<compile_context>
chip_gen: v7x
topology: tpu7x:2x2x1
jax: 0.10.0
libtpu: 0.0.40
codegen_flags: <defaults>
</compile_context>

<pallas_src>
import jax
import jax.numpy as jnp
import numpy as np
from jax import lax
from jax.experimental import pallas as pl
from jax.experimental.pallas import tpu as pltpu


# ---------------------------------------------------------------------------
# Kernel
# ---------------------------------------------------------------------------
def _make_up_kernel(C1, C2, Cmid, Cout, H1, W1, Hx, Wx):
    """Build the fused Up-block kernel for static shapes."""
    Cin = C1 + C2
    Hp, Wp = Hx + 2, Wx + 2      # conv1 output kept at "pad-1" size
    Hpp, Wpp = Hx + 4, Wx + 4    # "pad-2" input size

    # Offsets into the packed SMEM parameter vector.
    OFF_W1 = 0
    OFF_W2 = OFF_W1 + Cmid * Cin * 9
    OFF_S1 = OFF_W2 + Cout * Cmid * 9
    OFF_B1 = OFF_S1 + Cmid
    OFF_S2 = OFF_B1 + Cmid
    OFF_B2 = OFF_S2 + Cout
    n_params = OFF_B2 + Cout

    def kernel(params_ref, x1_ref, x2p_ref, ph_ref, pwt_ref, o_ref,
               x1p_ref, mid_ref):
        # ---- 1) bilinear 2x upsample of x1 (+ diff pad + conv zero-pad) -----
        #      x1p[c] = P_h @ x1[c] @ P_w^T  -> (Hpp, Wpp) with zero borders.
        ph = ph_ref[...].astype(jnp.float32)      # (Hpp, H1)
        pwt = pwt_ref[...].astype(jnp.float32)    # (W1, Wpp)
        for c in range(C1):
            t = jnp.dot(ph, x1_ref[c].astype(jnp.float32),
                        preferred_element_type=jnp.float32)          # (Hpp, W1)
            x1p_ref[c] = jnp.dot(t, pwt, preferred_element_type=jnp.float32)

        # Channel concat [x2, x1_up] is implicit: channel ic < C2 reads the
        # (pre-padded) x2 block, the rest read the freshly computed x1p scratch.
        def patch1(ic, dy, dx):
            if ic < C2:
                return x2p_ref[ic, dy:dy + Hp, dx:dx + Wp].astype(jnp.float32)
            return x1p_ref[ic - C2, dy:dy + Hp, dx:dx + Wp]

        # Interior mask: conv1 is evaluated over the padded (Hp, Wp) domain so
        # its output is already zero-padded for conv2; the border is forced to 0.
        row = lax.broadcasted_iota(jnp.int32, (Hp, Wp), 0)
        col = lax.broadcasted_iota(jnp.int32, (Hp, Wp), 1)
        interior = (row >= 1) & (row <= Hx) & (col >= 1) & (col <= Wx)

        # ---- 2) conv1 (3x3, pad 1) + BN1 + ReLU ------------------------------
        acc1 = [jnp.zeros((Hp, Wp), jnp.float32) for _ in range(Cmid)]
        for ic in range(Cin):
            for dy in range(3):
                for dx in range(3):
                    p = patch1(ic, dy, dx)
                    for oc in range(Cmid):
                        w = params_ref[OFF_W1 + (oc * Cin + ic) * 9 + dy * 3 + dx]
                        acc1[oc] = acc1[oc] + w * p
        for oc in range(Cmid):
            y = acc1[oc] * params_ref[OFF_S1 + oc] + params_ref[OFF_B1 + oc]
            y = jnp.maximum(y, 0.0)
            mid_ref[oc] = jnp.where(interior, y, 0.0)

        # ---- 3) conv2 (3x3, pad 1) + BN2 + ReLU ------------------------------
        acc2 = [jnp.zeros((Hx, Wx), jnp.float32) for _ in range(Cout)]
        for ic in range(Cmid):
            for dy in range(3):
                for dx in range(3):
                    p = mid_ref[ic, dy:dy + Hx, dx:dx + Wx]
                    for oc in range(Cout):
                        w = params_ref[OFF_W2 + (oc * Cmid + ic) * 9 + dy * 3 + dx]
                        acc2[oc] = acc2[oc] + w * p
        for oc in range(Cout):
            y = acc2[oc] * params_ref[OFF_S2 + oc] + params_ref[OFF_B2 + oc]
            o_ref[oc] = jnp.maximum(y, 0.0).astype(o_ref.dtype)

    return kernel, n_params


# ---------------------------------------------------------------------------
# Host-side helpers / wrapper
# ---------------------------------------------------------------------------
def _interp_matrix(n_in, n_out):
    """Row matrix for torch Upsample(mode='bilinear', align_corners=True)."""
    A = np.zeros((n_out, n_in), np.float32)
    if n_in == 1 or n_out == 1:
        A[:, 0] = 1.0
        return A
    scale = (n_in - 1) / (n_out - 1)
    for i in range(n_out):
        src = i * scale
        i0 = min(int(np.floor(src)), n_in - 1)
        i1 = min(i0 + 1, n_in - 1)
        t = src - i0
        A[i, i0] += 1.0 - t
        A[i, i1] += t
    return A


def up_pallas(x1, x2, w1, b1, g1, beta1, m1, v1, w2, b2, g2, beta2, m2, v2,
              *, eps=1e-5):
    """Forward of Up(bilinear=True) with inference-mode BatchNorm."""
    N, C1, H1, W1 = x1.shape
    N2, C2, Hx, Wx = x2.shape
    assert N == N2
    Cmid, Cin, kh, kw = w1.shape
    Cout = w2.shape[0]
    assert Cin == C1 + C2 and (kh, kw) == (3, 3) and w2.shape[1] == Cmid

    H2, W2 = 2 * H1, 2 * W1
    diffY, diffX = Hx - H2, Wx - W2
    assert diffY >= 0 and diffX >= 0, "x2 must be spatially >= upsampled x1"

    # Upsample matrices with the F.pad(diff) offset and the conv zero padding
    # (2 rows/cols each side) folded in as zero rows.
    Ah = _interp_matrix(H1, H2)                      # (H2, H1)
    Aw = _interp_matrix(W1, W2)                      # (W2, W1)
    Ph = np.zeros((Hx + 4, H1), np.float32)
    Ph[2 + diffY // 2: 2 + diffY // 2 + H2, :] = Ah
    Pw = np.zeros((Wx + 4, W1), np.float32)
    Pw[2 + diffX // 2: 2 + diffX // 2 + W2, :] = Aw
    ph = jnp.asarray(Ph)
    pwt = jnp.asarray(Pw.T)                          # (W1, Wx + 4)

    # x2 zero-padded by 2 so the kernel only does statically-offset reads.
    x2p = jnp.pad(x2, ((0, 0), (0, 0), (2, 2), (2, 2)))

    # Fold conv bias + inference BatchNorm into per-channel scale/shift.
    s1 = g1 / jnp.sqrt(v1 + eps)
    sh1 = beta1 + s1 * (b1 - m1)
    s2 = g2 / jnp.sqrt(v2 + eps)
    sh2 = beta2 + s2 * (b2 - m2)

    kernel, n_params = _make_up_kernel(C1, C2, Cmid, Cout, H1, W1, Hx, Wx)
    params = jnp.concatenate(
        [w1.reshape(-1), w2.reshape(-1), s1, sh1, s2, sh2]).astype(jnp.float32)
    assert params.shape[0] == n_params

    Hp, Wp = Hx + 2, Wx + 2
    Hpp, Wpp = Hx + 4, Wx + 4

    flops = int(N * (2 * C1 * (Hpp * H1 * W1 + Hpp * W1 * Wpp)
                     + 2 * 9 * Cin * Cmid * Hp * Wp
                     + 2 * 9 * Cmid * Cout * Hx * Wx))
    bytes_accessed = int(4 * (x1.size + x2p.size + N * Cout * Hx * Wx
                              + params.size + ph.size + pwt.size))

    grid_spec = pltpu.PrefetchScalarGridSpec(
        num_scalar_prefetch=1,                 # packed params -> SMEM
        grid=(N,),
        in_specs=[
            pl.BlockSpec((None, C1, H1, W1), lambda n, p: (n, 0, 0, 0)),
            pl.BlockSpec((None, C2, Hpp, Wpp), lambda n, p: (n, 0, 0, 0)),
            pl.BlockSpec((Hpp, H1), lambda n, p: (0, 0)),
            pl.BlockSpec((W1, Wpp), lambda n, p: (0, 0)),
        ],
        out_specs=pl.BlockSpec((None, Cout, Hx, Wx), lambda n, p: (n, 0, 0, 0)),
        scratch_shapes=[
            pltpu.VMEM((C1, Hpp, Wpp), jnp.float32),   # upsampled + padded x1
            pltpu.VMEM((Cmid, Hp, Wp), jnp.float32),   # conv1 output (pad-1)
        ],
    )

    return pl.pallas_call(
        kernel,
        out_shape=jax.ShapeDtypeStruct((N, Cout, Hx, Wx), x2.dtype),
        grid_spec=grid_spec,
        compiler_params=pltpu.CompilerParams(
            dimension_semantics=("parallel",),   # v7x: shard batch over 2 TCs
        ),
        cost_estimate=pl.CostEstimate(flops=flops, transcendentals=0,
                                      bytes_accessed=bytes_accessed),
    )(params, x1, x2p, ph, pwt)


# ---------------------------------------------------------------------------
# Pure-JAX reference
# ---------------------------------------------------------------------------
def _upsample_bilinear_align_corners(x, Ho, Wo):
    _, _, Hi, Wi = x.shape

    def coords(n_out, n_in):
        if n_out == 1 or n_in == 1:
            z = jnp.zeros((n_out,), jnp.int32)
            return z, z, jnp.zeros((n_out,), jnp.float32)
        src = jnp.arange(n_out, dtype=jnp.float32) * ((n_in - 1) / (n_out - 1))
        i0 = jnp.clip(jnp.floor(src).astype(jnp.int32), 0, n_in - 1)
        i1 = jnp.clip(i0 + 1, 0, n_in - 1)
        return i0, i1, src - i0.astype(jnp.float32)

    r0, r1, ty = coords(Ho, Hi)
    c0, c1, tx = coords(Wo, Wi)
    xr = (1.0 - ty)[None, None, :, None] * x[:, :, r0, :] \
        + ty[None, None, :, None] * x[:, :, r1, :]
    return (1.0 - tx)[None, None, None, :] * xr[:, :, :, c0] \
        + tx[None, None, None, :] * xr[:, :, :, c1]


def reference_up(x1, x2, w1, b1, g1, beta1, m1, v1, w2, b2, g2, beta2, m2, v2,
                 *, eps=1e-5):
    _, _, H1, W1 = x1.shape
    Hx, Wx = x2.shape[2], x2.shape[3]
    x1u = _upsample_bilinear_align_corners(x1, 2 * H1, 2 * W1)
    dY, dX = Hx - 2 * H1, Wx - 2 * W1
    x1u = jnp.pad(x1u, ((0, 0), (0, 0),
                        (dY // 2, dY - dY // 2), (dX // 2, dX - dX // 2)))
    x = jnp.concatenate([x2, x1u], axis=1)

    def conv_bn_relu(x, w, b, g, beta, m, v):
        y = lax.conv_general_dilated(
            x, w, window_strides=(1, 1), padding=((1, 1), (1, 1)),
            dimension_numbers=("NCHW", "OIHW", "NCHW"))
        y = y + b[None, :, None, None]
        y = (y - m[None, :, None, None]) \
            * (g / jnp.sqrt(v + eps))[None, :, None, None] \
            + beta[None, :, None, None]
        return jnp.maximum(y, 0.0)

    y = conv_bn_relu(x, w1, b1, g1, beta1, m1, v1)
    return conv_bn_relu(y, w2, b2, g2, beta2, m2, v2)


# ---------------------------------------------------------------------------
# Test harness
# ---------------------------------------------------------------------------
if __name__ == "__main__":
    key = jax.random.PRNGKey(0)
    ks = jax.random.split(key, 14)

    # Up(in_channels=8, out_channels=4, bilinear=True):
    #   x1: (N, 4, 8, 8) -> upsampled to 16x16 ; x2: (N, 4, 16, 16)
    #   DoubleConv(8, 4, mid_channels=4)
    N = 2
    C1, H1, W1 = 4, 8, 8
    C2, Hx, Wx = 4, 16, 16
    in_ch = C1 + C2          # 8
    out_ch = 4
    mid_ch = in_ch // 2      # 4

    x1 = jax.random.normal(ks[0], (N, C1, H1, W1), jnp.float32)
    x2 = jax.random.normal(ks[1], (N, C2, Hx, Wx), jnp.float32)

    def conv_init(kk, kb, cout, cin):
        bound = 1.0 / np.sqrt(cin * 9)
        w = jax.random.uniform(kk, (cout, cin, 3, 3), jnp.float32, -bound, bound)
        b = jax.random.uniform(kb, (cout,), jnp.float32, -bound, bound)
        return w, b

    w1, b1 = conv_init(ks[2], ks[3], mid_ch, in_ch)
    w2, b2 = conv_init(ks[4], ks[5], out_ch, mid_ch)
    # Inference-mode BatchNorm params / running statistics.
    g1 = jax.random.uniform(ks[6], (mid_ch,), jnp.float32, 0.5, 1.5)
    beta1 = 0.1 * jax.random.normal(ks[7], (mid_ch,), jnp.float32)
    m1 = 0.1 * jax.random.normal(ks[8], (mid_ch,), jnp.float32)
    v1 = jax.random.uniform(ks[9], (mid_ch,), jnp.float32, 0.5, 1.5)
    g2 = jax.random.uniform(ks[10], (out_ch,), jnp.float32, 0.5, 1.5)
    beta2 = 0.1 * jax.random.normal(ks[11], (out_ch,), jnp.float32)
    m2 = 0.1 * jax.random.normal(ks[12], (out_ch,), jnp.float32)
    v2 = jax.random.uniform(ks[13], (out_ch,), jnp.float32, 0.5, 1.5)

    out = up_pallas(x1, x2, w1, b1, g1, beta1, m1, v1,
                    w2, b2, g2, beta2, m2, v2)
    out = jax.block_until_ready(out)

    ref = reference_up(x1, x2, w1, b1, g1, beta1, m1, v1,
                       w2, b2, g2, beta2, m2, v2)
    assert out.shape == (N, out_ch, Hx, Wx)
    err = float(jnp.max(jnp.abs(out - ref)))
    assert err < 1e-4, f"mismatch vs reference: max abs err = {err}"
    print("KERNEL_OK")
</pallas_src>

<mosaic_0001>
module attributes {stable_mosaic.version = 11 : i64} {
  func.func @kernel(%arg0: i32, %arg1: memref<448xf32, #tpu.memory_space<smem>>, %arg2: memref<1x4x8x8xf32, #tpu.memory_space<vmem>>, %arg3: memref<1x4x20x20xf32, #tpu.memory_space<vmem>>, %arg4: memref<20x8xf32, #tpu.memory_space<vmem>>, %arg5: memref<8x20xf32, #tpu.memory_space<vmem>>, %arg6: memref<1x4x16x16xf32, #tpu.memory_space<vmem>>, %arg7: memref<4x20x20xf32, #tpu.memory_space<vmem>>, %arg8: memref<4x18x18xf32, #tpu.memory_space<vmem>>) attributes {dimension_semantics = [#tpu.dimension_semantics<parallel>], iteration_bounds = array<i64: 2>, scalar_prefetch = 1 : i64, scratch_operands = 2 : i64, tpu.core_type = #tpu.core_type<tc>, window_params = [{transform_indices = @transform_0, window_bounds = array<i64: 1, 4, 8, 8>}, {transform_indices = @transform_1, window_bounds = array<i64: 1, 4, 20, 20>}, {pipeline_mode = #tpu.pipeline_mode<synchronous>, transform_indices = @transform_2, window_bounds = array<i64: 20, 8>}, {pipeline_mode = #tpu.pipeline_mode<synchronous>, transform_indices = @transform_3, window_bounds = array<i64: 8, 20>}, {transform_indices = @transform_4, window_bounds = array<i64: 1, 4, 16, 16>}]} {
    %c0 = arith.constant 0 : index
    %c0_0 = arith.constant 0 : index
    %0 = vector.load %arg4[%c0, %c0_0] : memref<20x8xf32, #tpu.memory_space<vmem>>, vector<20x8xf32>
    %c0_1 = arith.constant 0 : index
    %c0_2 = arith.constant 0 : index
    %1 = vector.load %arg5[%c0_1, %c0_2] : memref<8x20xf32, #tpu.memory_space<vmem>>, vector<8x20xf32>
    %c0_3 = arith.constant 0 : index
    %c0_4 = arith.constant 0 : index
    %c0_5 = arith.constant 0 : index
    %c0_6 = arith.constant 0 : index
    %2 = vector.load %arg2[%c0_3, %c0_4, %c0_5, %c0_6] : memref<1x4x8x8xf32, #tpu.memory_space<vmem>>, vector<1x1x8x8xf32>
    %3 = vector.shape_cast %2 : vector<1x1x8x8xf32> to vector<8x8xf32>
    %cst = arith.constant dense<0.000000e+00> : vector<20x8xf32>
    %4 = tpu.matmul %0, %3, %cst {dimension_numbers = #tpu.dot_dimension_numbers<[1], [0], [0], [1], [0, 0, 1, 1], [], []>} : vector<20x8xf32>, vector<8x8xf32>, vector<20x8xf32> -> vector<20x8xf32>
    %cst_7 = arith.constant dense<0.000000e+00> : vector<20x20xf32>
    %5 = tpu.matmul %4, %1, %cst_7 {dimension_numbers = #tpu.dot_dimension_numbers<[1], [0], [0], [1], [0, 0, 1, 1], [], []>} : vector<20x8xf32>, vector<8x20xf32>, vector<20x20xf32> -> vector<20x20xf32>
    %c0_8 = arith.constant 0 : index
    %c0_9 = arith.constant 0 : index
    %c0_10 = arith.constant 0 : index
    %6 = vector.load %arg7[%c0_8, %c0_9, %c0_10] : memref<4x20x20xf32, #tpu.memory_space<vmem>>, vector<1x20x20xf32>
    %7 = vector.shape_cast %6 : vector<1x20x20xf32> to vector<20x20xf32>
    %8 = vector.shape_cast %5 : vector<20x20xf32> to vector<1x20x20xf32>
    tpu.vector_store %arg7[%c0_8, %c0_9, %c0_10], %8 {strides = array<i32>} : memref<4x20x20xf32, #tpu.memory_space<vmem>>, vector<1x20x20xf32>,
    %c0_11 = arith.constant 0 : index
    %c1 = arith.constant 1 : index
    %c0_12 = arith.constant 0 : index
    %c0_13 = arith.constant 0 : index
    %9 = vector.load %arg2[%c0_11, %c1, %c0_12, %c0_13] : memref<1x4x8x8xf32, #tpu.memory_space<vmem>>, vector<1x1x8x8xf32>
    %10 = vector.shape_cast %9 : vector<1x1x8x8xf32> to vector<8x8xf32>
    %cst_14 = arith.constant dense<0.000000e+00> : vector<20x8xf32>
    %11 = tpu.matmul %0, %10, %cst_14 {dimension_numbers = #tpu.dot_dimension_numbers<[1], [0], [0], [1], [0, 0, 1, 1], [], []>} : vector<20x8xf32>, vector<8x8xf32>, vector<20x8xf32> -> vector<20x8xf32>
    %cst_15 = arith.constant dense<0.000000e+00> : vector<20x20xf32>
    %12 = tpu.matmul %11, %1, %cst_15 {dimension_numbers = #tpu.dot_dimension_numbers<[1], [0], [0], [1], [0, 0, 1, 1], [], []>} : vector<20x8xf32>, vector<8x20xf32>, vector<20x20xf32> -> vector<20x20xf32>
    %c1_16 = arith.constant 1 : index
    %c0_17 = arith.constant 0 : index
    %c0_18 = arith.constant 0 : index
    %13 = vector.load %arg7[%c1_16, %c0_17, %c0_18] : memref<4x20x20xf32, #tpu.memory_space<vmem>>, vector<1x20x20xf32>
    %14 = vector.shape_cast %13 : vector<1x20x20xf32> to vector<20x20xf32>
    %15 = vector.shape_cast %12 : vector<20x20xf32> to vector<1x20x20xf32>
    tpu.vector_store %arg7[%c1_16, %c0_17, %c0_18], %15 {strides = array<i32>} : memref<4x20x20xf32, #tpu.memory_space<vmem>>, vector<1x20x20xf32>,
    %c0_19 = arith.constant 0 : index
    %c2 = arith.constant 2 : index
    %c0_20 = arith.constant 0 : index
    %c0_21 = arith.constant 0 : index
    %16 = vector.load %arg2[%c0_19, %c2, %c0_20, %c0_21] : memref<1x4x8x8xf32, #tpu.memory_space<vmem>>, vector<1x1x8x8xf32>
    %17 = vector.shape_cast %16 : vector<1x1x8x8xf32> to vector<8x8xf32>
    %cst_22 = arith.constant dense<0.000000e+00> : vector<20x8xf32>
    %18 = tpu.matmul %0, %17, %cst_22 {dimension_numbers = #tpu.dot_dimension_numbers<[1], [0], [0], [1], [0, 0, 1, 1], [], []>} : vector<20x8xf32>, vector<8x8xf32>, vector<20x8xf32> -> vector<20x8xf32>
    %cst_23 = arith.constant dense<0.000000e+00> : vector<20x20xf32>
    %19 = tpu.matmul %18, %1, %cst_23 {dimension_numbers = #tpu.dot_dimension_numbers<[1], [0], [0], [1], [0, 0, 1, 1], [], []>} : vector<20x8xf32>, vector<8x20xf32>, vector<20x20xf32> -> vector<20x20xf32>
    %c2_24 = arith.constant 2 : index
    %c0_25 = arith.constant 0 : index
    %c0_26 = arith.constant 0 : index
    %20 = vector.load %arg7[%c2_24, %c0_25, %c0_26] : memref<4x20x20xf32, #tpu.memory_space<vmem>>, vector<1x20x20xf32>
    %21 = vector.shape_cast %20 : vector<1x20x20xf32> to vector<20x20xf32>
    %22 = vector.shape_cast %19 : vector<20x20xf32> to vector<1x20x20xf32>
    tpu.vector_store %arg7[%c2_24, %c0_25, %c0_26], %22 {strides = array<i32>} : memref<4x20x20xf32, #tpu.memory_space<vmem>>, vector<1x20x20xf32>,
    %c0_27 = arith.constant 0 : index
    %c3 = arith.constant 3 : index
    %c0_28 = arith.constant 0 : index
    %c0_29 = arith.constant 0 : index
    %23 = vector.load %arg2[%c0_27, %c3, %c0_28, %c0_29] : memref<1x4x8x8xf32, #tpu.memory_space<vmem>>, vector<1x1x8x8xf32>
    %24 = vector.shape_cast %23 : vector<1x1x8x8xf32> to vector<8x8xf32>
    %cst_30 = arith.constant dense<0.000000e+00> : vector<20x8xf32>
    %25 = tpu.matmul %0, %24, %cst_30 {dimension_numbers = #tpu.dot_dimension_numbers<[1], [0], [0], [1], [0, 0, 1, 1], [], []>} : vector<20x8xf32>, vector<8x8xf32>, vector<20x8xf32> -> vector<20x8xf32>
    %cst_31 = arith.constant dense<0.000000e+00> : vector<20x20xf32>
    %26 = tpu.matmul %25, %1, %cst_31 {dimension_numbers = #tpu.dot_dimension_numbers<[1], [0], [0], [1], [0, 0, 1, 1], [], []>} : vector<20x8xf32>, vector<8x20xf32>, vector<20x20xf32> -> vector<20x20xf32>
    %c3_32 = arith.constant 3 : index
    %c0_33 = arith.constant 0 : index
    %c0_34 = arith.constant 0 : index
    %27 = vector.load %arg7[%c3_32, %c0_33, %c0_34] : memref<4x20x20xf32, #tpu.memory_space<vmem>>, vector<1x20x20xf32>
    %28 = vector.shape_cast %27 : vector<1x20x20xf32> to vector<20x20xf32>
    %29 = vector.shape_cast %26 : vector<20x20xf32> to vector<1x20x20xf32>
    tpu.vector_store %arg7[%c3_32, %c0_33, %c0_34], %29 {strides = array<i32>} : memref<4x20x20xf32, #tpu.memory_space<vmem>>, vector<1x20x20xf32>,
    %30 = tpu.iota {dimensions = array<i32: 0>} : vector<18x18xi32>
    %31 = tpu.iota {dimensions = array<i32: 1>} : vector<18x18xi32>
    %c1_i32 = arith.constant 1 : i32
    %32 = vector.broadcast %c1_i32 : i32 to vector<18x18xi32>
    %33 = arith.cmpi sge, %30, %32 : vector<18x18xi32>
    %c16_i32 = arith.constant 16 : i32
    %34 = vector.broadcast %c16_i32 : i32 to vector<18x18xi32>
    %35 = arith.cmpi sle, %30, %34 : vector<18x18xi32>
    %36 = arith.andi %33, %35 : vector<18x18xi1>
    %c1_i32_35 = arith.constant 1 : i32
    %37 = vector.broadcast %c1_i32_35 : i32 to vector<18x18xi32>
    %38 = arith.cmpi sge, %31, %37 : vector<18x18xi32>
    %39 = arith.andi %36, %38 : vector<18x18xi1>
    %c16_i32_36 = arith.constant 16 : i32
    %40 = vector.broadcast %c16_i32_36 : i32 to vector<18x18xi32>
    %41 = arith.cmpi sle, %31, %40 : vector<18x18xi32>
    %42 = arith.andi %39, %41 : vector<18x18xi1>
    %cst_37 = arith.constant 0.000000e+00 : f32
    %43 = vector.broadcast %cst_37 : f32 to vector<18x18xf32>
    %cst_38 = arith.constant 0.000000e+00 : f32
    %44 = vector.broadcast %cst_38 : f32 to vector<18x18xf32>
    %cst_39 = arith.constant 0.000000e+00 : f32
    %45 = vector.broadcast %cst_39 : f32 to vector<18x18xf32>
    %cst_40 = arith.constant 0.000000e+00 : f32
    %46 = vector.broadcast %cst_40 : f32 to vector<18x18xf32>
    %c0_41 = arith.constant 0 : index
    %c0_42 = arith.constant 0 : index
    %c0_43 = arith.constant 0 : index
    %c0_44 = arith.constant 0 : index
    %47 = vector.load %arg3[%c0_41, %c0_42, %c0_43, %c0_44] : memref<1x4x20x20xf32, #tpu.memory_space<vmem>>, vector<1x1x18x18xf32>
    %48 = vector.shape_cast %47 : vector<1x1x18x18xf32> to vector<18x18xf32>
    %c0_45 = arith.constant 0 : index
    %49 = memref.load %arg1[%c0_45] : memref<448xf32, #tpu.memory_space<smem>>
    %50 = vector.broadcast %49 : f32 to vector<18x18xf32>
    %51 = arith.mulf %50, %48 : vector<18x18xf32>
    %52 = arith.addf %43, %51 : vector<18x18xf32>
    %c72 = arith.constant 72 : index
    %53 = memref.load %arg1[%c72] : memref<448xf32, #tpu.memory_space<smem>>
    %54 = vector.broadcast %53 : f32 to vector<18x18xf32>
    %55 = arith.mulf %54, %48 : vector<18x18xf32>
    %56 = arith.addf %44, %55 : vector<18x18xf32>
    %c144 = arith.constant 144 : index
    %57 = memref.load %arg1[%c144] : memref<448xf32, #tpu.memory_space<smem>>
    %58 = vector.broadcast %57 : f32 to vector<18x18xf32>
    %59 = arith.mulf %58, %48 : vector<18x18xf32>
    %60 = arith.addf %45, %59 : vector<18x18xf32>
    %c216 = arith.constant 216 : index
    %61 = memref.load %arg1[%c216] : memref<448xf32, #tpu.memory_space<smem>>
    %62 = vector.broadcast %61 : f32 to vector<18x18xf32>
    %63 = arith.mulf %62, %48 : vector<18x18xf32>
    %64 = arith.addf %46, %63 : vector<18x18xf32>
    %c0_46 = arith.constant 0 : index
    %c0_47 = arith.constant 0 : index
    %c0_48 = arith.constant 0 : index
    %c1_49 = arith.constant 1 : index
    %65 = vector.load %arg3[%c0_46, %c0_47, %c0_48, %c1_49] : memref<1x4x20x20xf32, #tpu.memory_space<vmem>>, vector<1x1x18x18xf32>
    %66 = vector.shape_cast %65 : vector<1x1x18x18xf32> to vector<18x18xf32>
    %c1_50 = arith.constant 1 : index
    %67 = memref.load %arg1[%c1_50] : memref<448xf32, #tpu.memory_space<smem>>
    %68 = vector.broadcast %67 : f32 to vector<18x18xf32>
    %69 = arith.mulf %68, %66 : vector<18x18xf32>
    %70 = arith.addf %52, %69 : vector<18x18xf32>
    %c73 = arith.constant 73 : index
    %71 = memref.load %arg1[%c73] : memref<448xf32, #tpu.memory_space<smem>>
    %72 = vector.broadcast %71 : f32 to vector<18x18xf32>
    %73 = arith.mulf %72, %66 : vector<18x18xf32>
    %74 = arith.addf %56, %73 : vector<18x18xf32>
    %c145 = arith.constant 145 : index
    %75 = memref.load %arg1[%c145] : memref<448xf32, #tpu.memory_space<smem>>
    %76 = vector.broadcast %75 : f32 to vector<18x18xf32>
    %77 = arith.mulf %76, %66 : vector<18x18xf32>
    %78 = arith.addf %60, %77 : vector<18x18xf32>
    %c217 = arith.constant 217 : index
    %79 = memref.load %arg1[%c217] : memref<448xf32, #tpu.memory_space<smem>>
    %80 = vector.broadcast %79 : f32 to vector<18x18xf32>
    %81 = arith.mulf %80, %66 : vector<18x18xf32>
    %82 = arith.addf %64, %81 : vector<18x18xf32>
    %c0_51 = arith.constant 0 : index
    %c0_52 = arith.constant 0 : index
    %c0_53 = arith.constant 0 : index
    %c2_54 = arith.constant 2 : index
    %83 = vector.load %arg3[%c0_51, %c0_52, %c0_53, %c2_54] : memref<1x4x20x20xf32, #tpu.memory_space<vmem>>, vector<1x1x18x18xf32>
    %84 = vector.shape_cast %83 : vector<1x1x18x18xf32> to vector<18x18xf32>
    %c2_55 = arith.constant 2 : index
    %85 = memref.load %arg1[%c2_55] : memref<448xf32, #tpu.memory_space<smem>>
    %86 = vector.broadcast %85 : f32 to vector<18x18xf32>
    %87 = arith.mulf %86, %84 : vector<18x18xf32>
    %88 = arith.addf %70, %87 : vector<18x18xf32>
    %c74 = arith.constant 74 : index
    %89 = memref.load %arg1[%c74] : memref<448xf32, #tpu.memory_space<smem>>
    %90 = vector.broadcast %89 : f32 to vector<18x18xf32>
    %91 = arith.mulf %90, %84 : vector<18x18xf32>
    %92 = arith.addf %74, %91 : vector<18x18xf32>
    %c146 = arith.constant 146 : index
    %93 = memref.load %arg1[%c146] : memref<448xf32, #tpu.memory_space<smem>>
    %94 = vector.broadcast %93 : f32 to vector<18x18xf32>
    %95 = arith.mulf %94, %84 : vector<18x18xf32>
    %96 = arith.addf %78, %95 : vector<18x18xf32>
    %c218 = arith.constant 218 : index
    %97 = memref.load %arg1[%c218] : memref<448xf32, #tpu.memory_space<smem>>
    %98 = vector.broadcast %97 : f32 to vector<18x18xf32>
    %99 = arith.mulf %98, %84 : vector<18x18xf32>
    %100 = arith.addf %82, %99 : vector<18x18xf32>
    %c0_56 = arith.constant 0 : index
    %c0_57 = arith.constant 0 : index
    %c1_58 = arith.constant 1 : index
    %c0_59 = arith.constant 0 : index
    %101 = vector.load %arg3[%c0_56, %c0_57, %c1_58, %c0_59] : memref<1x4x20x20xf32, #tpu.memory_space<vmem>>, vector<1x1x18x18xf32>
    %102 = vector.shape_cast %101 : vector<1x1x18x18xf32> to vector<18x18xf32>
    %c3_60 = arith.constant 3 : index
    %103 = memref.load %arg1[%c3_60] : memref<448xf32, #tpu.memory_space<smem>>
    %104 = vector.broadcast %103 : f32 to vector<18x18xf32>
    %105 = arith.mulf %104, %102 : vector<18x18xf32>
    %106 = arith.addf %88, %105 : vector<18x18xf32>
    %c75 = arith.constant 75 : index
    %107 = memref.load %arg1[%c75] : memref<448xf32, #tpu.memory_space<smem>>
    %108 = vector.broadcast %107 : f32 to vector<18x18xf32>
    %109 = arith.mulf %108, %102 : vector<18x18xf32>
    %110 = arith.addf %92, %109 : vector<18x18xf32>
    %c147 = arith.constant 147 : index
    %111 = memref.load %arg1[%c147] : memref<448xf32, #tpu.memory_space<smem>>
    %112 = vector.broadcast %111 : f32 to vector<18x18xf32>
    %113 = arith.mulf %112, %102 : vector<18x18xf32>
    %114 = arith.addf %96, %113 : vector<18x18xf32>
    %c219 = arith.constant 219 : index
    %115 = memref.load %arg1[%c219] : memref<448xf32, #tpu.memory_space<smem>>
    %116 = vector.broadcast %115 : f32 to vector<18x18xf32>
    %117 = arith.mulf %116, %102 : vector<18x18xf32>
    %118 = arith.addf %100, %117 : vector<18x18xf32>
    %c0_61 = arith.constant 0 : index
    %c0_62 = arith.constant 0 : index
    %c1_63 = arith.constant 1 : index
    %c1_64 = arith.constant 1 : index
    %119 = vector.load %arg3[%c0_61, %c0_62, %c1_63, %c1_64] : memref<1x4x20x20xf32, #tpu.memory_space<vmem>>, vector<1x1x18x18xf32>
    %120 = vector.shape_cast %119 : vector<1x1x18x18xf32> to vector<18x18xf32>
    %c4 = arith.constant 4 : index
    %121 = memref.load %arg1[%c4] : memref<448xf32, #tpu.memory_space<smem>>
    %122 = vector.broadcast %121 : f32 to vector<18x18xf32>
    %123 = arith.mulf %122, %120 : vector<18x18xf32>
    %124 = arith.addf %106, %123 : vector<18x18xf32>
    %c76 = arith.constant 76 : index
    %125 = memref.load %arg1[%c76] : memref<448xf32, #tpu.memory_space<smem>>
    %126 = vector.broadcast %125 : f32 to vector<18x18xf32>
    %127 = arith.mulf %126, %120 : vector<18x18xf32>
    %128 = arith.addf %110, %127 : vector<18x18xf32>
    %c148 = arith.constant 148 : index
    %129 = memref.load %arg1[%c148] : memref<448xf32, #tpu.memory_space<smem>>
    %130 = vector.broadcast %129 : f32 to vector<18x18xf32>
    %131 = arith.mulf %130, %120 : vector<18x18xf32>
    %132 = arith.addf %114, %131 : vector<18x18xf32>
    %c220 = arith.constant 220 : index
    %133 = memref.load %arg1[%c220] : memref<448xf32, #tpu.memory_space<smem>>
    %134 = vector.broadcast %133 : f32 to vector<18x18xf32>
    %135 = arith.mulf %134, %120 : vector<18x18xf32>
    %136 = arith.addf %118, %135 : vector<18x18xf32>
    %c0_65 = arith.constant 0 : index
    %c0_66 = arith.constant 0 : index
    %c1_67 = arith.constant 1 : index
    %c2_68 = arith.constant 2 : index
    %137 = vector.load %arg3[%c0_65, %c0_66, %c1_67, %c2_68] : memref<1x4x20x20xf32, #tpu.memory_space<vmem>>, vector<1x1x18x18xf32>
    %138 = vector.shape_cast %137 : vector<1x1x18x18xf32> to vector<18x18xf32>
    %c5 = arith.constant 5 : index
    %139 = memref.load %arg1[%c5] : memref<448xf32, #tpu.memory_space<smem>>
    %140 = vector.broadcast %139 : f32 to vector<18x18xf32>
    %141 = arith.mulf %140, %138 : vector<18x18xf32>
    %142 = arith.addf %124, %141 : vector<18x18xf32>
    %c77 = arith.constant 77 : index
    %143 = memref.load %arg1[%c77] : memref<448xf32, #tpu.memory_space<smem>>
    %144 = vector.broadcast %143 : f32 to vector<18x18xf32>
    %145 = arith.mulf %144, %138 : vector<18x18xf32>
    %146 = arith.addf %128, %145 : vector<18x18xf32>
    %c149 = arith.constant 149 : index
    %147 = memref.load %arg1[%c149] : memref<448xf32, #tpu.memory_space<smem>>
    %148 = vector.broadcast %147 : f32 to vector<18x18xf32>
    %149 = arith.mulf %148, %138 : vector<18x18xf32>
    %150 = arith.addf %132, %149 : vector<18x18xf32>
    %c221 = arith.constant 221 : index
    %151 = memref.load %arg1[%c221] : memref<448xf32, #tpu.memory_space<smem>>
    %152 = vector.broadcast %151 : f32 to vector<18x18xf32>
    %153 = arith.mulf %152, %138 : vector<18x18xf32>
    %154 = arith.addf %136, %153 : vector<18x18xf32>
    %c0_69 = arith.constant 0 : index
    %c0_70 = arith.constant 0 : index
    %c2_71 = arith.constant 2 : index
    %c0_72 = arith.constant 0 : index
    %155 = vector.load %arg3[%c0_69, %c0_70, %c2_71, %c0_72] : memref<1x4x20x20xf32, #tpu.memory_space<vmem>>, vector<1x1x18x18xf32>
    %156 = vector.shape_cast %155 : vector<1x1x18x18xf32> to vector<18x18xf32>
    %c6 = arith.constant 6 : index
    %157 = memref.load %arg1[%c6] : memref<448xf32, #tpu.memory_space<smem>>
    %158 = vector.broadcast %157 : f32 to vector<18x18xf32>
    %159 = arith.mulf %158, %156 : vector<18x18xf32>
    %160 = arith.addf %142, %159 : vector<18x18xf32>
    %c78 = arith.constant 78 : index
    %161 = memref.load %arg1[%c78] : memref<448xf32, #tpu.memory_space<smem>>
    %162 = vector.broadcast %161 : f32 to vector<18x18xf32>
    %163 = arith.mulf %162, %156 : vector<18x18xf32>
    %164 = arith.addf %146, %163 : vector<18x18xf32>
    %c150 = arith.constant 150 : index
    %165 = memref.load %arg1[%c150] : memref<448xf32, #tpu.memory_space<smem>>
    %166 = vector.broadcast %165 : f32 to vector<18x18xf32>
    %167 = arith.mulf %166, %156 : vector<18x18xf32>
    %168 = arith.addf %150, %167 : vector<18x18xf32>
    %c222 = arith.constant 222 : index
    %169 = memref.load %arg1[%c222] : memref<448xf32, #tpu.memory_space<smem>>
    %170 = vector.broadcast %169 : f32 to vector<18x18xf32>
    %171 = arith.mulf %170, %156 : vector<18x18xf32>
    %172 = arith.addf %154, %171 : vector<18x18xf32>
    %c0_73 = arith.constant 0 : index
    %c0_74 = arith.constant 0 : index
    %c2_75 = arith.constant 2 : index
    %c1_76 = arith.constant 1 : index
    %173 = vector.load %arg3[%c0_73, %c0_74, %c2_75, %c1_76] : memref<1x4x20x20xf32, #tpu.memory_space<vmem>>, vector<1x1x18x18xf32>
    %174 = vector.shape_cast %173 : vector<1x1x18x18xf32> to vector<18x18xf32>
    %c7 = arith.constant 7 : index
    %175 = memref.load %arg1[%c7] : memref<448xf32, #tpu.memory_space<smem>>
    %176 = vector.broadcast %175 : f32 to vector<18x18xf32>
    %177 = arith.mulf %176, %174 : vector<18x18xf32>
    %178 = arith.addf %160, %177 : vector<18x18xf32>
    %c79 = arith.constant 79 : index
    %179 = memref.load %arg1[%c79] : memref<448xf32, #tpu.memory_space<smem>>
    %180 = vector.broadcast %179 : f32 to vector<18x18xf32>
    %181 = arith.mulf %180, %174 : vector<18x18xf32>
    %182 = arith.addf %164, %181 : vector<18x18xf32>
    %c151 = arith.constant 151 : index
    %183 = memref.load %arg1[%c151] : memref<448xf32, #tpu.memory_space<smem>>
    %184 = vector.broadcast %183 : f32 to vector<18x18xf32>
    %185 = arith.mulf %184, %174 : vector<18x18xf32>
    %186 = arith.addf %168, %185 : vector<18x18xf32>
    %c223 = arith.constant 223 : index
    %187 = memref.load %arg1[%c223] : memref<448xf32, #tpu.memory_space<smem>>
    %188 = vector.broadcast %187 : f32 to vector<18x18xf32>
    %189 = arith.mulf %188, %174 : vector<18x18xf32>
    %190 = arith.addf %172, %189 : vector<18x18xf32>
    %c0_77 = arith.constant 0 : index
    %c0_78 = arith.constant 0 : index
    %c2_79 = arith.constant 2 : index
    %c2_80 = arith.constant 2 : index
    %191 = vector.load %arg3[%c0_77, %c0_78, %c2_79, %c2_80] : memref<1x4x20x20xf32, #tpu.memory_space<vmem>>, vector<1x1x18x18xf32>
    %192 = vector.shape_cast %191 : vector<1x1x18x18xf32> to vector<18x18xf32>
    %c8 = arith.constant 8 : index
    %193 = memref.load %arg1[%c8] : memref<448xf32, #tpu.memory_space<smem>>
    %194 = vector.broadcast %193 : f32 to vector<18x18xf32>
    %195 = arith.mulf %194, %192 : vector<18x18xf32>
    %196 = arith.addf %178, %195 : vector<18x18xf32>
    %c80 = arith.constant 80 : index
    %197 = memref.load %arg1[%c80] : memref<448xf32, #tpu.memory_space<smem>>
    %198 = vector.broadcast %197 : f32 to vector<18x18xf32>
    %199 = arith.mulf %198, %192 : vector<18x18xf32>
    %200 = arith.addf %182, %199 : vector<18x18xf32>
    %c152 = arith.constant 152 : index
    %201 = memref.load %arg1[%c152] : memref<448xf32, #tpu.memory_space<smem>>
    %202 = vector.broadcast %201 : f32 to vector<18x18xf32>
    %203 = arith.mulf %202, %192 : vector<18x18xf32>
    %204 = arith.addf %186, %203 : vector<18x18xf32>
    %c224 = arith.constant 224 : index
    %205 = memref.load %arg1[%c224] : memref<448xf32, #tpu.memory_space<smem>>
    %206 = vector.broadcast %205 : f32 to vector<18x18xf32>
    %207 = arith.mulf %206, %192 : vector<18x18xf32>
    %208 = arith.addf %190, %207 : vector<18x18xf32>
    %c0_81 = arith.constant 0 : index
    %c1_82 = arith.constant 1 : index
    %c0_83 = arith.constant 0 : index
    %c0_84 = arith.constant 0 : index
    %209 = vector.load %arg3[%c0_81, %c1_82, %c0_83, %c0_84] : memref<1x4x20x20xf32, #tpu.memory_space<vmem>>, vector<1x1x18x18xf32>
    %210 = vector.shape_cast %209 : vector<1x1x18x18xf32> to vector<18x18xf32>
    %c9 = arith.constant 9 : index
    %211 = memref.load %arg1[%c9] : memref<448xf32, #tpu.memory_space<smem>>
    %212 = vector.broadcast %211 : f32 to vector<18x18xf32>
    %213 = arith.mulf %212, %210 : vector<18x18xf32>
    %214 = arith.addf %196, %213 : vector<18x18xf32>
    %c81 = arith.constant 81 : index
    %215 = memref.load %arg1[%c81] : memref<448xf32, #tpu.memory_space<smem>>
    %216 = vector.broadcast %215 : f32 to vector<18x18xf32>
    %217 = arith.mulf %216, %210 : vector<18x18xf32>
    %218 = arith.addf %200, %217 : vector<18x18xf32>
    %c153 = arith.constant 153 : index
    %219 = memref.load %arg1[%c153] : memref<448xf32, #tpu.memory_space<smem>>
    %220 = vector.broadcast %219 : f32 to vector<18x18xf32>
    %221 = arith.mulf %220, %210 : vector<18x18xf32>
    %222 = arith.addf %204, %221 : vector<18x18xf32>
    %c225 = arith.constant 225 : index
    %223 = memref.load %arg1[%c225] : memref<448xf32, #tpu.memory_space<smem>>
    %224 = vector.broadcast %223 : f32 to vector<18x18xf32>
    %225 = arith.mulf %224, %210 : vector<18x18xf32>
    %226 = arith.addf %208, %225 : vector<18x18xf32>
    %c0_85 = arith.constant 0 : index
    %c1_86 = arith.constant 1 : index
    %c0_87 = arith.constant 0 : index
    %c1_88 = arith.constant 1 : index
    %227 = vector.load %arg3[%c0_85, %c1_86, %c0_87, %c1_88] : memref<1x4x20x20xf32, #tpu.memory_space<vmem>>, vector<1x1x18x18xf32>
    %228 = vector.shape_cast %227 : vector<1x1x18x18xf32> to vector<18x18xf32>
    %c10 = arith.constant 10 : index
    %229 = memref.load %arg1[%c10] : memref<448xf32, #tpu.memory_space<smem>>
    %230 = vector.broadcast %229 : f32 to vector<18x18xf32>
    %231 = arith.mulf %230, %228 : vector<18x18xf32>
    %232 = arith.addf %214, %231 : vector<18x18xf32>
    %c82 = arith.constant 82 : index
    %233 = memref.load %arg1[%c82] : memref<448xf32, #tpu.memory_space<smem>>
    %234 = vector.broadcast %233 : f32 to vector<18x18xf32>
    %235 = arith.mulf %234, %228 : vector<18x18xf32>
    %236 = arith.addf %218, %235 : vector<18x18xf32>
    %c154 = arith.constant 154 : index
    %237 = memref.load %arg1[%c154] : memref<448xf32, #tpu.memory_space<smem>>
    %238 = vector.broadcast %237 : f32 to vector<18x18xf32>
    %239 = arith.mulf %238, %228 : vector<18x18xf32>
    %240 = arith.addf %222, %239 : vector<18x18xf32>
    %c226 = arith.constant 226 : index
    %241 = memref.load %arg1[%c226] : memref<448xf32, #tpu.memory_space<smem>>
    %242 = vector.broadcast %241 : f32 to vector<18x18xf32>
    %243 = arith.mulf %242, %228 : vector<18x18xf32>
    %244 = arith.addf %226, %243 : vector<18x18xf32>
    %c0_89 = arith.constant 0 : index
    %c1_90 = arith.constant 1 : index
    %c0_91 = arith.constant 0 : index
    %c2_92 = arith.constant 2 : index
    %245 = vector.load %arg3[%c0_89, %c1_90, %c0_91, %c2_92] : memref<1x4x20x20xf32, #tpu.memory_space<vmem>>, vector<1x1x18x18xf32>
    %246 = vector.shape_cast %245 : vector<1x1x18x18xf32> to vector<18x18xf32>
    %c11 = arith.constant 11 : index
    %247 = memref.load %arg1[%c11] : memref<448xf32, #tpu.memory_space<smem>>
    %248 = vector.broadcast %247 : f32 to vector<18x18xf32>
    %249 = arith.mulf %248, %246 : vector<18x18xf32>
    %250 = arith.addf %232, %249 : vector<18x18xf32>
    %c83 = arith.constant 83 : index
    %251 = memref.load %arg1[%c83] : memref<448xf32, #tpu.memory_space<smem>>
    %252 = vector.broadcast %251 : f32 to vector<18x18xf32>
    %253 = arith.mulf %252, %246 : vector<18x18xf32>
    %254 = arith.addf %236, %253 : vector<18x18xf32>
    %c155 = arith.constant 155 : index
    %255 = memref.load %arg1[%c155] : memref<448xf32, #tpu.memory_space<smem>>
    %256 = vector.broadcast %255 : f32 to vector<18x18xf32>
    %257 = arith.mulf %256, %246 : vector<18x18xf32>
    %258 = arith.addf %240, %257 : vector<18x18xf32>
    %c227 = arith.constant 227 : index
    %259 = memref.load %arg1[%c227] : memref<448xf32, #tpu.memory_space<smem>>
    %260 = vector.broadcast %259 : f32 to vector<18x18xf32>
    %261 = arith.mulf %260, %246 : vector<18x18xf32>
    %262 = arith.addf %244, %261 : vector<18x18xf32>
    %c0_93 = arith.constant 0 : index
    %c1_94 = arith.constant 1 : index
    %c1_95 = arith.constant 1 : index
    %c0_96 = arith.constant 0 : index
    %263 = vector.load %arg3[%c0_93, %c1_94, %c1_95, %c0_96] : memref<1x4x20x20xf32, #tpu.memory_space<vmem>>, vector<1x1x18x18xf32>
    %264 = vector.shape_cast %263 : vector<1x1x18x18xf32> to vector<18x18xf32>
    %c12 = arith.constant 12 : index
    %265 = memref.load %arg1[%c12] : memref<448xf32, #tpu.memory_space<smem>>
    %266 = vector.broadcast %265 : f32 to vector<18x18xf32>
    %267 = arith.mulf %266, %264 : vector<18x18xf32>
    %268 = arith.addf %250, %267 : vector<18x18xf32>
    %c84 = arith.constant 84 : index
    %269 = memref.load %arg1[%c84] : memref<448xf32, #tpu.memory_space<smem>>
    %270 = vector.broadcast %269 : f32 to vector<18x18xf32>
    %271 = arith.mulf %270, %264 : vector<18x18xf32>
    %272 = arith.addf %254, %271 : vector<18x18xf32>
    %c156 = arith.constant 156 : index
    %273 = memref.load %arg1[%c156] : memref<448xf32, #tpu.memory_space<smem>>
    %274 = vector.broadcast %273 : f32 to vector<18x18xf32>
    %275 = arith.mulf %274, %264 : vector<18x18xf32>
    %276 = arith.addf %258, %275 : vector<18x18xf32>
    %c228 = arith.constant 228 : index
    %277 = memref.load %arg1[%c228] : memref<448xf32, #tpu.memory_space<smem>>
    %278 = vector.broadcast %277 : f32 to vector<18x18xf32>
    %279 = arith.mulf %278, %264 : vector<18x18xf32>
    %280 = arith.addf %262, %279 : vector<18x18xf32>
    %c0_97 = arith.constant 0 : index
    %c1_98 = arith.constant 1 : index
    %c1_99 = arith.constant 1 : index
    %c1_100 = arith.constant 1 : index
    %281 = vector.load %arg3[%c0_97, %c1_98, %c1_99, %c1_100] : memref<1x4x20x20xf32, #tpu.memory_space<vmem>>, vector<1x1x18x18xf32>
    %282 = vector.shape_cast %281 : vector<1x1x18x18xf32> to vector<18x18xf32>
    %c13 = arith.constant 13 : index
    %283 = memref.load %arg1[%c13] : memref<448xf32, #tpu.memory_space<smem>>
    %284 = vector.broadcast %283 : f32 to vector<18x18xf32>
    %285 = arith.mulf %284, %282 : vector<18x18xf32>
    %286 = arith.addf %268, %285 : vector<18x18xf32>
    %c85 = arith.constant 85 : index
    %287 = memref.load %arg1[%c85] : memref<448xf32, #tpu.memory_space<smem>>
    %288 = vector.broadcast %287 : f32 to vector<18x18xf32>
    %289 = arith.mulf %288, %282 : vector<18x18xf32>
    %290 = arith.addf %272, %289 : vector<18x18xf32>
    %c157 = arith.constant 157 : index
    %291 = memref.load %arg1[%c157] : memref<448xf32, #tpu.memory_space<smem>>
    %292 = vector.broadcast %291 : f32 to vector<18x18xf32>
    %293 = arith.mulf %292, %282 : vector<18x18xf32>
    %294 = arith.addf %276, %293 : vector<18x18xf32>
    %c229 = arith.constant 229 : index
    %295 = memref.load %arg1[%c229] : memref<448xf32, #tpu.memory_space<smem>>
    %296 = vector.broadcast %295 : f32 to vector<18x18xf32>
    %297 = arith.mulf %296, %282 : vector<18x18xf32>
    %298 = arith.addf %280, %297 : vector<18x18xf32>
    %c0_101 = arith.constant 0 : index
    %c1_102 = arith.constant 1 : index
    %c1_103 = arith.constant 1 : index
    %c2_104 = arith.constant 2 : index
    %299 = vector.load %arg3[%c0_101, %c1_102, %c1_103, %c2_104] : memref<1x4x20x20xf32, #tpu.memory_space<vmem>>, vector<1x1x18x18xf32>
    %300 = vector.shape_cast %299 : vector<1x1x18x18xf32> to vector<18x18xf32>
    %c14 = arith.constant 14 : index
    %301 = memref.load %arg1[%c14] : memref<448xf32, #tpu.memory_space<smem>>
    %302 = vector.broadcast %301 : f32 to vector<18x18xf32>
    %303 = arith.mulf %302, %300 : vector<18x18xf32>
    %304 = arith.addf %286, %303 : vector<18x18xf32>
    %c86 = arith.constant 86 : index
    %305 = memref.load %arg1[%c86] : memref<448xf32, #tpu.memory_space<smem>>
    %306 = vector.broadcast %305 : f32 to vector<18x18xf32>
    %307 = arith.mulf %306, %300 : vector<18x18xf32>
    %308 = arith.addf %290, %307 : vector<18x18xf32>
    %c158 = arith.constant 158 : index
    %309 = memref.load %arg1[%c158] : memref<448xf32, #tpu.memory_space<smem>>
    %310 = vector.broadcast %309 : f32 to vector<18x18xf32>
    %311 = arith.mulf %310, %300 : vector<18x18xf32>
    %312 = arith.addf %294, %311 : vector<18x18xf32>
    %c230 = arith.constant 230 : index
    %313 = memref.load %arg1[%c230] : memref<448xf32, #tpu.memory_space<smem>>
    %314 = vector.broadcast %313 : f32 to vector<18x18xf32>
    %315 = arith.mulf %314, %300 : vector<18x18xf32>
    %316 = arith.addf %298, %315 : vector<18x18xf32>
    %c0_105 = arith.constant 0 : index
    %c1_106 = arith.constant 1 : index
    %c2_107 = arith.constant 2 : index
    %c0_108 = arith.constant 0 : index
    %317 = vector.load %arg3[%c0_105, %c1_106, %c2_107, %c0_108] : memref<1x4x20x20xf32, #tpu.memory_space<vmem>>, vector<1x1x18x18xf32>
    %318 = vector.shape_cast %317 : vector<1x1x18x18xf32> to vector<18x18xf32>
    %c15 = arith.constant 15 : index
    %319 = memref.load %arg1[%c15] : memref<448xf32, #tpu.memory_space<smem>>
    %320 = vector.broadcast %319 : f32 to vector<18x18xf32>
    %321 = arith.mulf %320, %318 : vector<18x18xf32>
    %322 = arith.addf %304, %321 : vector<18x18xf32>
    %c87 = arith.constant 87 : index
    %323 = memref.load %arg1[%c87] : memref<448xf32, #tpu.memory_space<smem>>
    %324 = vector.broadcast %323 : f32 to vector<18x18xf32>
    %325 = arith.mulf %324, %318 : vector<18x18xf32>
    %326 = arith.addf %308, %325 : vector<18x18xf32>
    %c159 = arith.constant 159 : index
    %327 = memref.load %arg1[%c159] : memref<448xf32, #tpu.memory_space<smem>>
    %328 = vector.broadcast %327 : f32 to vector<18x18xf32>
    %329 = arith.mulf %328, %318 : vector<18x18xf32>
    %330 = arith.addf %312, %329 : vector<18x18xf32>
    %c231 = arith.constant 231 : index
    %331 = memref.load %arg1[%c231] : memref<448xf32, #tpu.memory_space<smem>>
    %332 = vector.broadcast %331 : f32 to vector<18x18xf32>
    %333 = arith.mulf %332, %318 : vector<18x18xf32>
    %334 = arith.addf %316, %333 : vector<18x18xf32>
    %c0_109 = arith.constant 0 : index
    %c1_110 = arith.constant 1 : index
    %c2_111 = arith.constant 2 : index
    %c1_112 = arith.constant 1 : index
    %335 = vector.load %arg3[%c0_109, %c1_110, %c2_111, %c1_112] : memref<1x4x20x20xf32, #tpu.memory_space<vmem>>, vector<1x1x18x18xf32>
    %336 = vector.shape_cast %335 : vector<1x1x18x18xf32> to vector<18x18xf32>
    %c16 = arith.constant 16 : index
    %337 = memref.load %arg1[%c16] : memref<448xf32, #tpu.memory_space<smem>>
    %338 = vector.broadcast %337 : f32 to vector<18x18xf32>
    %339 = arith.mulf %338, %336 : vector<18x18xf32>
    %340 = arith.addf %322, %339 : vector<18x18xf32>
    %c88 = arith.constant 88 : index
    %341 = memref.load %arg1[%c88] : memref<448xf32, #tpu.memory_space<smem>>
    %342 = vector.broadcast %341 : f32 to vector<18x18xf32>
    %343 = arith.mulf %342, %336 : vector<18x18xf32>
    %344 = arith.addf %326, %343 : vector<18x18xf32>
    %c160 = arith.constant 160 : index
    %345 = memref.load %arg1[%c160] : memref<448xf32, #tpu.memory_space<smem>>
    %346 = vector.broadcast %345 : f32 to vector<18x18xf32>
    %347 = arith.mulf %346, %336 : vector<18x18xf32>
    %348 = arith.addf %330, %347 : vector<18x18xf32>
    %c232 = arith.constant 232 : index
    %349 = memref.load %arg1[%c232] : memref<448xf32, #tpu.memory_space<smem>>
    %350 = vector.broadcast %349 : f32 to vector<18x18xf32>
    %351 = arith.mulf %350, %336 : vector<18x18xf32>
    %352 = arith.addf %334, %351 : vector<18x18xf32>
    %c0_113 = arith.constant 0 : index
    %c1_114 = arith.constant 1 : index
    %c2_115 = arith.constant 2 : index
    %c2_116 = arith.constant 2 : index
    %353 = vector.load %arg3[%c0_113, %c1_114, %c2_115, %c2_116] : memref<1x4x20x20xf32, #tpu.memory_space<vmem>>, vector<1x1x18x18xf32>
    %354 = vector.shape_cast %353 : vector<1x1x18x18xf32> to vector<18x18xf32>
    %c17 = arith.constant 17 : index
    %355 = memref.load %arg1[%c17] : memref<448xf32, #tpu.memory_space<smem>>
    %356 = vector.broadcast %355 : f32 to vector<18x18xf32>
    %357 = arith.mulf %356, %354 : vector<18x18xf32>
    %358 = arith.addf %340, %357 : vector<18x18xf32>
    %c89 = arith.constant 89 : index
    %359 = memref.load %arg1[%c89] : memref<448xf32, #tpu.memory_space<smem>>
    %360 = vector.broadcast %359 : f32 to vector<18x18xf32>
    %361 = arith.mulf %360, %354 : vector<18x18xf32>
    %362 = arith.addf %344, %361 : vector<18x18xf32>
    %c161 = arith.constant 161 : index
    %363 = memref.load %arg1[%c161] : memref<448xf32, #tpu.memory_space<smem>>
    %364 = vector.broadcast %363 : f32 to vector<18x18xf32>
    %365 = arith.mulf %364, %354 : vector<18x18xf32>
    %366 = arith.addf %348, %365 : vector<18x18xf32>
    %c233 = arith.constant 233 : index
    %367 = memref.load %arg1[%c233] : memref<448xf32, #tpu.memory_space<smem>>
    %368 = vector.broadcast %367 : f32 to vector<18x18xf32>
    %369 = arith.mulf %368, %354 : vector<18x18xf32>
    %370 = arith.addf %352, %369 : vector<18x18xf32>
    %c0_117 = arith.constant 0 : index
    %c2_118 = arith.constant 2 : index
    %c0_119 = arith.constant 0 : index
    %c0_120 = arith.constant 0 : index
    %371 = vector.load %arg3[%c0_117, %c2_118, %c0_119, %c0_120] : memref<1x4x20x20xf32, #tpu.memory_space<vmem>>, vector<1x1x18x18xf32>
    %372 = vector.shape_cast %371 : vector<1x1x18x18xf32> to vector<18x18xf32>
    %c18 = arith.constant 18 : index
    %373 = memref.load %arg1[%c18] : memref<448xf32, #tpu.memory_space<smem>>
    %374 = vector.broadcast %373 : f32 to vector<18x18xf32>
    %375 = arith.mulf %374, %372 : vector<18x18xf32>
    %376 = arith.addf %358, %375 : vector<18x18xf32>
    %c90 = arith.constant 90 : index
    %377 = memref.load %arg1[%c90] : memref<448xf32, #tpu.memory_space<smem>>
    %378 = vector.broadcast %377 : f32 to vector<18x18xf32>
    %379 = arith.mulf %378, %372 : vector<18x18xf32>
    %380 = arith.addf %362, %379 : vector<18x18xf32>
    %c162 = arith.constant 162 : index
    %381 = memref.load %arg1[%c162] : memref<448xf32, #tpu.memory_space<smem>>
    %382 = vector.broadcast %381 : f32 to vector<18x18xf32>
    %383 = arith.mulf %382, %372 : vector<18x18xf32>
    %384 = arith.addf %366, %383 : vector<18x18xf32>
    %c234 = arith.constant 234 : index
    %385 = memref.load %arg1[%c234] : memref<448xf32, #tpu.memory_space<smem>>
    %386 = vector.broadcast %385 : f32 to vector<18x18xf32>
    %387 = arith.mulf %386, %372 : vector<18x18xf32>
    %388 = arith.addf %370, %387 : vector<18x18xf32>
    %c0_121 = arith.constant 0 : index
    %c2_122 = arith.constant 2 : index
    %c0_123 = arith.constant 0 : index
    %c1_124 = arith.constant 1 : index
    %389 = vector.load %arg3[%c0_121, %c2_122, %c0_123, %c1_124] : memref<1x4x20x20xf32, #tpu.memory_space<vmem>>, vector<1x1x18x18xf32>
    %390 = vector.shape_cast %389 : vector<1x1x18x18xf32> to vector<18x18xf32>
    %c19 = arith.constant 19 : index
    %391 = memref.load %arg1[%c19] : memref<448xf32, #tpu.memory_space<smem>>
    %392 = vector.broadcast %391 : f32 to vector<18x18xf32>
    %393 = arith.mulf %392, %390 : vector<18x18xf32>
    %394 = arith.addf %376, %393 : vector<18x18xf32>
    %c91 = arith.constant 91 : index
    %395 = memref.load %arg1[%c91] : memref<448xf32, #tpu.memory_space<smem>>
    %396 = vector.broadcast %395 : f32 to vector<18x18xf32>
    %397 = arith.mulf %396, %390 : vector<18x18xf32>
    %398 = arith.addf %380, %397 : vector<18x18xf32>
    %c163 = arith.constant 163 : index
    %399 = memref.load %arg1[%c163] : memref<448xf32, #tpu.memory_space<smem>>
    %400 = vector.broadcast %399 : f32 to vector<18x18xf32>
    %401 = arith.mulf %400, %390 : vector<18x18xf32>
    %402 = arith.addf %384, %401 : vector<18x18xf32>
    %c235 = arith.constant 235 : index
    %403 = memref.load %arg1[%c235] : memref<448xf32, #tpu.memory_space<smem>>
    %404 = vector.broadcast %403 : f32 to vector<18x18xf32>
    %405 = arith.mulf %404, %390 : vector<18x18xf32>
    %406 = arith.addf %388, %405 : vector<18x18xf32>
    %c0_125 = arith.constant 0 : index
    %c2_126 = arith.constant 2 : index
    %c0_127 = arith.constant 0 : index
    %c2_128 = arith.constant 2 : index
    %407 = vector.load %arg3[%c0_125, %c2_126, %c0_127, %c2_128] : memref<1x4x20x20xf32, #tpu.memory_space<vmem>>, vector<1x1x18x18xf32>
    %408 = vector.shape_cast %407 : vector<1x1x18x18xf32> to vector<18x18xf32>
    %c20 = arith.constant 20 : index
    %409 = memref.load %arg1[%c20] : memref<448xf32, #tpu.memory_space<smem>>
    %410 = vector.broadcast %409 : f32 to vector<18x18xf32>
    %411 = arith.mulf %410, %408 : vector<18x18xf32>
    %412 = arith.addf %394, %411 : vector<18x18xf32>
    %c92 = arith.constant 92 : index
    %413 = memref.load %arg1[%c92] : memref<448xf32, #tpu.memory_space<smem>>
    %414 = vector.broadcast %413 : f32 to vector<18x18xf32>
    %415 = arith.mulf %414, %408 : vector<18x18xf32>
    %416 = arith.addf %398, %415 : vector<18x18xf32>
    %c164 = arith.constant 164 : index
    %417 = memref.load %arg1[%c164] : memref<448xf32, #tpu.memory_space<smem>>
    %418 = vector.broadcast %417 : f32 to vector<18x18xf32>
    %419 = arith.mulf %418, %408 : vector<18x18xf32>
    %420 = arith.addf %402, %419 : vector<18x18xf32>
    %c236 = arith.constant 236 : index
    %421 = memref.load %arg1[%c236] : memref<448xf32, #tpu.memory_space<smem>>
    %422 = vector.broadcast %421 : f32 to vector<18x18xf32>
    %423 = arith.mulf %422, %408 : vector<18x18xf32>
    %424 = arith.addf %406, %423 : vector<18x18xf32>
    %c0_129 = arith.constant 0 : index
    %c2_130 = arith.constant 2 : index
    %c1_131 = arith.constant 1 : index
    %c0_132 = arith.constant 0 : index
    %425 = vector.load %arg3[%c0_129, %c2_130, %c1_131, %c0_132] : memref<1x4x20x20xf32, #tpu.memory_space<vmem>>, vector<1x1x18x18xf32>
    %426 = vector.shape_cast %425 : vector<1x1x18x18xf32> to vector<18x18xf32>
    %c21 = arith.constant 21 : index
    %427 = memref.load %arg1[%c21] : memref<448xf32, #tpu.memory_space<smem>>
    %428 = vector.broadcast %427 : f32 to vector<18x18xf32>
    %429 = arith.mulf %428, %426 : vector<18x18xf32>
    %430 = arith.addf %412, %429 : vector<18x18xf32>
    %c93 = arith.constant 93 : index
    %431 = memref.load %arg1[%c93] : memref<448xf32, #tpu.memory_space<smem>>
    %432 = vector.broadcast %431 : f32 to vector<18x18xf32>
    %433 = arith.mulf %432, %426 : vector<18x18xf32>
    %434 = arith.addf %416, %433 : vector<18x18xf32>
    %c165 = arith.constant 165 : index
    %435 = memref.load %arg1[%c165] : memref<448xf32, #tpu.memory_space<smem>>
    %436 = vector.broadcast %435 : f32 to vector<18x18xf32>
    %437 = arith.mulf %436, %426 : vector<18x18xf32>
    %438 = arith.addf %420, %437 : vector<18x18xf32>
    %c237 = arith.constant 237 : index
    %439 = memref.load %arg1[%c237] : memref<448xf32, #tpu.memory_space<smem>>
    %440 = vector.broadcast %439 : f32 to vector<18x18xf32>
    %441 = arith.mulf %440, %426 : vector<18x18xf32>
    %442 = arith.addf %424, %441 : vector<18x18xf32>
    %c0_133 = arith.constant 0 : index
    %c2_134 = arith.constant 2 : index
    %c1_135 = arith.constant 1 : index
    %c1_136 = arith.constant 1 : index
    %443 = vector.load %arg3[%c0_133, %c2_134, %c1_135, %c1_136] : memref<1x4x20x20xf32, #tpu.memory_space<vmem>>, vector<1x1x18x18xf32>
    %444 = vector.shape_cast %443 : vector<1x1x18x18xf32> to vector<18x18xf32>
    %c22 = arith.constant 22 : index
    %445 = memref.load %arg1[%c22] : memref<448xf32, #tpu.memory_space<smem>>
    %446 = vector.broadcast %445 : f32 to vector<18x18xf32>
    %447 = arith.mulf %446, %444 : vector<18x18xf32>
    %448 = arith.addf %430, %447 : vector<18x18xf32>
    %c94 = arith.constant 94 : index
    %449 = memref.load %arg1[%c94] : memref<448xf32, #tpu.memory_space<smem>>
    %450 = vector.broadcast %449 : f32 to vector<18x18xf32>
    %451 = arith.mulf %450, %444 : vector<18x18xf32>
    %452 = arith.addf %434, %451 : vector<18x18xf32>
    %c166 = arith.constant 166 : index
    %453 = memref.load %arg1[%c166] : memref<448xf32, #tpu.memory_space<smem>>
    %454 = vector.broadcast %453 : f32 to vector<18x18xf32>
    %455 = arith.mulf %454, %444 : vector<18x18xf32>
    %456 = arith.addf %438, %455 : vector<18x18xf32>
    %c238 = arith.constant 238 : index
    %457 = memref.load %arg1[%c238] : memref<448xf32, #tpu.memory_space<smem>>
    %458 = vector.broadcast %457 : f32 to vector<18x18xf32>
    %459 = arith.mulf %458, %444 : vector<18x18xf32>
    %460 = arith.addf %442, %459 : vector<18x18xf32>
    %c0_137 = arith.constant 0 : index
    %c2_138 = arith.constant 2 : index
    %c1_139 = arith.constant 1 : index
    %c2_140 = arith.constant 2 : index
    %461 = vector.load %arg3[%c0_137, %c2_138, %c1_139, %c2_140] : memref<1x4x20x20xf32, #tpu.memory_space<vmem>>, vector<1x1x18x18xf32>
    %462 = vector.shape_cast %461 : vector<1x1x18x18xf32> to vector<18x18xf32>
    %c23 = arith.constant 23 : index
    %463 = memref.load %arg1[%c23] : memref<448xf32, #tpu.memory_space<smem>>
    %464 = vector.broadcast %463 : f32 to vector<18x18xf32>
    %465 = arith.mulf %464, %462 : vector<18x18xf32>
    %466 = arith.addf %448, %465 : vector<18x18xf32>
    %c95 = arith.constant 95 : index
    %467 = memref.load %arg1[%c95] : memref<448xf32, #tpu.memory_space<smem>>
    %468 = vector.broadcast %467 : f32 to vector<18x18xf32>
    %469 = arith.mulf %468, %462 : vector<18x18xf32>
    %470 = arith.addf %452, %469 : vector<18x18xf32>
    %c167 = arith.constant 167 : index
    %471 = memref.load %arg1[%c167] : memref<448xf32, #tpu.memory_space<smem>>
    %472 = vector.broadcast %471 : f32 to vector<18x18xf32>
    %473 = arith.mulf %472, %462 : vector<18x18xf32>
    %474 = arith.addf %456, %473 : vector<18x18xf32>
    %c239 = arith.constant 239 : index
    %475 = memref.load %arg1[%c239] : memref<448xf32, #tpu.memory_space<smem>>
    %476 = vector.broadcast %475 : f32 to vector<18x18xf32>
    %477 = arith.mulf %476, %462 : vector<18x18xf32>
    %478 = arith.addf %460, %477 : vector<18x18xf32>
    %c0_141 = arith.constant 0 : index
    %c2_142 = arith.constant 2 : index
    %c2_143 = arith.constant 2 : index
    %c0_144 = arith.constant 0 : index
    %479 = vector.load %arg3[%c0_141, %c2_142, %c2_143, %c0_144] : memref<1x4x20x20xf32, #tpu.memory_space<vmem>>, vector<1x1x18x18xf32>
    %480 = vector.shape_cast %479 : vector<1x1x18x18xf32> to vector<18x18xf32>
    %c24 = arith.constant 24 : index
    %481 = memref.load %arg1[%c24] : memref<448xf32, #tpu.memory_space<smem>>
    %482 = vector.broadcast %481 : f32 to vector<18x18xf32>
    %483 = arith.mulf %482, %480 : vector<18x18xf32>
    %484 = arith.addf %466, %483 : vector<18x18xf32>
    %c96 = arith.constant 96 : index
    %485 = memref.load %arg1[%c96] : memref<448xf32, #tpu.memory_space<smem>>
    %486 = vector.broadcast %485 : f32 to vector<18x18xf32>
    %487 = arith.mulf %486, %480 : vector<18x18xf32>
    %488 = arith.addf %470, %487 : vector<18x18xf32>
    %c168 = arith.constant 168 : index
    %489 = memref.load %arg1[%c168] : memref<448xf32, #tpu.memory_space<smem>>
    %490 = vector.broadcast %489 : f32 to vector<18x18xf32>
    %491 = arith.mulf %490, %480 : vector<18x18xf32>
    %492 = arith.addf %474, %491 : vector<18x18xf32>
    %c240 = arith.constant 240 : index
    %493 = memref.load %arg1[%c240] : memref<448xf32, #tpu.memory_space<smem>>
    %494 = vector.broadcast %493 : f32 to vector<18x18xf32>
    %495 = arith.mulf %494, %480 : vector<18x18xf32>
    %496 = arith.addf %478, %495 : vector<18x18xf32>
    %c0_145 = arith.constant 0 : index
    %c2_146 = arith.constant 2 : index
    %c2_147 = arith.constant 2 : index
    %c1_148 = arith.constant 1 : index
    %497 = vector.load %arg3[%c0_145, %c2_146, %c2_147, %c1_148] : memref<1x4x20x20xf32, #tpu.memory_space<vmem>>, vector<1x1x18x18xf32>
    %498 = vector.shape_cast %497 : vector<1x1x18x18xf32> to vector<18x18xf32>
    %c25 = arith.constant 25 : index
    %499 = memref.load %arg1[%c25] : memref<448xf32, #tpu.memory_space<smem>>
    %500 = vector.broadcast %499 : f32 to vector<18x18xf32>
    %501 = arith.mulf %500, %498 : vector<18x18xf32>
    %502 = arith.addf %484, %501 : vector<18x18xf32>
    %c97 = arith.constant 97 : index
    %503 = memref.load %arg1[%c97] : memref<448xf32, #tpu.memory_space<smem>>
    %504 = vector.broadcast %503 : f32 to vector<18x18xf32>
    %505 = arith.mulf %504, %498 : vector<18x18xf32>
    %506 = arith.addf %488, %505 : vector<18x18xf32>
    %c169 = arith.constant 169 : index
    %507 = memref.load %arg1[%c169] : memref<448xf32, #tpu.memory_space<smem>>
    %508 = vector.broadcast %507 : f32 to vector<18x18xf32>
    %509 = arith.mulf %508, %498 : vector<18x18xf32>
    %510 = arith.addf %492, %509 : vector<18x18xf32>
    %c241 = arith.constant 241 : index
    %511 = memref.load %arg1[%c241] : memref<448xf32, #tpu.memory_space<smem>>
    %512 = vector.broadcast %511 : f32 to vector<18x18xf32>
    %513 = arith.mulf %512, %498 : vector<18x18xf32>
    %514 = arith.addf %496, %513 : vector<18x18xf32>
    %c0_149 = arith.constant 0 : index
    %c2_150 = arith.constant 2 : index
    %c2_151 = arith.constant 2 : index
    %c2_152 = arith.constant 2 : index
    %515 = vector.load %arg3[%c0_149, %c2_150, %c2_151, %c2_152] : memref<1x4x20x20xf32, #tpu.memory_space<vmem>>, vector<1x1x18x18xf32>
    %516 = vector.shape_cast %515 : vector<1x1x18x18xf32> to vector<18x18xf32>
    %c26 = arith.constant 26 : index
    %517 = memref.load %arg1[%c26] : memref<448xf32, #tpu.memory_space<smem>>
    %518 = vector.broadcast %517 : f32 to vector<18x18xf32>
    %519 = arith.mulf %518, %516 : vector<18x18xf32>
    %520 = arith.addf %502, %519 : vector<18x18xf32>
    %c98 = arith.constant 98 : index
    %521 = memref.load %arg1[%c98] : memref<448xf32, #tpu.memory_space<smem>>
    %522 = vector.broadcast %521 : f32 to vector<18x18xf32>
    %523 = arith.mulf %522, %516 : vector<18x18xf32>
    %524 = arith.addf %506, %523 : vector<18x18xf32>
    %c170 = arith.constant 170 : index
    %525 = memref.load %arg1[%c170] : memref<448xf32, #tpu.memory_space<smem>>
    %526 = vector.broadcast %525 : f32 to vector<18x18xf32>
    %527 = arith.mulf %526, %516 : vector<18x18xf32>
    %528 = arith.addf %510, %527 : vector<18x18xf32>
    %c242 = arith.constant 242 : index
    %529 = memref.load %arg1[%c242] : memref<448xf32, #tpu.memory_space<smem>>
    %530 = vector.broadcast %529 : f32 to vector<18x18xf32>
    %531 = arith.mulf %530, %516 : vector<18x18xf32>
    %532 = arith.addf %514, %531 : vector<18x18xf32>
    %c0_153 = arith.constant 0 : index
    %c3_154 = arith.constant 3 : index
    %c0_155 = arith.constant 0 : index
    %c0_156 = arith.constant 0 : index
    %533 = vector.load %arg3[%c0_153, %c3_154, %c0_155, %c0_156] : memref<1x4x20x20xf32, #tpu.memory_space<vmem>>, vector<1x1x18x18xf32>
    %534 = vector.shape_cast %533 : vector<1x1x18x18xf32> to vector<18x18xf32>
    %c27 = arith.constant 27 : index
    %535 = memref.load %arg1[%c27] : memref<448xf32, #tpu.memory_space<smem>>
    %536 = vector.broadcast %535 : f32 to vector<18x18xf32>
    %537 = arith.mulf %536, %534 : vector<18x18xf32>
    %538 = arith.addf %520, %537 : vector<18x18xf32>
    %c99 = arith.constant 99 : index
    %539 = memref.load %arg1[%c99] : memref<448xf32, #tpu.memory_space<smem>>
    %540 = vector.broadcast %539 : f32 to vector<18x18xf32>
    %541 = arith.mulf %540, %534 : vector<18x18xf32>
    %542 = arith.addf %524, %541 : vector<18x18xf32>
    %c171 = arith.constant 171 : index
    %543 = memref.load %arg1[%c171] : memref<448xf32, #tpu.memory_space<smem>>
    %544 = vector.broadcast %543 : f32 to vector<18x18xf32>
    %545 = arith.mulf %544, %534 : vector<18x18xf32>
    %546 = arith.addf %528, %545 : vector<18x18xf32>
    %c243 = arith.constant 243 : index
    %547 = memref.load %arg1[%c243] : memref<448xf32, #tpu.memory_space<smem>>
    %548 = vector.broadcast %547 : f32 to vector<18x18xf32>
    %549 = arith.mulf %548, %534 : vector<18x18xf32>
    %550 = arith.addf %532, %549 : vector<18x18xf32>
    %c0_157 = arith.constant 0 : index
    %c3_158 = arith.constant 3 : index
    %c0_159 = arith.constant 0 : index
    %c1_160 = arith.constant 1 : index
    %551 = vector.load %arg3[%c0_157, %c3_158, %c0_159, %c1_160] : memref<1x4x20x20xf32, #tpu.memory_space<vmem>>, vector<1x1x18x18xf32>
    %552 = vector.shape_cast %551 : vector<1x1x18x18xf32> to vector<18x18xf32>
    %c28 = arith.constant 28 : index
    %553 = memref.load %arg1[%c28] : memref<448xf32, #tpu.memory_space<smem>>
    %554 = vector.broadcast %553 : f32 to vector<18x18xf32>
    %555 = arith.mulf %554, %552 : vector<18x18xf32>
    %556 = arith.addf %538, %555 : vector<18x18xf32>
    %c100 = arith.constant 100 : index
    %557 = memref.load %arg1[%c100] : memref<448xf32, #tpu.memory_space<smem>>
    %558 = vector.broadcast %557 : f32 to vector<18x18xf32>
    %559 = arith.mulf %558, %552 : vector<18x18xf32>
    %560 = arith.addf %542, %559 : vector<18x18xf32>
    %c172 = arith.constant 172 : index
    %561 = memref.load %arg1[%c172] : memref<448xf32, #tpu.memory_space<smem>>
    %562 = vector.broadcast %561 : f32 to vector<18x18xf32>
    %563 = arith.mulf %562, %552 : vector<18x18xf32>
    %564 = arith.addf %546, %563 : vector<18x18xf32>
    %c244 = arith.constant 244 : index
    %565 = memref.load %arg1[%c244] : memref<448xf32, #tpu.memory_space<smem>>
    %566 = vector.broadcast %565 : f32 to vector<18x18xf32>
    %567 = arith.mulf %566, %552 : vector<18x18xf32>
    %568 = arith.addf %550, %567 : vector<18x18xf32>
    %c0_161 = arith.constant 0 : index
    %c3_162 = arith.constant 3 : index
    %c0_163 = arith.constant 0 : index
    %c2_164 = arith.constant 2 : index
    %569 = vector.load %arg3[%c0_161, %c3_162, %c0_163, %c2_164] : memref<1x4x20x20xf32, #tpu.memory_space<vmem>>, vector<1x1x18x18xf32>
    %570 = vector.shape_cast %569 : vector<1x1x18x18xf32> to vector<18x18xf32>
    %c29 = arith.constant 29 : index
    %571 = memref.load %arg1[%c29] : memref<448xf32, #tpu.memory_space<smem>>
    %572 = vector.broadcast %571 : f32 to vector<18x18xf32>
    %573 = arith.mulf %572, %570 : vector<18x18xf32>
    %574 = arith.addf %556, %573 : vector<18x18xf32>
    %c101 = arith.constant 101 : index
    %575 = memref.load %arg1[%c101] : memref<448xf32, #tpu.memory_space<smem>>
    %576 = vector.broadcast %575 : f32 to vector<18x18xf32>
    %577 = arith.mulf %576, %570 : vector<18x18xf32>
    %578 = arith.addf %560, %577 : vector<18x18xf32>
    %c173 = arith.constant 173 : index
    %579 = memref.load %arg1[%c173] : memref<448xf32, #tpu.memory_space<smem>>
    %580 = vector.broadcast %579 : f32 to vector<18x18xf32>
    %581 = arith.mulf %580, %570 : vector<18x18xf32>
    %582 = arith.addf %564, %581 : vector<18x18xf32>
    %c245 = arith.constant 245 : index
    %583 = memref.load %arg1[%c245] : memref<448xf32, #tpu.memory_space<smem>>
    %584 = vector.broadcast %583 : f32 to vector<18x18xf32>
    %585 = arith.mulf %584, %570 : vector<18x18xf32>
    %586 = arith.addf %568, %585 : vector<18x18xf32>
    %c0_165 = arith.constant 0 : index
    %c3_166 = arith.constant 3 : index
    %c1_167 = arith.constant 1 : index
    %c0_168 = arith.constant 0 : index
    %587 = vector.load %arg3[%c0_165, %c3_166, %c1_167, %c0_168] : memref<1x4x20x20xf32, #tpu.memory_space<vmem>>, vector<1x1x18x18xf32>
    %588 = vector.shape_cast %587 : vector<1x1x18x18xf32> to vector<18x18xf32>
    %c30 = arith.constant 30 : index
    %589 = memref.load %arg1[%c30] : memref<448xf32, #tpu.memory_space<smem>>
    %590 = vector.broadcast %589 : f32 to vector<18x18xf32>
    %591 = arith.mulf %590, %588 : vector<18x18xf32>
    %592 = arith.addf %574, %591 : vector<18x18xf32>
    %c102 = arith.constant 102 : index
    %593 = memref.load %arg1[%c102] : memref<448xf32, #tpu.memory_space<smem>>
    %594 = vector.broadcast %593 : f32 to vector<18x18xf32>
    %595 = arith.mulf %594, %588 : vector<18x18xf32>
    %596 = arith.addf %578, %595 : vector<18x18xf32>
    %c174 = arith.constant 174 : index
    %597 = memref.load %arg1[%c174] : memref<448xf32, #tpu.memory_space<smem>>
    %598 = vector.broadcast %597 : f32 to vector<18x18xf32>
    %599 = arith.mulf %598, %588 : vector<18x18xf32>
    %600 = arith.addf %582, %599 : vector<18x18xf32>
    %c246 = arith.constant 246 : index
    %601 = memref.load %arg1[%c246] : memref<448xf32, #tpu.memory_space<smem>>
    %602 = vector.broadcast %601 : f32 to vector<18x18xf32>
    %603 = arith.mulf %602, %588 : vector<18x18xf32>
    %604 = arith.addf %586, %603 : vector<18x18xf32>
    %c0_169 = arith.constant 0 : index
    %c3_170 = arith.constant 3 : index
    %c1_171 = arith.constant 1 : index
    %c1_172 = arith.constant 1 : index
    %605 = vector.load %arg3[%c0_169, %c3_170, %c1_171, %c1_172] : memref<1x4x20x20xf32, #tpu.memory_space<vmem>>, vector<1x1x18x18xf32>
    %606 = vector.shape_cast %605 : vector<1x1x18x18xf32> to vector<18x18xf32>
    %c31 = arith.constant 31 : index
    %607 = memref.load %arg1[%c31] : memref<448xf32, #tpu.memory_space<smem>>
    %608 = vector.broadcast %607 : f32 to vector<18x18xf32>
    %609 = arith.mulf %608, %606 : vector<18x18xf32>
    %610 = arith.addf %592, %609 : vector<18x18xf32>
    %c103 = arith.constant 103 : index
    %611 = memref.load %arg1[%c103] : memref<448xf32, #tpu.memory_space<smem>>
    %612 = vector.broadcast %611 : f32 to vector<18x18xf32>
    %613 = arith.mulf %612, %606 : vector<18x18xf32>
    %614 = arith.addf %596, %613 : vector<18x18xf32>
    %c175 = arith.constant 175 : index
    %615 = memref.load %arg1[%c175] : memref<448xf32, #tpu.memory_space<smem>>
    %616 = vector.broadcast %615 : f32 to vector<18x18xf32>
    %617 = arith.mulf %616, %606 : vector<18x18xf32>
    %618 = arith.addf %600, %617 : vector<18x18xf32>
    %c247 = arith.constant 247 : index
    %619 = memref.load %arg1[%c247] : memref<448xf32, #tpu.memory_space<smem>>
    %620 = vector.broadcast %619 : f32 to vector<18x18xf32>
    %621 = arith.mulf %620, %606 : vector<18x18xf32>
    %622 = arith.addf %604, %621 : vector<18x18xf32>
    %c0_173 = arith.constant 0 : index
    %c3_174 = arith.constant 3 : index
    %c1_175 = arith.constant 1 : index
    %c2_176 = arith.constant 2 : index
    %623 = vector.load %arg3[%c0_173, %c3_174, %c1_175, %c2_176] : memref<1x4x20x20xf32, #tpu.memory_space<vmem>>, vector<1x1x18x18xf32>
    %624 = vector.shape_cast %623 : vector<1x1x18x18xf32> to vector<18x18xf32>
    %c32 = arith.constant 32 : index
    %625 = memref.load %arg1[%c32] : memref<448xf32, #tpu.memory_space<smem>>
    %626 = vector.broadcast %625 : f32 to vector<18x18xf32>
    %627 = arith.mulf %626, %624 : vector<18x18xf32>
    %628 = arith.addf %610, %627 : vector<18x18xf32>
    %c104 = arith.constant 104 : index
    %629 = memref.load %arg1[%c104] : memref<448xf32, #tpu.memory_space<smem>>
    %630 = vector.broadcast %629 : f32 to vector<18x18xf32>
    %631 = arith.mulf %630, %624 : vector<18x18xf32>
    %632 = arith.addf %614, %631 : vector<18x18xf32>
    %c176 = arith.constant 176 : index
    %633 = memref.load %arg1[%c176] : memref<448xf32, #tpu.memory_space<smem>>
    %634 = vector.broadcast %633 : f32 to vector<18x18xf32>
    %635 = arith.mulf %634, %624 : vector<18x18xf32>
    %636 = arith.addf %618, %635 : vector<18x18xf32>
    %c248 = arith.constant 248 : index
    %637 = memref.load %arg1[%c248] : memref<448xf32, #tpu.memory_space<smem>>
    %638 = vector.broadcast %637 : f32 to vector<18x18xf32>
    %639 = arith.mulf %638, %624 : vector<18x18xf32>
    %640 = arith.addf %622, %639 : vector<18x18xf32>
    %c0_177 = arith.constant 0 : index
    %c3_178 = arith.constant 3 : index
    %c2_179 = arith.constant 2 : index
    %c0_180 = arith.constant 0 : index
    %641 = vector.load %arg3[%c0_177, %c3_178, %c2_179, %c0_180] : memref<1x4x20x20xf32, #tpu.memory_space<vmem>>, vector<1x1x18x18xf32>
    %642 = vector.shape_cast %641 : vector<1x1x18x18xf32> to vector<18x18xf32>
    %c33 = arith.constant 33 : index
    %643 = memref.load %arg1[%c33] : memref<448xf32, #tpu.memory_space<smem>>
    %644 = vector.broadcast %643 : f32 to vector<18x18xf32>
    %645 = arith.mulf %644, %642 : vector<18x18xf32>
    %646 = arith.addf %628, %645 : vector<18x18xf32>
    %c105 = arith.constant 105 : index
    %647 = memref.load %arg1[%c105] : memref<448xf32, #tpu.memory_space<smem>>
    %648 = vector.broadcast %647 : f32 to vector<18x18xf32>
    %649 = arith.mulf %648, %642 : vector<18x18xf32>
    %650 = arith.addf %632, %649 : vector<18x18xf32>
    %c177 = arith.constant 177 : index
    %651 = memref.load %arg1[%c177] : memref<448xf32, #tpu.memory_space<smem>>
    %652 = vector.broadcast %651 : f32 to vector<18x18xf32>
    %653 = arith.mulf %652, %642 : vector<18x18xf32>
    %654 = arith.addf %636, %653 : vector<18x18xf32>
    %c249 = arith.constant 249 : index
    %655 = memref.load %arg1[%c249] : memref<448xf32, #tpu.memory_space<smem>>
    %656 = vector.broadcast %655 : f32 to vector<18x18xf32>
    %657 = arith.mulf %656, %642 : vector<18x18xf32>
    %658 = arith.addf %640, %657 : vector<18x18xf32>
    %c0_181 = arith.constant 0 : index
    %c3_182 = arith.constant 3 : index
    %c2_183 = arith.constant 2 : index
    %c1_184 = arith.constant 1 : index
    %659 = vector.load %arg3[%c0_181, %c3_182, %c2_183, %c1_184] : memref<1x4x20x20xf32, #tpu.memory_space<vmem>>, vector<1x1x18x18xf32>
    %660 = vector.shape_cast %659 : vector<1x1x18x18xf32> to vector<18x18xf32>
    %c34 = arith.constant 34 : index
    %661 = memref.load %arg1[%c34] : memref<448xf32, #tpu.memory_space<smem>>
    %662 = vector.broadcast %661 : f32 to vector<18x18xf32>
    %663 = arith.mulf %662, %660 : vector<18x18xf32>
    %664 = arith.addf %646, %663 : vector<18x18xf32>
    %c106 = arith.constant 106 : index
    %665 = memref.load %arg1[%c106] : memref<448xf32, #tpu.memory_space<smem>>
    %666 = vector.broadcast %665 : f32 to vector<18x18xf32>
    %667 = arith.mulf %666, %660 : vector<18x18xf32>
    %668 = arith.addf %650, %667 : vector<18x18xf32>
    %c178 = arith.constant 178 : index
    %669 = memref.load %arg1[%c178] : memref<448xf32, #tpu.memory_space<smem>>
    %670 = vector.broadcast %669 : f32 to vector<18x18xf32>
    %671 = arith.mulf %670, %660 : vector<18x18xf32>
    %672 = arith.addf %654, %671 : vector<18x18xf32>
    %c250 = arith.constant 250 : index
    %673 = memref.load %arg1[%c250] : memref<448xf32, #tpu.memory_space<smem>>
    %674 = vector.broadcast %673 : f32 to vector<18x18xf32>
    %675 = arith.mulf %674, %660 : vector<18x18xf32>
    %676 = arith.addf %658, %675 : vector<18x18xf32>
    %c0_185 = arith.constant 0 : index
    %c3_186 = arith.constant 3 : index
    %c2_187 = arith.constant 2 : index
    %c2_188 = arith.constant 2 : index
    %677 = vector.load %arg3[%c0_185, %c3_186, %c2_187, %c2_188] : memref<1x4x20x20xf32, #tpu.memory_space<vmem>>, vector<1x1x18x18xf32>
    %678 = vector.shape_cast %677 : vector<1x1x18x18xf32> to vector<18x18xf32>
    %c35 = arith.constant 35 : index
    %679 = memref.load %arg1[%c35] : memref<448xf32, #tpu.memory_space<smem>>
    %680 = vector.broadcast %679 : f32 to vector<18x18xf32>
    %681 = arith.mulf %680, %678 : vector<18x18xf32>
    %682 = arith.addf %664, %681 : vector<18x18xf32>
    %c107 = arith.constant 107 : index
    %683 = memref.load %arg1[%c107] : memref<448xf32, #tpu.memory_space<smem>>
    %684 = vector.broadcast %683 : f32 to vector<18x18xf32>
    %685 = arith.mulf %684, %678 : vector<18x18xf32>
    %686 = arith.addf %668, %685 : vector<18x18xf32>
    %c179 = arith.constant 179 : index
    %687 = memref.load %arg1[%c179] : memref<448xf32, #tpu.memory_space<smem>>
    %688 = vector.broadcast %687 : f32 to vector<18x18xf32>
    %689 = arith.mulf %688, %678 : vector<18x18xf32>
    %690 = arith.addf %672, %689 : vector<18x18xf32>
    %c251 = arith.constant 251 : index
    %691 = memref.load %arg1[%c251] : memref<448xf32, #tpu.memory_space<smem>>
    %692 = vector.broadcast %691 : f32 to vector<18x18xf32>
    %693 = arith.mulf %692, %678 : vector<18x18xf32>
    %694 = arith.addf %676, %693 : vector<18x18xf32>
    %c0_189 = arith.constant 0 : index
    %c0_190 = arith.constant 0 : index
    %c0_191 = arith.constant 0 : index
    %695 = vector.load %arg7[%c0_189, %c0_190, %c0_191] : memref<4x20x20xf32, #tpu.memory_space<vmem>>, vector<1x18x18xf32>
    %696 = vector.shape_cast %695 : vector<1x18x18xf32> to vector<18x18xf32>
    %c36 = arith.constant 36 : index
    %697 = memref.load %arg1[%c36] : memref<448xf32, #tpu.memory_space<smem>>
    %698 = vector.broadcast %697 : f32 to vector<18x18xf32>
    %699 = arith.mulf %698, %696 : vector<18x18xf32>
    %700 = arith.addf %682, %699 : vector<18x18xf32>
    %c108 = arith.constant 108 : index
    %701 = memref.load %arg1[%c108] : memref<448xf32, #tpu.memory_space<smem>>
    %702 = vector.broadcast %701 : f32 to vector<18x18xf32>
    %703 = arith.mulf %702, %696 : vector<18x18xf32>
    %704 = arith.addf %686, %703 : vector<18x18xf32>
    %c180 = arith.constant 180 : index
    %705 = memref.load %arg1[%c180] : memref<448xf32, #tpu.memory_space<smem>>
    %706 = vector.broadcast %705 : f32 to vector<18x18xf32>
    %707 = arith.mulf %706, %696 : vector<18x18xf32>
    %708 = arith.addf %690, %707 : vector<18x18xf32>
    %c252 = arith.constant 252 : index
    %709 = memref.load %arg1[%c252] : memref<448xf32, #tpu.memory_space<smem>>
    %710 = vector.broadcast %709 : f32 to vector<18x18xf32>
    %711 = arith.mulf %710, %696 : vector<18x18xf32>
    %712 = arith.addf %694, %711 : vector<18x18xf32>
    %c0_192 = arith.constant 0 : index
    %c0_193 = arith.constant 0 : index
    %c1_194 = arith.constant 1 : index
    %713 = vector.load %arg7[%c0_192, %c0_193, %c1_194] : memref<4x20x20xf32, #tpu.memory_space<vmem>>, vector<1x18x18xf32>
    %714 = vector.shape_cast %713 : vector<1x18x18xf32> to vector<18x18xf32>
    %c37 = arith.constant 37 : index
    %715 = memref.load %arg1[%c37] : memref<448xf32, #tpu.memory_space<smem>>
    %716 = vector.broadcast %715 : f32 to vector<18x18xf32>
    %717 = arith.mulf %716, %714 : vector<18x18xf32>
    %718 = arith.addf %700, %717 : vector<18x18xf32>
    %c109 = arith.constant 109 : index
    %719 = memref.load %arg1[%c109] : memref<448xf32, #tpu.memory_space<smem>>
    %720 = vector.broadcast %719 : f32 to vector<18x18xf32>
    %721 = arith.mulf %720, %714 : vector<18x18xf32>
    %722 = arith.addf %704, %721 : vector<18x18xf32>
    %c181 = arith.constant 181 : index
    %723 = memref.load %arg1[%c181] : memref<448xf32, #tpu.memory_space<smem>>
    %724 = vector.broadcast %723 : f32 to vector<18x18xf32>
    %725 = arith.mulf %724, %714 : vector<18x18xf32>
    %726 = arith.addf %708, %725 : vector<18x18xf32>
    %c253 = arith.constant 253 : index
    %727 = memref.load %arg1[%c253] : memref<448xf32, #tpu.memory_space<smem>>
    %728 = vector.broadcast %727 : f32 to vector<18x18xf32>
    %729 = arith.mulf %728, %714 : vector<18x18xf32>
    %730 = arith.addf %712, %729 : vector<18x18xf32>
    %c0_195 = arith.constant 0 : index
    %c0_196 = arith.constant 0 : index
    %c2_197 = arith.constant 2 : index
    %731 = vector.load %arg7[%c0_195, %c0_196, %c2_197] : memref<4x20x20xf32, #tpu.memory_space<vmem>>, vector<1x18x18xf32>
    %732 = vector.shape_cast %731 : vector<1x18x18xf32> to vector<18x18xf32>
    %c38 = arith.constant 38 : index
    %733 = memref.load %arg1[%c38] : memref<448xf32, #tpu.memory_space<smem>>
    %734 = vector.broadcast %733 : f32 to vector<18x18xf32>
    %735 = arith.mulf %734, %732 : vector<18x18xf32>
    %736 = arith.addf %718, %735 : vector<18x18xf32>
    %c110 = arith.constant 110 : index
    %737 = memref.load %arg1[%c110] : memref<448xf32, #tpu.memory_space<smem>>
    %738 = vector.broadcast %737 : f32 to vector<18x18xf32>
    %739 = arith.mulf %738, %732 : vector<18x18xf32>
    %740 = arith.addf %722, %739 : vector<18x18xf32>
    %c182 = arith.constant 182 : index
    %741 = memref.load %arg1[%c182] : memref<448xf32, #tpu.memory_space<smem>>
    %742 = vector.broadcast %741 : f32 to vector<18x18xf32>
    %743 = arith.mulf %742, %732 : vector<18x18xf32>
    %744 = arith.addf %726, %743 : vector<18x18xf32>
    %c254 = arith.constant 254 : index
    %745 = memref.load %arg1[%c254] : memref<448xf32, #tpu.memory_space<smem>>
    %746 = vector.broadcast %745 : f32 to vector<18x18xf32>
    %747 = arith.mulf %746, %732 : vector<18x18xf32>
    %748 = arith.addf %730, %747 : vector<18x18xf32>
    %c0_198 = arith.constant 0 : index
    %c1_199 = arith.constant 1 : index
    %c0_200 = arith.constant 0 : index
    %749 = vector.load %arg7[%c0_198, %c1_199, %c0_200] : memref<4x20x20xf32, #tpu.memory_space<vmem>>, vector<1x18x18xf32>
    %750 = vector.shape_cast %749 : vector<1x18x18xf32> to vector<18x18xf32>
    %c39 = arith.constant 39 : index
    %751 = memref.load %arg1[%c39] : memref<448xf32, #tpu.memory_space<smem>>
    %752 = vector.broadcast %751 : f32 to vector<18x18xf32>
    %753 = arith.mulf %752, %750 : vector<18x18xf32>
    %754 = arith.addf %736, %753 : vector<18x18xf32>
    %c111 = arith.constant 111 : index
    %755 = memref.load %arg1[%c111] : memref<448xf32, #tpu.memory_space<smem>>
    %756 = vector.broadcast %755 : f32 to vector<18x18xf32>
    %757 = arith.mulf %756, %750 : vector<18x18xf32>
    %758 = arith.addf %740, %757 : vector<18x18xf32>
    %c183 = arith.constant 183 : index
    %759 = memref.load %arg1[%c183] : memref<448xf32, #tpu.memory_space<smem>>
    %760 = vector.broadcast %759 : f32 to vector<18x18xf32>
    %761 = arith.mulf %760, %750 : vector<18x18xf32>
    %762 = arith.addf %744, %761 : vector<18x18xf32>
    %c255 = arith.constant 255 : index
    %763 = memref.load %arg1[%c255] : memref<448xf32, #tpu.memory_space<smem>>
    %764 = vector.broadcast %763 : f32 to vector<18x18xf32>
    %765 = arith.mulf %764, %750 : vector<18x18xf32>
    %766 = arith.addf %748, %765 : vector<18x18xf32>
    %c0_201 = arith.constant 0 : index
    %c1_202 = arith.constant 1 : index
    %c1_203 = arith.constant 1 : index
    %767 = vector.load %arg7[%c0_201, %c1_202, %c1_203] : memref<4x20x20xf32, #tpu.memory_space<vmem>>, vector<1x18x18xf32>
    %768 = vector.shape_cast %767 : vector<1x18x18xf32> to vector<18x18xf32>
    %c40 = arith.constant 40 : index
    %769 = memref.load %arg1[%c40] : memref<448xf32, #tpu.memory_space<smem>>
    %770 = vector.broadcast %769 : f32 to vector<18x18xf32>
    %771 = arith.mulf %770, %768 : vector<18x18xf32>
    %772 = arith.addf %754, %771 : vector<18x18xf32>
    %c112 = arith.constant 112 : index
    %773 = memref.load %arg1[%c112] : memref<448xf32, #tpu.memory_space<smem>>
    %774 = vector.broadcast %773 : f32 to vector<18x18xf32>
    %775 = arith.mulf %774, %768 : vector<18x18xf32>
    %776 = arith.addf %758, %775 : vector<18x18xf32>
    %c184 = arith.constant 184 : index
    %777 = memref.load %arg1[%c184] : memref<448xf32, #tpu.memory_space<smem>>
    %778 = vector.broadcast %777 : f32 to vector<18x18xf32>
    %779 = arith.mulf %778, %768 : vector<18x18xf32>
    %780 = arith.addf %762, %779 : vector<18x18xf32>
    %c256 = arith.constant 256 : index
    %781 = memref.load %arg1[%c256] : memref<448xf32, #tpu.memory_space<smem>>
    %782 = vector.broadcast %781 : f32 to vector<18x18xf32>
    %783 = arith.mulf %782, %768 : vector<18x18xf32>
    %784 = arith.addf %766, %783 : vector<18x18xf32>
    %c0_204 = arith.constant 0 : index
    %c1_205 = arith.constant 1 : index
    %c2_206 = arith.constant 2 : index
    %785 = vector.load %arg7[%c0_204, %c1_205, %c2_206] : memref<4x20x20xf32, #tpu.memory_space<vmem>>, vector<1x18x18xf32>
    %786 = vector.shape_cast %785 : vector<1x18x18xf32> to vector<18x18xf32>
    %c41 = arith.constant 41 : index
    %787 = memref.load %arg1[%c41] : memref<448xf32, #tpu.memory_space<smem>>
    %788 = vector.broadcast %787 : f32 to vector<18x18xf32>
    %789 = arith.mulf %788, %786 : vector<18x18xf32>
    %790 = arith.addf %772, %789 : vector<18x18xf32>
    %c113 = arith.constant 113 : index
    %791 = memref.load %arg1[%c113] : memref<448xf32, #tpu.memory_space<smem>>
    %792 = vector.broadcast %791 : f32 to vector<18x18xf32>
    %793 = arith.mulf %792, %786 : vector<18x18xf32>
    %794 = arith.addf %776, %793 : vector<18x18xf32>
    %c185 = arith.constant 185 : index
    %795 = memref.load %arg1[%c185] : memref<448xf32, #tpu.memory_space<smem>>
    %796 = vector.broadcast %795 : f32 to vector<18x18xf32>
    %797 = arith.mulf %796, %786 : vector<18x18xf32>
    %798 = arith.addf %780, %797 : vector<18x18xf32>
    %c257 = arith.constant 257 : index
    %799 = memref.load %arg1[%c257] : memref<448xf32, #tpu.memory_space<smem>>
    %800 = vector.broadcast %799 : f32 to vector<18x18xf32>
    %801 = arith.mulf %800, %786 : vector<18x18xf32>
    %802 = arith.addf %784, %801 : vector<18x18xf32>
    %c0_207 = arith.constant 0 : index
    %c2_208 = arith.constant 2 : index
    %c0_209 = arith.constant 0 : index
    %803 = vector.load %arg7[%c0_207, %c2_208, %c0_209] : memref<4x20x20xf32, #tpu.memory_space<vmem>>, vector<1x18x18xf32>
    %804 = vector.shape_cast %803 : vector<1x18x18xf32> to vector<18x18xf32>
    %c42 = arith.constant 42 : index
    %805 = memref.load %arg1[%c42] : memref<448xf32, #tpu.memory_space<smem>>
    %806 = vector.broadcast %805 : f32 to vector<18x18xf32>
    %807 = arith.mulf %806, %804 : vector<18x18xf32>
    %808 = arith.addf %790, %807 : vector<18x18xf32>
    %c114 = arith.constant 114 : index
    %809 = memref.load %arg1[%c114] : memref<448xf32, #tpu.memory_space<smem>>
    %810 = vector.broadcast %809 : f32 to vector<18x18xf32>
    %811 = arith.mulf %810, %804 : vector<18x18xf32>
    %812 = arith.addf %794, %811 : vector<18x18xf32>
    %c186 = arith.constant 186 : index
    %813 = memref.load %arg1[%c186] : memref<448xf32, #tpu.memory_space<smem>>
    %814 = vector.broadcast %813 : f32 to vector<18x18xf32>
    %815 = arith.mulf %814, %804 : vector<18x18xf32>
    %816 = arith.addf %798, %815 : vector<18x18xf32>
    %c258 = arith.constant 258 : index
    %817 = memref.load %arg1[%c258] : memref<448xf32, #tpu.memory_space<smem>>
    %818 = vector.broadcast %817 : f32 to vector<18x18xf32>
    %819 = arith.mulf %818, %804 : vector<18x18xf32>
    %820 = arith.addf %802, %819 : vector<18x18xf32>
    %c0_210 = arith.constant 0 : index
    %c2_211 = arith.constant 2 : index
    %c1_212 = arith.constant 1 : index
    %821 = vector.load %arg7[%c0_210, %c2_211, %c1_212] : memref<4x20x20xf32, #tpu.memory_space<vmem>>, vector<1x18x18xf32>
    %822 = vector.shape_cast %821 : vector<1x18x18xf32> to vector<18x18xf32>
    %c43 = arith.constant 43 : index
    %823 = memref.load %arg1[%c43] : memref<448xf32, #tpu.memory_space<smem>>
    %824 = vector.broadcast %823 : f32 to vector<18x18xf32>
    %825 = arith.mulf %824, %822 : vector<18x18xf32>
    %826 = arith.addf %808, %825 : vector<18x18xf32>
    %c115 = arith.constant 115 : index
    %827 = memref.load %arg1[%c115] : memref<448xf32, #tpu.memory_space<smem>>
    %828 = vector.broadcast %827 : f32 to vector<18x18xf32>
    %829 = arith.mulf %828, %822 : vector<18x18xf32>
    %830 = arith.addf %812, %829 : vector<18x18xf32>
    %c187 = arith.constant 187 : index
    %831 = memref.load %arg1[%c187] : memref<448xf32, #tpu.memory_space<smem>>
    %832 = vector.broadcast %831 : f32 to vector<18x18xf32>
    %833 = arith.mulf %832, %822 : vector<18x18xf32>
    %834 = arith.addf %816, %833 : vector<18x18xf32>
    %c259 = arith.constant 259 : index
    %835 = memref.load %arg1[%c259] : memref<448xf32, #tpu.memory_space<smem>>
    %836 = vector.broadcast %835 : f32 to vector<18x18xf32>
    %837 = arith.mulf %836, %822 : vector<18x18xf32>
    %838 = arith.addf %820, %837 : vector<18x18xf32>
    %c0_213 = arith.constant 0 : index
    %c2_214 = arith.constant 2 : index
    %c2_215 = arith.constant 2 : index
    %839 = vector.load %arg7[%c0_213, %c2_214, %c2_215] : memref<4x20x20xf32, #tpu.memory_space<vmem>>, vector<1x18x18xf32>
    %840 = vector.shape_cast %839 : vector<1x18x18xf32> to vector<18x18xf32>
    %c44 = arith.constant 44 : index
    %841 = memref.load %arg1[%c44] : memref<448xf32, #tpu.memory_space<smem>>
    %842 = vector.broadcast %841 : f32 to vector<18x18xf32>
    %843 = arith.mulf %842, %840 : vector<18x18xf32>
    %844 = arith.addf %826, %843 : vector<18x18xf32>
    %c116 = arith.constant 116 : index
    %845 = memref.load %arg1[%c116] : memref<448xf32, #tpu.memory_space<smem>>
    %846 = vector.broadcast %845 : f32 to vector<18x18xf32>
    %847 = arith.mulf %846, %840 : vector<18x18xf32>
    %848 = arith.addf %830, %847 : vector<18x18xf32>
    %c188 = arith.constant 188 : index
    %849 = memref.load %arg1[%c188] : memref<448xf32, #tpu.memory_space<smem>>
    %850 = vector.broadcast %849 : f32 to vector<18x18xf32>
    %851 = arith.mulf %850, %840 : vector<18x18xf32>
    %852 = arith.addf %834, %851 : vector<18x18xf32>
    %c260 = arith.constant 260 : index
    %853 = memref.load %arg1[%c260] : memref<448xf32, #tpu.memory_space<smem>>
    %854 = vector.broadcast %853 : f32 to vector<18x18xf32>
    %855 = arith.mulf %854, %840 : vector<18x18xf32>
    %856 = arith.addf %838, %855 : vector<18x18xf32>
    %c1_216 = arith.constant 1 : index
    %c0_217 = arith.constant 0 : index
    %c0_218 = arith.constant 0 : index
    %857 = vector.load %arg7[%c1_216, %c0_217, %c0_218] : memref<4x20x20xf32, #tpu.memory_space<vmem>>, vector<1x18x18xf32>
    %858 = vector.shape_cast %857 : vector<1x18x18xf32> to vector<18x18xf32>
    %c45 = arith.constant 45 : index
    %859 = memref.load %arg1[%c45] : memref<448xf32, #tpu.memory_space<smem>>
    %860 = vector.broadcast %859 : f32 to vector<18x18xf32>
    %861 = arith.mulf %860, %858 : vector<18x18xf32>
    %862 = arith.addf %844, %861 : vector<18x18xf32>
    %c117 = arith.constant 117 : index
    %863 = memref.load %arg1[%c117] : memref<448xf32, #tpu.memory_space<smem>>
    %864 = vector.broadcast %863 : f32 to vector<18x18xf32>
    %865 = arith.mulf %864, %858 : vector<18x18xf32>
    %866 = arith.addf %848, %865 : vector<18x18xf32>
    %c189 = arith.constant 189 : index
    %867 = memref.load %arg1[%c189] : memref<448xf32, #tpu.memory_space<smem>>
    %868 = vector.broadcast %867 : f32 to vector<18x18xf32>
    %869 = arith.mulf %868, %858 : vector<18x18xf32>
    %870 = arith.addf %852, %869 : vector<18x18xf32>
    %c261 = arith.constant 261 : index
    %871 = memref.load %arg1[%c261] : memref<448xf32, #tpu.memory_space<smem>>
    %872 = vector.broadcast %871 : f32 to vector<18x18xf32>
    %873 = arith.mulf %872, %858 : vector<18x18xf32>
    %874 = arith.addf %856, %873 : vector<18x18xf32>
    %c1_219 = arith.constant 1 : index
    %c0_220 = arith.constant 0 : index
    %c1_221 = arith.constant 1 : index
    %875 = vector.load %arg7[%c1_219, %c0_220, %c1_221] : memref<4x20x20xf32, #tpu.memory_space<vmem>>, vector<1x18x18xf32>
    %876 = vector.shape_cast %875 : vector<1x18x18xf32> to vector<18x18xf32>
    %c46 = arith.constant 46 : index
    %877 = memref.load %arg1[%c46] : memref<448xf32, #tpu.memory_space<smem>>
    %878 = vector.broadcast %877 : f32 to vector<18x18xf32>
    %879 = arith.mulf %878, %876 : vector<18x18xf32>
    %880 = arith.addf %862, %879 : vector<18x18xf32>
    %c118 = arith.constant 118 : index
    %881 = memref.load %arg1[%c118] : memref<448xf32, #tpu.memory_space<smem>>
    %882 = vector.broadcast %881 : f32 to vector<18x18xf32>
    %883 = arith.mulf %882, %876 : vector<18x18xf32>
    %884 = arith.addf %866, %883 : vector<18x18xf32>
    %c190 = arith.constant 190 : index
    %885 = memref.load %arg1[%c190] : memref<448xf32, #tpu.memory_space<smem>>
    %886 = vector.broadcast %885 : f32 to vector<18x18xf32>
    %887 = arith.mulf %886, %876 : vector<18x18xf32>
    %888 = arith.addf %870, %887 : vector<18x18xf32>
    %c262 = arith.constant 262 : index
    %889 = memref.load %arg1[%c262] : memref<448xf32, #tpu.memory_space<smem>>
    %890 = vector.broadcast %889 : f32 to vector<18x18xf32>
    %891 = arith.mulf %890, %876 : vector<18x18xf32>
    %892 = arith.addf %874, %891 : vector<18x18xf32>
    %c1_222 = arith.constant 1 : index
    %c0_223 = arith.constant 0 : index
    %c2_224 = arith.constant 2 : index
    %893 = vector.load %arg7[%c1_222, %c0_223, %c2_224] : memref<4x20x20xf32, #tpu.memory_space<vmem>>, vector<1x18x18xf32>
    %894 = vector.shape_cast %893 : vector<1x18x18xf32> to vector<18x18xf32>
    %c47 = arith.constant 47 : index
    %895 = memref.load %arg1[%c47] : memref<448xf32, #tpu.memory_space<smem>>
    %896 = vector.broadcast %895 : f32 to vector<18x18xf32>
    %897 = arith.mulf %896, %894 : vector<18x18xf32>
    %898 = arith.addf %880, %897 : vector<18x18xf32>
    %c119 = arith.constant 119 : index
    %899 = memref.load %arg1[%c119] : memref<448xf32, #tpu.memory_space<smem>>
    %900 = vector.broadcast %899 : f32 to vector<18x18xf32>
    %901 = arith.mulf %900, %894 : vector<18x18xf32>
    %902 = arith.addf %884, %901 : vector<18x18xf32>
    %c191 = arith.constant 191 : index
    %903 = memref.load %arg1[%c191] : memref<448xf32, #tpu.memory_space<smem>>
    %904 = vector.broadcast %903 : f32 to vector<18x18xf32>
    %905 = arith.mulf %904, %894 : vector<18x18xf32>
    %906 = arith.addf %888, %905 : vector<18x18xf32>
    %c263 = arith.constant 263 : index
    %907 = memref.load %arg1[%c263] : memref<448xf32, #tpu.memory_space<smem>>
    %908 = vector.broadcast %907 : f32 to vector<18x18xf32>
    %909 = arith.mulf %908, %894 : vector<18x18xf32>
    %910 = arith.addf %892, %909 : vector<18x18xf32>
    %c1_225 = arith.constant 1 : index
    %c1_226 = arith.constant 1 : index
    %c0_227 = arith.constant 0 : index
    %911 = vector.load %arg7[%c1_225, %c1_226, %c0_227] : memref<4x20x20xf32, #tpu.memory_space<vmem>>, vector<1x18x18xf32>
    %912 = vector.shape_cast %911 : vector<1x18x18xf32> to vector<18x18xf32>
    %c48 = arith.constant 48 : index
    %913 = memref.load %arg1[%c48] : memref<448xf32, #tpu.memory_space<smem>>
    %914 = vector.broadcast %913 : f32 to vector<18x18xf32>
    %915 = arith.mulf %914, %912 : vector<18x18xf32>
    %916 = arith.addf %898, %915 : vector<18x18xf32>
    %c120 = arith.constant 120 : index
    %917 = memref.load %arg1[%c120] : memref<448xf32, #tpu.memory_space<smem>>
    %918 = vector.broadcast %917 : f32 to vector<18x18xf32>
    %919 = arith.mulf %918, %912 : vector<18x18xf32>
    %920 = arith.addf %902, %919 : vector<18x18xf32>
    %c192 = arith.constant 192 : index
    %921 = memref.load %arg1[%c192] : memref<448xf32, #tpu.memory_space<smem>>
    %922 = vector.broadcast %921 : f32 to vector<18x18xf32>
    %923 = arith.mulf %922, %912 : vector<18x18xf32>
    %924 = arith.addf %906, %923 : vector<18x18xf32>
    %c264 = arith.constant 264 : index
    %925 = memref.load %arg1[%c264] : memref<448xf32, #tpu.memory_space<smem>>
    %926 = vector.broadcast %925 : f32 to vector<18x18xf32>
    %927 = arith.mulf %926, %912 : vector<18x18xf32>
    %928 = arith.addf %910, %927 : vector<18x18xf32>
    %c1_228 = arith.constant 1 : index
    %c1_229 = arith.constant 1 : index
    %c1_230 = arith.constant 1 : index
    %929 = vector.load %arg7[%c1_228, %c1_229, %c1_230] : memref<4x20x20xf32, #tpu.memory_space<vmem>>, vector<1x18x18xf32>
    %930 = vector.shape_cast %929 : vector<1x18x18xf32> to vector<18x18xf32>
    %c49 = arith.constant 49 : index
    %931 = memref.load %arg1[%c49] : memref<448xf32, #tpu.memory_space<smem>>
    %932 = vector.broadcast %931 : f32 to vector<18x18xf32>
    %933 = arith.mulf %932, %930 : vector<18x18xf32>
    %934 = arith.addf %916, %933 : vector<18x18xf32>
    %c121 = arith.constant 121 : index
    %935 = memref.load %arg1[%c121] : memref<448xf32, #tpu.memory_space<smem>>
    %936 = vector.broadcast %935 : f32 to vector<18x18xf32>
    %937 = arith.mulf %936, %930 : vector<18x18xf32>
    %938 = arith.addf %920, %937 : vector<18x18xf32>
    %c193 = arith.constant 193 : index
    %939 = memref.load %arg1[%c193] : memref<448xf32, #tpu.memory_space<smem>>
    %940 = vector.broadcast %939 : f32 to vector<18x18xf32>
    %941 = arith.mulf %940, %930 : vector<18x18xf32>
    %942 = arith.addf %924, %941 : vector<18x18xf32>
    %c265 = arith.constant 265 : index
    %943 = memref.load %arg1[%c265] : memref<448xf32, #tpu.memory_space<smem>>
    %944 = vector.broadcast %943 : f32 to vector<18x18xf32>
    %945 = arith.mulf %944, %930 : vector<18x18xf32>
    %946 = arith.addf %928, %945 : vector<18x18xf32>
    %c1_231 = arith.constant 1 : index
    %c1_232 = arith.constant 1 : index
    %c2_233 = arith.constant 2 : index
    %947 = vector.load %arg7[%c1_231, %c1_232, %c2_233] : memref<4x20x20xf32, #tpu.memory_space<vmem>>, vector<1x18x18xf32>
    %948 = vector.shape_cast %947 : vector<1x18x18xf32> to vector<18x18xf32>
    %c50 = arith.constant 50 : index
    %949 = memref.load %arg1[%c50] : memref<448xf32, #tpu.memory_space<smem>>
    %950 = vector.broadcast %949 : f32 to vector<18x18xf32>
    %951 = arith.mulf %950, %948 : vector<18x18xf32>
    %952 = arith.addf %934, %951 : vector<18x18xf32>
    %c122 = arith.constant 122 : index
    %953 = memref.load %arg1[%c122] : memref<448xf32, #tpu.memory_space<smem>>
    %954 = vector.broadcast %953 : f32 to vector<18x18xf32>
    %955 = arith.mulf %954, %948 : vector<18x18xf32>
    %956 = arith.addf %938, %955 : vector<18x18xf32>
    %c194 = arith.constant 194 : index
    %957 = memref.load %arg1[%c194] : memref<448xf32, #tpu.memory_space<smem>>
    %958 = vector.broadcast %957 : f32 to vector<18x18xf32>
    %959 = arith.mulf %958, %948 : vector<18x18xf32>
    %960 = arith.addf %942, %959 : vector<18x18xf32>
    %c266 = arith.constant 266 : index
    %961 = memref.load %arg1[%c266] : memref<448xf32, #tpu.memory_space<smem>>
    %962 = vector.broadcast %961 : f32 to vector<18x18xf32>
    %963 = arith.mulf %962, %948 : vector<18x18xf32>
    %964 = arith.addf %946, %963 : vector<18x18xf32>
    %c1_234 = arith.constant 1 : index
    %c2_235 = arith.constant 2 : index
    %c0_236 = arith.constant 0 : index
    %965 = vector.load %arg7[%c1_234, %c2_235, %c0_236] : memref<4x20x20xf32, #tpu.memory_space<vmem>>, vector<1x18x18xf32>
    %966 = vector.shape_cast %965 : vector<1x18x18xf32> to vector<18x18xf32>
    %c51 = arith.constant 51 : index
    %967 = memref.load %arg1[%c51] : memref<448xf32, #tpu.memory_space<smem>>
    %968 = vector.broadcast %967 : f32 to vector<18x18xf32>
    %969 = arith.mulf %968, %966 : vector<18x18xf32>
    %970 = arith.addf %952, %969 : vector<18x18xf32>
    %c123 = arith.constant 123 : index
    %971 = memref.load %arg1[%c123] : memref<448xf32, #tpu.memory_space<smem>>
    %972 = vector.broadcast %971 : f32 to vector<18x18xf32>
    %973 = arith.mulf %972, %966 : vector<18x18xf32>
    %974 = arith.addf %956, %973 : vector<18x18xf32>
    %c195 = arith.constant 195 : index
    %975 = memref.load %arg1[%c195] : memref<448xf32, #tpu.memory_space<smem>>
    %976 = vector.broadcast %975 : f32 to vector<18x18xf32>
    %977 = arith.mulf %976, %966 : vector<18x18xf32>
    %978 = arith.addf %960, %977 : vector<18x18xf32>
    %c267 = arith.constant 267 : index
    %979 = memref.load %arg1[%c267] : memref<448xf32, #tpu.memory_space<smem>>
    %980 = vector.broadcast %979 : f32 to vector<18x18xf32>
    %981 = arith.mulf %980, %966 : vector<18x18xf32>
    %982 = arith.addf %964, %981 : vector<18x18xf32>
    %c1_237 = arith.constant 1 : index
    %c2_238 = arith.constant 2 : index
    %c1_239 = arith.constant 1 : index
    %983 = vector.load %arg7[%c1_237, %c2_238, %c1_239] : memref<4x20x20xf32, #tpu.memory_space<vmem>>, vector<1x18x18xf32>
    %984 = vector.shape_cast %983 : vector<1x18x18xf32> to vector<18x18xf32>
    %c52 = arith.constant 52 : index
    %985 = memref.load %arg1[%c52] : memref<448xf32, #tpu.memory_space<smem>>
    %986 = vector.broadcast %985 : f32 to vector<18x18xf32>
    %987 = arith.mulf %986, %984 : vector<18x18xf32>
    %988 = arith.addf %970, %987 : vector<18x18xf32>
    %c124 = arith.constant 124 : index
    %989 = memref.load %arg1[%c124] : memref<448xf32, #tpu.memory_space<smem>>
    %990 = vector.broadcast %989 : f32 to vector<18x18xf32>
    %991 = arith.mulf %990, %984 : vector<18x18xf32>
    %992 = arith.addf %974, %991 : vector<18x18xf32>
    %c196 = arith.constant 196 : index
    %993 = memref.load %arg1[%c196] : memref<448xf32, #tpu.memory_space<smem>>
    %994 = vector.broadcast %993 : f32 to vector<18x18xf32>
    %995 = arith.mulf %994, %984 : vector<18x18xf32>
    %996 = arith.addf %978, %995 : vector<18x18xf32>
    %c268 = arith.constant 268 : index
    %997 = memref.load %arg1[%c268] : memref<448xf32, #tpu.memory_space<smem>>
    %998 = vector.broadcast %997 : f32 to vector<18x18xf32>
    %999 = arith.mulf %998, %984 : vector<18x18xf32>
    %1000 = arith.addf %982, %999 : vector<18x18xf32>
    %c1_240 = arith.constant 1 : index
    %c2_241 = arith.constant 2 : index
    %c2_242 = arith.constant 2 : index
    %1001 = vector.load %arg7[%c1_240, %c2_241, %c2_242] : memref<4x20x20xf32, #tpu.memory_space<vmem>>, vector<1x18x18xf32>
    %1002 = vector.shape_cast %1001 : vector<1x18x18xf32> to vector<18x18xf32>
    %c53 = arith.constant 53 : index
    %1003 = memref.load %arg1[%c53] : memref<448xf32, #tpu.memory_space<smem>>
    %1004 = vector.broadcast %1003 : f32 to vector<18x18xf32>
    %1005 = arith.mulf %1004, %1002 : vector<18x18xf32>
    %1006 = arith.addf %988, %1005 : vector<18x18xf32>
    %c125 = arith.constant 125 : index
    %1007 = memref.load %arg1[%c125] : memref<448xf32, #tpu.memory_space<smem>>
    %1008 = vector.broadcast %1007 : f32 to vector<18x18xf32>
    %1009 = arith.mulf %1008, %1002 : vector<18x18xf32>
    %1010 = arith.addf %992, %1009 : vector<18x18xf32>
    %c197 = arith.constant 197 : index
    %1011 = memref.load %arg1[%c197] : memref<448xf32, #tpu.memory_space<smem>>
    %1012 = vector.broadcast %1011 : f32 to vector<18x18xf32>
    %1013 = arith.mulf %1012, %1002 : vector<18x18xf32>
    %1014 = arith.addf %996, %1013 : vector<18x18xf32>
    %c269 = arith.constant 269 : index
    %1015 = memref.load %arg1[%c269] : memref<448xf32, #tpu.memory_space<smem>>
    %1016 = vector.broadcast %1015 : f32 to vector<18x18xf32>
    %1017 = arith.mulf %1016, %1002 : vector<18x18xf32>
    %1018 = arith.addf %1000, %1017 : vector<18x18xf32>
    %c2_243 = arith.constant 2 : index
    %c0_244 = arith.constant 0 : index
    %c0_245 = arith.constant 0 : index
    %1019 = vector.load %arg7[%c2_243, %c0_244, %c0_245] : memref<4x20x20xf32, #tpu.memory_space<vmem>>, vector<1x18x18xf32>
    %1020 = vector.shape_cast %1019 : vector<1x18x18xf32> to vector<18x18xf32>
    %c54 = arith.constant 54 : index
    %1021 = memref.load %arg1[%c54] : memref<448xf32, #tpu.memory_space<smem>>
    %1022 = vector.broadcast %1021 : f32 to vector<18x18xf32>
    %1023 = arith.mulf %1022, %1020 : vector<18x18xf32>
    %1024 = arith.addf %1006, %1023 : vector<18x18xf32>
    %c126 = arith.constant 126 : index
    %1025 = memref.load %arg1[%c126] : memref<448xf32, #tpu.memory_space<smem>>
    %1026 = vector.broadcast %1025 : f32 to vector<18x18xf32>
    %1027 = arith.mulf %1026, %1020 : vector<18x18xf32>
    %1028 = arith.addf %1010, %1027 : vector<18x18xf32>
    %c198 = arith.constant 198 : index
    %1029 = memref.load %arg1[%c198] : memref<448xf32, #tpu.memory_space<smem>>
    %1030 = vector.broadcast %1029 : f32 to vector<18x18xf32>
    %1031 = arith.mulf %1030, %1020 : vector<18x18xf32>
    %1032 = arith.addf %1014, %1031 : vector<18x18xf32>
    %c270 = arith.constant 270 : index
    %1033 = memref.load %arg1[%c270] : memref<448xf32, #tpu.memory_space<smem>>
    %1034 = vector.broadcast %1033 : f32 to vector<18x18xf32>
    %1035 = arith.mulf %1034, %1020 : vector<18x18xf32>
    %1036 = arith.addf %1018, %1035 : vector<18x18xf32>
    %c2_246 = arith.constant 2 : index
    %c0_247 = arith.constant 0 : index
    %c1_248 = arith.constant 1 : index
    %1037 = vector.load %arg7[%c2_246, %c0_247, %c1_248] : memref<4x20x20xf32, #tpu.memory_space<vmem>>, vector<1x18x18xf32>
    %1038 = vector.shape_cast %1037 : vector<1x18x18xf32> to vector<18x18xf32>
    %c55 = arith.constant 55 : index
    %1039 = memref.load %arg1[%c55] : memref<448xf32, #tpu.memory_space<smem>>
    %1040 = vector.broadcast %1039 : f32 to vector<18x18xf32>
    %1041 = arith.mulf %1040, %1038 : vector<18x18xf32>
    %1042 = arith.addf %1024, %1041 : vector<18x18xf32>
    %c127 = arith.constant 127 : index
    %1043 = memref.load %arg1[%c127] : memref<448xf32, #tpu.memory_space<smem>>
    %1044 = vector.broadcast %1043 : f32 to vector<18x18xf32>
    %1045 = arith.mulf %1044, %1038 : vector<18x18xf32>
    %1046 = arith.addf %1028, %1045 : vector<18x18xf32>
    %c199 = arith.constant 199 : index
    %1047 = memref.load %arg1[%c199] : memref<448xf32, #tpu.memory_space<smem>>
    %1048 = vector.broadcast %1047 : f32 to vector<18x18xf32>
    %1049 = arith.mulf %1048, %1038 : vector<18x18xf32>
    %1050 = arith.addf %1032, %1049 : vector<18x18xf32>
    %c271 = arith.constant 271 : index
    %1051 = memref.load %arg1[%c271] : memref<448xf32, #tpu.memory_space<smem>>
    %1052 = vector.broadcast %1051 : f32 to vector<18x18xf32>
    %1053 = arith.mulf %1052, %1038 : vector<18x18xf32>
    %1054 = arith.addf %1036, %1053 : vector<18x18xf32>
    %c2_249 = arith.constant 2 : index
    %c0_250 = arith.constant 0 : index
    %c2_251 = arith.constant 2 : index
    %1055 = vector.load %arg7[%c2_249, %c0_250, %c2_251] : memref<4x20x20xf32, #tpu.memory_space<vmem>>, vector<1x18x18xf32>
    %1056 = vector.shape_cast %1055 : vector<1x18x18xf32> to vector<18x18xf32>
    %c56 = arith.constant 56 : index
    %1057 = memref.load %arg1[%c56] : memref<448xf32, #tpu.memory_space<smem>>
    %1058 = vector.broadcast %1057 : f32 to vector<18x18xf32>
    %1059 = arith.mulf %1058, %1056 : vector<18x18xf32>
    %1060 = arith.addf %1042, %1059 : vector<18x18xf32>
    %c128 = arith.constant 128 : index
    %1061 = memref.load %arg1[%c128] : memref<448xf32, #tpu.memory_space<smem>>
    %1062 = vector.broadcast %1061 : f32 to vector<18x18xf32>
    %1063 = arith.mulf %1062, %1056 : vector<18x18xf32>
    %1064 = arith.addf %1046, %1063 : vector<18x18xf32>
    %c200 = arith.constant 200 : index
    %1065 = memref.load %arg1[%c200] : memref<448xf32, #tpu.memory_space<smem>>
    %1066 = vector.broadcast %1065 : f32 to vector<18x18xf32>
    %1067 = arith.mulf %1066, %1056 : vector<18x18xf32>
    %1068 = arith.addf %1050, %1067 : vector<18x18xf32>
    %c272 = arith.constant 272 : index
    %1069 = memref.load %arg1[%c272] : memref<448xf32, #tpu.memory_space<smem>>
    %1070 = vector.broadcast %1069 : f32 to vector<18x18xf32>
    %1071 = arith.mulf %1070, %1056 : vector<18x18xf32>
    %1072 = arith.addf %1054, %1071 : vector<18x18xf32>
    %c2_252 = arith.constant 2 : index
    %c1_253 = arith.constant 1 : index
    %c0_254 = arith.constant 0 : index
    %1073 = vector.load %arg7[%c2_252, %c1_253, %c0_254] : memref<4x20x20xf32, #tpu.memory_space<vmem>>, vector<1x18x18xf32>
    %1074 = vector.shape_cast %1073 : vector<1x18x18xf32> to vector<18x18xf32>
    %c57 = arith.constant 57 : index
    %1075 = memref.load %arg1[%c57] : memref<448xf32, #tpu.memory_space<smem>>
    %1076 = vector.broadcast %1075 : f32 to vector<18x18xf32>
    %1077 = arith.mulf %1076, %1074 : vector<18x18xf32>
    %1078 = arith.addf %1060, %1077 : vector<18x18xf32>
    %c129 = arith.constant 129 : index
    %1079 = memref.load %arg1[%c129] : memref<448xf32, #tpu.memory_space<smem>>
    %1080 = vector.broadcast %1079 : f32 to vector<18x18xf32>
    %1081 = arith.mulf %1080, %1074 : vector<18x18xf32>
    %1082 = arith.addf %1064, %1081 : vector<18x18xf32>
    %c201 = arith.constant 201 : index
    %1083 = memref.load %arg1[%c201] : memref<448xf32, #tpu.memory_space<smem>>
    %1084 = vector.broadcast %1083 : f32 to vector<18x18xf32>
    %1085 = arith.mulf %1084, %1074 : vector<18x18xf32>
    %1086 = arith.addf %1068, %1085 : vector<18x18xf32>
    %c273 = arith.constant 273 : index
    %1087 = memref.load %arg1[%c273] : memref<448xf32, #tpu.memory_space<smem>>
    %1088 = vector.broadcast %1087 : f32 to vector<18x18xf32>
    %1089 = arith.mulf %1088, %1074 : vector<18x18xf32>
    %1090 = arith.addf %1072, %1089 : vector<18x18xf32>
    %c2_255 = arith.constant 2 : index
    %c1_256 = arith.constant 1 : index
    %c1_257 = arith.constant 1 : index
    %1091 = vector.load %arg7[%c2_255, %c1_256, %c1_257] : memref<4x20x20xf32, #tpu.memory_space<vmem>>, vector<1x18x18xf32>
    %1092 = vector.shape_cast %1091 : vector<1x18x18xf32> to vector<18x18xf32>
    %c58 = arith.constant 58 : index
    %1093 = memref.load %arg1[%c58] : memref<448xf32, #tpu.memory_space<smem>>
    %1094 = vector.broadcast %1093 : f32 to vector<18x18xf32>
    %1095 = arith.mulf %1094, %1092 : vector<18x18xf32>
    %1096 = arith.addf %1078, %1095 : vector<18x18xf32>
    %c130 = arith.constant 130 : index
    %1097 = memref.load %arg1[%c130] : memref<448xf32, #tpu.memory_space<smem>>
    %1098 = vector.broadcast %1097 : f32 to vector<18x18xf32>
    %1099 = arith.mulf %1098, %1092 : vector<18x18xf32>
    %1100 = arith.addf %1082, %1099 : vector<18x18xf32>
    %c202 = arith.constant 202 : index
    %1101 = memref.load %arg1[%c202] : memref<448xf32, #tpu.memory_space<smem>>
    %1102 = vector.broadcast %1101 : f32 to vector<18x18xf32>
    %1103 = arith.mulf %1102, %1092 : vector<18x18xf32>
    %1104 = arith.addf %1086, %1103 : vector<18x18xf32>
    %c274 = arith.constant 274 : index
    %1105 = memref.load %arg1[%c274] : memref<448xf32, #tpu.memory_space<smem>>
    %1106 = vector.broadcast %1105 : f32 to vector<18x18xf32>
    %1107 = arith.mulf %1106, %1092 : vector<18x18xf32>
    %1108 = arith.addf %1090, %1107 : vector<18x18xf32>
    %c2_258 = arith.constant 2 : index
    %c1_259 = arith.constant 1 : index
    %c2_260 = arith.constant 2 : index
    %1109 = vector.load %arg7[%c2_258, %c1_259, %c2_260] : memref<4x20x20xf32, #tpu.memory_space<vmem>>, vector<1x18x18xf32>
    %1110 = vector.shape_cast %1109 : vector<1x18x18xf32> to vector<18x18xf32>
    %c59 = arith.constant 59 : index
    %1111 = memref.load %arg1[%c59] : memref<448xf32, #tpu.memory_space<smem>>
    %1112 = vector.broadcast %1111 : f32 to vector<18x18xf32>
    %1113 = arith.mulf %1112, %1110 : vector<18x18xf32>
    %1114 = arith.addf %1096, %1113 : vector<18x18xf32>
    %c131 = arith.constant 131 : index
    %1115 = memref.load %arg1[%c131] : memref<448xf32, #tpu.memory_space<smem>>
    %1116 = vector.broadcast %1115 : f32 to vector<18x18xf32>
    %1117 = arith.mulf %1116, %1110 : vector<18x18xf32>
    %1118 = arith.addf %1100, %1117 : vector<18x18xf32>
    %c203 = arith.constant 203 : index
    %1119 = memref.load %arg1[%c203] : memref<448xf32, #tpu.memory_space<smem>>
    %1120 = vector.broadcast %1119 : f32 to vector<18x18xf32>
    %1121 = arith.mulf %1120, %1110 : vector<18x18xf32>
    %1122 = arith.addf %1104, %1121 : vector<18x18xf32>
    %c275 = arith.constant 275 : index
    %1123 = memref.load %arg1[%c275] : memref<448xf32, #tpu.memory_space<smem>>
    %1124 = vector.broadcast %1123 : f32 to vector<18x18xf32>
    %1125 = arith.mulf %1124, %1110 : vector<18x18xf32>
    %1126 = arith.addf %1108, %1125 : vector<18x18xf32>
    %c2_261 = arith.constant 2 : index
    %c2_262 = arith.constant 2 : index
    %c0_263 = arith.constant 0 : index
    %1127 = vector.load %arg7[%c2_261, %c2_262, %c0_263] : memref<4x20x20xf32, #tpu.memory_space<vmem>>, vector<1x18x18xf32>
    %1128 = vector.shape_cast %1127 : vector<1x18x18xf32> to vector<18x18xf32>
    %c60 = arith.constant 60 : index
    %1129 = memref.load %arg1[%c60] : memref<448xf32, #tpu.memory_space<smem>>
    %1130 = vector.broadcast %1129 : f32 to vector<18x18xf32>
    %1131 = arith.mulf %1130, %1128 : vector<18x18xf32>
    %1132 = arith.addf %1114, %1131 : vector<18x18xf32>
    %c132 = arith.constant 132 : index
    %1133 = memref.load %arg1[%c132] : memref<448xf32, #tpu.memory_space<smem>>
    %1134 = vector.broadcast %1133 : f32 to vector<18x18xf32>
    %1135 = arith.mulf %1134, %1128 : vector<18x18xf32>
    %1136 = arith.addf %1118, %1135 : vector<18x18xf32>
    %c204 = arith.constant 204 : index
    %1137 = memref.load %arg1[%c204] : memref<448xf32, #tpu.memory_space<smem>>
    %1138 = vector.broadcast %1137 : f32 to vector<18x18xf32>
    %1139 = arith.mulf %1138, %1128 : vector<18x18xf32>
    %1140 = arith.addf %1122, %1139 : vector<18x18xf32>
    %c276 = arith.constant 276 : index
    %1141 = memref.load %arg1[%c276] : memref<448xf32, #tpu.memory_space<smem>>
    %1142 = vector.broadcast %1141 : f32 to vector<18x18xf32>
    %1143 = arith.mulf %1142, %1128 : vector<18x18xf32>
    %1144 = arith.addf %1126, %1143 : vector<18x18xf32>
    %c2_264 = arith.constant 2 : index
    %c2_265 = arith.constant 2 : index
    %c1_266 = arith.constant 1 : index
    %1145 = vector.load %arg7[%c2_264, %c2_265, %c1_266] : memref<4x20x20xf32, #tpu.memory_space<vmem>>, vector<1x18x18xf32>
    %1146 = vector.shape_cast %1145 : vector<1x18x18xf32> to vector<18x18xf32>
    %c61 = arith.constant 61 : index
    %1147 = memref.load %arg1[%c61] : memref<448xf32, #tpu.memory_space<smem>>
    %1148 = vector.broadcast %1147 : f32 to vector<18x18xf32>
    %1149 = arith.mulf %1148, %1146 : vector<18x18xf32>
    %1150 = arith.addf %1132, %1149 : vector<18x18xf32>
    %c133 = arith.constant 133 : index
    %1151 = memref.load %arg1[%c133] : memref<448xf32, #tpu.memory_space<smem>>
    %1152 = vector.broadcast %1151 : f32 to vector<18x18xf32>
    %1153 = arith.mulf %1152, %1146 : vector<18x18xf32>
    %1154 = arith.addf %1136, %1153 : vector<18x18xf32>
    %c205 = arith.constant 205 : index
    %1155 = memref.load %arg1[%c205] : memref<448xf32, #tpu.memory_space<smem>>
    %1156 = vector.broadcast %1155 : f32 to vector<18x18xf32>
    %1157 = arith.mulf %1156, %1146 : vector<18x18xf32>
    %1158 = arith.addf %1140, %1157 : vector<18x18xf32>
    %c277 = arith.constant 277 : index
    %1159 = memref.load %arg1[%c277] : memref<448xf32, #tpu.memory_space<smem>>
    %1160 = vector.broadcast %1159 : f32 to vector<18x18xf32>
    %1161 = arith.mulf %1160, %1146 : vector<18x18xf32>
    %1162 = arith.addf %1144, %1161 : vector<18x18xf32>
    %c2_267 = arith.constant 2 : index
    %c2_268 = arith.constant 2 : index
    %c2_269 = arith.constant 2 : index
    %1163 = vector.load %arg7[%c2_267, %c2_268, %c2_269] : memref<4x20x20xf32, #tpu.memory_space<vmem>>, vector<1x18x18xf32>
    %1164 = vector.shape_cast %1163 : vector<1x18x18xf32> to vector<18x18xf32>
    %c62 = arith.constant 62 : index
    %1165 = memref.load %arg1[%c62] : memref<448xf32, #tpu.memory_space<smem>>
    %1166 = vector.broadcast %1165 : f32 to vector<18x18xf32>
    %1167 = arith.mulf %1166, %1164 : vector<18x18xf32>
    %1168 = arith.addf %1150, %1167 : vector<18x18xf32>
    %c134 = arith.constant 134 : index
    %1169 = memref.load %arg1[%c134] : memref<448xf32, #tpu.memory_space<smem>>
    %1170 = vector.broadcast %1169 : f32 to vector<18x18xf32>
    %1171 = arith.mulf %1170, %1164 : vector<18x18xf32>
    %1172 = arith.addf %1154, %1171 : vector<18x18xf32>
    %c206 = arith.constant 206 : index
    %1173 = memref.load %arg1[%c206] : memref<448xf32, #tpu.memory_space<smem>>
    %1174 = vector.broadcast %1173 : f32 to vector<18x18xf32>
    %1175 = arith.mulf %1174, %1164 : vector<18x18xf32>
    %1176 = arith.addf %1158, %1175 : vector<18x18xf32>
    %c278 = arith.constant 278 : index
    %1177 = memref.load %arg1[%c278] : memref<448xf32, #tpu.memory_space<smem>>
    %1178 = vector.broadcast %1177 : f32 to vector<18x18xf32>
    %1179 = arith.mulf %1178, %1164 : vector<18x18xf32>
    %1180 = arith.addf %1162, %1179 : vector<18x18xf32>
    %c3_270 = arith.constant 3 : index
    %c0_271 = arith.constant 0 : index
    %c0_272 = arith.constant 0 : index
    %1181 = vector.load %arg7[%c3_270, %c0_271, %c0_272] : memref<4x20x20xf32, #tpu.memory_space<vmem>>, vector<1x18x18xf32>
    %1182 = vector.shape_cast %1181 : vector<1x18x18xf32> to vector<18x18xf32>
    %c63 = arith.constant 63 : index
    %1183 = memref.load %arg1[%c63] : memref<448xf32, #tpu.memory_space<smem>>
    %1184 = vector.broadcast %1183 : f32 to vector<18x18xf32>
    %1185 = arith.mulf %1184, %1182 : vector<18x18xf32>
    %1186 = arith.addf %1168, %1185 : vector<18x18xf32>
    %c135 = arith.constant 135 : index
    %1187 = memref.load %arg1[%c135] : memref<448xf32, #tpu.memory_space<smem>>
    %1188 = vector.broadcast %1187 : f32 to vector<18x18xf32>
    %1189 = arith.mulf %1188, %1182 : vector<18x18xf32>
    %1190 = arith.addf %1172, %1189 : vector<18x18xf32>
    %c207 = arith.constant 207 : index
    %1191 = memref.load %arg1[%c207] : memref<448xf32, #tpu.memory_space<smem>>
    %1192 = vector.broadcast %1191 : f32 to vector<18x18xf32>
    %1193 = arith.mulf %1192, %1182 : vector<18x18xf32>
    %1194 = arith.addf %1176, %1193 : vector<18x18xf32>
    %c279 = arith.constant 279 : index
    %1195 = memref.load %arg1[%c279] : memref<448xf32, #tpu.memory_space<smem>>
    %1196 = vector.broadcast %1195 : f32 to vector<18x18xf32>
    %1197 = arith.mulf %1196, %1182 : vector<18x18xf32>
    %1198 = arith.addf %1180, %1197 : vector<18x18xf32>
    %c3_273 = arith.constant 3 : index
    %c0_274 = arith.constant 0 : index
    %c1_275 = arith.constant 1 : index
    %1199 = vector.load %arg7[%c3_273, %c0_274, %c1_275] : memref<4x20x20xf32, #tpu.memory_space<vmem>>, vector<1x18x18xf32>
    %1200 = vector.shape_cast %1199 : vector<1x18x18xf32> to vector<18x18xf32>
    %c64 = arith.constant 64 : index
    %1201 = memref.load %arg1[%c64] : memref<448xf32, #tpu.memory_space<smem>>
    %1202 = vector.broadcast %1201 : f32 to vector<18x18xf32>
    %1203 = arith.mulf %1202, %1200 : vector<18x18xf32>
    %1204 = arith.addf %1186, %1203 : vector<18x18xf32>
    %c136 = arith.constant 136 : index
    %1205 = memref.load %arg1[%c136] : memref<448xf32, #tpu.memory_space<smem>>
    %1206 = vector.broadcast %1205 : f32 to vector<18x18xf32>
    %1207 = arith.mulf %1206, %1200 : vector<18x18xf32>
    %1208 = arith.addf %1190, %1207 : vector<18x18xf32>
    %c208 = arith.constant 208 : index
    %1209 = memref.load %arg1[%c208] : memref<448xf32, #tpu.memory_space<smem>>
    %1210 = vector.broadcast %1209 : f32 to vector<18x18xf32>
    %1211 = arith.mulf %1210, %1200 : vector<18x18xf32>
    %1212 = arith.addf %1194, %1211 : vector<18x18xf32>
    %c280 = arith.constant 280 : index
    %1213 = memref.load %arg1[%c280] : memref<448xf32, #tpu.memory_space<smem>>
    %1214 = vector.broadcast %1213 : f32 to vector<18x18xf32>
    %1215 = arith.mulf %1214, %1200 : vector<18x18xf32>
    %1216 = arith.addf %1198, %1215 : vector<18x18xf32>
    %c3_276 = arith.constant 3 : index
    %c0_277 = arith.constant 0 : index
    %c2_278 = arith.constant 2 : index
    %1217 = vector.load %arg7[%c3_276, %c0_277, %c2_278] : memref<4x20x20xf32, #tpu.memory_space<vmem>>, vector<1x18x18xf32>
    %1218 = vector.shape_cast %1217 : vector<1x18x18xf32> to vector<18x18xf32>
    %c65 = arith.constant 65 : index
    %1219 = memref.load %arg1[%c65] : memref<448xf32, #tpu.memory_space<smem>>
    %1220 = vector.broadcast %1219 : f32 to vector<18x18xf32>
    %1221 = arith.mulf %1220, %1218 : vector<18x18xf32>
    %1222 = arith.addf %1204, %1221 : vector<18x18xf32>
    %c137 = arith.constant 137 : index
    %1223 = memref.load %arg1[%c137] : memref<448xf32, #tpu.memory_space<smem>>
    %1224 = vector.broadcast %1223 : f32 to vector<18x18xf32>
    %1225 = arith.mulf %1224, %1218 : vector<18x18xf32>
    %1226 = arith.addf %1208, %1225 : vector<18x18xf32>
    %c209 = arith.constant 209 : index
    %1227 = memref.load %arg1[%c209] : memref<448xf32, #tpu.memory_space<smem>>
    %1228 = vector.broadcast %1227 : f32 to vector<18x18xf32>
    %1229 = arith.mulf %1228, %1218 : vector<18x18xf32>
    %1230 = arith.addf %1212, %1229 : vector<18x18xf32>
    %c281 = arith.constant 281 : index
    %1231 = memref.load %arg1[%c281] : memref<448xf32, #tpu.memory_space<smem>>
    %1232 = vector.broadcast %1231 : f32 to vector<18x18xf32>
    %1233 = arith.mulf %1232, %1218 : vector<18x18xf32>
    %1234 = arith.addf %1216, %1233 : vector<18x18xf32>
    %c3_279 = arith.constant 3 : index
    %c1_280 = arith.constant 1 : index
    %c0_281 = arith.constant 0 : index
    %1235 = vector.load %arg7[%c3_279, %c1_280, %c0_281] : memref<4x20x20xf32, #tpu.memory_space<vmem>>, vector<1x18x18xf32>
    %1236 = vector.shape_cast %1235 : vector<1x18x18xf32> to vector<18x18xf32>
    %c66 = arith.constant 66 : index
    %1237 = memref.load %arg1[%c66] : memref<448xf32, #tpu.memory_space<smem>>
    %1238 = vector.broadcast %1237 : f32 to vector<18x18xf32>
    %1239 = arith.mulf %1238, %1236 : vector<18x18xf32>
    %1240 = arith.addf %1222, %1239 : vector<18x18xf32>
    %c138 = arith.constant 138 : index
    %1241 = memref.load %arg1[%c138] : memref<448xf32, #tpu.memory_space<smem>>
    %1242 = vector.broadcast %1241 : f32 to vector<18x18xf32>
    %1243 = arith.mulf %1242, %1236 : vector<18x18xf32>
    %1244 = arith.addf %1226, %1243 : vector<18x18xf32>
    %c210 = arith.constant 210 : index
    %1245 = memref.load %arg1[%c210] : memref<448xf32, #tpu.memory_space<smem>>
    %1246 = vector.broadcast %1245 : f32 to vector<18x18xf32>
    %1247 = arith.mulf %1246, %1236 : vector<18x18xf32>
    %1248 = arith.addf %1230, %1247 : vector<18x18xf32>
    %c282 = arith.constant 282 : index
    %1249 = memref.load %arg1[%c282] : memref<448xf32, #tpu.memory_space<smem>>
    %1250 = vector.broadcast %1249 : f32 to vector<18x18xf32>
    %1251 = arith.mulf %1250, %1236 : vector<18x18xf32>
    %1252 = arith.addf %1234, %1251 : vector<18x18xf32>
    %c3_282 = arith.constant 3 : index
    %c1_283 = arith.constant 1 : index
    %c1_284 = arith.constant 1 : index
    %1253 = vector.load %arg7[%c3_282, %c1_283, %c1_284] : memref<4x20x20xf32, #tpu.memory_space<vmem>>, vector<1x18x18xf32>
    %1254 = vector.shape_cast %1253 : vector<1x18x18xf32> to vector<18x18xf32>
    %c67 = arith.constant 67 : index
    %1255 = memref.load %arg1[%c67] : memref<448xf32, #tpu.memory_space<smem>>
    %1256 = vector.broadcast %1255 : f32 to vector<18x18xf32>
    %1257 = arith.mulf %1256, %1254 : vector<18x18xf32>
    %1258 = arith.addf %1240, %1257 : vector<18x18xf32>
    %c139 = arith.constant 139 : index
    %1259 = memref.load %arg1[%c139] : memref<448xf32, #tpu.memory_space<smem>>
    %1260 = vector.broadcast %1259 : f32 to vector<18x18xf32>
    %1261 = arith.mulf %1260, %1254 : vector<18x18xf32>
    %1262 = arith.addf %1244, %1261 : vector<18x18xf32>
    %c211 = arith.constant 211 : index
    %1263 = memref.load %arg1[%c211] : memref<448xf32, #tpu.memory_space<smem>>
    %1264 = vector.broadcast %1263 : f32 to vector<18x18xf32>
    %1265 = arith.mulf %1264, %1254 : vector<18x18xf32>
    %1266 = arith.addf %1248, %1265 : vector<18x18xf32>
    %c283 = arith.constant 283 : index
    %1267 = memref.load %arg1[%c283] : memref<448xf32, #tpu.memory_space<smem>>
    %1268 = vector.broadcast %1267 : f32 to vector<18x18xf32>
    %1269 = arith.mulf %1268, %1254 : vector<18x18xf32>
    %1270 = arith.addf %1252, %1269 : vector<18x18xf32>
    %c3_285 = arith.constant 3 : index
    %c1_286 = arith.constant 1 : index
    %c2_287 = arith.constant 2 : index
    %1271 = vector.load %arg7[%c3_285, %c1_286, %c2_287] : memref<4x20x20xf32, #tpu.memory_space<vmem>>, vector<1x18x18xf32>
    %1272 = vector.shape_cast %1271 : vector<1x18x18xf32> to vector<18x18xf32>
    %c68 = arith.constant 68 : index
    %1273 = memref.load %arg1[%c68] : memref<448xf32, #tpu.memory_space<smem>>
    %1274 = vector.broadcast %1273 : f32 to vector<18x18xf32>
    %1275 = arith.mulf %1274, %1272 : vector<18x18xf32>
    %1276 = arith.addf %1258, %1275 : vector<18x18xf32>
    %c140 = arith.constant 140 : index
    %1277 = memref.load %arg1[%c140] : memref<448xf32, #tpu.memory_space<smem>>
    %1278 = vector.broadcast %1277 : f32 to vector<18x18xf32>
    %1279 = arith.mulf %1278, %1272 : vector<18x18xf32>
    %1280 = arith.addf %1262, %1279 : vector<18x18xf32>
    %c212 = arith.constant 212 : index
    %1281 = memref.load %arg1[%c212] : memref<448xf32, #tpu.memory_space<smem>>
    %1282 = vector.broadcast %1281 : f32 to vector<18x18xf32>
    %1283 = arith.mulf %1282, %1272 : vector<18x18xf32>
    %1284 = arith.addf %1266, %1283 : vector<18x18xf32>
    %c284 = arith.constant 284 : index
    %1285 = memref.load %arg1[%c284] : memref<448xf32, #tpu.memory_space<smem>>
    %1286 = vector.broadcast %1285 : f32 to vector<18x18xf32>
    %1287 = arith.mulf %1286, %1272 : vector<18x18xf32>
    %1288 = arith.addf %1270, %1287 : vector<18x18xf32>
    %c3_288 = arith.constant 3 : index
    %c2_289 = arith.constant 2 : index
    %c0_290 = arith.constant 0 : index
    %1289 = vector.load %arg7[%c3_288, %c2_289, %c0_290] : memref<4x20x20xf32, #tpu.memory_space<vmem>>, vector<1x18x18xf32>
    %1290 = vector.shape_cast %1289 : vector<1x18x18xf32> to vector<18x18xf32>
    %c69 = arith.constant 69 : index
    %1291 = memref.load %arg1[%c69] : memref<448xf32, #tpu.memory_space<smem>>
    %1292 = vector.broadcast %1291 : f32 to vector<18x18xf32>
    %1293 = arith.mulf %1292, %1290 : vector<18x18xf32>
    %1294 = arith.addf %1276, %1293 : vector<18x18xf32>
    %c141 = arith.constant 141 : index
    %1295 = memref.load %arg1[%c141] : memref<448xf32, #tpu.memory_space<smem>>
    %1296 = vector.broadcast %1295 : f32 to vector<18x18xf32>
    %1297 = arith.mulf %1296, %1290 : vector<18x18xf32>
    %1298 = arith.addf %1280, %1297 : vector<18x18xf32>
    %c213 = arith.constant 213 : index
    %1299 = memref.load %arg1[%c213] : memref<448xf32, #tpu.memory_space<smem>>
    %1300 = vector.broadcast %1299 : f32 to vector<18x18xf32>
    %1301 = arith.mulf %1300, %1290 : vector<18x18xf32>
    %1302 = arith.addf %1284, %1301 : vector<18x18xf32>
    %c285 = arith.constant 285 : index
    %1303 = memref.load %arg1[%c285] : memref<448xf32, #tpu.memory_space<smem>>
    %1304 = vector.broadcast %1303 : f32 to vector<18x18xf32>
    %1305 = arith.mulf %1304, %1290 : vector<18x18xf32>
    %1306 = arith.addf %1288, %1305 : vector<18x18xf32>
    %c3_291 = arith.constant 3 : index
    %c2_292 = arith.constant 2 : index
    %c1_293 = arith.constant 1 : index
    %1307 = vector.load %arg7[%c3_291, %c2_292, %c1_293] : memref<4x20x20xf32, #tpu.memory_space<vmem>>, vector<1x18x18xf32>
    %1308 = vector.shape_cast %1307 : vector<1x18x18xf32> to vector<18x18xf32>
    %c70 = arith.constant 70 : index
    %1309 = memref.load %arg1[%c70] : memref<448xf32, #tpu.memory_space<smem>>
    %1310 = vector.broadcast %1309 : f32 to vector<18x18xf32>
    %1311 = arith.mulf %1310, %1308 : vector<18x18xf32>
    %1312 = arith.addf %1294, %1311 : vector<18x18xf32>
    %c142 = arith.constant 142 : index
    %1313 = memref.load %arg1[%c142] : memref<448xf32, #tpu.memory_space<smem>>
    %1314 = vector.broadcast %1313 : f32 to vector<18x18xf32>
    %1315 = arith.mulf %1314, %1308 : vector<18x18xf32>
    %1316 = arith.addf %1298, %1315 : vector<18x18xf32>
    %c214 = arith.constant 214 : index
    %1317 = memref.load %arg1[%c214] : memref<448xf32, #tpu.memory_space<smem>>
    %1318 = vector.broadcast %1317 : f32 to vector<18x18xf32>
    %1319 = arith.mulf %1318, %1308 : vector<18x18xf32>
    %1320 = arith.addf %1302, %1319 : vector<18x18xf32>
    %c286 = arith.constant 286 : index
    %1321 = memref.load %arg1[%c286] : memref<448xf32, #tpu.memory_space<smem>>
    %1322 = vector.broadcast %1321 : f32 to vector<18x18xf32>
    %1323 = arith.mulf %1322, %1308 : vector<18x18xf32>
    %1324 = arith.addf %1306, %1323 : vector<18x18xf32>
    %c3_294 = arith.constant 3 : index
    %c2_295 = arith.constant 2 : index
    %c2_296 = arith.constant 2 : index
    %1325 = vector.load %arg7[%c3_294, %c2_295, %c2_296] : memref<4x20x20xf32, #tpu.memory_space<vmem>>, vector<1x18x18xf32>
    %1326 = vector.shape_cast %1325 : vector<1x18x18xf32> to vector<18x18xf32>
    %c71 = arith.constant 71 : index
    %1327 = memref.load %arg1[%c71] : memref<448xf32, #tpu.memory_space<smem>>
    %1328 = vector.broadcast %1327 : f32 to vector<18x18xf32>
    %1329 = arith.mulf %1328, %1326 : vector<18x18xf32>
    %1330 = arith.addf %1312, %1329 : vector<18x18xf32>
    %c143 = arith.constant 143 : index
    %1331 = memref.load %arg1[%c143] : memref<448xf32, #tpu.memory_space<smem>>
    %1332 = vector.broadcast %1331 : f32 to vector<18x18xf32>
    %1333 = arith.mulf %1332, %1326 : vector<18x18xf32>
    %1334 = arith.addf %1316, %1333 : vector<18x18xf32>
    %c215 = arith.constant 215 : index
    %1335 = memref.load %arg1[%c215] : memref<448xf32, #tpu.memory_space<smem>>
    %1336 = vector.broadcast %1335 : f32 to vector<18x18xf32>
    %1337 = arith.mulf %1336, %1326 : vector<18x18xf32>
    %1338 = arith.addf %1320, %1337 : vector<18x18xf32>
    %c287 = arith.constant 287 : index
    %1339 = memref.load %arg1[%c287] : memref<448xf32, #tpu.memory_space<smem>>
    %1340 = vector.broadcast %1339 : f32 to vector<18x18xf32>
    %1341 = arith.mulf %1340, %1326 : vector<18x18xf32>
    %1342 = arith.addf %1324, %1341 : vector<18x18xf32>
    %c432 = arith.constant 432 : index
    %1343 = memref.load %arg1[%c432] : memref<448xf32, #tpu.memory_space<smem>>
    %1344 = vector.broadcast %1343 : f32 to vector<18x18xf32>
    %1345 = arith.mulf %1330, %1344 : vector<18x18xf32>
    %c436 = arith.constant 436 : index
    %1346 = memref.load %arg1[%c436] : memref<448xf32, #tpu.memory_space<smem>>
    %1347 = vector.broadcast %1346 : f32 to vector<18x18xf32>
    %1348 = arith.addf %1345, %1347 : vector<18x18xf32>
    %cst_297 = arith.constant 0.000000e+00 : f32
    %1349 = vector.broadcast %cst_297 : f32 to vector<18x18xf32>
    %1350 = arith.maximumf %1348, %1349 : vector<18x18xf32>
    %cst_298 = arith.constant 0.000000e+00 : f32
    %1351 = vector.broadcast %cst_298 : f32 to vector<18x18xf32>
    %1352 = arith.select %42, %1350, %1351 : vector<18x18xi1>, vector<18x18xf32>
    %c0_299 = arith.constant 0 : index
    %c0_300 = arith.constant 0 : index
    %c0_301 = arith.constant 0 : index
    %1353 = vector.load %arg8[%c0_299, %c0_300, %c0_301] : memref<4x18x18xf32, #tpu.memory_space<vmem>>, vector<1x18x18xf32>
    %1354 = vector.shape_cast %1353 : vector<1x18x18xf32> to vector<18x18xf32>
    %1355 = vector.shape_cast %1352 : vector<18x18xf32> to vector<1x18x18xf32>
    tpu.vector_store %arg8[%c0_299, %c0_300, %c0_301], %1355 {strides = array<i32>} : memref<4x18x18xf32, #tpu.memory_space<vmem>>, vector<1x18x18xf32>,
    %c433 = arith.constant 433 : index
    %1356 = memref.load %arg1[%c433] : memref<448xf32, #tpu.memory_space<smem>>
    %1357 = vector.broadcast %1356 : f32 to vector<18x18xf32>
    %1358 = arith.mulf %1334, %1357 : vector<18x18xf32>
    %c437 = arith.constant 437 : index
    %1359 = memref.load %arg1[%c437] : memref<448xf32, #tpu.memory_space<smem>>
    %1360 = vector.broadcast %1359 : f32 to vector<18x18xf32>
    %1361 = arith.addf %1358, %1360 : vector<18x18xf32>
    %cst_302 = arith.constant 0.000000e+00 : f32
    %1362 = vector.broadcast %cst_302 : f32 to vector<18x18xf32>
    %1363 = arith.maximumf %1361, %1362 : vector<18x18xf32>
    %cst_303 = arith.constant 0.000000e+00 : f32
    %1364 = vector.broadcast %cst_303 : f32 to vector<18x18xf32>
    %1365 = arith.select %42, %1363, %1364 : vector<18x18xi1>, vector<18x18xf32>
    %c1_304 = arith.constant 1 : index
    %c0_305 = arith.constant 0 : index
    %c0_306 = arith.constant 0 : index
    %1366 = vector.load %arg8[%c1_304, %c0_305, %c0_306] : memref<4x18x18xf32, #tpu.memory_space<vmem>>, vector<1x18x18xf32>
    %1367 = vector.shape_cast %1366 : vector<1x18x18xf32> to vector<18x18xf32>
    %1368 = vector.shape_cast %1365 : vector<18x18xf32> to vector<1x18x18xf32>
    tpu.vector_store %arg8[%c1_304, %c0_305, %c0_306], %1368 {strides = array<i32>} : memref<4x18x18xf32, #tpu.memory_space<vmem>>, vector<1x18x18xf32>,
    %c434 = arith.constant 434 : index
    %1369 = memref.load %arg1[%c434] : memref<448xf32, #tpu.memory_space<smem>>
    %1370 = vector.broadcast %1369 : f32 to vector<18x18xf32>
    %1371 = arith.mulf %1338, %1370 : vector<18x18xf32>
    %c438 = arith.constant 438 : index
    %1372 = memref.load %arg1[%c438] : memref<448xf32, #tpu.memory_space<smem>>
    %1373 = vector.broadcast %1372 : f32 to vector<18x18xf32>
    %1374 = arith.addf %1371, %1373 : vector<18x18xf32>
    %cst_307 = arith.constant 0.000000e+00 : f32
    %1375 = vector.broadcast %cst_307 : f32 to vector<18x18xf32>
    %1376 = arith.maximumf %1374, %1375 : vector<18x18xf32>
    %cst_308 = arith.constant 0.000000e+00 : f32
    %1377 = vector.broadcast %cst_308 : f32 to vector<18x18xf32>
    %1378 = arith.select %42, %1376, %1377 : vector<18x18xi1>, vector<18x18xf32>
    %c2_309 = arith.constant 2 : index
    %c0_310 = arith.constant 0 : index
    %c0_311 = arith.constant 0 : index
    %1379 = vector.load %arg8[%c2_309, %c0_310, %c0_311] : memref<4x18x18xf32, #tpu.memory_space<vmem>>, vector<1x18x18xf32>
    %1380 = vector.shape_cast %1379 : vector<1x18x18xf32> to vector<18x18xf32>
    %1381 = vector.shape_cast %1378 : vector<18x18xf32> to vector<1x18x18xf32>
    tpu.vector_store %arg8[%c2_309, %c0_310, %c0_311], %1381 {strides = array<i32>} : memref<4x18x18xf32, #tpu.memory_space<vmem>>, vector<1x18x18xf32>,
    %c435 = arith.constant 435 : index
    %1382 = memref.load %arg1[%c435] : memref<448xf32, #tpu.memory_space<smem>>
    %1383 = vector.broadcast %1382 : f32 to vector<18x18xf32>
    %1384 = arith.mulf %1342, %1383 : vector<18x18xf32>
    %c439 = arith.constant 439 : index
    %1385 = memref.load %arg1[%c439] : memref<448xf32, #tpu.memory_space<smem>>
    %1386 = vector.broadcast %1385 : f32 to vector<18x18xf32>
    %1387 = arith.addf %1384, %1386 : vector<18x18xf32>
    %cst_312 = arith.constant 0.000000e+00 : f32
    %1388 = vector.broadcast %cst_312 : f32 to vector<18x18xf32>
    %1389 = arith.maximumf %1387, %1388 : vector<18x18xf32>
    %cst_313 = arith.constant 0.000000e+00 : f32
    %1390 = vector.broadcast %cst_313 : f32 to vector<18x18xf32>
    %1391 = arith.select %42, %1389, %1390 : vector<18x18xi1>, vector<18x18xf32>
    %c3_314 = arith.constant 3 : index
    %c0_315 = arith.constant 0 : index
    %c0_316 = arith.constant 0 : index
    %1392 = vector.load %arg8[%c3_314, %c0_315, %c0_316] : memref<4x18x18xf32, #tpu.memory_space<vmem>>, vector<1x18x18xf32>
    %1393 = vector.shape_cast %1392 : vector<1x18x18xf32> to vector<18x18xf32>
    %1394 = vector.shape_cast %1391 : vector<18x18xf32> to vector<1x18x18xf32>
    tpu.vector_store %arg8[%c3_314, %c0_315, %c0_316], %1394 {strides = array<i32>} : memref<4x18x18xf32, #tpu.memory_space<vmem>>, vector<1x18x18xf32>,
    %cst_317 = arith.constant 0.000000e+00 : f32
    %1395 = vector.broadcast %cst_317 : f32 to vector<16x16xf32>
    %cst_318 = arith.constant 0.000000e+00 : f32
    %1396 = vector.broadcast %cst_318 : f32 to vector<16x16xf32>
    %cst_319 = arith.constant 0.000000e+00 : f32
    %1397 = vector.broadcast %cst_319 : f32 to vector<16x16xf32>
    %cst_320 = arith.constant 0.000000e+00 : f32
    %1398 = vector.broadcast %cst_320 : f32 to vector<16x16xf32>
    %c0_321 = arith.constant 0 : index
    %c0_322 = arith.constant 0 : index
    %c0_323 = arith.constant 0 : index
    %1399 = vector.load %arg8[%c0_321, %c0_322, %c0_323] : memref<4x18x18xf32, #tpu.memory_space<vmem>>, vector<1x16x16xf32>
    %1400 = vector.shape_cast %1399 : vector<1x16x16xf32> to vector<16x16xf32>
    %c288 = arith.constant 288 : index
    %1401 = memref.load %arg1[%c288] : memref<448xf32, #tpu.memory_space<smem>>
    %1402 = vector.broadcast %1401 : f32 to vector<16x16xf32>
    %1403 = arith.mulf %1402, %1400 : vector<16x16xf32>
    %1404 = arith.addf %1395, %1403 : vector<16x16xf32>
    %c324 = arith.constant 324 : index
    %1405 = memref.load %arg1[%c324] : memref<448xf32, #tpu.memory_space<smem>>
    %1406 = vector.broadcast %1405 : f32 to vector<16x16xf32>
    %1407 = arith.mulf %1406, %1400 : vector<16x16xf32>
    %1408 = arith.addf %1396, %1407 : vector<16x16xf32>
    %c360 = arith.constant 360 : index
    %1409 = memref.load %arg1[%c360] : memref<448xf32, #tpu.memory_space<smem>>
    %1410 = vector.broadcast %1409 : f32 to vector<16x16xf32>
    %1411 = arith.mulf %1410, %1400 : vector<16x16xf32>
    %1412 = arith.addf %1397, %1411 : vector<16x16xf32>
    %c396 = arith.constant 396 : index
    %1413 = memref.load %arg1[%c396] : memref<448xf32, #tpu.memory_space<smem>>
    %1414 = vector.broadcast %1413 : f32 to vector<16x16xf32>
    %1415 = arith.mulf %1414, %1400 : vector<16x16xf32>
    %1416 = arith.addf %1398, %1415 : vector<16x16xf32>
    %c0_324 = arith.constant 0 : index
    %c0_325 = arith.constant 0 : index
    %c1_326 = arith.constant 1 : index
    %1417 = vector.load %arg8[%c0_324, %c0_325, %c1_326] : memref<4x18x18xf32, #tpu.memory_space<vmem>>, vector<1x16x16xf32>
    %1418 = vector.shape_cast %1417 : vector<1x16x16xf32> to vector<16x16xf32>
    %c289 = arith.constant 289 : index
    %1419 = memref.load %arg1[%c289] : memref<448xf32, #tpu.memory_space<smem>>
    %1420 = vector.broadcast %1419 : f32 to vector<16x16xf32>
    %1421 = arith.mulf %1420, %1418 : vector<16x16xf32>
    %1422 = arith.addf %1404, %1421 : vector<16x16xf32>
    %c325 = arith.constant 325 : index
    %1423 = memref.load %arg1[%c325] : memref<448xf32, #tpu.memory_space<smem>>
    %1424 = vector.broadcast %1423 : f32 to vector<16x16xf32>
    %1425 = arith.mulf %1424, %1418 : vector<16x16xf32>
    %1426 = arith.addf %1408, %1425 : vector<16x16xf32>
    %c361 = arith.constant 361 : index
    %1427 = memref.load %arg1[%c361] : memref<448xf32, #tpu.memory_space<smem>>
    %1428 = vector.broadcast %1427 : f32 to vector<16x16xf32>
    %1429 = arith.mulf %1428, %1418 : vector<16x16xf32>
    %1430 = arith.addf %1412, %1429 : vector<16x16xf32>
    %c397 = arith.constant 397 : index
    %1431 = memref.load %arg1[%c397] : memref<448xf32, #tpu.memory_space<smem>>
    %1432 = vector.broadcast %1431 : f32 to vector<16x16xf32>
    %1433 = arith.mulf %1432, %1418 : vector<16x16xf32>
    %1434 = arith.addf %1416, %1433 : vector<16x16xf32>
    %c0_327 = arith.constant 0 : index
    %c0_328 = arith.constant 0 : index
    %c2_329 = arith.constant 2 : index
    %1435 = vector.load %arg8[%c0_327, %c0_328, %c2_329] : memref<4x18x18xf32, #tpu.memory_space<vmem>>, vector<1x16x16xf32>
    %1436 = vector.shape_cast %1435 : vector<1x16x16xf32> to vector<16x16xf32>
    %c290 = arith.constant 290 : index
    %1437 = memref.load %arg1[%c290] : memref<448xf32, #tpu.memory_space<smem>>
    %1438 = vector.broadcast %1437 : f32 to vector<16x16xf32>
    %1439 = arith.mulf %1438, %1436 : vector<16x16xf32>
    %1440 = arith.addf %1422, %1439 : vector<16x16xf32>
    %c326 = arith.constant 326 : index
    %1441 = memref.load %arg1[%c326] : memref<448xf32, #tpu.memory_space<smem>>
    %1442 = vector.broadcast %1441 : f32 to vector<16x16xf32>
    %1443 = arith.mulf %1442, %1436 : vector<16x16xf32>
    %1444 = arith.addf %1426, %1443 : vector<16x16xf32>
    %c362 = arith.constant 362 : index
    %1445 = memref.load %arg1[%c362] : memref<448xf32, #tpu.memory_space<smem>>
    %1446 = vector.broadcast %1445 : f32 to vector<16x16xf32>
    %1447 = arith.mulf %1446, %1436 : vector<16x16xf32>
    %1448 = arith.addf %1430, %1447 : vector<16x16xf32>
    %c398 = arith.constant 398 : index
    %1449 = memref.load %arg1[%c398] : memref<448xf32, #tpu.memory_space<smem>>
    %1450 = vector.broadcast %1449 : f32 to vector<16x16xf32>
    %1451 = arith.mulf %1450, %1436 : vector<16x16xf32>
    %1452 = arith.addf %1434, %1451 : vector<16x16xf32>
    %c0_330 = arith.constant 0 : index
    %c1_331 = arith.constant 1 : index
    %c0_332 = arith.constant 0 : index
    %1453 = vector.load %arg8[%c0_330, %c1_331, %c0_332] : memref<4x18x18xf32, #tpu.memory_space<vmem>>, vector<1x16x16xf32>
    %1454 = vector.shape_cast %1453 : vector<1x16x16xf32> to vector<16x16xf32>
    %c291 = arith.constant 291 : index
    %1455 = memref.load %arg1[%c291] : memref<448xf32, #tpu.memory_space<smem>>
    %1456 = vector.broadcast %1455 : f32 to vector<16x16xf32>
    %1457 = arith.mulf %1456, %1454 : vector<16x16xf32>
    %1458 = arith.addf %1440, %1457 : vector<16x16xf32>
    %c327 = arith.constant 327 : index
    %1459 = memref.load %arg1[%c327] : memref<448xf32, #tpu.memory_space<smem>>
    %1460 = vector.broadcast %1459 : f32 to vector<16x16xf32>
    %1461 = arith.mulf %1460, %1454 : vector<16x16xf32>
    %1462 = arith.addf %1444, %1461 : vector<16x16xf32>
    %c363 = arith.constant 363 : index
    %1463 = memref.load %arg1[%c363] : memref<448xf32, #tpu.memory_space<smem>>
    %1464 = vector.broadcast %1463 : f32 to vector<16x16xf32>
    %1465 = arith.mulf %1464, %1454 : vector<16x16xf32>
    %1466 = arith.addf %1448, %1465 : vector<16x16xf32>
    %c399 = arith.constant 399 : index
    %1467 = memref.load %arg1[%c399] : memref<448xf32, #tpu.memory_space<smem>>
    %1468 = vector.broadcast %1467 : f32 to vector<16x16xf32>
    %1469 = arith.mulf %1468, %1454 : vector<16x16xf32>
    %1470 = arith.addf %1452, %1469 : vector<16x16xf32>
    %c0_333 = arith.constant 0 : index
    %c1_334 = arith.constant 1 : index
    %c1_335 = arith.constant 1 : index
    %1471 = vector.load %arg8[%c0_333, %c1_334, %c1_335] : memref<4x18x18xf32, #tpu.memory_space<vmem>>, vector<1x16x16xf32>
    %1472 = vector.shape_cast %1471 : vector<1x16x16xf32> to vector<16x16xf32>
    %c292 = arith.constant 292 : index
    %1473 = memref.load %arg1[%c292] : memref<448xf32, #tpu.memory_space<smem>>
    %1474 = vector.broadcast %1473 : f32 to vector<16x16xf32>
    %1475 = arith.mulf %1474, %1472 : vector<16x16xf32>
    %1476 = arith.addf %1458, %1475 : vector<16x16xf32>
    %c328 = arith.constant 328 : index
    %1477 = memref.load %arg1[%c328] : memref<448xf32, #tpu.memory_space<smem>>
    %1478 = vector.broadcast %1477 : f32 to vector<16x16xf32>
    %1479 = arith.mulf %1478, %1472 : vector<16x16xf32>
    %1480 = arith.addf %1462, %1479 : vector<16x16xf32>
    %c364 = arith.constant 364 : index
    %1481 = memref.load %arg1[%c364] : memref<448xf32, #tpu.memory_space<smem>>
    %1482 = vector.broadcast %1481 : f32 to vector<16x16xf32>
    %1483 = arith.mulf %1482, %1472 : vector<16x16xf32>
    %1484 = arith.addf %1466, %1483 : vector<16x16xf32>
    %c400 = arith.constant 400 : index
    %1485 = memref.load %arg1[%c400] : memref<448xf32, #tpu.memory_space<smem>>
    %1486 = vector.broadcast %1485 : f32 to vector<16x16xf32>
    %1487 = arith.mulf %1486, %1472 : vector<16x16xf32>
    %1488 = arith.addf %1470, %1487 : vector<16x16xf32>
    %c0_336 = arith.constant 0 : index
    %c1_337 = arith.constant 1 : index
    %c2_338 = arith.constant 2 : index
    %1489 = vector.load %arg8[%c0_336, %c1_337, %c2_338] : memref<4x18x18xf32, #tpu.memory_space<vmem>>, vector<1x16x16xf32>
    %1490 = vector.shape_cast %1489 : vector<1x16x16xf32> to vector<16x16xf32>
    %c293 = arith.constant 293 : index
    %1491 = memref.load %arg1[%c293] : memref<448xf32, #tpu.memory_space<smem>>
    %1492 = vector.broadcast %1491 : f32 to vector<16x16xf32>
    %1493 = arith.mulf %1492, %1490 : vector<16x16xf32>
    %1494 = arith.addf %1476, %1493 : vector<16x16xf32>
    %c329 = arith.constant 329 : index
    %1495 = memref.load %arg1[%c329] : memref<448xf32, #tpu.memory_space<smem>>
    %1496 = vector.broadcast %1495 : f32 to vector<16x16xf32>
    %1497 = arith.mulf %1496, %1490 : vector<16x16xf32>
    %1498 = arith.addf %1480, %1497 : vector<16x16xf32>
    %c365 = arith.constant 365 : index
    %1499 = memref.load %arg1[%c365] : memref<448xf32, #tpu.memory_space<smem>>
    %1500 = vector.broadcast %1499 : f32 to vector<16x16xf32>
    %1501 = arith.mulf %1500, %1490 : vector<16x16xf32>
    %1502 = arith.addf %1484, %1501 : vector<16x16xf32>
    %c401 = arith.constant 401 : index
    %1503 = memref.load %arg1[%c401] : memref<448xf32, #tpu.memory_space<smem>>
    %1504 = vector.broadcast %1503 : f32 to vector<16x16xf32>
    %1505 = arith.mulf %1504, %1490 : vector<16x16xf32>
    %1506 = arith.addf %1488, %1505 : vector<16x16xf32>
    %c0_339 = arith.constant 0 : index
    %c2_340 = arith.constant 2 : index
    %c0_341 = arith.constant 0 : index
    %1507 = vector.load %arg8[%c0_339, %c2_340, %c0_341] : memref<4x18x18xf32, #tpu.memory_space<vmem>>, vector<1x16x16xf32>
    %1508 = vector.shape_cast %1507 : vector<1x16x16xf32> to vector<16x16xf32>
    %c294 = arith.constant 294 : index
    %1509 = memref.load %arg1[%c294] : memref<448xf32, #tpu.memory_space<smem>>
    %1510 = vector.broadcast %1509 : f32 to vector<16x16xf32>
    %1511 = arith.mulf %1510, %1508 : vector<16x16xf32>
    %1512 = arith.addf %1494, %1511 : vector<16x16xf32>
    %c330 = arith.constant 330 : index
    %1513 = memref.load %arg1[%c330] : memref<448xf32, #tpu.memory_space<smem>>
    %1514 = vector.broadcast %1513 : f32 to vector<16x16xf32>
    %1515 = arith.mulf %1514, %1508 : vector<16x16xf32>
    %1516 = arith.addf %1498, %1515 : vector<16x16xf32>
    %c366 = arith.constant 366 : index
    %1517 = memref.load %arg1[%c366] : memref<448xf32, #tpu.memory_space<smem>>
    %1518 = vector.broadcast %1517 : f32 to vector<16x16xf32>
    %1519 = arith.mulf %1518, %1508 : vector<16x16xf32>
    %1520 = arith.addf %1502, %1519 : vector<16x16xf32>
    %c402 = arith.constant 402 : index
    %1521 = memref.load %arg1[%c402] : memref<448xf32, #tpu.memory_space<smem>>
    %1522 = vector.broadcast %1521 : f32 to vector<16x16xf32>
    %1523 = arith.mulf %1522, %1508 : vector<16x16xf32>
    %1524 = arith.addf %1506, %1523 : vector<16x16xf32>
    %c0_342 = arith.constant 0 : index
    %c2_343 = arith.constant 2 : index
    %c1_344 = arith.constant 1 : index
    %1525 = vector.load %arg8[%c0_342, %c2_343, %c1_344] : memref<4x18x18xf32, #tpu.memory_space<vmem>>, vector<1x16x16xf32>
    %1526 = vector.shape_cast %1525 : vector<1x16x16xf32> to vector<16x16xf32>
    %c295 = arith.constant 295 : index
    %1527 = memref.load %arg1[%c295] : memref<448xf32, #tpu.memory_space<smem>>
    %1528 = vector.broadcast %1527 : f32 to vector<16x16xf32>
    %1529 = arith.mulf %1528, %1526 : vector<16x16xf32>
    %1530 = arith.addf %1512, %1529 : vector<16x16xf32>
    %c331 = arith.constant 331 : index
    %1531 = memref.load %arg1[%c331] : memref<448xf32, #tpu.memory_space<smem>>
    %1532 = vector.broadcast %1531 : f32 to vector<16x16xf32>
    %1533 = arith.mulf %1532, %1526 : vector<16x16xf32>
    %1534 = arith.addf %1516, %1533 : vector<16x16xf32>
    %c367 = arith.constant 367 : index
    %1535 = memref.load %arg1[%c367] : memref<448xf32, #tpu.memory_space<smem>>
    %1536 = vector.broadcast %1535 : f32 to vector<16x16xf32>
    %1537 = arith.mulf %1536, %1526 : vector<16x16xf32>
    %1538 = arith.addf %1520, %1537 : vector<16x16xf32>
    %c403 = arith.constant 403 : index
    %1539 = memref.load %arg1[%c403] : memref<448xf32, #tpu.memory_space<smem>>
    %1540 = vector.broadcast %1539 : f32 to vector<16x16xf32>
    %1541 = arith.mulf %1540, %1526 : vector<16x16xf32>
    %1542 = arith.addf %1524, %1541 : vector<16x16xf32>
    %c0_345 = arith.constant 0 : index
    %c2_346 = arith.constant 2 : index
    %c2_347 = arith.constant 2 : index
    %1543 = vector.load %arg8[%c0_345, %c2_346, %c2_347] : memref<4x18x18xf32, #tpu.memory_space<vmem>>, vector<1x16x16xf32>
    %1544 = vector.shape_cast %1543 : vector<1x16x16xf32> to vector<16x16xf32>
    %c296 = arith.constant 296 : index
    %1545 = memref.load %arg1[%c296] : memref<448xf32, #tpu.memory_space<smem>>
    %1546 = vector.broadcast %1545 : f32 to vector<16x16xf32>
    %1547 = arith.mulf %1546, %1544 : vector<16x16xf32>
    %1548 = arith.addf %1530, %1547 : vector<16x16xf32>
    %c332 = arith.constant 332 : index
    %1549 = memref.load %arg1[%c332] : memref<448xf32, #tpu.memory_space<smem>>
    %1550 = vector.broadcast %1549 : f32 to vector<16x16xf32>
    %1551 = arith.mulf %1550, %1544 : vector<16x16xf32>
    %1552 = arith.addf %1534, %1551 : vector<16x16xf32>
    %c368 = arith.constant 368 : index
    %1553 = memref.load %arg1[%c368] : memref<448xf32, #tpu.memory_space<smem>>
    %1554 = vector.broadcast %1553 : f32 to vector<16x16xf32>
    %1555 = arith.mulf %1554, %1544 : vector<16x16xf32>
    %1556 = arith.addf %1538, %1555 : vector<16x16xf32>
    %c404 = arith.constant 404 : index
    %1557 = memref.load %arg1[%c404] : memref<448xf32, #tpu.memory_space<smem>>
    %1558 = vector.broadcast %1557 : f32 to vector<16x16xf32>
    %1559 = arith.mulf %1558, %1544 : vector<16x16xf32>
    %1560 = arith.addf %1542, %1559 : vector<16x16xf32>
    %c1_348 = arith.constant 1 : index
    %c0_349 = arith.constant 0 : index
    %c0_350 = arith.constant 0 : index
    %1561 = vector.load %arg8[%c1_348, %c0_349, %c0_350] : memref<4x18x18xf32, #tpu.memory_space<vmem>>, vector<1x16x16xf32>
    %1562 = vector.shape_cast %1561 : vector<1x16x16xf32> to vector<16x16xf32>
    %c297 = arith.constant 297 : index
    %1563 = memref.load %arg1[%c297] : memref<448xf32, #tpu.memory_space<smem>>
    %1564 = vector.broadcast %1563 : f32 to vector<16x16xf32>
    %1565 = arith.mulf %1564, %1562 : vector<16x16xf32>
    %1566 = arith.addf %1548, %1565 : vector<16x16xf32>
    %c333 = arith.constant 333 : index
    %1567 = memref.load %arg1[%c333] : memref<448xf32, #tpu.memory_space<smem>>
    %1568 = vector.broadcast %1567 : f32 to vector<16x16xf32>
    %1569 = arith.mulf %1568, %1562 : vector<16x16xf32>
    %1570 = arith.addf %1552, %1569 : vector<16x16xf32>
    %c369 = arith.constant 369 : index
    %1571 = memref.load %arg1[%c369] : memref<448xf32, #tpu.memory_space<smem>>
    %1572 = vector.broadcast %1571 : f32 to vector<16x16xf32>
    %1573 = arith.mulf %1572, %1562 : vector<16x16xf32>
    %1574 = arith.addf %1556, %1573 : vector<16x16xf32>
    %c405 = arith.constant 405 : index
    %1575 = memref.load %arg1[%c405] : memref<448xf32, #tpu.memory_space<smem>>
    %1576 = vector.broadcast %1575 : f32 to vector<16x16xf32>
    %1577 = arith.mulf %1576, %1562 : vector<16x16xf32>
    %1578 = arith.addf %1560, %1577 : vector<16x16xf32>
    %c1_351 = arith.constant 1 : index
    %c0_352 = arith.constant 0 : index
    %c1_353 = arith.constant 1 : index
    %1579 = vector.load %arg8[%c1_351, %c0_352, %c1_353] : memref<4x18x18xf32, #tpu.memory_space<vmem>>, vector<1x16x16xf32>
    %1580 = vector.shape_cast %1579 : vector<1x16x16xf32> to vector<16x16xf32>
    %c298 = arith.constant 298 : index
    %1581 = memref.load %arg1[%c298] : memref<448xf32, #tpu.memory_space<smem>>
    %1582 = vector.broadcast %1581 : f32 to vector<16x16xf32>
    %1583 = arith.mulf %1582, %1580 : vector<16x16xf32>
    %1584 = arith.addf %1566, %1583 : vector<16x16xf32>
    %c334 = arith.constant 334 : index
    %1585 = memref.load %arg1[%c334] : memref<448xf32, #tpu.memory_space<smem>>
    %1586 = vector.broadcast %1585 : f32 to vector<16x16xf32>
    %1587 = arith.mulf %1586, %1580 : vector<16x16xf32>
    %1588 = arith.addf %1570, %1587 : vector<16x16xf32>
    %c370 = arith.constant 370 : index
    %1589 = memref.load %arg1[%c370] : memref<448xf32, #tpu.memory_space<smem>>
    %1590 = vector.broadcast %1589 : f32 to vector<16x16xf32>
    %1591 = arith.mulf %1590, %1580 : vector<16x16xf32>
    %1592 = arith.addf %1574, %1591 : vector<16x16xf32>
    %c406 = arith.constant 406 : index
    %1593 = memref.load %arg1[%c406] : memref<448xf32, #tpu.memory_space<smem>>
    %1594 = vector.broadcast %1593 : f32 to vector<16x16xf32>
    %1595 = arith.mulf %1594, %1580 : vector<16x16xf32>
    %1596 = arith.addf %1578, %1595 : vector<16x16xf32>
    %c1_354 = arith.constant 1 : index
    %c0_355 = arith.constant 0 : index
    %c2_356 = arith.constant 2 : index
    %1597 = vector.load %arg8[%c1_354, %c0_355, %c2_356] : memref<4x18x18xf32, #tpu.memory_space<vmem>>, vector<1x16x16xf32>
    %1598 = vector.shape_cast %1597 : vector<1x16x16xf32> to vector<16x16xf32>
    %c299 = arith.constant 299 : index
    %1599 = memref.load %arg1[%c299] : memref<448xf32, #tpu.memory_space<smem>>
    %1600 = vector.broadcast %1599 : f32 to vector<16x16xf32>
    %1601 = arith.mulf %1600, %1598 : vector<16x16xf32>
    %1602 = arith.addf %1584, %1601 : vector<16x16xf32>
    %c335 = arith.constant 335 : index
    %1603 = memref.load %arg1[%c335] : memref<448xf32, #tpu.memory_space<smem>>
    %1604 = vector.broadcast %1603 : f32 to vector<16x16xf32>
    %1605 = arith.mulf %1604, %1598 : vector<16x16xf32>
    %1606 = arith.addf %1588, %1605 : vector<16x16xf32>
    %c371 = arith.constant 371 : index
    %1607 = memref.load %arg1[%c371] : memref<448xf32, #tpu.memory_space<smem>>
    %1608 = vector.broadcast %1607 : f32 to vector<16x16xf32>
    %1609 = arith.mulf %1608, %1598 : vector<16x16xf32>
    %1610 = arith.addf %1592, %1609 : vector<16x16xf32>
    %c407 = arith.constant 407 : index
    %1611 = memref.load %arg1[%c407] : memref<448xf32, #tpu.memory_space<smem>>
    %1612 = vector.broadcast %1611 : f32 to vector<16x16xf32>
    %1613 = arith.mulf %1612, %1598 : vector<16x16xf32>
    %1614 = arith.addf %1596, %1613 : vector<16x16xf32>
    %c1_357 = arith.constant 1 : index
    %c1_358 = arith.constant 1 : index
    %c0_359 = arith.constant 0 : index
    %1615 = vector.load %arg8[%c1_357, %c1_358, %c0_359] : memref<4x18x18xf32, #tpu.memory_space<vmem>>, vector<1x16x16xf32>
    %1616 = vector.shape_cast %1615 : vector<1x16x16xf32> to vector<16x16xf32>
    %c300 = arith.constant 300 : index
    %1617 = memref.load %arg1[%c300] : memref<448xf32, #tpu.memory_space<smem>>
    %1618 = vector.broadcast %1617 : f32 to vector<16x16xf32>
    %1619 = arith.mulf %1618, %1616 : vector<16x16xf32>
    %1620 = arith.addf %1602, %1619 : vector<16x16xf32>
    %c336 = arith.constant 336 : index
    %1621 = memref.load %arg1[%c336] : memref<448xf32, #tpu.memory_space<smem>>
    %1622 = vector.broadcast %1621 : f32 to vector<16x16xf32>
    %1623 = arith.mulf %1622, %1616 : vector<16x16xf32>
    %1624 = arith.addf %1606, %1623 : vector<16x16xf32>
    %c372 = arith.constant 372 : index
    %1625 = memref.load %arg1[%c372] : memref<448xf32, #tpu.memory_space<smem>>
    %1626 = vector.broadcast %1625 : f32 to vector<16x16xf32>
    %1627 = arith.mulf %1626, %1616 : vector<16x16xf32>
    %1628 = arith.addf %1610, %1627 : vector<16x16xf32>
    %c408 = arith.constant 408 : index
    %1629 = memref.load %arg1[%c408] : memref<448xf32, #tpu.memory_space<smem>>
    %1630 = vector.broadcast %1629 : f32 to vector<16x16xf32>
    %1631 = arith.mulf %1630, %1616 : vector<16x16xf32>
    %1632 = arith.addf %1614, %1631 : vector<16x16xf32>
    %c1_360 = arith.constant 1 : index
    %c1_361 = arith.constant 1 : index
    %c1_362 = arith.constant 1 : index
    %1633 = vector.load %arg8[%c1_360, %c1_361, %c1_362] : memref<4x18x18xf32, #tpu.memory_space<vmem>>, vector<1x16x16xf32>
    %1634 = vector.shape_cast %1633 : vector<1x16x16xf32> to vector<16x16xf32>
    %c301 = arith.constant 301 : index
    %1635 = memref.load %arg1[%c301] : memref<448xf32, #tpu.memory_space<smem>>
    %1636 = vector.broadcast %1635 : f32 to vector<16x16xf32>
    %1637 = arith.mulf %1636, %1634 : vector<16x16xf32>
    %1638 = arith.addf %1620, %1637 : vector<16x16xf32>
    %c337 = arith.constant 337 : index
    %1639 = memref.load %arg1[%c337] : memref<448xf32, #tpu.memory_space<smem>>
    %1640 = vector.broadcast %1639 : f32 to vector<16x16xf32>
    %1641 = arith.mulf %1640, %1634 : vector<16x16xf32>
    %1642 = arith.addf %1624, %1641 : vector<16x16xf32>
    %c373 = arith.constant 373 : index
    %1643 = memref.load %arg1[%c373] : memref<448xf32, #tpu.memory_space<smem>>
    %1644 = vector.broadcast %1643 : f32 to vector<16x16xf32>
    %1645 = arith.mulf %1644, %1634 : vector<16x16xf32>
    %1646 = arith.addf %1628, %1645 : vector<16x16xf32>
    %c409 = arith.constant 409 : index
    %1647 = memref.load %arg1[%c409] : memref<448xf32, #tpu.memory_space<smem>>
    %1648 = vector.broadcast %1647 : f32 to vector<16x16xf32>
    %1649 = arith.mulf %1648, %1634 : vector<16x16xf32>
    %1650 = arith.addf %1632, %1649 : vector<16x16xf32>
    %c1_363 = arith.constant 1 : index
    %c1_364 = arith.constant 1 : index
    %c2_365 = arith.constant 2 : index
    %1651 = vector.load %arg8[%c1_363, %c1_364, %c2_365] : memref<4x18x18xf32, #tpu.memory_space<vmem>>, vector<1x16x16xf32>
    %1652 = vector.shape_cast %1651 : vector<1x16x16xf32> to vector<16x16xf32>
    %c302 = arith.constant 302 : index
    %1653 = memref.load %arg1[%c302] : memref<448xf32, #tpu.memory_space<smem>>
    %1654 = vector.broadcast %1653 : f32 to vector<16x16xf32>
    %1655 = arith.mulf %1654, %1652 : vector<16x16xf32>
    %1656 = arith.addf %1638, %1655 : vector<16x16xf32>
    %c338 = arith.constant 338 : index
    %1657 = memref.load %arg1[%c338] : memref<448xf32, #tpu.memory_space<smem>>
    %1658 = vector.broadcast %1657 : f32 to vector<16x16xf32>
    %1659 = arith.mulf %1658, %1652 : vector<16x16xf32>
    %1660 = arith.addf %1642, %1659 : vector<16x16xf32>
    %c374 = arith.constant 374 : index
    %1661 = memref.load %arg1[%c374] : memref<448xf32, #tpu.memory_space<smem>>
    %1662 = vector.broadcast %1661 : f32 to vector<16x16xf32>
    %1663 = arith.mulf %1662, %1652 : vector<16x16xf32>
    %1664 = arith.addf %1646, %1663 : vector<16x16xf32>
    %c410 = arith.constant 410 : index
    %1665 = memref.load %arg1[%c410] : memref<448xf32, #tpu.memory_space<smem>>
    %1666 = vector.broadcast %1665 : f32 to vector<16x16xf32>
    %1667 = arith.mulf %1666, %1652 : vector<16x16xf32>
    %1668 = arith.addf %1650, %1667 : vector<16x16xf32>
    %c1_366 = arith.constant 1 : index
    %c2_367 = arith.constant 2 : index
    %c0_368 = arith.constant 0 : index
    %1669 = vector.load %arg8[%c1_366, %c2_367, %c0_368] : memref<4x18x18xf32, #tpu.memory_space<vmem>>, vector<1x16x16xf32>
    %1670 = vector.shape_cast %1669 : vector<1x16x16xf32> to vector<16x16xf32>
    %c303 = arith.constant 303 : index
    %1671 = memref.load %arg1[%c303] : memref<448xf32, #tpu.memory_space<smem>>
    %1672 = vector.broadcast %1671 : f32 to vector<16x16xf32>
    %1673 = arith.mulf %1672, %1670 : vector<16x16xf32>
    %1674 = arith.addf %1656, %1673 : vector<16x16xf32>
    %c339 = arith.constant 339 : index
    %1675 = memref.load %arg1[%c339] : memref<448xf32, #tpu.memory_space<smem>>
    %1676 = vector.broadcast %1675 : f32 to vector<16x16xf32>
    %1677 = arith.mulf %1676, %1670 : vector<16x16xf32>
    %1678 = arith.addf %1660, %1677 : vector<16x16xf32>
    %c375 = arith.constant 375 : index
    %1679 = memref.load %arg1[%c375] : memref<448xf32, #tpu.memory_space<smem>>
    %1680 = vector.broadcast %1679 : f32 to vector<16x16xf32>
    %1681 = arith.mulf %1680, %1670 : vector<16x16xf32>
    %1682 = arith.addf %1664, %1681 : vector<16x16xf32>
    %c411 = arith.constant 411 : index
    %1683 = memref.load %arg1[%c411] : memref<448xf32, #tpu.memory_space<smem>>
    %1684 = vector.broadcast %1683 : f32 to vector<16x16xf32>
    %1685 = arith.mulf %1684, %1670 : vector<16x16xf32>
    %1686 = arith.addf %1668, %1685 : vector<16x16xf32>
    %c1_369 = arith.constant 1 : index
    %c2_370 = arith.constant 2 : index
    %c1_371 = arith.constant 1 : index
    %1687 = vector.load %arg8[%c1_369, %c2_370, %c1_371] : memref<4x18x18xf32, #tpu.memory_space<vmem>>, vector<1x16x16xf32>
    %1688 = vector.shape_cast %1687 : vector<1x16x16xf32> to vector<16x16xf32>
    %c304 = arith.constant 304 : index
    %1689 = memref.load %arg1[%c304] : memref<448xf32, #tpu.memory_space<smem>>
    %1690 = vector.broadcast %1689 : f32 to vector<16x16xf32>
    %1691 = arith.mulf %1690, %1688 : vector<16x16xf32>
    %1692 = arith.addf %1674, %1691 : vector<16x16xf32>
    %c340 = arith.constant 340 : index
    %1693 = memref.load %arg1[%c340] : memref<448xf32, #tpu.memory_space<smem>>
    %1694 = vector.broadcast %1693 : f32 to vector<16x16xf32>
    %1695 = arith.mulf %1694, %1688 : vector<16x16xf32>
    %1696 = arith.addf %1678, %1695 : vector<16x16xf32>
    %c376 = arith.constant 376 : index
    %1697 = memref.load %arg1[%c376] : memref<448xf32, #tpu.memory_space<smem>>
    %1698 = vector.broadcast %1697 : f32 to vector<16x16xf32>
    %1699 = arith.mulf %1698, %1688 : vector<16x16xf32>
    %1700 = arith.addf %1682, %1699 : vector<16x16xf32>
    %c412 = arith.constant 412 : index
    %1701 = memref.load %arg1[%c412] : memref<448xf32, #tpu.memory_space<smem>>
    %1702 = vector.broadcast %1701 : f32 to vector<16x16xf32>
    %1703 = arith.mulf %1702, %1688 : vector<16x16xf32>
    %1704 = arith.addf %1686, %1703 : vector<16x16xf32>
    %c1_372 = arith.constant 1 : index
    %c2_373 = arith.constant 2 : index
    %c2_374 = arith.constant 2 : index
    %1705 = vector.load %arg8[%c1_372, %c2_373, %c2_374] : memref<4x18x18xf32, #tpu.memory_space<vmem>>, vector<1x16x16xf32>
    %1706 = vector.shape_cast %1705 : vector<1x16x16xf32> to vector<16x16xf32>
    %c305 = arith.constant 305 : index
    %1707 = memref.load %arg1[%c305] : memref<448xf32, #tpu.memory_space<smem>>
    %1708 = vector.broadcast %1707 : f32 to vector<16x16xf32>
    %1709 = arith.mulf %1708, %1706 : vector<16x16xf32>
    %1710 = arith.addf %1692, %1709 : vector<16x16xf32>
    %c341 = arith.constant 341 : index
    %1711 = memref.load %arg1[%c341] : memref<448xf32, #tpu.memory_space<smem>>
    %1712 = vector.broadcast %1711 : f32 to vector<16x16xf32>
    %1713 = arith.mulf %1712, %1706 : vector<16x16xf32>
    %1714 = arith.addf %1696, %1713 : vector<16x16xf32>
    %c377 = arith.constant 377 : index
    %1715 = memref.load %arg1[%c377] : memref<448xf32, #tpu.memory_space<smem>>
    %1716 = vector.broadcast %1715 : f32 to vector<16x16xf32>
    %1717 = arith.mulf %1716, %1706 : vector<16x16xf32>
    %1718 = arith.addf %1700, %1717 : vector<16x16xf32>
    %c413 = arith.constant 413 : index
    %1719 = memref.load %arg1[%c413] : memref<448xf32, #tpu.memory_space<smem>>
    %1720 = vector.broadcast %1719 : f32 to vector<16x16xf32>
    %1721 = arith.mulf %1720, %1706 : vector<16x16xf32>
    %1722 = arith.addf %1704, %1721 : vector<16x16xf32>
    %c2_375 = arith.constant 2 : index
    %c0_376 = arith.constant 0 : index
    %c0_377 = arith.constant 0 : index
    %1723 = vector.load %arg8[%c2_375, %c0_376, %c0_377] : memref<4x18x18xf32, #tpu.memory_space<vmem>>, vector<1x16x16xf32>
    %1724 = vector.shape_cast %1723 : vector<1x16x16xf32> to vector<16x16xf32>
    %c306 = arith.constant 306 : index
    %1725 = memref.load %arg1[%c306] : memref<448xf32, #tpu.memory_space<smem>>
    %1726 = vector.broadcast %1725 : f32 to vector<16x16xf32>
    %1727 = arith.mulf %1726, %1724 : vector<16x16xf32>
    %1728 = arith.addf %1710, %1727 : vector<16x16xf32>
    %c342 = arith.constant 342 : index
    %1729 = memref.load %arg1[%c342] : memref<448xf32, #tpu.memory_space<smem>>
    %1730 = vector.broadcast %1729 : f32 to vector<16x16xf32>
    %1731 = arith.mulf %1730, %1724 : vector<16x16xf32>
    %1732 = arith.addf %1714, %1731 : vector<16x16xf32>
    %c378 = arith.constant 378 : index
    %1733 = memref.load %arg1[%c378] : memref<448xf32, #tpu.memory_space<smem>>
    %1734 = vector.broadcast %1733 : f32 to vector<16x16xf32>
    %1735 = arith.mulf %1734, %1724 : vector<16x16xf32>
    %1736 = arith.addf %1718, %1735 : vector<16x16xf32>
    %c414 = arith.constant 414 : index
    %1737 = memref.load %arg1[%c414] : memref<448xf32, #tpu.memory_space<smem>>
    %1738 = vector.broadcast %1737 : f32 to vector<16x16xf32>
    %1739 = arith.mulf %1738, %1724 : vector<16x16xf32>
    %1740 = arith.addf %1722, %1739 : vector<16x16xf32>
    %c2_378 = arith.constant 2 : index
    %c0_379 = arith.constant 0 : index
    %c1_380 = arith.constant 1 : index
    %1741 = vector.load %arg8[%c2_378, %c0_379, %c1_380] : memref<4x18x18xf32, #tpu.memory_space<vmem>>, vector<1x16x16xf32>
    %1742 = vector.shape_cast %1741 : vector<1x16x16xf32> to vector<16x16xf32>
    %c307 = arith.constant 307 : index
    %1743 = memref.load %arg1[%c307] : memref<448xf32, #tpu.memory_space<smem>>
    %1744 = vector.broadcast %1743 : f32 to vector<16x16xf32>
    %1745 = arith.mulf %1744, %1742 : vector<16x16xf32>
    %1746 = arith.addf %1728, %1745 : vector<16x16xf32>
    %c343 = arith.constant 343 : index
    %1747 = memref.load %arg1[%c343] : memref<448xf32, #tpu.memory_space<smem>>
    %1748 = vector.broadcast %1747 : f32 to vector<16x16xf32>
    %1749 = arith.mulf %1748, %1742 : vector<16x16xf32>
    %1750 = arith.addf %1732, %1749 : vector<16x16xf32>
    %c379 = arith.constant 379 : index
    %1751 = memref.load %arg1[%c379] : memref<448xf32, #tpu.memory_space<smem>>
    %1752 = vector.broadcast %1751 : f32 to vector<16x16xf32>
    %1753 = arith.mulf %1752, %1742 : vector<16x16xf32>
    %1754 = arith.addf %1736, %1753 : vector<16x16xf32>
    %c415 = arith.constant 415 : index
    %1755 = memref.load %arg1[%c415] : memref<448xf32, #tpu.memory_space<smem>>
    %1756 = vector.broadcast %1755 : f32 to vector<16x16xf32>
    %1757 = arith.mulf %1756, %1742 : vector<16x16xf32>
    %1758 = arith.addf %1740, %1757 : vector<16x16xf32>
    %c2_381 = arith.constant 2 : index
    %c0_382 = arith.constant 0 : index
    %c2_383 = arith.constant 2 : index
    %1759 = vector.load %arg8[%c2_381, %c0_382, %c2_383] : memref<4x18x18xf32, #tpu.memory_space<vmem>>, vector<1x16x16xf32>
    %1760 = vector.shape_cast %1759 : vector<1x16x16xf32> to vector<16x16xf32>
    %c308 = arith.constant 308 : index
    %1761 = memref.load %arg1[%c308] : memref<448xf32, #tpu.memory_space<smem>>
    %1762 = vector.broadcast %1761 : f32 to vector<16x16xf32>
    %1763 = arith.mulf %1762, %1760 : vector<16x16xf32>
    %1764 = arith.addf %1746, %1763 : vector<16x16xf32>
    %c344 = arith.constant 344 : index
    %1765 = memref.load %arg1[%c344] : memref<448xf32, #tpu.memory_space<smem>>
    %1766 = vector.broadcast %1765 : f32 to vector<16x16xf32>
    %1767 = arith.mulf %1766, %1760 : vector<16x16xf32>
    %1768 = arith.addf %1750, %1767 : vector<16x16xf32>
    %c380 = arith.constant 380 : index
    %1769 = memref.load %arg1[%c380] : memref<448xf32, #tpu.memory_space<smem>>
    %1770 = vector.broadcast %1769 : f32 to vector<16x16xf32>
    %1771 = arith.mulf %1770, %1760 : vector<16x16xf32>
    %1772 = arith.addf %1754, %1771 : vector<16x16xf32>
    %c416 = arith.constant 416 : index
    %1773 = memref.load %arg1[%c416] : memref<448xf32, #tpu.memory_space<smem>>
    %1774 = vector.broadcast %1773 : f32 to vector<16x16xf32>
    %1775 = arith.mulf %1774, %1760 : vector<16x16xf32>
    %1776 = arith.addf %1758, %1775 : vector<16x16xf32>
    %c2_384 = arith.constant 2 : index
    %c1_385 = arith.constant 1 : index
    %c0_386 = arith.constant 0 : index
    %1777 = vector.load %arg8[%c2_384, %c1_385, %c0_386] : memref<4x18x18xf32, #tpu.memory_space<vmem>>, vector<1x16x16xf32>
    %1778 = vector.shape_cast %1777 : vector<1x16x16xf32> to vector<16x16xf32>
    %c309 = arith.constant 309 : index
    %1779 = memref.load %arg1[%c309] : memref<448xf32, #tpu.memory_space<smem>>
    %1780 = vector.broadcast %1779 : f32 to vector<16x16xf32>
    %1781 = arith.mulf %1780, %1778 : vector<16x16xf32>
    %1782 = arith.addf %1764, %1781 : vector<16x16xf32>
    %c345 = arith.constant 345 : index
    %1783 = memref.load %arg1[%c345] : memref<448xf32, #tpu.memory_space<smem>>
    %1784 = vector.broadcast %1783 : f32 to vector<16x16xf32>
    %1785 = arith.mulf %1784, %1778 : vector<16x16xf32>
    %1786 = arith.addf %1768, %1785 : vector<16x16xf32>
    %c381 = arith.constant 381 : index
    %1787 = memref.load %arg1[%c381] : memref<448xf32, #tpu.memory_space<smem>>
    %1788 = vector.broadcast %1787 : f32 to vector<16x16xf32>
    %1789 = arith.mulf %1788, %1778 : vector<16x16xf32>
    %1790 = arith.addf %1772, %1789 : vector<16x16xf32>
    %c417 = arith.constant 417 : index
    %1791 = memref.load %arg1[%c417] : memref<448xf32, #tpu.memory_space<smem>>
    %1792 = vector.broadcast %1791 : f32 to vector<16x16xf32>
    %1793 = arith.mulf %1792, %1778 : vector<16x16xf32>
    %1794 = arith.addf %1776, %1793 : vector<16x16xf32>
    %c2_387 = arith.constant 2 : index
    %c1_388 = arith.constant 1 : index
    %c1_389 = arith.constant 1 : index
    %1795 = vector.load %arg8[%c2_387, %c1_388, %c1_389] : memref<4x18x18xf32, #tpu.memory_space<vmem>>, vector<1x16x16xf32>
    %1796 = vector.shape_cast %1795 : vector<1x16x16xf32> to vector<16x16xf32>
    %c310 = arith.constant 310 : index
    %1797 = memref.load %arg1[%c310] : memref<448xf32, #tpu.memory_space<smem>>
    %1798 = vector.broadcast %1797 : f32 to vector<16x16xf32>
    %1799 = arith.mulf %1798, %1796 : vector<16x16xf32>
    %1800 = arith.addf %1782, %1799 : vector<16x16xf32>
    %c346 = arith.constant 346 : index
    %1801 = memref.load %arg1[%c346] : memref<448xf32, #tpu.memory_space<smem>>
    %1802 = vector.broadcast %1801 : f32 to vector<16x16xf32>
    %1803 = arith.mulf %1802, %1796 : vector<16x16xf32>
    %1804 = arith.addf %1786, %1803 : vector<16x16xf32>
    %c382 = arith.constant 382 : index
    %1805 = memref.load %arg1[%c382] : memref<448xf32, #tpu.memory_space<smem>>
    %1806 = vector.broadcast %1805 : f32 to vector<16x16xf32>
    %1807 = arith.mulf %1806, %1796 : vector<16x16xf32>
    %1808 = arith.addf %1790, %1807 : vector<16x16xf32>
    %c418 = arith.constant 418 : index
    %1809 = memref.load %arg1[%c418] : memref<448xf32, #tpu.memory_space<smem>>
    %1810 = vector.broadcast %1809 : f32 to vector<16x16xf32>
    %1811 = arith.mulf %1810, %1796 : vector<16x16xf32>
    %1812 = arith.addf %1794, %1811 : vector<16x16xf32>
    %c2_390 = arith.constant 2 : index
    %c1_391 = arith.constant 1 : index
    %c2_392 = arith.constant 2 : index
    %1813 = vector.load %arg8[%c2_390, %c1_391, %c2_392] : memref<4x18x18xf32, #tpu.memory_space<vmem>>, vector<1x16x16xf32>
    %1814 = vector.shape_cast %1813 : vector<1x16x16xf32> to vector<16x16xf32>
    %c311 = arith.constant 311 : index
    %1815 = memref.load %arg1[%c311] : memref<448xf32, #tpu.memory_space<smem>>
    %1816 = vector.broadcast %1815 : f32 to vector<16x16xf32>
    %1817 = arith.mulf %1816, %1814 : vector<16x16xf32>
    %1818 = arith.addf %1800, %1817 : vector<16x16xf32>
    %c347 = arith.constant 347 : index
    %1819 = memref.load %arg1[%c347] : memref<448xf32, #tpu.memory_space<smem>>
    %1820 = vector.broadcast %1819 : f32 to vector<16x16xf32>
    %1821 = arith.mulf %1820, %1814 : vector<16x16xf32>
    %1822 = arith.addf %1804, %1821 : vector<16x16xf32>
    %c383 = arith.constant 383 : index
    %1823 = memref.load %arg1[%c383] : memref<448xf32, #tpu.memory_space<smem>>
    %1824 = vector.broadcast %1823 : f32 to vector<16x16xf32>
    %1825 = arith.mulf %1824, %1814 : vector<16x16xf32>
    %1826 = arith.addf %1808, %1825 : vector<16x16xf32>
    %c419 = arith.constant 419 : index
    %1827 = memref.load %arg1[%c419] : memref<448xf32, #tpu.memory_space<smem>>
    %1828 = vector.broadcast %1827 : f32 to vector<16x16xf32>
    %1829 = arith.mulf %1828, %1814 : vector<16x16xf32>
    %1830 = arith.addf %1812, %1829 : vector<16x16xf32>
    %c2_393 = arith.constant 2 : index
    %c2_394 = arith.constant 2 : index
    %c0_395 = arith.constant 0 : index
    %1831 = vector.load %arg8[%c2_393, %c2_394, %c0_395] : memref<4x18x18xf32, #tpu.memory_space<vmem>>, vector<1x16x16xf32>
    %1832 = vector.shape_cast %1831 : vector<1x16x16xf32> to vector<16x16xf32>
    %c312 = arith.constant 312 : index
    %1833 = memref.load %arg1[%c312] : memref<448xf32, #tpu.memory_space<smem>>
    %1834 = vector.broadcast %1833 : f32 to vector<16x16xf32>
    %1835 = arith.mulf %1834, %1832 : vector<16x16xf32>
    %1836 = arith.addf %1818, %1835 : vector<16x16xf32>
    %c348 = arith.constant 348 : index
    %1837 = memref.load %arg1[%c348] : memref<448xf32, #tpu.memory_space<smem>>
    %1838 = vector.broadcast %1837 : f32 to vector<16x16xf32>
    %1839 = arith.mulf %1838, %1832 : vector<16x16xf32>
    %1840 = arith.addf %1822, %1839 : vector<16x16xf32>
    %c384 = arith.constant 384 : index
    %1841 = memref.load %arg1[%c384] : memref<448xf32, #tpu.memory_space<smem>>
    %1842 = vector.broadcast %1841 : f32 to vector<16x16xf32>
    %1843 = arith.mulf %1842, %1832 : vector<16x16xf32>
    %1844 = arith.addf %1826, %1843 : vector<16x16xf32>
    %c420 = arith.constant 420 : index
    %1845 = memref.load %arg1[%c420] : memref<448xf32, #tpu.memory_space<smem>>
    %1846 = vector.broadcast %1845 : f32 to vector<16x16xf32>
    %1847 = arith.mulf %1846, %1832 : vector<16x16xf32>
    %1848 = arith.addf %1830, %1847 : vector<16x16xf32>
    %c2_396 = arith.constant 2 : index
    %c2_397 = arith.constant 2 : index
    %c1_398 = arith.constant 1 : index
    %1849 = vector.load %arg8[%c2_396, %c2_397, %c1_398] : memref<4x18x18xf32, #tpu.memory_space<vmem>>, vector<1x16x16xf32>
    %1850 = vector.shape_cast %1849 : vector<1x16x16xf32> to vector<16x16xf32>
    %c313 = arith.constant 313 : index
    %1851 = memref.load %arg1[%c313] : memref<448xf32, #tpu.memory_space<smem>>
    %1852 = vector.broadcast %1851 : f32 to vector<16x16xf32>
    %1853 = arith.mulf %1852, %1850 : vector<16x16xf32>
    %1854 = arith.addf %1836, %1853 : vector<16x16xf32>
    %c349 = arith.constant 349 : index
    %1855 = memref.load %arg1[%c349] : memref<448xf32, #tpu.memory_space<smem>>
    %1856 = vector.broadcast %1855 : f32 to vector<16x16xf32>
    %1857 = arith.mulf %1856, %1850 : vector<16x16xf32>
    %1858 = arith.addf %1840, %1857 : vector<16x16xf32>
    %c385 = arith.constant 385 : index
    %1859 = memref.load %arg1[%c385] : memref<448xf32, #tpu.memory_space<smem>>
    %1860 = vector.broadcast %1859 : f32 to vector<16x16xf32>
    %1861 = arith.mulf %1860, %1850 : vector<16x16xf32>
    %1862 = arith.addf %1844, %1861 : vector<16x16xf32>
    %c421 = arith.constant 421 : index
    %1863 = memref.load %arg1[%c421] : memref<448xf32, #tpu.memory_space<smem>>
    %1864 = vector.broadcast %1863 : f32 to vector<16x16xf32>
    %1865 = arith.mulf %1864, %1850 : vector<16x16xf32>
    %1866 = arith.addf %1848, %1865 : vector<16x16xf32>
    %c2_399 = arith.constant 2 : index
    %c2_400 = arith.constant 2 : index
    %c2_401 = arith.constant 2 : index
    %1867 = vector.load %arg8[%c2_399, %c2_400, %c2_401] : memref<4x18x18xf32, #tpu.memory_space<vmem>>, vector<1x16x16xf32>
    %1868 = vector.shape_cast %1867 : vector<1x16x16xf32> to vector<16x16xf32>
    %c314 = arith.constant 314 : index
    %1869 = memref.load %arg1[%c314] : memref<448xf32, #tpu.memory_space<smem>>
    %1870 = vector.broadcast %1869 : f32 to vector<16x16xf32>
    %1871 = arith.mulf %1870, %1868 : vector<16x16xf32>
    %1872 = arith.addf %1854, %1871 : vector<16x16xf32>
    %c350 = arith.constant 350 : index
    %1873 = memref.load %arg1[%c350] : memref<448xf32, #tpu.memory_space<smem>>
    %1874 = vector.broadcast %1873 : f32 to vector<16x16xf32>
    %1875 = arith.mulf %1874, %1868 : vector<16x16xf32>
    %1876 = arith.addf %1858, %1875 : vector<16x16xf32>
    %c386 = arith.constant 386 : index
    %1877 = memref.load %arg1[%c386] : memref<448xf32, #tpu.memory_space<smem>>
    %1878 = vector.broadcast %1877 : f32 to vector<16x16xf32>
    %1879 = arith.mulf %1878, %1868 : vector<16x16xf32>
    %1880 = arith.addf %1862, %1879 : vector<16x16xf32>
    %c422 = arith.constant 422 : index
    %1881 = memref.load %arg1[%c422] : memref<448xf32, #tpu.memory_space<smem>>
    %1882 = vector.broadcast %1881 : f32 to vector<16x16xf32>
    %1883 = arith.mulf %1882, %1868 : vector<16x16xf32>
    %1884 = arith.addf %1866, %1883 : vector<16x16xf32>
    %c3_402 = arith.constant 3 : index
    %c0_403 = arith.constant 0 : index
    %c0_404 = arith.constant 0 : index
    %1885 = vector.load %arg8[%c3_402, %c0_403, %c0_404] : memref<4x18x18xf32, #tpu.memory_space<vmem>>, vector<1x16x16xf32>
    %1886 = vector.shape_cast %1885 : vector<1x16x16xf32> to vector<16x16xf32>
    %c315 = arith.constant 315 : index
    %1887 = memref.load %arg1[%c315] : memref<448xf32, #tpu.memory_space<smem>>
    %1888 = vector.broadcast %1887 : f32 to vector<16x16xf32>
    %1889 = arith.mulf %1888, %1886 : vector<16x16xf32>
    %1890 = arith.addf %1872, %1889 : vector<16x16xf32>
    %c351 = arith.constant 351 : index
    %1891 = memref.load %arg1[%c351] : memref<448xf32, #tpu.memory_space<smem>>
    %1892 = vector.broadcast %1891 : f32 to vector<16x16xf32>
    %1893 = arith.mulf %1892, %1886 : vector<16x16xf32>
    %1894 = arith.addf %1876, %1893 : vector<16x16xf32>
    %c387 = arith.constant 387 : index
    %1895 = memref.load %arg1[%c387] : memref<448xf32, #tpu.memory_space<smem>>
    %1896 = vector.broadcast %1895 : f32 to vector<16x16xf32>
    %1897 = arith.mulf %1896, %1886 : vector<16x16xf32>
    %1898 = arith.addf %1880, %1897 : vector<16x16xf32>
    %c423 = arith.constant 423 : index
    %1899 = memref.load %arg1[%c423] : memref<448xf32, #tpu.memory_space<smem>>
    %1900 = vector.broadcast %1899 : f32 to vector<16x16xf32>
    %1901 = arith.mulf %1900, %1886 : vector<16x16xf32>
    %1902 = arith.addf %1884, %1901 : vector<16x16xf32>
    %c3_405 = arith.constant 3 : index
    %c0_406 = arith.constant 0 : index
    %c1_407 = arith.constant 1 : index
    %1903 = vector.load %arg8[%c3_405, %c0_406, %c1_407] : memref<4x18x18xf32, #tpu.memory_space<vmem>>, vector<1x16x16xf32>
    %1904 = vector.shape_cast %1903 : vector<1x16x16xf32> to vector<16x16xf32>
    %c316 = arith.constant 316 : index
    %1905 = memref.load %arg1[%c316] : memref<448xf32, #tpu.memory_space<smem>>
    %1906 = vector.broadcast %1905 : f32 to vector<16x16xf32>
    %1907 = arith.mulf %1906, %1904 : vector<16x16xf32>
    %1908 = arith.addf %1890, %1907 : vector<16x16xf32>
    %c352 = arith.constant 352 : index
    %1909 = memref.load %arg1[%c352] : memref<448xf32, #tpu.memory_space<smem>>
    %1910 = vector.broadcast %1909 : f32 to vector<16x16xf32>
    %1911 = arith.mulf %1910, %1904 : vector<16x16xf32>
    %1912 = arith.addf %1894, %1911 : vector<16x16xf32>
    %c388 = arith.constant 388 : index
    %1913 = memref.load %arg1[%c388] : memref<448xf32, #tpu.memory_space<smem>>
    %1914 = vector.broadcast %1913 : f32 to vector<16x16xf32>
    %1915 = arith.mulf %1914, %1904 : vector<16x16xf32>
    %1916 = arith.addf %1898, %1915 : vector<16x16xf32>
    %c424 = arith.constant 424 : index
    %1917 = memref.load %arg1[%c424] : memref<448xf32, #tpu.memory_space<smem>>
    %1918 = vector.broadcast %1917 : f32 to vector<16x16xf32>
    %1919 = arith.mulf %1918, %1904 : vector<16x16xf32>
    %1920 = arith.addf %1902, %1919 : vector<16x16xf32>
    %c3_408 = arith.constant 3 : index
    %c0_409 = arith.constant 0 : index
    %c2_410 = arith.constant 2 : index
    %1921 = vector.load %arg8[%c3_408, %c0_409, %c2_410] : memref<4x18x18xf32, #tpu.memory_space<vmem>>, vector<1x16x16xf32>
    %1922 = vector.shape_cast %1921 : vector<1x16x16xf32> to vector<16x16xf32>
    %c317 = arith.constant 317 : index
    %1923 = memref.load %arg1[%c317] : memref<448xf32, #tpu.memory_space<smem>>
    %1924 = vector.broadcast %1923 : f32 to vector<16x16xf32>
    %1925 = arith.mulf %1924, %1922 : vector<16x16xf32>
    %1926 = arith.addf %1908, %1925 : vector<16x16xf32>
    %c353 = arith.constant 353 : index
    %1927 = memref.load %arg1[%c353] : memref<448xf32, #tpu.memory_space<smem>>
    %1928 = vector.broadcast %1927 : f32 to vector<16x16xf32>
    %1929 = arith.mulf %1928, %1922 : vector<16x16xf32>
    %1930 = arith.addf %1912, %1929 : vector<16x16xf32>
    %c389 = arith.constant 389 : index
    %1931 = memref.load %arg1[%c389] : memref<448xf32, #tpu.memory_space<smem>>
    %1932 = vector.broadcast %1931 : f32 to vector<16x16xf32>
    %1933 = arith.mulf %1932, %1922 : vector<16x16xf32>
    %1934 = arith.addf %1916, %1933 : vector<16x16xf32>
    %c425 = arith.constant 425 : index
    %1935 = memref.load %arg1[%c425] : memref<448xf32, #tpu.memory_space<smem>>
    %1936 = vector.broadcast %1935 : f32 to vector<16x16xf32>
    %1937 = arith.mulf %1936, %1922 : vector<16x16xf32>
    %1938 = arith.addf %1920, %1937 : vector<16x16xf32>
    %c3_411 = arith.constant 3 : index
    %c1_412 = arith.constant 1 : index
    %c0_413 = arith.constant 0 : index
    %1939 = vector.load %arg8[%c3_411, %c1_412, %c0_413] : memref<4x18x18xf32, #tpu.memory_space<vmem>>, vector<1x16x16xf32>
    %1940 = vector.shape_cast %1939 : vector<1x16x16xf32> to vector<16x16xf32>
    %c318 = arith.constant 318 : index
    %1941 = memref.load %arg1[%c318] : memref<448xf32, #tpu.memory_space<smem>>
    %1942 = vector.broadcast %1941 : f32 to vector<16x16xf32>
    %1943 = arith.mulf %1942, %1940 : vector<16x16xf32>
    %1944 = arith.addf %1926, %1943 : vector<16x16xf32>
    %c354 = arith.constant 354 : index
    %1945 = memref.load %arg1[%c354] : memref<448xf32, #tpu.memory_space<smem>>
    %1946 = vector.broadcast %1945 : f32 to vector<16x16xf32>
    %1947 = arith.mulf %1946, %1940 : vector<16x16xf32>
    %1948 = arith.addf %1930, %1947 : vector<16x16xf32>
    %c390 = arith.constant 390 : index
    %1949 = memref.load %arg1[%c390] : memref<448xf32, #tpu.memory_space<smem>>
    %1950 = vector.broadcast %1949 : f32 to vector<16x16xf32>
    %1951 = arith.mulf %1950, %1940 : vector<16x16xf32>
    %1952 = arith.addf %1934, %1951 : vector<16x16xf32>
    %c426 = arith.constant 426 : index
    %1953 = memref.load %arg1[%c426] : memref<448xf32, #tpu.memory_space<smem>>
    %1954 = vector.broadcast %1953 : f32 to vector<16x16xf32>
    %1955 = arith.mulf %1954, %1940 : vector<16x16xf32>
    %1956 = arith.addf %1938, %1955 : vector<16x16xf32>
    %c3_414 = arith.constant 3 : index
    %c1_415 = arith.constant 1 : index
    %c1_416 = arith.constant 1 : index
    %1957 = vector.load %arg8[%c3_414, %c1_415, %c1_416] : memref<4x18x18xf32, #tpu.memory_space<vmem>>, vector<1x16x16xf32>
    %1958 = vector.shape_cast %1957 : vector<1x16x16xf32> to vector<16x16xf32>
    %c319 = arith.constant 319 : index
    %1959 = memref.load %arg1[%c319] : memref<448xf32, #tpu.memory_space<smem>>
    %1960 = vector.broadcast %1959 : f32 to vector<16x16xf32>
    %1961 = arith.mulf %1960, %1958 : vector<16x16xf32>
    %1962 = arith.addf %1944, %1961 : vector<16x16xf32>
    %c355 = arith.constant 355 : index
    %1963 = memref.load %arg1[%c355] : memref<448xf32, #tpu.memory_space<smem>>
    %1964 = vector.broadcast %1963 : f32 to vector<16x16xf32>
    %1965 = arith.mulf %1964, %1958 : vector<16x16xf32>
    %1966 = arith.addf %1948, %1965 : vector<16x16xf32>
    %c391 = arith.constant 391 : index
    %1967 = memref.load %arg1[%c391] : memref<448xf32, #tpu.memory_space<smem>>
    %1968 = vector.broadcast %1967 : f32 to vector<16x16xf32>
    %1969 = arith.mulf %1968, %1958 : vector<16x16xf32>
    %1970 = arith.addf %1952, %1969 : vector<16x16xf32>
    %c427 = arith.constant 427 : index
    %1971 = memref.load %arg1[%c427] : memref<448xf32, #tpu.memory_space<smem>>
    %1972 = vector.broadcast %1971 : f32 to vector<16x16xf32>
    %1973 = arith.mulf %1972, %1958 : vector<16x16xf32>
    %1974 = arith.addf %1956, %1973 : vector<16x16xf32>
    %c3_417 = arith.constant 3 : index
    %c1_418 = arith.constant 1 : index
    %c2_419 = arith.constant 2 : index
    %1975 = vector.load %arg8[%c3_417, %c1_418, %c2_419] : memref<4x18x18xf32, #tpu.memory_space<vmem>>, vector<1x16x16xf32>
    %1976 = vector.shape_cast %1975 : vector<1x16x16xf32> to vector<16x16xf32>
    %c320 = arith.constant 320 : index
    %1977 = memref.load %arg1[%c320] : memref<448xf32, #tpu.memory_space<smem>>
    %1978 = vector.broadcast %1977 : f32 to vector<16x16xf32>
    %1979 = arith.mulf %1978, %1976 : vector<16x16xf32>
    %1980 = arith.addf %1962, %1979 : vector<16x16xf32>
    %c356 = arith.constant 356 : index
    %1981 = memref.load %arg1[%c356] : memref<448xf32, #tpu.memory_space<smem>>
    %1982 = vector.broadcast %1981 : f32 to vector<16x16xf32>
    %1983 = arith.mulf %1982, %1976 : vector<16x16xf32>
    %1984 = arith.addf %1966, %1983 : vector<16x16xf32>
    %c392 = arith.constant 392 : index
    %1985 = memref.load %arg1[%c392] : memref<448xf32, #tpu.memory_space<smem>>
    %1986 = vector.broadcast %1985 : f32 to vector<16x16xf32>
    %1987 = arith.mulf %1986, %1976 : vector<16x16xf32>
    %1988 = arith.addf %1970, %1987 : vector<16x16xf32>
    %c428 = arith.constant 428 : index
    %1989 = memref.load %arg1[%c428] : memref<448xf32, #tpu.memory_space<smem>>
    %1990 = vector.broadcast %1989 : f32 to vector<16x16xf32>
    %1991 = arith.mulf %1990, %1976 : vector<16x16xf32>
    %1992 = arith.addf %1974, %1991 : vector<16x16xf32>
    %c3_420 = arith.constant 3 : index
    %c2_421 = arith.constant 2 : index
    %c0_422 = arith.constant 0 : index
    %1993 = vector.load %arg8[%c3_420, %c2_421, %c0_422] : memref<4x18x18xf32, #tpu.memory_space<vmem>>, vector<1x16x16xf32>
    %1994 = vector.shape_cast %1993 : vector<1x16x16xf32> to vector<16x16xf32>
    %c321 = arith.constant 321 : index
    %1995 = memref.load %arg1[%c321] : memref<448xf32, #tpu.memory_space<smem>>
    %1996 = vector.broadcast %1995 : f32 to vector<16x16xf32>
    %1997 = arith.mulf %1996, %1994 : vector<16x16xf32>
    %1998 = arith.addf %1980, %1997 : vector<16x16xf32>
    %c357 = arith.constant 357 : index
    %1999 = memref.load %arg1[%c357] : memref<448xf32, #tpu.memory_space<smem>>
    %2000 = vector.broadcast %1999 : f32 to vector<16x16xf32>
    %2001 = arith.mulf %2000, %1994 : vector<16x16xf32>
    %2002 = arith.addf %1984, %2001 : vector<16x16xf32>
    %c393 = arith.constant 393 : index
    %2003 = memref.load %arg1[%c393] : memref<448xf32, #tpu.memory_space<smem>>
    %2004 = vector.broadcast %2003 : f32 to vector<16x16xf32>
    %2005 = arith.mulf %2004, %1994 : vector<16x16xf32>
    %2006 = arith.addf %1988, %2005 : vector<16x16xf32>
    %c429 = arith.constant 429 : index
    %2007 = memref.load %arg1[%c429] : memref<448xf32, #tpu.memory_space<smem>>
    %2008 = vector.broadcast %2007 : f32 to vector<16x16xf32>
    %2009 = arith.mulf %2008, %1994 : vector<16x16xf32>
    %2010 = arith.addf %1992, %2009 : vector<16x16xf32>
    %c3_423 = arith.constant 3 : index
    %c2_424 = arith.constant 2 : index
    %c1_425 = arith.constant 1 : index
    %2011 = vector.load %arg8[%c3_423, %c2_424, %c1_425] : memref<4x18x18xf32, #tpu.memory_space<vmem>>, vector<1x16x16xf32>
    %2012 = vector.shape_cast %2011 : vector<1x16x16xf32> to vector<16x16xf32>
    %c322 = arith.constant 322 : index
    %2013 = memref.load %arg1[%c322] : memref<448xf32, #tpu.memory_space<smem>>
    %2014 = vector.broadcast %2013 : f32 to vector<16x16xf32>
    %2015 = arith.mulf %2014, %2012 : vector<16x16xf32>
    %2016 = arith.addf %1998, %2015 : vector<16x16xf32>
    %c358 = arith.constant 358 : index
    %2017 = memref.load %arg1[%c358] : memref<448xf32, #tpu.memory_space<smem>>
    %2018 = vector.broadcast %2017 : f32 to vector<16x16xf32>
    %2019 = arith.mulf %2018, %2012 : vector<16x16xf32>
    %2020 = arith.addf %2002, %2019 : vector<16x16xf32>
    %c394 = arith.constant 394 : index
    %2021 = memref.load %arg1[%c394] : memref<448xf32, #tpu.memory_space<smem>>
    %2022 = vector.broadcast %2021 : f32 to vector<16x16xf32>
    %2023 = arith.mulf %2022, %2012 : vector<16x16xf32>
    %2024 = arith.addf %2006, %2023 : vector<16x16xf32>
    %c430 = arith.constant 430 : index
    %2025 = memref.load %arg1[%c430] : memref<448xf32, #tpu.memory_space<smem>>
    %2026 = vector.broadcast %2025 : f32 to vector<16x16xf32>
    %2027 = arith.mulf %2026, %2012 : vector<16x16xf32>
    %2028 = arith.addf %2010, %2027 : vector<16x16xf32>
    %c3_426 = arith.constant 3 : index
    %c2_427 = arith.constant 2 : index
    %c2_428 = arith.constant 2 : index
    %2029 = vector.load %arg8[%c3_426, %c2_427, %c2_428] : memref<4x18x18xf32, #tpu.memory_space<vmem>>, vector<1x16x16xf32>
    %2030 = vector.shape_cast %2029 : vector<1x16x16xf32> to vector<16x16xf32>
    %c323 = arith.constant 323 : index
    %2031 = memref.load %arg1[%c323] : memref<448xf32, #tpu.memory_space<smem>>
    %2032 = vector.broadcast %2031 : f32 to vector<16x16xf32>
    %2033 = arith.mulf %2032, %2030 : vector<16x16xf32>
    %2034 = arith.addf %2016, %2033 : vector<16x16xf32>
    %c359 = arith.constant 359 : index
    %2035 = memref.load %arg1[%c359] : memref<448xf32, #tpu.memory_space<smem>>
    %2036 = vector.broadcast %2035 : f32 to vector<16x16xf32>
    %2037 = arith.mulf %2036, %2030 : vector<16x16xf32>
    %2038 = arith.addf %2020, %2037 : vector<16x16xf32>
    %c395 = arith.constant 395 : index
    %2039 = memref.load %arg1[%c395] : memref<448xf32, #tpu.memory_space<smem>>
    %2040 = vector.broadcast %2039 : f32 to vector<16x16xf32>
    %2041 = arith.mulf %2040, %2030 : vector<16x16xf32>
    %2042 = arith.addf %2024, %2041 : vector<16x16xf32>
    %c431 = arith.constant 431 : index
    %2043 = memref.load %arg1[%c431] : memref<448xf32, #tpu.memory_space<smem>>
    %2044 = vector.broadcast %2043 : f32 to vector<16x16xf32>
    %2045 = arith.mulf %2044, %2030 : vector<16x16xf32>
    %2046 = arith.addf %2028, %2045 : vector<16x16xf32>
    %c440 = arith.constant 440 : index
    %2047 = memref.load %arg1[%c440] : memref<448xf32, #tpu.memory_space<smem>>
    %2048 = vector.broadcast %2047 : f32 to vector<16x16xf32>
    %2049 = arith.mulf %2034, %2048 : vector<16x16xf32>
    %c444 = arith.constant 444 : index
    %2050 = memref.load %arg1[%c444] : memref<448xf32, #tpu.memory_space<smem>>
    %2051 = vector.broadcast %2050 : f32 to vector<16x16xf32>
    %2052 = arith.addf %2049, %2051 : vector<16x16xf32>
    %cst_429 = arith.constant 0.000000e+00 : f32
    %2053 = vector.broadcast %cst_429 : f32 to vector<16x16xf32>
    %2054 = arith.maximumf %2052, %2053 : vector<16x16xf32>
    %c0_430 = arith.constant 0 : index
    %c0_431 = arith.constant 0 : index
    %c0_432 = arith.constant 0 : index
    %c0_433 = arith.constant 0 : index
    %2055 = vector.load %arg6[%c0_430, %c0_431, %c0_432, %c0_433] : memref<1x4x16x16xf32, #tpu.memory_space<vmem>>, vector<1x1x16x16xf32>
    %2056 = vector.shape_cast %2055 : vector<1x1x16x16xf32> to vector<16x16xf32>
    %2057 = vector.shape_cast %2054 : vector<16x16xf32> to vector<1x1x16x16xf32>
    tpu.vector_store %arg6[%c0_430, %c0_431, %c0_432, %c0_433], %2057 {strides = array<i32>} : memref<1x4x16x16xf32, #tpu.memory_space<vmem>>, vector<1x1x16x16xf32>,
    %c441 = arith.constant 441 : index
    %2058 = memref.load %arg1[%c441] : memref<448xf32, #tpu.memory_space<smem>>
    %2059 = vector.broadcast %2058 : f32 to vector<16x16xf32>
    %2060 = arith.mulf %2038, %2059 : vector<16x16xf32>
    %c445 = arith.constant 445 : index
    %2061 = memref.load %arg1[%c445] : memref<448xf32, #tpu.memory_space<smem>>
    %2062 = vector.broadcast %2061 : f32 to vector<16x16xf32>
    %2063 = arith.addf %2060, %2062 : vector<16x16xf32>
    %cst_434 = arith.constant 0.000000e+00 : f32
    %2064 = vector.broadcast %cst_434 : f32 to vector<16x16xf32>
    %2065 = arith.maximumf %2063, %2064 : vector<16x16xf32>
    %c0_435 = arith.constant 0 : index
    %c1_436 = arith.constant 1 : index
    %c0_437 = arith.constant 0 : index
    %c0_438 = arith.constant 0 : index
    %2066 = vector.load %arg6[%c0_435, %c1_436, %c0_437, %c0_438] : memref<1x4x16x16xf32, #tpu.memory_space<vmem>>, vector<1x1x16x16xf32>
    %2067 = vector.shape_cast %2066 : vector<1x1x16x16xf32> to vector<16x16xf32>
    %2068 = vector.shape_cast %2065 : vector<16x16xf32> to vector<1x1x16x16xf32>
    tpu.vector_store %arg6[%c0_435, %c1_436, %c0_437, %c0_438], %2068 {strides = array<i32>} : memref<1x4x16x16xf32, #tpu.memory_space<vmem>>, vector<1x1x16x16xf32>,
    %c442 = arith.constant 442 : index
    %2069 = memref.load %arg1[%c442] : memref<448xf32, #tpu.memory_space<smem>>
    %2070 = vector.broadcast %2069 : f32 to vector<16x16xf32>
    %2071 = arith.mulf %2042, %2070 : vector<16x16xf32>
    %c446 = arith.constant 446 : index
    %2072 = memref.load %arg1[%c446] : memref<448xf32, #tpu.memory_space<smem>>
    %2073 = vector.broadcast %2072 : f32 to vector<16x16xf32>
    %2074 = arith.addf %2071, %2073 : vector<16x16xf32>
    %cst_439 = arith.constant 0.000000e+00 : f32
    %2075 = vector.broadcast %cst_439 : f32 to vector<16x16xf32>
    %2076 = arith.maximumf %2074, %2075 : vector<16x16xf32>
    %c0_440 = arith.constant 0 : index
    %c2_441 = arith.constant 2 : index
    %c0_442 = arith.constant 0 : index
    %c0_443 = arith.constant 0 : index
    %2077 = vector.load %arg6[%c0_440, %c2_441, %c0_442, %c0_443] : memref<1x4x16x16xf32, #tpu.memory_space<vmem>>, vector<1x1x16x16xf32>
    %2078 = vector.shape_cast %2077 : vector<1x1x16x16xf32> to vector<16x16xf32>
    %2079 = vector.shape_cast %2076 : vector<16x16xf32> to vector<1x1x16x16xf32>
    tpu.vector_store %arg6[%c0_440, %c2_441, %c0_442, %c0_443], %2079 {strides = array<i32>} : memref<1x4x16x16xf32, #tpu.memory_space<vmem>>, vector<1x1x16x16xf32>,
    %c443 = arith.constant 443 : index
    %2080 = memref.load %arg1[%c443] : memref<448xf32, #tpu.memory_space<smem>>
    %2081 = vector.broadcast %2080 : f32 to vector<16x16xf32>
    %2082 = arith.mulf %2046, %2081 : vector<16x16xf32>
    %c447 = arith.constant 447 : index
    %2083 = memref.load %arg1[%c447] : memref<448xf32, #tpu.memory_space<smem>>
    %2084 = vector.broadcast %2083 : f32 to vector<16x16xf32>
    %2085 = arith.addf %2082, %2084 : vector<16x16xf32>
    %cst_444 = arith.constant 0.000000e+00 : f32
    %2086 = vector.broadcast %cst_444 : f32 to vector<16x16xf32>
    %2087 = arith.maximumf %2085, %2086 : vector<16x16xf32>
    %c0_445 = arith.constant 0 : index
    %c3_446 = arith.constant 3 : index
    %c0_447 = arith.constant 0 : index
    %c0_448 = arith.constant 0 : index
    %2088 = vector.load %arg6[%c0_445, %c3_446, %c0_447, %c0_448] : memref<1x4x16x16xf32, #tpu.memory_space<vmem>>, vector<1x1x16x16xf32>
    %2089 = vector.shape_cast %2088 : vector<1x1x16x16xf32> to vector<16x16xf32>
    %2090 = vector.shape_cast %2087 : vector<16x16xf32> to vector<1x1x16x16xf32>
    tpu.vector_store %arg6[%c0_445, %c3_446, %c0_447, %c0_448], %2090 {strides = array<i32>} : memref<1x4x16x16xf32, #tpu.memory_space<vmem>>, vector<1x1x16x16xf32>,
    return
  }
  func.func @transform_0(%arg0: i32, %arg1: memref<448xf32, #tpu.memory_space<smem>>) -> (i32, i32, i32, i32) {
    %c0_i32 = arith.constant 0 : i32
    %c0_i32_0 = arith.constant 0 : i32
    %c0_i32_1 = arith.constant 0 : i32
    %c0_i32_2 = arith.constant 0 : i32
    return %arg0, %c0_i32, %c0_i32_0, %c0_i32_1 : i32, i32, i32, i32
  }
  func.func @transform_1(%arg0: i32, %arg1: memref<448xf32, #tpu.memory_space<smem>>) -> (i32, i32, i32, i32) {
    %c0_i32 = arith.constant 0 : i32
    %c0_i32_0 = arith.constant 0 : i32
    %c0_i32_1 = arith.constant 0 : i32
    %c0_i32_2 = arith.constant 0 : i32
    return %arg0, %c0_i32, %c0_i32_0, %c0_i32_1 : i32, i32, i32, i32
  }
  func.func @transform_2(%arg0: i32, %arg1: memref<448xf32, #tpu.memory_space<smem>>) -> (i32, i32) {
    %c0_i32 = arith.constant 0 : i32
    %c0_i32_0 = arith.constant 0 : i32
    %c0_i32_1 = arith.constant 0 : i32
    return %c0_i32, %c0_i32_0 : i32, i32
  }
  func.func @transform_3(%arg0: i32, %arg1: memref<448xf32, #tpu.memory_space<smem>>) -> (i32, i32) {
    %c0_i32 = arith.constant 0 : i32
    %c0_i32_0 = arith.constant 0 : i32
    %c0_i32_1 = arith.constant 0 : i32
    return %c0_i32, %c0_i32_0 : i32, i32
  }
  func.func @transform_4(%arg0: i32, %arg1: memref<448xf32, #tpu.memory_space<smem>>) -> (i32, i32, i32, i32) {
    %c0_i32 = arith.constant 0 : i32
    %c0_i32_0 = arith.constant 0 : i32
    %c0_i32_1 = arith.constant 0 : i32
    %c0_i32_2 = arith.constant 0 : i32
    return %arg0, %c0_i32, %c0_i32_0, %c0_i32_1 : i32, i32, i32, i32
  }
}

</mosaic_0001>

<llo_original>
// kernel: tpu_custom_call.1
$region0: #{tpu_custom_call.1}
  #allocation0 [shape = 'u32[]', space=smem, size = 0x4, offset = 0x4, fixed_abs, tag = 'smem constant byte address 0x4 - core index']
  #allocation1 [shape = 'u32[144,128]{1,0:T(1,128)}', space=vmem, size = 0x12000, scoped, tag = 'internal scratch']
  #allocation2 [shape = 'f32[4,20,20]{2,1,0:T(8,128)}', space=vmem, size = 0xc000, scoped, tag = 'scratch operand']
  #allocation3 [shape = 'f32[4,18,18]{2,1,0:T(8,128)}', space=vmem, size = 0xc000, scoped, tag = 'scratch operand']
  #allocation4 [shape = 's32[1]{0}', space=sflag, size = 0x4, scoped, tag = 'scoped memory for tpu_custom_call.1']
  #allocation5 [shape = 'u8[2048]{0}', space=smem, size = 0x800, scoped, tag = 'prefetched SMEM operand 0']
  %s0 = inlined_call_operand.vmem [shape: f32[448], index: 0, kind: input, shape index: {}]
  %s1 = inlined_call_operand.vmem [shape: f32[2,4,8,8], index: 1, kind: input, shape index: {}]
  %s2 = inlined_call_operand.vmem [shape: f32[2,4,20,20], index: 2, kind: input, shape index: {}]
  %s3 = inlined_call_operand.vmem [shape: f32[20,8], index: 3, kind: input, shape index: {}]
  %s4 = inlined_call_operand.vmem [shape: f32[8,20], index: 4, kind: input, shape index: {}]
  %s5 = inlined_call_operand.hbm [shape: f32[2,4,16,16], index: 5, kind: output, shape index: {}]
  %s6 = sld [smem:[#allocation0]]
  $region49: #{tpu_custom_call.1} parent=0
    _
  %s8 = ssub.s32 1, %s6
  %s9 = scalar_select 0, %s8, %s6
  %s10 = sshll.u32 %s0, 4
  %s11 = int_to_ptr.vmem [resolvable:$true] %s10
  %13 = dma.vmem_to_smem %s11, 64, [#allocation5], [#allocation4]
  %14 = dma.done [#allocation4], 64
  %15 = sfence
  $region1: #{tpu_custom_call.1} parent=0
    #allocation6 [shape = 'u8[65536]{0}', space=vmem, size = 0x10000, scoped, tag = 'output window, operand 0']
    #allocation7 [shape = 's32[2]{0}', space=sflag, size = 0x8, scoped, tag = 'scoped memory for tpu_custom_call.1']
    %16 = vsyncpa [#allocation7], 0
    %s17 = scalar_lea.sflag [#allocation7], 1
    %18 = vsyncpa %s17, 0
    loop: start=0, step=1, limit=4
    $region2: #{tpu_custom_call.1} parent=1 // loop_pre_header
      _
    $region3: #{tpu_custom_call.1} parent=1 // loop_header
      %s20 = sphi 0, %s24
      %p21 = scmp.ge.s32.totalorder %s20, 4
      %s30 = sphi 0, %s32
      %s33 = sphi 0, %s30
      %s34 = sphi 0, %s33
      %s50 = sphi 0, %s34
      %s56 = sphi 0, %s58
      %s59 = sphi 0, %s56
      %s60 = sphi 0, %s59
      %s76 = sphi 0, %s60
      %s80 = sphi 0, %s80
      %s82 = sphi 0, %s80
      %s83 = sphi 0, %s82
      %s97 = sphi 0, %s83
      %s101 = sphi 0, %s101
      %s103 = sphi 0, %s101
      %s104 = sphi 0, %s103
      %s118 = sphi 0, %s104
      %s124 = sphi 0, %s126
      %s127 = sphi 0, %s124
      %s128 = sphi 0, %s127
      %s144 = sphi 0, %s128
    $region4: #{tpu_custom_call.1} parent=1 // loop_header_branch
      %23 = sbr.rel (%p21) target = $region8
    $region5: #{tpu_custom_call.1} parent=1 // loop_body
      %s25 = ssub.s32 %s20, 1
      %s26 = ssub.s32 %s20, 2
      %s27 = sadd.s32 %s20, 1
      %s28 = ssub.s32 %s20, %s27
      %p29 = scmp.eq.s32.totalorder %s28, 0
      %s31 = sadd.s32 %s30, 1
      %s32 = scalar_select %p29, %s30, %s31
      %p35 = pneg %p29
      %p36 = scmp.eq.s32.totalorder %s20, 1
      %p37 = por %p35, %p36
      %p38 = scmp.ne.s32.totalorder %s30, %s33
      %p39 = scmp.eq.s32.totalorder %s20, 0
      %p40 = por %p38, %p39
      %p41 = scmp.ne.s32.totalorder %s30, %s33
      %p42 = scmp.eq.s32.totalorder %s25, 1
      %p43 = por %p41, %p42
      %p44 = scmp.ne.s32.totalorder %s33, %s34
      %p45 = scmp.eq.s32.totalorder %s25, 0
      %p46 = por %p44, %p45
      %p47 = scmp.ne.s32.totalorder %s33, %s34
      %p48 = scmp.eq.s32.totalorder %s26, 1
      %p49 = por %p47, %p48
      %p51 = scmp.ne.s32.totalorder %s34, %s50
      %p52 = scmp.eq.s32.totalorder %s26, 0
      %p53 = por %p51, %p52
      %s54 = ssub.s32 %s20, %s27
      %p55 = scmp.eq.s32.totalorder %s54, 0
      %s57 = sadd.s32 %s56, 1
      %s58 = scalar_select %p55, %s56, %s57
      %p61 = pneg %p55
      %p62 = scmp.eq.s32.totalorder %s20, 1
      %p63 = por %p61, %p62
      %p64 = scmp.ne.s32.totalorder %s56, %s59
      %p65 = scmp.eq.s32.totalorder %s20, 0
      %p66 = por %p64, %p65
      %p67 = scmp.ne.s32.totalorder %s56, %s59
      %p68 = scmp.eq.s32.totalorder %s25, 1
      %p69 = por %p67, %p68
      %p70 = scmp.ne.s32.totalorder %s59, %s60
      %p71 = scmp.eq.s32.totalorder %s25, 0
      %p72 = por %p70, %p71
      %p73 = scmp.ne.s32.totalorder %s59, %s60
      %p74 = scmp.eq.s32.totalorder %s26, 1
      %p75 = por %p73, %p74
      %p77 = scmp.ne.s32.totalorder %s60, %s76
      %p78 = scmp.eq.s32.totalorder %s26, 0
      %p79 = por %p77, %p78
      %s81 = sadd.s32 %s80, 1
      %p84 = scmp.eq.s32.totalorder %s20, 1
      %p85 = scmp.ne.s32.totalorder %s80, %s82
      %p86 = scmp.eq.s32.totalorder %s20, 0
      %p87 = por %p85, %p86
      %p88 = scmp.ne.s32.totalorder %s80, %s82
      %p89 = scmp.eq.s32.totalorder %s25, 1
      %p90 = por %p88, %p89
      %p91 = scmp.ne.s32.totalorder %s82, %s83
      %p92 = scmp.eq.s32.totalorder %s25, 0
      %p93 = por %p91, %p92
      %p94 = scmp.ne.s32.totalorder %s82, %s83
      %p95 = scmp.eq.s32.totalorder %s26, 1
      %p96 = por %p94, %p95
      %p98 = scmp.ne.s32.totalorder %s83, %s97
      %p99 = scmp.eq.s32.totalorder %s26, 0
      %p100 = por %p98, %p99
      %s102 = sadd.s32 %s101, 1
      %p105 = scmp.eq.s32.totalorder %s20, 1
      %p106 = scmp.ne.s32.totalorder %s101, %s103
      %p107 = scmp.eq.s32.totalorder %s20, 0
      %p108 = por %p106, %p107
      %p109 = scmp.ne.s32.totalorder %s101, %s103
      %p110 = scmp.eq.s32.totalorder %s25, 1
      %p111 = por %p109, %p110
      %p112 = scmp.ne.s32.totalorder %s103, %s104
      %p113 = scmp.eq.s32.totalorder %s25, 0
      %p114 = por %p112, %p113
      %p115 = scmp.ne.s32.totalorder %s103, %s104
      %p116 = scmp.eq.s32.totalorder %s26, 1
      %p117 = por %p115, %p116
      %p119 = scmp.ne.s32.totalorder %s104, %s118
      %p120 = scmp.eq.s32.totalorder %s26, 0
      %p121 = por %p119, %p120
      %s122 = ssub.s32 %s20, %s27
      %p123 = scmp.eq.s32.totalorder %s122, 0
      %s125 = sadd.s32 %s124, 1
      %s126 = scalar_select %p123, %s124, %s125
      %p129 = pneg %p123
      %p130 = scmp.eq.s32.totalorder %s20, 1
      %p131 = por %p129, %p130
      %p132 = scmp.ne.s32.totalorder %s124, %s127
      %p133 = scmp.eq.s32.totalorder %s20, 0
      %p134 = por %p132, %p133
      %p135 = scmp.ne.s32.totalorder %s124, %s127
      %p136 = scmp.eq.s32.totalorder %s25, 1
      %p137 = por %p135, %p136
      %p138 = scmp.ne.s32.totalorder %s127, %s128
      %p139 = scmp.eq.s32.totalorder %s25, 0
      %p140 = por %p138, %p139
      %p141 = scmp.ne.s32.totalorder %s127, %s128
      %p142 = scmp.eq.s32.totalorder %s26, 1
      %p143 = por %p141, %p142
      %p145 = scmp.ne.s32.totalorder %s128, %s144
      %p146 = scmp.eq.s32.totalorder %s26, 0
      %p147 = por %p145, %p146
      %p148 = scmp.le.s32.totalorder 1, %s20
      %p149 = scmp.lt.s32.totalorder %s20, 3
      %p150 = pnand %p148, %p149
      %p151 = pneg %p150
      // Predicated region
      $region9: #{tpu_custom_call.1} parent=5 // pred_check
        _
      $region10: #{tpu_custom_call.1} parent=5 // pred_check_branch
        %153 = sbr.rel (%p150) target = $region12
      $region11: #{tpu_custom_call.1} parent=5 // pred_region
        %s154 = ssub.s32 %s20, 1
        // Predicated region
        $region13: #{tpu_custom_call.1} parent=11 // pred_check
          %p155 = pneg %p93
        $region14: #{tpu_custom_call.1} parent=11 // pred_check_branch
          %157 = sbr.rel (%p155) target = $region16
        $region15: #{tpu_custom_call.1} parent=11 // pred_region
          _
        $region16: #{tpu_custom_call.1} parent=11 // pred_fallthru
          _
        // Predicated region
        $region17: #{tpu_custom_call.1} parent=11 // pred_check
          %p158 = pneg %p114
        $region18: #{tpu_custom_call.1} parent=11 // pred_check_branch
          %160 = sbr.rel (%p158) target = $region20
        $region19: #{tpu_custom_call.1} parent=11 // pred_region
          _
        $region20: #{tpu_custom_call.1} parent=11 // pred_fallthru
          _
      $region12: #{tpu_custom_call.1} parent=5 // pred_fallthru
        _
      %p161 = scmp.lt.s32.totalorder %s20, 2
      // Predicated region
      $region21: #{tpu_custom_call.1} parent=5 // pred_check
        %p162 = pneg %p161
      $region22: #{tpu_custom_call.1} parent=5 // pred_check_branch
        %164 = sbr.rel (%p162) target = $region24
      $region23: #{tpu_custom_call.1} parent=5 // pred_region
        // Predicated region
        $region25: #{tpu_custom_call.1} parent=23 // pred_check
          %p165 = pneg %p40
        $region26: #{tpu_custom_call.1} parent=23 // pred_check_branch
          %167 = sbr.rel (%p165) target = $region28
        $region27: #{tpu_custom_call.1} parent=23 // pred_region
          %p168 = scmp.lt.s32.totalorder %s20, 1
          %s169 = scalar_select %p168, %s20, 1
          %s170 = smul.addr %s169, 4
          %s171 = smul.addr %s170, 8
          %s172 = scalar_lea.vmem %s1, %s171
        $region28: #{tpu_custom_call.1} parent=23 // pred_fallthru
          _
        // Predicated region
        $region29: #{tpu_custom_call.1} parent=23 // pred_check
          %p173 = pneg %p66
        $region30: #{tpu_custom_call.1} parent=23 // pred_check_branch
          %175 = sbr.rel (%p173) target = $region32
        $region31: #{tpu_custom_call.1} parent=23 // pred_region
          %p176 = scmp.lt.s32.totalorder %s20, 1
          %s177 = scalar_select %p176, %s20, 1
          %s178 = smul.addr %s177, 12
          %s179 = smul.addr %s178, 8
          %s180 = scalar_lea.vmem %s2, %s179
        $region32: #{tpu_custom_call.1} parent=23 // pred_fallthru
          _
      $region24: #{tpu_custom_call.1} parent=5 // pred_fallthru
        _
      %p181 = scmp.le.s32.totalorder 1, %s20
      %p182 = scmp.lt.s32.totalorder %s20, 3
      %p183 = pnand %p181, %p182
      %p184 = pneg %p183
      // Predicated region
      $region33: #{tpu_custom_call.1} parent=5 // pred_check
        _
      $region34: #{tpu_custom_call.1} parent=5 // pred_check_branch
        %186 = sbr.rel (%p183) target = $region36
      $region35: #{tpu_custom_call.1} parent=5 // pred_region
        %s187 = ssub.s32 %s20, 1
        %p188 = scmp.lt.s32.totalorder %s25, 1
        %s189 = scalar_select %p188, %s25, 1
        %s190 = smul.addr %s189, 4
        %s191 = smul.addr %s190, 8
        %s192 = scalar_lea.vmem %s1, %s191
        %p193 = pneg %p46
        %p194 = pneg %p43
        %p195 = scmp.lt.s32.totalorder %s25, 1
        %s196 = scalar_select %p195, %s25, 1
        %s197 = smul.addr %s196, 12
        %s198 = smul.addr %s197, 8
        %s199 = scalar_lea.vmem %s2, %s198
        %p200 = pneg %p72
        %p201 = pneg %p69
        %p202 = pneg %p93
        %p203 = pneg %p90
        %p204 = pneg %p114
        %p205 = pneg %p111
        %p206 = pneg %p140
        %p207 = pneg %p137
        %s208 = sand.u32 %s127, 1
        %s209 = scalar_lea.sflag [#allocation7], %s208
        %s210 = sand.u32 %s127, 1
        %s211 = smul.addr %s210, 64
        %s212 = scalar_lea.vmem [#allocation6], %s211
        %p213 = scmp.lt.s32.totalorder %s25, 1
        %s214 = scalar_select %p213, %s25, 1
        %s215 = smul.addr %s214, 4
        %s216 = smul.addr %s215, 8
        %s217 = scalar_lea.vmem %s1, %s216
        %p218 = scmp.lt.s32.totalorder %s25, 1
        %s219 = scalar_select %p218, %s25, 1
        %s220 = smul.addr %s219, 12
        %s221 = smul.addr %s220, 8
        %s222 = scalar_lea.vmem %s2, %s221
        %v223 = vld [vmem:[%s3] sm:$0xff]
        %v224 = vld [vmem:[%s3 + $0x8] sm:$0xff]
        %v225 = vld [vmem:[%s3 + $0x10] sm:$0xf]
        %v226 = vld [vmem:[%s4] sm:$0xff]
        %v227 = vld [vmem:[%s217] sm:$0xff]
        %vm228 = vcmask 64512
        %v230 = vsel %vm228, %v223, 0
        %v233 = vsel %vm228, %v224, 0
        %v236 = vsel %vm228, %v225, 0
        %238 = vmatprep.subr.mxu0 0.0
        %239 = vmatpush1.msra.mxu0 %v227
        %240 = vmatprep.subr.mxu0 0.0
        %241 = vmatpush1.msra.mxu0 0.0
        %242 = vmatprep.subr.mxu0 0.0
        %243 = vmatpush1.msra.mxu0 0.0
        %244 = vmatprep.subr.mxu0 0.0
        %245 = vmatpush1.msra.mxu0 0.0
        %246 = vmatprep.subr.mxu0 0.0
        %247 = vmatpush1.msra.mxu0 0.0
        %248 = vmatprep.subr.mxu0 0.0
        %249 = vmatpush1.msra.mxu0 0.0
        %250 = vmatprep.subr.mxu0 0.0
        %251 = vmatpush1.msra.mxu0 0.0
        %252 = vmatprep.subr.mxu0 0.0
        %253 = vmatpush1.msra.mxu0 0.0
        %254 = vmatprep.subr.mxu0 0.0
        %255 = vmatpush1.msra.mxu0 0.0
        %256 = vmatprep.subr.mxu0 0.0
        %257 = vmatpush1.msra.mxu0 0.0
        %258 = vmatprep.subr.mxu0 0.0
        %259 = vmatpush1.msra.mxu0 0.0
        %260 = vmatprep.subr.mxu0 0.0
        %261 = vmatpush1.msra.mxu0 0.0
        %262 = vmatprep.subr.mxu0 0.0
        %263 = vmatpush1.msra.mxu0 0.0
        %264 = vmatprep.subr.mxu0 0.0
        %265 = vmatpush1.msra.mxu0 0.0
        %266 = vmatprep.subr.mxu0 0.0
        %267 = vmatpush1.msra.mxu0 0.0
        %268 = vmatprep.subr.mxu0 0.0
        %269 = vmatpush1.msra.mxu0 0.0
        %270 = vmatprep.subr.mxu0 0.0
        %271 = vmatpush1.msra.mxu0 0.0
        %272 = vmatprep.subr.mxu0 0.0
        %273 = vmatpush1.msra.mxu0 0.0
        %274 = vmatprep.subr.mxu0 0.0
        %275 = vmatpush1.msra.mxu0 0.0
        %276 = vmatprep.subr.mxu0 0.0
        %277 = vmatpush1.msra.mxu0 0.0
        %278 = vmatprep.subr.mxu0 0.0
        %279 = vmatpush1.msra.mxu0 0.0
        %280 = vmatprep.subr.mxu0 0.0
        %281 = vmatpush1.msra.mxu0 0.0
        %282 = vmatprep.subr.mxu0 0.0
        %283 = vmatpush1.msra.mxu0 0.0
        %284 = vmatprep.subr.mxu0 0.0
        %285 = vmatpush1.msra.mxu0 0.0
        %286 = vmatprep.subr.mxu0 0.0
        %287 = vmatpush1.msra.mxu0 0.0
        %288 = vmatprep.subr.mxu0 0.0
        %289 = vmatpush1.msra.mxu0 0.0
        %290 = vmatprep.subr.mxu0 0.0
        %291 = vmatpush1.msra.mxu0 0.0
        %292 = vmatprep.subr.mxu0 0.0
        %293 = vmatpush1.msra.mxu0 0.0
        %294 = vmatprep.subr.mxu0 0.0
        %295 = vmatpush1.msra.mxu0 0.0
        %296 = vmatprep.subr.mxu0 0.0
        %297 = vmatpush1.msra.mxu0 0.0
        %298 = vmatprep.subr.mxu0 0.0
        %299 = vmatpush1.msra.mxu0 0.0
        %300 = vmatprep.subr.mxu0 0.0
        %301 = vmatpush1.msra.mxu0 0.0
        %302 = vmatprep.mubr.f32.mxu0 0.0
        %303 = vmatmul.mubr.f32.gmra.mrb[0].mxu0 %v230
        %v304 = vpop.f32.mrb[0].mxu0
        %v305 = vadd.f32 0.0, %v304
        %v306 = vpop.f32.mrb[0].mxu0
        %307 = vmatprep.mubr.f32.mxu0 0.0
        %308 = vmatmul.mubr.f32.gmra.mrb[0].mxu0 %v233
        %v309 = vpop.f32.mrb[0].mxu0
        %v310 = vadd.f32 0.0, %v309
        %v311 = vpop.f32.mrb[0].mxu0
        %312 = vmatprep.mubr.f32.mxu0 0.0
        %313 = vmatmul.mubr.f32.gmra.mrb[0].mxu0 %v236
        %v314 = vpop.f32.mrb[0].mxu0
        %v315 = vadd.f32 0.0, %v314
        %v316 = vpop.f32.mrb[0].mxu0
        %317 = vdwg.mxu0
        %v319 = vsel %vm228, %v305, 0
        %v322 = vsel %vm228, %v310, 0
        %v325 = vsel %vm228, %v315, 0
        %327 = vmatprep.subr.mxu0 0.0
        %328 = vmatpush1.msra.mxu0 %v226
        %329 = vmatprep.subr.mxu0 0.0
        %330 = vmatpush1.msra.mxu0 0.0
        %331 = vmatprep.subr.mxu0 0.0
        %332 = vmatpush1.msra.mxu0 0.0
        %333 = vmatprep.subr.mxu0 0.0
        %334 = vmatpush1.msra.mxu0 0.0
        %335 = vmatprep.subr.mxu0 0.0
        %336 = vmatpush1.msra.mxu0 0.0
        %337 = vmatprep.subr.mxu0 0.0
        %338 = vmatpush1.msra.mxu0 0.0
        %339 = vmatprep.subr.mxu0 0.0
        %340 = vmatpush1.msra.mxu0 0.0
        %341 = vmatprep.subr.mxu0 0.0
        %342 = vmatpush1.msra.mxu0 0.0
        %343 = vmatprep.subr.mxu0 0.0
        %344 = vmatpush1.msra.mxu0 0.0
        %345 = vmatprep.subr.mxu0 0.0
        %346 = vmatpush1.msra.mxu0 0.0
        %347 = vmatprep.subr.mxu0 0.0
        %348 = vmatpush1.msra.mxu0 0.0
        %349 = vmatprep.subr.mxu0 0.0
        %350 = vmatpush1.msra.mxu0 0.0
        %351 = vmatprep.subr.mxu0 0.0
        %352 = vmatpush1.msra.mxu0 0.0
        %353 = vmatprep.subr.mxu0 0.0
        %354 = vmatpush1.msra.mxu0 0.0
        %355 = vmatprep.subr.mxu0 0.0
        %356 = vmatpush1.msra.mxu0 0.0
        %357 = vmatprep.subr.mxu0 0.0
        %358 = vmatpush1.msra.mxu0 0.0
        %359 = vmatprep.subr.mxu0 0.0
        %360 = vmatpush1.msra.mxu0 0.0
        %361 = vmatprep.subr.mxu0 0.0
        %362 = vmatpush1.msra.mxu0 0.0
        %363 = vmatprep.subr.mxu0 0.0
        %364 = vmatpush1.msra.mxu0 0.0
        %365 = vmatprep.subr.mxu0 0.0
        %366 = vmatpush1.msra.mxu0 0.0
        %367 = vmatprep.subr.mxu0 0.0
        %368 = vmatpush1.msra.mxu0 0.0
        %369 = vmatprep.subr.mxu0 0.0
        %370 = vmatpush1.msra.mxu0 0.0
        %371 = vmatprep.subr.mxu0 0.0
        %372 = vmatpush1.msra.mxu0 0.0
        %373 = vmatprep.subr.mxu0 0.0
        %374 = vmatpush1.msra.mxu0 0.0
        %375 = vmatprep.subr.mxu0 0.0
        %376 = vmatpush1.msra.mxu0 0.0
        %377 = vmatprep.subr.mxu0 0.0
        %378 = vmatpush1.msra.mxu0 0.0
        %379 = vmatprep.subr.mxu0 0.0
        %380 = vmatpush1.msra.mxu0 0.0
        %381 = vmatprep.subr.mxu0 0.0
        %382 = vmatpush1.msra.mxu0 0.0
        %383 = vmatprep.subr.mxu0 0.0
        %384 = vmatpush1.msra.mxu0 0.0
        %385 = vmatprep.subr.mxu0 0.0
        %386 = vmatpush1.msra.mxu0 0.0
        %387 = vmatprep.subr.mxu0 0.0
        %388 = vmatpush1.msra.mxu0 0.0
        %389 = vmatprep.subr.mxu0 0.0
        %390 = vmatpush1.msra.mxu0 0.0
        %391 = vmatprep.mubr.f32.mxu0 0.0
        %392 = vmatmul.mubr.f32.gmra.mrb[0].mxu0 %v319
        %v393 = vpop.f32.mrb[0].mxu0
        %v394 = vadd.f32 0.0, %v393
        %v395 = vpop.f32.mrb[0].mxu0
        %396 = vmatprep.mubr.f32.mxu0 0.0
        %397 = vmatmul.mubr.f32.gmra.mrb[0].mxu0 %v322
        %v398 = vpop.f32.mrb[0].mxu0
        %v399 = vadd.f32 0.0, %v398
        %v400 = vpop.f32.mrb[0].mxu0
        %401 = vmatprep.mubr.f32.mxu0 0.0
        %402 = vmatmul.mubr.f32.gmra.mrb[0].mxu0 %v325
        %v403 = vpop.f32.mrb[0].mxu0
        %v404 = vadd.f32 0.0, %v403
        %v405 = vpop.f32.mrb[0].mxu0
        %406 = vdwg.mxu0
        %vm407 = vcmask 162816
        %408 = vst.msk [vmem:[#allocation2] sm:$0xff] %vm407, %v394
        %409 = vst.msk [vmem:[#allocation2 + $0x8] sm:$0xff] %vm407, %v399
        %vm410 = vcmask 158720
        %411 = vst.msk [vmem:[#allocation2 + $0x10] sm:$0xf] %vm410, %v404
        %s412 = scalar_lea.vmem %s217, 8
        %v413 = vld [vmem:[%s412] sm:$0xff]
        %414 = vmatprep.subr.mxu0 0.0
        %415 = vmatpush1.msra.mxu0 %v413
        %416 = vmatprep.subr.mxu0 0.0
        %417 = vmatpush1.msra.mxu0 0.0
        %418 = vmatprep.subr.mxu0 0.0
        %419 = vmatpush1.msra.mxu0 0.0
        %420 = vmatprep.subr.mxu0 0.0
        %421 = vmatpush1.msra.mxu0 0.0
        %422 = vmatprep.subr.mxu0 0.0
        %423 = vmatpush1.msra.mxu0 0.0
        %424 = vmatprep.subr.mxu0 0.0
        %425 = vmatpush1.msra.mxu0 0.0
        %426 = vmatprep.subr.mxu0 0.0
        %427 = vmatpush1.msra.mxu0 0.0
        %428 = vmatprep.subr.mxu0 0.0
        %429 = vmatpush1.msra.mxu0 0.0
        %430 = vmatprep.subr.mxu0 0.0
        %431 = vmatpush1.msra.mxu0 0.0
        %432 = vmatprep.subr.mxu0 0.0
        %433 = vmatpush1.msra.mxu0 0.0
        %434 = vmatprep.subr.mxu0 0.0
        %435 = vmatpush1.msra.mxu0 0.0
        %436 = vmatprep.subr.mxu0 0.0
        %437 = vmatpush1.msra.mxu0 0.0
        %438 = vmatprep.subr.mxu0 0.0
        %439 = vmatpush1.msra.mxu0 0.0
        %440 = vmatprep.subr.mxu0 0.0
        %441 = vmatpush1.msra.mxu0 0.0
        %442 = vmatprep.subr.mxu0 0.0
        %443 = vmatpush1.msra.mxu0 0.0
        %444 = vmatprep.subr.mxu0 0.0
        %445 = vmatpush1.msra.mxu0 0.0
        %446 = vmatprep.subr.mxu0 0.0
        %447 = vmatpush1.msra.mxu0 0.0
        %448 = vmatprep.subr.mxu0 0.0
        %449 = vmatpush1.msra.mxu0 0.0
        %450 = vmatprep.subr.mxu0 0.0
        %451 = vmatpush1.msra.mxu0 0.0
        %452 = vmatprep.subr.mxu0 0.0
        %453 = vmatpush1.msra.mxu0 0.0
        %454 = vmatprep.subr.mxu0 0.0
        %455 = vmatpush1.msra.mxu0 0.0
        %456 = vmatprep.subr.mxu0 0.0
        %457 = vmatpush1.msra.mxu0 0.0
        %458 = vmatprep.subr.mxu0 0.0
        %459 = vmatpush1.msra.mxu0 0.0
        %460 = vmatprep.subr.mxu0 0.0
        %461 = vmatpush1.msra.mxu0 0.0
        %462 = vmatprep.subr.mxu0 0.0
        %463 = vmatpush1.msra.mxu0 0.0
        %464 = vmatprep.subr.mxu0 0.0
        %465 = vmatpush1.msra.mxu0 0.0
        %466 = vmatprep.subr.mxu0 0.0
        %467 = vmatpush1.msra.mxu0 0.0
        %468 = vmatprep.subr.mxu0 0.0
        %469 = vmatpush1.msra.mxu0 0.0
        %470 = vmatprep.subr.mxu0 0.0
        %471 = vmatpush1.msra.mxu0 0.0
        %472 = vmatprep.subr.mxu0 0.0
        %473 = vmatpush1.msra.mxu0 0.0
        %474 = vmatprep.subr.mxu0 0.0
        %475 = vmatpush1.msra.mxu0 0.0
        %476 = vmatprep.subr.mxu0 0.0
        %477 = vmatpush1.msra.mxu0 0.0
        %478 = vmatprep.mubr.f32.mxu0 0.0
        %479 = vmatmul.mubr.f32.gmra.mrb[0].mxu0 %v230
        %v480 = vpop.f32.mrb[0].mxu0
        %v481 = vadd.f32 0.0, %v480
        %v482 = vpop.f32.mrb[0].mxu0
        %483 = vmatprep.mubr.f32.mxu0 0.0
        %484 = vmatmul.mubr.f32.gmra.mrb[0].mxu0 %v233
        %v485 = vpop.f32.mrb[0].mxu0
        %v486 = vadd.f32 0.0, %v485
        %v487 = vpop.f32.mrb[0].mxu0
        %488 = vmatprep.mubr.f32.mxu0 0.0
        %489 = vmatmul.mubr.f32.gmra.mrb[0].mxu0 %v236
        %v490 = vpop.f32.mrb[0].mxu0
        %v491 = vadd.f32 0.0, %v490
        %v492 = vpop.f32.mrb[0].mxu0
        %493 = vdwg.mxu0
        %v495 = vsel %vm228, %v481, 0
        %v498 = vsel %vm228, %v486, 0
        %v501 = vsel %vm228, %v491, 0
        %503 = vmatprep.subr.mxu0 0.0
        %504 = vmatpush1.msra.mxu0 %v226
        %505 = vmatprep.subr.mxu0 0.0
        %506 = vmatpush1.msra.mxu0 0.0
        %507 = vmatprep.subr.mxu0 0.0
        %508 = vmatpush1.msra.mxu0 0.0
        %509 = vmatprep.subr.mxu0 0.0
        %510 = vmatpush1.msra.mxu0 0.0
        %511 = vmatprep.subr.mxu0 0.0
        %512 = vmatpush1.msra.mxu0 0.0
        %513 = vmatprep.subr.mxu0 0.0
        %514 = vmatpush1.msra.mxu0 0.0
        %515 = vmatprep.subr.mxu0 0.0
        %516 = vmatpush1.msra.mxu0 0.0
        %517 = vmatprep.subr.mxu0 0.0
        %518 = vmatpush1.msra.mxu0 0.0
        %519 = vmatprep.subr.mxu0 0.0
        %520 = vmatpush1.msra.mxu0 0.0
        %521 = vmatprep.subr.mxu0 0.0
        %522 = vmatpush1.msra.mxu0 0.0
        %523 = vmatprep.subr.mxu0 0.0
        %524 = vmatpush1.msra.mxu0 0.0
        %525 = vmatprep.subr.mxu0 0.0
        %526 = vmatpush1.msra.mxu0 0.0
        %527 = vmatprep.subr.mxu0 0.0
        %528 = vmatpush1.msra.mxu0 0.0
        %529 = vmatprep.subr.mxu0 0.0
        %530 = vmatpush1.msra.mxu0 0.0
        %531 = vmatprep.subr.mxu0 0.0
        %532 = vmatpush1.msra.mxu0 0.0
        %533 = vmatprep.subr.mxu0 0.0
        %534 = vmatpush1.msra.mxu0 0.0
        %535 = vmatprep.subr.mxu0 0.0
        %536 = vmatpush1.msra.mxu0 0.0
        %537 = vmatprep.subr.mxu0 0.0
        %538 = vmatpush1.msra.mxu0 0.0
        %539 = vmatprep.subr.mxu0 0.0
        %540 = vmatpush1.msra.mxu0 0.0
        %541 = vmatprep.subr.mxu0 0.0
        %542 = vmatpush1.msra.mxu0 0.0
        %543 = vmatprep.subr.mxu0 0.0
        %544 = vmatpush1.msra.mxu0 0.0
        %545 = vmatprep.subr.mxu0 0.0
        %546 = vmatpush1.msra.mxu0 0.0
        %547 = vmatprep.subr.mxu0 0.0
        %548 = vmatpush1.msra.mxu0 0.0
        %549 = vmatprep.subr.mxu0 0.0
        %550 = vmatpush1.msra.mxu0 0.0
        %551 = vmatprep.subr.mxu0 0.0
        %552 = vmatpush1.msra.mxu0 0.0
        %553 = vmatprep.subr.mxu0 0.0
        %554 = vmatpush1.msra.mxu0 0.0
        %555 = vmatprep.subr.mxu0 0.0
        %556 = vmatpush1.msra.mxu0 0.0
        %557 = vmatprep.subr.mxu0 0.0
        %558 = vmatpush1.msra.mxu0 0.0
        %559 = vmatprep.subr.mxu0 0.0
        %560 = vmatpush1.msra.mxu0 0.0
        %561 = vmatprep.subr.mxu0 0.0
        %562 = vmatpush1.msra.mxu0 0.0
        %563 = vmatprep.subr.mxu0 0.0
        %564 = vmatpush1.msra.mxu0 0.0
        %565 = vmatprep.subr.mxu0 0.0
        %566 = vmatpush1.msra.mxu0 0.0
        %567 = vmatprep.mubr.f32.mxu0 0.0
        %568 = vmatmul.mubr.f32.gmra.mrb[0].mxu0 %v495
        %v569 = vpop.f32.mrb[0].mxu0
        %v570 = vadd.f32 0.0, %v569
        %v571 = vpop.f32.mrb[0].mxu0
        %572 = vmatprep.mubr.f32.mxu0 0.0
        %573 = vmatmul.mubr.f32.gmra.mrb[0].mxu0 %v498
        %v574 = vpop.f32.mrb[0].mxu0
        %v575 = vadd.f32 0.0, %v574
        %v576 = vpop.f32.mrb[0].mxu0
        %577 = vmatprep.mubr.f32.mxu0 0.0
        %578 = vmatmul.mubr.f32.gmra.mrb[0].mxu0 %v501
        %v579 = vpop.f32.mrb[0].mxu0
        %v580 = vadd.f32 0.0, %v579
        %v581 = vpop.f32.mrb[0].mxu0
        %582 = vdwg.mxu0
        %s583 = scalar_lea.vmem [#allocation2], 24
        %584 = vst.msk [vmem:[%s583] sm:$0xff] %vm407, %v570
        %585 = vst.msk [vmem:[%s583 + $0x8] sm:$0xff] %vm407, %v575
        %586 = vst.msk [vmem:[%s583 + $0x10] sm:$0xf] %vm410, %v580
        %s587 = scalar_lea.vmem %s217, 16
        %v588 = vld [vmem:[%s587] sm:$0xff]
        %589 = vmatprep.subr.mxu0 0.0
        %590 = vmatpush1.msra.mxu0 %v588
        %591 = vmatprep.subr.mxu0 0.0
        %592 = vmatpush1.msra.mxu0 0.0
        %593 = vmatprep.subr.mxu0 0.0
        %594 = vmatpush1.msra.mxu0 0.0
        %595 = vmatprep.subr.mxu0 0.0
        %596 = vmatpush1.msra.mxu0 0.0
        %597 = vmatprep.subr.mxu0 0.0
        %598 = vmatpush1.msra.mxu0 0.0
        %599 = vmatprep.subr.mxu0 0.0
        %600 = vmatpush1.msra.mxu0 0.0
        %601 = vmatprep.subr.mxu0 0.0
        %602 = vmatpush1.msra.mxu0 0.0
        %603 = vmatprep.subr.mxu0 0.0
        %604 = vmatpush1.msra.mxu0 0.0
        %605 = vmatprep.subr.mxu0 0.0
        %606 = vmatpush1.msra.mxu0 0.0
        %607 = vmatprep.subr.mxu0 0.0
        %608 = vmatpush1.msra.mxu0 0.0
        %609 = vmatprep.subr.mxu0 0.0
        %610 = vmatpush1.msra.mxu0 0.0
        %611 = vmatprep.subr.mxu0 0.0
        %612 = vmatpush1.msra.mxu0 0.0
        %613 = vmatprep.subr.mxu0 0.0
        %614 = vmatpush1.msra.mxu0 0.0
        %615 = vmatprep.subr.mxu0 0.0
        %616 = vmatpush1.msra.mxu0 0.0
        %617 = vmatprep.subr.mxu0 0.0
        %618 = vmatpush1.msra.mxu0 0.0
        %619 = vmatprep.subr.mxu0 0.0
        %620 = vmatpush1.msra.mxu0 0.0
        %621 = vmatprep.subr.mxu0 0.0
        %622 = vmatpush1.msra.mxu0 0.0
        %623 = vmatprep.subr.mxu0 0.0
        %624 = vmatpush1.msra.mxu0 0.0
        %625 = vmatprep.subr.mxu0 0.0
        %626 = vmatpush1.msra.mxu0 0.0
        %627 = vmatprep.subr.mxu0 0.0
        %628 = vmatpush1.msra.mxu0 0.0
        %629 = vmatprep.subr.mxu0 0.0
        %630 = vmatpush1.msra.mxu0 0.0
        %631 = vmatprep.subr.mxu0 0.0
        %632 = vmatpush1.msra.mxu0 0.0
        %633 = vmatprep.subr.mxu0 0.0
        %634 = vmatpush1.msra.mxu0 0.0
        %635 = vmatprep.subr.mxu0 0.0
        %636 = vmatpush1.msra.mxu0 0.0
        %637 = vmatprep.subr.mxu0 0.0
        %638 = vmatpush1.msra.mxu0 0.0
        %639 = vmatprep.subr.mxu0 0.0
        %640 = vmatpush1.msra.mxu0 0.0
        %641 = vmatprep.subr.mxu0 0.0
        %642 = vmatpush1.msra.mxu0 0.0
        %643 = vmatprep.subr.mxu0 0.0
        %644 = vmatpush1.msra.mxu0 0.0
        %645 = vmatprep.subr.mxu0 0.0
        %646 = vmatpush1.msra.mxu0 0.0
        %647 = vmatprep.subr.mxu0 0.0
        %648 = vmatpush1.msra.mxu0 0.0
        %649 = vmatprep.subr.mxu0 0.0
        %650 = vmatpush1.msra.mxu0 0.0
        %651 = vmatprep.subr.mxu0 0.0
        %652 = vmatpush1.msra.mxu0 0.0
        %653 = vmatprep.mubr.f32.mxu0 0.0
        %654 = vmatmul.mubr.f32.gmra.mrb[0].mxu0 %v230
        %v655 = vpop.f32.mrb[0].mxu0
        %v656 = vadd.f32 0.0, %v655
        %v657 = vpop.f32.mrb[0].mxu0
        %658 = vmatprep.mubr.f32.mxu0 0.0
        %659 = vmatmul.mubr.f32.gmra.mrb[0].mxu0 %v233
        %v660 = vpop.f32.mrb[0].mxu0
        %v661 = vadd.f32 0.0, %v660
        %v662 = vpop.f32.mrb[0].mxu0
        %663 = vmatprep.mubr.f32.mxu0 0.0
        %664 = vmatmul.mubr.f32.gmra.mrb[0].mxu0 %v236
        %v665 = vpop.f32.mrb[0].mxu0
        %v666 = vadd.f32 0.0, %v665
        %v667 = vpop.f32.mrb[0].mxu0
        %668 = vdwg.mxu0
        %v670 = vsel %vm228, %v656, 0
        %v673 = vsel %vm228, %v661, 0
        %v676 = vsel %vm228, %v666, 0
        %678 = vmatprep.subr.mxu0 0.0
        %679 = vmatpush1.msra.mxu0 %v226
        %680 = vmatprep.subr.mxu0 0.0
        %681 = vmatpush1.msra.mxu0 0.0
        %682 = vmatprep.subr.mxu0 0.0
        %683 = vmatpush1.msra.mxu0 0.0
        %684 = vmatprep.subr.mxu0 0.0
        %685 = vmatpush1.msra.mxu0 0.0
        %686 = vmatprep.subr.mxu0 0.0
        %687 = vmatpush1.msra.mxu0 0.0
        %688 = vmatprep.subr.mxu0 0.0
        %689 = vmatpush1.msra.mxu0 0.0
        %690 = vmatprep.subr.mxu0 0.0
        %691 = vmatpush1.msra.mxu0 0.0
        %692 = vmatprep.subr.mxu0 0.0
        %693 = vmatpush1.msra.mxu0 0.0
        %694 = vmatprep.subr.mxu0 0.0
        %695 = vmatpush1.msra.mxu0 0.0
        %696 = vmatprep.subr.mxu0 0.0
        %697 = vmatpush1.msra.mxu0 0.0
        %698 = vmatprep.subr.mxu0 0.0
        %699 = vmatpush1.msra.mxu0 0.0
        %700 = vmatprep.subr.mxu0 0.0
        %701 = vmatpush1.msra.mxu0 0.0
        %702 = vmatprep.subr.mxu0 0.0
        %703 = vmatpush1.msra.mxu0 0.0
        %704 = vmatprep.subr.mxu0 0.0
        %705 = vmatpush1.msra.mxu0 0.0
        %706 = vmatprep.subr.mxu0 0.0
        %707 = vmatpush1.msra.mxu0 0.0
        %708 = vmatprep.subr.mxu0 0.0
        %709 = vmatpush1.msra.mxu0 0.0
        %710 = vmatprep.subr.mxu0 0.0
        %711 = vmatpush1.msra.mxu0 0.0
        %712 = vmatprep.subr.mxu0 0.0
        %713 = vmatpush1.msra.mxu0 0.0
        %714 = vmatprep.subr.mxu0 0.0
        %715 = vmatpush1.msra.mxu0 0.0
        %716 = vmatprep.subr.mxu0 0.0
        %717 = vmatpush1.msra.mxu0 0.0
        %718 = vmatprep.subr.mxu0 0.0
        %719 = vmatpush1.msra.mxu0 0.0
        %720 = vmatprep.subr.mxu0 0.0
        %721 = vmatpush1.msra.mxu0 0.0
        %722 = vmatprep.subr.mxu0 0.0
        %723 = vmatpush1.msra.mxu0 0.0
        %724 = vmatprep.subr.mxu0 0.0
        %725 = vmatpush1.msra.mxu0 0.0
        %726 = vmatprep.subr.mxu0 0.0
        %727 = vmatpush1.msra.mxu0 0.0
        %728 = vmatprep.subr.mxu0 0.0
        %729 = vmatpush1.msra.mxu0 0.0
        %730 = vmatprep.subr.mxu0 0.0
        %731 = vmatpush1.msra.mxu0 0.0
        %732 = vmatprep.subr.mxu0 0.0
        %733 = vmatpush1.msra.mxu0 0.0
        %734 = vmatprep.subr.mxu0 0.0
        %735 = vmatpush1.msra.mxu0 0.0
        %736 = vmatprep.subr.mxu0 0.0
        %737 = vmatpush1.msra.mxu0 0.0
        %738 = vmatprep.subr.mxu0 0.0
        %739 = vmatpush1.msra.mxu0 0.0
        %740 = vmatprep.subr.mxu0 0.0
        %741 = vmatpush1.msra.mxu0 0.0
        %742 = vmatprep.mubr.f32.mxu0 0.0
        %743 = vmatmul.mubr.f32.gmra.mrb[0].mxu0 %v670
        %v744 = vpop.f32.mrb[0].mxu0
        %v745 = vadd.f32 0.0, %v744
        %v746 = vpop.f32.mrb[0].mxu0
        %747 = vmatprep.mubr.f32.mxu0 0.0
        %748 = vmatmul.mubr.f32.gmra.mrb[0].mxu0 %v673
        %v749 = vpop.f32.mrb[0].mxu0
        %v750 = vadd.f32 0.0, %v749
        %v751 = vpop.f32.mrb[0].mxu0
        %752 = vmatprep.mubr.f32.mxu0 0.0
        %753 = vmatmul.mubr.f32.gmra.mrb[0].mxu0 %v676
        %v754 = vpop.f32.mrb[0].mxu0
        %v755 = vadd.f32 0.0, %v754
        %v756 = vpop.f32.mrb[0].mxu0
        %757 = vdwg.mxu0
        %s758 = scalar_lea.vmem [#allocation2], 48
        %759 = vst.msk [vmem:[%s758] sm:$0xff] %vm407, %v745
        %760 = vst.msk [vmem:[%s758 + $0x8] sm:$0xff] %vm407, %v750
        %761 = vst.msk [vmem:[%s758 + $0x10] sm:$0xf] %vm410, %v755
        %s762 = scalar_lea.vmem %s217, 24
        %v763 = vld [vmem:[%s762] sm:$0xff]
        %764 = vmatprep.subr.mxu0 0.0
        %765 = vmatpush1.msra.mxu0 %v763
        %766 = vmatprep.subr.mxu0 0.0
        %767 = vmatpush1.msra.mxu0 0.0
        %768 = vmatprep.subr.mxu0 0.0
        %769 = vmatpush1.msra.mxu0 0.0
        %770 = vmatprep.subr.mxu0 0.0
        %771 = vmatpush1.msra.mxu0 0.0
        %772 = vmatprep.subr.mxu0 0.0
        %773 = vmatpush1.msra.mxu0 0.0
        %774 = vmatprep.subr.mxu0 0.0
        %775 = vmatpush1.msra.mxu0 0.0
        %776 = vmatprep.subr.mxu0 0.0
        %777 = vmatpush1.msra.mxu0 0.0
        %778 = vmatprep.subr.mxu0 0.0
        %779 = vmatpush1.msra.mxu0 0.0
        %780 = vmatprep.subr.mxu0 0.0
        %781 = vmatpush1.msra.mxu0 0.0
        %782 = vmatprep.subr.mxu0 0.0
        %783 = vmatpush1.msra.mxu0 0.0
        %784 = vmatprep.subr.mxu0 0.0
        %785 = vmatpush1.msra.mxu0 0.0
        %786 = vmatprep.subr.mxu0 0.0
        %787 = vmatpush1.msra.mxu0 0.0
        %788 = vmatprep.subr.mxu0 0.0
        %789 = vmatpush1.msra.mxu0 0.0
        %790 = vmatprep.subr.mxu0 0.0
        %791 = vmatpush1.msra.mxu0 0.0
        %792 = vmatprep.subr.mxu0 0.0
        %793 = vmatpush1.msra.mxu0 0.0
        %794 = vmatprep.subr.mxu0 0.0
        %795 = vmatpush1.msra.mxu0 0.0
        %796 = vmatprep.subr.mxu0 0.0
        %797 = vmatpush1.msra.mxu0 0.0
        %798 = vmatprep.subr.mxu0 0.0
        %799 = vmatpush1.msra.mxu0 0.0
        %800 = vmatprep.subr.mxu0 0.0
        %801 = vmatpush1.msra.mxu0 0.0
        %802 = vmatprep.subr.mxu0 0.0
        %803 = vmatpush1.msra.mxu0 0.0
        %804 = vmatprep.subr.mxu0 0.0
        %805 = vmatpush1.msra.mxu0 0.0
        %806 = vmatprep.subr.mxu0 0.0
        %807 = vmatpush1.msra.mxu0 0.0
        %808 = vmatprep.subr.mxu0 0.0
        %809 = vmatpush1.msra.mxu0 0.0
        %810 = vmatprep.subr.mxu0 0.0
        %811 = vmatpush1.msra.mxu0 0.0
        %812 = vmatprep.subr.mxu0 0.0
        %813 = vmatpush1.msra.mxu0 0.0
        %814 = vmatprep.subr.mxu0 0.0
        %815 = vmatpush1.msra.mxu0 0.0
        %816 = vmatprep.subr.mxu0 0.0
        %817 = vmatpush1.msra.mxu0 0.0
        %818 = vmatprep.subr.mxu0 0.0
        %819 = vmatpush1.msra.mxu0 0.0
        %820 = vmatprep.subr.mxu0 0.0
        %821 = vmatpush1.msra.mxu0 0.0
        %822 = vmatprep.subr.mxu0 0.0
        %823 = vmatpush1.msra.mxu0 0.0
        %824 = vmatprep.subr.mxu0 0.0
        %825 = vmatpush1.msra.mxu0 0.0
        %826 = vmatprep.subr.mxu0 0.0
        %827 = vmatpush1.msra.mxu0 0.0
        %828 = vmatprep.mubr.f32.mxu0 0.0
        %829 = vmatmul.mubr.f32.gmra.mrb[0].mxu0 %v230
        %v830 = vpop.f32.mrb[0].mxu0
        %v831 = vadd.f32 0.0, %v830
        %v832 = vpop.f32.mrb[0].mxu0
        %833 = vmatprep.mubr.f32.mxu0 0.0
        %834 = vmatmul.mubr.f32.gmra.mrb[0].mxu0 %v233
        %v835 = vpop.f32.mrb[0].mxu0
        %v836 = vadd.f32 0.0, %v835
        %v837 = vpop.f32.mrb[0].mxu0
        %838 = vmatprep.mubr.f32.mxu0 0.0
        %839 = vmatmul.mubr.f32.gmra.mrb[0].mxu0 %v236
        %v840 = vpop.f32.mrb[0].mxu0
        %v841 = vadd.f32 0.0, %v840
        %v842 = vpop.f32.mrb[0].mxu0
        %843 = vdwg.mxu0
        %v845 = vsel %vm228, %v831, 0
        %v848 = vsel %vm228, %v836, 0
        %v851 = vsel %vm228, %v841, 0
        %853 = vmatprep.subr.mxu0 0.0
        %854 = vmatpush1.msra.mxu0 %v226
        %855 = vmatprep.subr.mxu0 0.0
        %856 = vmatpush1.msra.mxu0 0.0
        %857 = vmatprep.subr.mxu0 0.0
        %858 = vmatpush1.msra.mxu0 0.0
        %859 = vmatprep.subr.mxu0 0.0
        %860 = vmatpush1.msra.mxu0 0.0
        %861 = vmatprep.subr.mxu0 0.0
        %862 = vmatpush1.msra.mxu0 0.0
        %863 = vmatprep.subr.mxu0 0.0
        %864 = vmatpush1.msra.mxu0 0.0
        %865 = vmatprep.subr.mxu0 0.0
        %866 = vmatpush1.msra.mxu0 0.0
        %867 = vmatprep.subr.mxu0 0.0
        %868 = vmatpush1.msra.mxu0 0.0
        %869 = vmatprep.subr.mxu0 0.0
        %870 = vmatpush1.msra.mxu0 0.0
        %871 = vmatprep.subr.mxu0 0.0
        %872 = vmatpush1.msra.mxu0 0.0
        %873 = vmatprep.subr.mxu0 0.0
        %874 = vmatpush1.msra.mxu0 0.0
        %875 = vmatprep.subr.mxu0 0.0
        %876 = vmatpush1.msra.mxu0 0.0
        %877 = vmatprep.subr.mxu0 0.0
        %878 = vmatpush1.msra.mxu0 0.0
        %879 = vmatprep.subr.mxu0 0.0
        %880 = vmatpush1.msra.mxu0 0.0
        %881 = vmatprep.subr.mxu0 0.0
        %882 = vmatpush1.msra.mxu0 0.0
        %883 = vmatprep.subr.mxu0 0.0
        %884 = vmatpush1.msra.mxu0 0.0
        %885 = vmatprep.subr.mxu0 0.0
        %886 = vmatpush1.msra.mxu0 0.0
        %887 = vmatprep.subr.mxu0 0.0
        %888 = vmatpush1.msra.mxu0 0.0
        %889 = vmatprep.subr.mxu0 0.0
        %890 = vmatpush1.msra.mxu0 0.0
        %891 = vmatprep.subr.mxu0 0.0
        %892 = vmatpush1.msra.mxu0 0.0
        %893 = vmatprep.subr.mxu0 0.0
        %894 = vmatpush1.msra.mxu0 0.0
        %895 = vmatprep.subr.mxu0 0.0
        %896 = vmatpush1.msra.mxu0 0.0
        %897 = vmatprep.subr.mxu0 0.0
        %898 = vmatpush1.msra.mxu0 0.0
        %899 = vmatprep.subr.mxu0 0.0
        %900 = vmatpush1.msra.mxu0 0.0
        %901 = vmatprep.subr.mxu0 0.0
        %902 = vmatpush1.msra.mxu0 0.0
        %903 = vmatprep.subr.mxu0 0.0
        %904 = vmatpush1.msra.mxu0 0.0
        %905 = vmatprep.subr.mxu0 0.0
        %906 = vmatpush1.msra.mxu0 0.0
        %907 = vmatprep.subr.mxu0 0.0
        %908 = vmatpush1.msra.mxu0 0.0
        %909 = vmatprep.subr.mxu0 0.0
        %910 = vmatpush1.msra.mxu0 0.0
        %911 = vmatprep.subr.mxu0 0.0
        %912 = vmatpush1.msra.mxu0 0.0
        %913 = vmatprep.subr.mxu0 0.0
        %914 = vmatpush1.msra.mxu0 0.0
        %915 = vmatprep.subr.mxu0 0.0
        %916 = vmatpush1.msra.mxu0 0.0
        %917 = vmatprep.mubr.f32.mxu0 0.0
        %918 = vmatmul.mubr.f32.gmra.mrb[0].mxu0 %v845
        %v919 = vpop.f32.mrb[0].mxu0
        %v920 = vadd.f32 0.0, %v919
        %v921 = vpop.f32.mrb[0].mxu0
        %922 = vmatprep.mubr.f32.mxu0 0.0
        %923 = vmatmul.mubr.f32.gmra.mrb[0].mxu0 %v848
        %v924 = vpop.f32.mrb[0].mxu0
        %v925 = vadd.f32 0.0, %v924
        %v926 = vpop.f32.mrb[0].mxu0
        %927 = vmatprep.mubr.f32.mxu0 0.0
        %928 = vmatmul.mubr.f32.gmra.mrb[0].mxu0 %v851
        %v929 = vpop.f32.mrb[0].mxu0
        %v930 = vadd.f32 0.0, %v929
        %v931 = vpop.f32.mrb[0].mxu0
        %932 = vdwg.mxu0
        %s933 = scalar_lea.vmem [#allocation2], 72
        %934 = vst.msk [vmem:[%s933] sm:$0xff] %vm407, %v920
        %935 = vst.msk [vmem:[%s933 + $0x8] sm:$0xff] %vm407, %v925
        %936 = vst.msk [vmem:[%s933 + $0x10] sm:$0xf] %vm410, %v930
        %v937 = vlaneseq
        %v938 = vshrl.u32 %v937, 7
        %v939 = vadd.s32 %v938, 8
        %v940 = vadd.s32 %v938, 16
        %v941 = vlaneseq
        %v942 = vand.u32 %v941, 127
        %vm943 = vcmp.ge.s32.totalorder %v938, 1
        %vm944 = vcmp.ge.s32.totalorder %v939, 1
        %vm945 = vcmp.ge.s32.totalorder %v940, 1
        %vm946 = vcmp.le.s32.totalorder %v938, 16
        %vm947 = vcmp.le.s32.totalorder %v939, 16
        %vm948 = vcmp.le.s32.totalorder %v940, 16
        %vm949 = vmand %vm943, %vm946
        %vm950 = vmand %vm944, %vm947
        %vm951 = vmand %vm945, %vm948
        %vm952 = vcmp.ge.s32.totalorder %v942, 1
        %vm953 = vmand %vm949, %vm952
        %vm954 = vmand %vm950, %vm952
        %vm955 = vmand %vm951, %vm952
        %vm956 = vcmp.le.s32.totalorder %v942, 16
        %vm957 = vmand %vm953, %vm956
        %vm958 = vmand %vm954, %vm956
        %vm959 = vmand %vm955, %vm956
        %v960 = vld [vmem:[%s222] sm:$0xff]
        %v961 = vld [vmem:[%s222 + $0x8] sm:$0xff]
        %v962 = vld [vmem:[%s222 + $0x10] sm:$0x3]
        %s963 = sld [smem:[#allocation5]]
        %v964 = vstv %s963
        %v965 = vmul.f32 %v964, %v960
        %v966 = vmul.f32 %v964, %v961
        %v967 = vmul.f32 %v964, %v962
        %v968 = vadd.f32 %v965, 0.0
        %v969 = vadd.f32 %v966, 0.0
        %v970 = vadd.f32 %v967, 0.0
        %s971 = sld [smem:[#allocation5 + $0x48]]
        %v972 = vstv %s971
        %v973 = vmul.f32 %v972, %v960
        %v974 = vmul.f32 %v972, %v961
        %v975 = vmul.f32 %v972, %v962
        %v976 = vadd.f32 %v973, 0.0
        %v977 = vadd.f32 %v974, 0.0
        %v978 = vadd.f32 %v975, 0.0
        %s979 = sld [smem:[#allocation5 + $0x90]]
        %v980 = vstv %s979
        %v981 = vmul.f32 %v980, %v960
        %v982 = vmul.f32 %v980, %v961
        %v983 = vmul.f32 %v980, %v962
        %v984 = vadd.f32 %v981, 0.0
        %v985 = vadd.f32 %v982, 0.0
        %v986 = vadd.f32 %v983, 0.0
        %s987 = sld [smem:[#allocation5 + $0xd8]]
        %v988 = vstv %s987
        %v989 = vmul.f32 %v988, %v960
        %v990 = vmul.f32 %v988, %v961
        %v991 = vmul.f32 %v988, %v962
        %v992 = vadd.f32 %v989, 0.0
        %v993 = vadd.f32 %v990, 0.0
        %v994 = vadd.f32 %v991, 0.0
        %s995 = sld [smem:[#allocation5 + $0x1]]
        %v996 = vstv %s995
        %v997 = vmul.f32 %v996, %v960
        %v998 = vmul.f32 %v996, %v961
        %v999 = vmul.f32 %v996, %v962
        %1003 = vrot.lane.b32.xlu0 %v997, 127
        %v1004 = vpop.permute.xlu0 %1003
        %1005 = vrot.lane.b32.xlu0 %v998, 127
        %v1006 = vpop.permute.xlu0 %1005
        %1007 = vrot.lane.b32.xlu0 %v999, 127
        %v1008 = vpop.permute.xlu0 %1007
        %v1012 = vadd.f32 %v968, %v1004
        %v1013 = vadd.f32 %v969, %v1006
        %v1014 = vadd.f32 %v970, %v1008
        %s1015 = sld [smem:[#allocation5 + $0x49]]
        %v1016 = vstv %s1015
        %v1017 = vmul.f32 %v1016, %v960
        %v1018 = vmul.f32 %v1016, %v961
        %v1019 = vmul.f32 %v1016, %v962
        %1023 = vrot.lane.b32.xlu0 %v1017, 127
        %v1024 = vpop.permute.xlu0 %1023
        %1025 = vrot.lane.b32.xlu0 %v1018, 127
        %v1026 = vpop.permute.xlu0 %1025
        %1027 = vrot.lane.b32.xlu0 %v1019, 127
        %v1028 = vpop.permute.xlu0 %1027
        %v1032 = vadd.f32 %v976, %v1024
        %v1033 = vadd.f32 %v977, %v1026
        %v1034 = vadd.f32 %v978, %v1028
        %s1035 = sld [smem:[#allocation5 + $0x91]]
        %v1036 = vstv %s1035
        %v1037 = vmul.f32 %v1036, %v960
        %v1038 = vmul.f32 %v1036, %v961
        %v1039 = vmul.f32 %v1036, %v962
        %1043 = vrot.lane.b32.xlu0 %v1037, 127
        %v1044 = vpop.permute.xlu0 %1043
        %1045 = vrot.lane.b32.xlu0 %v1038, 127
        %v1046 = vpop.permute.xlu0 %1045
        %1047 = vrot.lane.b32.xlu0 %v1039, 127
        %v1048 = vpop.permute.xlu0 %1047
        %v1052 = vadd.f32 %v984, %v1044
        %v1053 = vadd.f32 %v985, %v1046
        %v1054 = vadd.f32 %v986, %v1048
        %s1055 = sld [smem:[#allocation5 + $0xd9]]
        %v1056 = vstv %s1055
        %v1057 = vmul.f32 %v1056, %v960
        %v1058 = vmul.f32 %v1056, %v961
        %v1059 = vmul.f32 %v1056, %v962
        %1063 = vrot.lane.b32.xlu0 %v1057, 127
        %v1064 = vpop.permute.xlu0 %1063
        %1065 = vrot.lane.b32.xlu0 %v1058, 127
        %v1066 = vpop.permute.xlu0 %1065
        %1067 = vrot.lane.b32.xlu0 %v1059, 127
        %v1068 = vpop.permute.xlu0 %1067
        %v1072 = vadd.f32 %v992, %v1064
        %v1073 = vadd.f32 %v993, %v1066
        %v1074 = vadd.f32 %v994, %v1068
        %s1075 = sld [smem:[#allocation5 + $0x2]]
        %v1076 = vstv %s1075
        %v1077 = vmul.f32 %v1076, %v960
        %v1078 = vmul.f32 %v1076, %v961
        %v1079 = vmul.f32 %v1076, %v962
        %1083 = vrot.lane.b32.xlu0 %v1077, 126
        %v1084 = vpop.permute.xlu0 %1083
        %1085 = vrot.lane.b32.xlu0 %v1078, 126
        %v1086 = vpop.permute.xlu0 %1085
        %1087 = vrot.lane.b32.xlu0 %v1079, 126
        %v1088 = vpop.permute.xlu0 %1087
        %v1092 = vadd.f32 %v1012, %v1084
        %v1093 = vadd.f32 %v1013, %v1086
        %v1094 = vadd.f32 %v1014, %v1088
        %s1095 = sld [smem:[#allocation5 + $0x4a]]
        %v1096 = vstv %s1095
        %v1097 = vmul.f32 %v1096, %v960
        %v1098 = vmul.f32 %v1096, %v961
        %v1099 = vmul.f32 %v1096, %v962
        %1103 = vrot.lane.b32.xlu0 %v1097, 126
        %v1104 = vpop.permute.xlu0 %1103
        %1105 = vrot.lane.b32.xlu0 %v1098, 126
        %v1106 = vpop.permute.xlu0 %1105
        %1107 = vrot.lane.b32.xlu0 %v1099, 126
        %v1108 = vpop.permute.xlu0 %1107
        %v1112 = vadd.f32 %v1032, %v1104
        %v1113 = vadd.f32 %v1033, %v1106
        %v1114 = vadd.f32 %v1034, %v1108
        %s1115 = sld [smem:[#allocation5 + $0x92]]
        %v1116 = vstv %s1115
        %v1117 = vmul.f32 %v1116, %v960
        %v1118 = vmul.f32 %v1116, %v961
        %v1119 = vmul.f32 %v1116, %v962
        %1123 = vrot.lane.b32.xlu0 %v1117, 126
        %v1124 = vpop.permute.xlu0 %1123
        %1125 = vrot.lane.b32.xlu0 %v1118, 126
        %v1126 = vpop.permute.xlu0 %1125
        %1127 = vrot.lane.b32.xlu0 %v1119, 126
        %v1128 = vpop.permute.xlu0 %1127
        %v1132 = vadd.f32 %v1052, %v1124
        %v1133 = vadd.f32 %v1053, %v1126
        %v1134 = vadd.f32 %v1054, %v1128
        %s1135 = sld [smem:[#allocation5 + $0xda]]
        %v1136 = vstv %s1135
        %v1137 = vmul.f32 %v1136, %v960
        %v1138 = vmul.f32 %v1136, %v961
        %v1139 = vmul.f32 %v1136, %v962
        %1143 = vrot.lane.b32.xlu0 %v1137, 126
        %v1144 = vpop.permute.xlu0 %1143
        %1145 = vrot.lane.b32.xlu0 %v1138, 126
        %v1146 = vpop.permute.xlu0 %1145
        %1147 = vrot.lane.b32.xlu0 %v1139, 126
        %v1148 = vpop.permute.xlu0 %1147
        %v1152 = vadd.f32 %v1072, %v1144
        %v1153 = vadd.f32 %v1073, %v1146
        %v1154 = vadd.f32 %v1074, %v1148
        %v1155 = vld [vmem:[%s222 + $0x1] sm:$0xff]
        %v1156 = vld [vmem:[%s222 + $0x9] sm:$0xff]
        %v1157 = vld [vmem:[%s222 + $0x11] sm:$0x3]
        %s1158 = sld [smem:[#allocation5 + $0x3]]
        %v1159 = vstv %s1158
        %v1160 = vmul.f32 %v1159, %v1155
        %v1161 = vmul.f32 %v1159, %v1156
        %v1162 = vmul.f32 %v1159, %v1157
        %v1163 = vadd.f32 %v1092, %v1160
        %v1164 = vadd.f32 %v1093, %v1161
        %v1165 = vadd.f32 %v1094, %v1162
        %s1166 = sld [smem:[#allocation5 + $0x4b]]
        %v1167 = vstv %s1166
        %v1168 = vmul.f32 %v1167, %v1155
        %v1169 = vmul.f32 %v1167, %v1156
        %v1170 = vmul.f32 %v1167, %v1157
        %v1171 = vadd.f32 %v1112, %v1168
        %v1172 = vadd.f32 %v1113, %v1169
        %v1173 = vadd.f32 %v1114, %v1170
        %s1174 = sld [smem:[#allocation5 + $0x93]]
        %v1175 = vstv %s1174
        %v1176 = vmul.f32 %v1175, %v1155
        %v1177 = vmul.f32 %v1175, %v1156
        %v1178 = vmul.f32 %v1175, %v1157
        %v1179 = vadd.f32 %v1132, %v1176
        %v1180 = vadd.f32 %v1133, %v1177
        %v1181 = vadd.f32 %v1134, %v1178
        %s1182 = sld [smem:[#allocation5 + $0xdb]]
        %v1183 = vstv %s1182
        %v1184 = vmul.f32 %v1183, %v1155
        %v1185 = vmul.f32 %v1183, %v1156
        %v1186 = vmul.f32 %v1183, %v1157
        %v1187 = vadd.f32 %v1152, %v1184
        %v1188 = vadd.f32 %v1153, %v1185
        %v1189 = vadd.f32 %v1154, %v1186
        %s1190 = sld [smem:[#allocation5 + $0x4]]
        %v1191 = vstv %s1190
        %v1192 = vmul.f32 %v1191, %v1155
        %v1193 = vmul.f32 %v1191, %v1156
        %v1194 = vmul.f32 %v1191, %v1157
        %1198 = vrot.lane.b32.xlu0 %v1192, 127
        %v1199 = vpop.permute.xlu0 %1198
        %1200 = vrot.lane.b32.xlu0 %v1193, 127
        %v1201 = vpop.permute.xlu0 %1200
        %1202 = vrot.lane.b32.xlu0 %v1194, 127
        %v1203 = vpop.permute.xlu0 %1202
        %v1207 = vadd.f32 %v1163, %v1199
        %v1208 = vadd.f32 %v1164, %v1201
        %v1209 = vadd.f32 %v1165, %v1203
        %s1210 = sld [smem:[#allocation5 + $0x4c]]
        %v1211 = vstv %s1210
        %v1212 = vmul.f32 %v1211, %v1155
        %v1213 = vmul.f32 %v1211, %v1156
        %v1214 = vmul.f32 %v1211, %v1157
        %1218 = vrot.lane.b32.xlu0 %v1212, 127
        %v1219 = vpop.permute.xlu0 %1218
        %1220 = vrot.lane.b32.xlu0 %v1213, 127
        %v1221 = vpop.permute.xlu0 %1220
        %1222 = vrot.lane.b32.xlu0 %v1214, 127
        %v1223 = vpop.permute.xlu0 %1222
        %v1227 = vadd.f32 %v1171, %v1219
        %v1228 = vadd.f32 %v1172, %v1221
        %v1229 = vadd.f32 %v1173, %v1223
        %s1230 = sld [smem:[#allocation5 + $0x94]]
        %v1231 = vstv %s1230
        %v1232 = vmul.f32 %v1231, %v1155
        %v1233 = vmul.f32 %v1231, %v1156
        %v1234 = vmul.f32 %v1231, %v1157
        %1238 = vrot.lane.b32.xlu0 %v1232, 127
        %v1239 = vpop.permute.xlu0 %1238
        %1240 = vrot.lane.b32.xlu0 %v1233, 127
        %v1241 = vpop.permute.xlu0 %1240
        %1242 = vrot.lane.b32.xlu0 %v1234, 127
        %v1243 = vpop.permute.xlu0 %1242
        %v1247 = vadd.f32 %v1179, %v1239
        %v1248 = vadd.f32 %v1180, %v1241
        %v1249 = vadd.f32 %v1181, %v1243
        %s1250 = sld [smem:[#allocation5 + $0xdc]]
        %v1251 = vstv %s1250
        %v1252 = vmul.f32 %v1251, %v1155
        %v1253 = vmul.f32 %v1251, %v1156
        %v1254 = vmul.f32 %v1251, %v1157
        %1258 = vrot.lane.b32.xlu0 %v1252, 127
        %v1259 = vpop.permute.xlu0 %1258
        %1260 = vrot.lane.b32.xlu0 %v1253, 127
        %v1261 = vpop.permute.xlu0 %1260
        %1262 = vrot.lane.b32.xlu0 %v1254, 127
        %v1263 = vpop.permute.xlu0 %1262
        %v1267 = vadd.f32 %v1187, %v1259
        %v1268 = vadd.f32 %v1188, %v1261
        %v1269 = vadd.f32 %v1189, %v1263
        %s1270 = sld [smem:[#allocation5 + $0x5]]
        %v1271 = vstv %s1270
        %v1272 = vmul.f32 %v1271, %v1155
        %v1273 = vmul.f32 %v1271, %v1156
        %v1274 = vmul.f32 %v1271, %v1157
        %1278 = vrot.lane.b32.xlu0 %v1272, 126
        %v1279 = vpop.permute.xlu0 %1278
        %1280 = vrot.lane.b32.xlu0 %v1273, 126
        %v1281 = vpop.permute.xlu0 %1280
        %1282 = vrot.lane.b32.xlu0 %v1274, 126
        %v1283 = vpop.permute.xlu0 %1282
        %v1287 = vadd.f32 %v1207, %v1279
        %v1288 = vadd.f32 %v1208, %v1281
        %v1289 = vadd.f32 %v1209, %v1283
        %s1290 = sld [smem:[#allocation5 + $0x4d]]
        %v1291 = vstv %s1290
        %v1292 = vmul.f32 %v1291, %v1155
        %v1293 = vmul.f32 %v1291, %v1156
        %v1294 = vmul.f32 %v1291, %v1157
        %1298 = vrot.lane.b32.xlu0 %v1292, 126
        %v1299 = vpop.permute.xlu0 %1298
        %1300 = vrot.lane.b32.xlu0 %v1293, 126
        %v1301 = vpop.permute.xlu0 %1300
        %1302 = vrot.lane.b32.xlu0 %v1294, 126
        %v1303 = vpop.permute.xlu0 %1302
        %v1307 = vadd.f32 %v1227, %v1299
        %v1308 = vadd.f32 %v1228, %v1301
        %v1309 = vadd.f32 %v1229, %v1303
        %s1310 = sld [smem:[#allocation5 + $0x95]]
        %v1311 = vstv %s1310
        %v1312 = vmul.f32 %v1311, %v1155
        %v1313 = vmul.f32 %v1311, %v1156
        %v1314 = vmul.f32 %v1311, %v1157
        %1318 = vrot.lane.b32.xlu0 %v1312, 126
        %v1319 = vpop.permute.xlu0 %1318
        %1320 = vrot.lane.b32.xlu0 %v1313, 126
        %v1321 = vpop.permute.xlu0 %1320
        %1322 = vrot.lane.b32.xlu0 %v1314, 126
        %v1323 = vpop.permute.xlu0 %1322
        %v1327 = vadd.f32 %v1247, %v1319
        %v1328 = vadd.f32 %v1248, %v1321
        %v1329 = vadd.f32 %v1249, %v1323
        %s1330 = sld [smem:[#allocation5 + $0xdd]]
        %v1331 = vstv %s1330
        %v1332 = vmul.f32 %v1331, %v1155
        %v1333 = vmul.f32 %v1331, %v1156
        %v1334 = vmul.f32 %v1331, %v1157
        %1338 = vrot.lane.b32.xlu0 %v1332, 126
        %v1339 = vpop.permute.xlu0 %1338
        %1340 = vrot.lane.b32.xlu0 %v1333, 126
        %v1341 = vpop.permute.xlu0 %1340
        %1342 = vrot.lane.b32.xlu0 %v1334, 126
        %v1343 = vpop.permute.xlu0 %1342
        %v1347 = vadd.f32 %v1267, %v1339
        %v1348 = vadd.f32 %v1268, %v1341
        %v1349 = vadd.f32 %v1269, %v1343
        %v1350 = vld [vmem:[%s222 + $0x2] sm:$0xff]
        %v1351 = vld [vmem:[%s222 + $0xa] sm:$0xff]
        %v1352 = vld [vmem:[%s222 + $0x12] sm:$0x3]
        %s1353 = sld [smem:[#allocation5 + $0x6]]
        %v1354 = vstv %s1353
        %v1355 = vmul.f32 %v1354, %v1350
        %v1356 = vmul.f32 %v1354, %v1351
        %v1357 = vmul.f32 %v1354, %v1352
        %v1358 = vadd.f32 %v1287, %v1355
        %v1359 = vadd.f32 %v1288, %v1356
        %v1360 = vadd.f32 %v1289, %v1357
        %s1361 = sld [smem:[#allocation5 + $0x4e]]
        %v1362 = vstv %s1361
        %v1363 = vmul.f32 %v1362, %v1350
        %v1364 = vmul.f32 %v1362, %v1351
        %v1365 = vmul.f32 %v1362, %v1352
        %v1366 = vadd.f32 %v1307, %v1363
        %v1367 = vadd.f32 %v1308, %v1364
        %v1368 = vadd.f32 %v1309, %v1365
        %s1369 = sld [smem:[#allocation5 + $0x96]]
        %v1370 = vstv %s1369
        %v1371 = vmul.f32 %v1370, %v1350
        %v1372 = vmul.f32 %v1370, %v1351
        %v1373 = vmul.f32 %v1370, %v1352
        %v1374 = vadd.f32 %v1327, %v1371
        %v1375 = vadd.f32 %v1328, %v1372
        %v1376 = vadd.f32 %v1329, %v1373
        %s1377 = sld [smem:[#allocation5 + $0xde]]
        %v1378 = vstv %s1377
        %v1379 = vmul.f32 %v1378, %v1350
        %v1380 = vmul.f32 %v1378, %v1351
        %v1381 = vmul.f32 %v1378, %v1352
        %v1382 = vadd.f32 %v1347, %v1379
        %v1383 = vadd.f32 %v1348, %v1380
        %v1384 = vadd.f32 %v1349, %v1381
        %s1385 = sld [smem:[#allocation5 + $0x7]]
        %v1386 = vstv %s1385
        %v1387 = vmul.f32 %v1386, %v1350
        %v1388 = vmul.f32 %v1386, %v1351
        %v1389 = vmul.f32 %v1386, %v1352
        %1393 = vrot.lane.b32.xlu0 %v1387, 127
        %v1394 = vpop.permute.xlu0 %1393
        %1395 = vrot.lane.b32.xlu0 %v1388, 127
        %v1396 = vpop.permute.xlu0 %1395
        %1397 = vrot.lane.b32.xlu0 %v1389, 127
        %v1398 = vpop.permute.xlu0 %1397
        %v1402 = vadd.f32 %v1358, %v1394
        %v1403 = vadd.f32 %v1359, %v1396
        %v1404 = vadd.f32 %v1360, %v1398
        %s1405 = sld [smem:[#allocation5 + $0x4f]]
        %v1406 = vstv %s1405
        %v1407 = vmul.f32 %v1406, %v1350
        %v1408 = vmul.f32 %v1406, %v1351
        %v1409 = vmul.f32 %v1406, %v1352
        %1413 = vrot.lane.b32.xlu0 %v1407, 127
        %v1414 = vpop.permute.xlu0 %1413
        %1415 = vrot.lane.b32.xlu0 %v1408, 127
        %v1416 = vpop.permute.xlu0 %1415
        %1417 = vrot.lane.b32.xlu0 %v1409, 127
        %v1418 = vpop.permute.xlu0 %1417
        %v1422 = vadd.f32 %v1366, %v1414
        %v1423 = vadd.f32 %v1367, %v1416
        %v1424 = vadd.f32 %v1368, %v1418
        %s1425 = sld [smem:[#allocation5 + $0x97]]
        %v1426 = vstv %s1425
        %v1427 = vmul.f32 %v1426, %v1350
        %v1428 = vmul.f32 %v1426, %v1351
        %v1429 = vmul.f32 %v1426, %v1352
        %1433 = vrot.lane.b32.xlu0 %v1427, 127
        %v1434 = vpop.permute.xlu0 %1433
        %1435 = vrot.lane.b32.xlu0 %v1428, 127
        %v1436 = vpop.permute.xlu0 %1435
        %1437 = vrot.lane.b32.xlu0 %v1429, 127
        %v1438 = vpop.permute.xlu0 %1437
        %v1442 = vadd.f32 %v1374, %v1434
        %v1443 = vadd.f32 %v1375, %v1436
        %v1444 = vadd.f32 %v1376, %v1438
        %s1445 = sld [smem:[#allocation5 + $0xdf]]
        %v1446 = vstv %s1445
        %v1447 = vmul.f32 %v1446, %v1350
        %v1448 = vmul.f32 %v1446, %v1351
        %v1449 = vmul.f32 %v1446, %v1352
        %1453 = vrot.lane.b32.xlu0 %v1447, 127
        %v1454 = vpop.permute.xlu0 %1453
        %1455 = vrot.lane.b32.xlu0 %v1448, 127
        %v1456 = vpop.permute.xlu0 %1455
        %1457 = vrot.lane.b32.xlu0 %v1449, 127
        %v1458 = vpop.permute.xlu0 %1457
        %v1462 = vadd.f32 %v1382, %v1454
        %v1463 = vadd.f32 %v1383, %v1456
        %v1464 = vadd.f32 %v1384, %v1458
        %s1465 = sld [smem:[#allocation5 + $0x8]]
        %v1466 = vstv %s1465
        %v1467 = vmul.f32 %v1466, %v1350
        %v1468 = vmul.f32 %v1466, %v1351
        %v1469 = vmul.f32 %v1466, %v1352
        %1473 = vrot.lane.b32.xlu0 %v1467, 126
        %v1474 = vpop.permute.xlu0 %1473
        %1475 = vrot.lane.b32.xlu0 %v1468, 126
        %v1476 = vpop.permute.xlu0 %1475
        %1477 = vrot.lane.b32.xlu0 %v1469, 126
        %v1478 = vpop.permute.xlu0 %1477
        %v1482 = vadd.f32 %v1402, %v1474
        %v1483 = vadd.f32 %v1403, %v1476
        %v1484 = vadd.f32 %v1404, %v1478
        %s1485 = sld [smem:[#allocation5 + $0x50]]
        %v1486 = vstv %s1485
        %v1487 = vmul.f32 %v1486, %v1350
        %v1488 = vmul.f32 %v1486, %v1351
        %v1489 = vmul.f32 %v1486, %v1352
        %1493 = vrot.lane.b32.xlu0 %v1487, 126
        %v1494 = vpop.permute.xlu0 %1493
        %1495 = vrot.lane.b32.xlu0 %v1488, 126
        %v1496 = vpop.permute.xlu0 %1495
        %1497 = vrot.lane.b32.xlu0 %v1489, 126
        %v1498 = vpop.permute.xlu0 %1497
        %v1502 = vadd.f32 %v1422, %v1494
        %v1503 = vadd.f32 %v1423, %v1496
        %v1504 = vadd.f32 %v1424, %v1498
        %s1505 = sld [smem:[#allocation5 + $0x98]]
        %v1506 = vstv %s1505
        %v1507 = vmul.f32 %v1506, %v1350
        %v1508 = vmul.f32 %v1506, %v1351
        %v1509 = vmul.f32 %v1506, %v1352
        %1513 = vrot.lane.b32.xlu0 %v1507, 126
        %v1514 = vpop.permute.xlu0 %1513
        %1515 = vrot.lane.b32.xlu0 %v1508, 126
        %v1516 = vpop.permute.xlu0 %1515
        %1517 = vrot.lane.b32.xlu0 %v1509, 126
        %v1518 = vpop.permute.xlu0 %1517
        %v1522 = vadd.f32 %v1442, %v1514
        %v1523 = vadd.f32 %v1443, %v1516
        %v1524 = vadd.f32 %v1444, %v1518
        %s1525 = sld [smem:[#allocation5 + $0xe0]]
        %v1526 = vstv %s1525
        %v1527 = vmul.f32 %v1526, %v1350
        %v1528 = vmul.f32 %v1526, %v1351
        %v1529 = vmul.f32 %v1526, %v1352
        %1533 = vrot.lane.b32.xlu0 %v1527, 126
        %v1534 = vpop.permute.xlu0 %1533
        %1535 = vrot.lane.b32.xlu0 %v1528, 126
        %v1536 = vpop.permute.xlu0 %1535
        %1537 = vrot.lane.b32.xlu0 %v1529, 126
        %v1538 = vpop.permute.xlu0 %1537
        %v1542 = vadd.f32 %v1462, %v1534
        %v1543 = vadd.f32 %v1463, %v1536
        %v1544 = vadd.f32 %v1464, %v1538
        %s1545 = scalar_lea.vmem %s222, 24
        %v1546 = vld [vmem:[%s1545] sm:$0xff]
        %v1547 = vld [vmem:[%s1545 + $0x8] sm:$0xff]
        %v1548 = vld [vmem:[%s1545 + $0x10] sm:$0x3]
        %s1549 = sld [smem:[#allocation5 + $0x9]]
        %v1550 = vstv %s1549
        %v1551 = vmul.f32 %v1550, %v1546
        %v1552 = vmul.f32 %v1550, %v1547
        %v1553 = vmul.f32 %v1550, %v1548
        %v1554 = vadd.f32 %v1482, %v1551
        %v1555 = vadd.f32 %v1483, %v1552
        %v1556 = vadd.f32 %v1484, %v1553
        %s1557 = sld [smem:[#allocation5 + $0x51]]
        %v1558 = vstv %s1557
        %v1559 = vmul.f32 %v1558, %v1546
        %v1560 = vmul.f32 %v1558, %v1547
        %v1561 = vmul.f32 %v1558, %v1548
        %v1562 = vadd.f32 %v1502, %v1559
        %v1563 = vadd.f32 %v1503, %v1560
        %v1564 = vadd.f32 %v1504, %v1561
        %s1565 = sld [smem:[#allocation5 + $0x99]]
        %v1566 = vstv %s1565
        %v1567 = vmul.f32 %v1566, %v1546
        %v1568 = vmul.f32 %v1566, %v1547
        %v1569 = vmul.f32 %v1566, %v1548
        %v1570 = vadd.f32 %v1522, %v1567
        %v1571 = vadd.f32 %v1523, %v1568
        %v1572 = vadd.f32 %v1524, %v1569
        %s1573 = sld [smem:[#allocation5 + $0xe1]]
        %v1574 = vstv %s1573
        %v1575 = vmul.f32 %v1574, %v1546
        %v1576 = vmul.f32 %v1574, %v1547
        %v1577 = vmul.f32 %v1574, %v1548
        %v1578 = vadd.f32 %v1542, %v1575
        %v1579 = vadd.f32 %v1543, %v1576
        %v1580 = vadd.f32 %v1544, %v1577
        %s1581 = sld [smem:[#allocation5 + $0xa]]
        %v1582 = vstv %s1581
        %v1583 = vmul.f32 %v1582, %v1546
        %v1584 = vmul.f32 %v1582, %v1547
        %v1585 = vmul.f32 %v1582, %v1548
        %1589 = vrot.lane.b32.xlu0 %v1583, 127
        %v1590 = vpop.permute.xlu0 %1589
        %1591 = vrot.lane.b32.xlu0 %v1584, 127
        %v1592 = vpop.permute.xlu0 %1591
        %1593 = vrot.lane.b32.xlu0 %v1585, 127
        %v1594 = vpop.permute.xlu0 %1593
        %v1598 = vadd.f32 %v1554, %v1590
        %v1599 = vadd.f32 %v1555, %v1592
        %v1600 = vadd.f32 %v1556, %v1594
        %s1601 = sld [smem:[#allocation5 + $0x52]]
        %v1602 = vstv %s1601
        %v1603 = vmul.f32 %v1602, %v1546
        %v1604 = vmul.f32 %v1602, %v1547
        %v1605 = vmul.f32 %v1602, %v1548
        %1609 = vrot.lane.b32.xlu0 %v1603, 127
        %v1610 = vpop.permute.xlu0 %1609
        %1611 = vrot.lane.b32.xlu0 %v1604, 127
        %v1612 = vpop.permute.xlu0 %1611
        %1613 = vrot.lane.b32.xlu0 %v1605, 127
        %v1614 = vpop.permute.xlu0 %1613
        %v1618 = vadd.f32 %v1562, %v1610
        %v1619 = vadd.f32 %v1563, %v1612
        %v1620 = vadd.f32 %v1564, %v1614
        %s1621 = sld [smem:[#allocation5 + $0x9a]]
        %v1622 = vstv %s1621
        %v1623 = vmul.f32 %v1622, %v1546
        %v1624 = vmul.f32 %v1622, %v1547
        %v1625 = vmul.f32 %v1622, %v1548
        %1629 = vrot.lane.b32.xlu0 %v1623, 127
        %v1630 = vpop.permute.xlu0 %1629
        %1631 = vrot.lane.b32.xlu0 %v1624, 127
        %v1632 = vpop.permute.xlu0 %1631
        %1633 = vrot.lane.b32.xlu0 %v1625, 127
        %v1634 = vpop.permute.xlu0 %1633
        %v1638 = vadd.f32 %v1570, %v1630
        %v1639 = vadd.f32 %v1571, %v1632
        %v1640 = vadd.f32 %v1572, %v1634
        %s1641 = sld [smem:[#allocation5 + $0xe2]]
        %v1642 = vstv %s1641
        %v1643 = vmul.f32 %v1642, %v1546
        %v1644 = vmul.f32 %v1642, %v1547
        %v1645 = vmul.f32 %v1642, %v1548
        %1649 = vrot.lane.b32.xlu0 %v1643, 127
        %v1650 = vpop.permute.xlu0 %1649
        %1651 = vrot.lane.b32.xlu0 %v1644, 127
        %v1652 = vpop.permute.xlu0 %1651
        %1653 = vrot.lane.b32.xlu0 %v1645, 127
        %v1654 = vpop.permute.xlu0 %1653
        %v1658 = vadd.f32 %v1578, %v1650
        %v1659 = vadd.f32 %v1579, %v1652
        %v1660 = vadd.f32 %v1580, %v1654
        %s1661 = sld [smem:[#allocation5 + $0xb]]
        %v1662 = vstv %s1661
        %v1663 = vmul.f32 %v1662, %v1546
        %v1664 = vmul.f32 %v1662, %v1547
        %v1665 = vmul.f32 %v1662, %v1548
        %1669 = vrot.lane.b32.xlu0 %v1663, 126
        %v1670 = vpop.permute.xlu0 %1669
        %1671 = vrot.lane.b32.xlu0 %v1664, 126
        %v1672 = vpop.permute.xlu0 %1671
        %1673 = vrot.lane.b32.xlu0 %v1665, 126
        %v1674 = vpop.permute.xlu0 %1673
        %v1678 = vadd.f32 %v1598, %v1670
        %v1679 = vadd.f32 %v1599, %v1672
        %v1680 = vadd.f32 %v1600, %v1674
        %s1681 = sld [smem:[#allocation5 + $0x53]]
        %v1682 = vstv %s1681
        %v1683 = vmul.f32 %v1682, %v1546
        %v1684 = vmul.f32 %v1682, %v1547
        %v1685 = vmul.f32 %v1682, %v1548
        %1689 = vrot.lane.b32.xlu0 %v1683, 126
        %v1690 = vpop.permute.xlu0 %1689
        %1691 = vrot.lane.b32.xlu0 %v1684, 126
        %v1692 = vpop.permute.xlu0 %1691
        %1693 = vrot.lane.b32.xlu0 %v1685, 126
        %v1694 = vpop.permute.xlu0 %1693
        %v1698 = vadd.f32 %v1618, %v1690
        %v1699 = vadd.f32 %v1619, %v1692
        %v1700 = vadd.f32 %v1620, %v1694
        %s1701 = sld [smem:[#allocation5 + $0x9b]]
        %v1702 = vstv %s1701
        %v1703 = vmul.f32 %v1702, %v1546
        %v1704 = vmul.f32 %v1702, %v1547
        %v1705 = vmul.f32 %v1702, %v1548
        %1709 = vrot.lane.b32.xlu0 %v1703, 126
        %v1710 = vpop.permute.xlu0 %1709
        %1711 = vrot.lane.b32.xlu0 %v1704, 126
        %v1712 = vpop.permute.xlu0 %1711
        %1713 = vrot.lane.b32.xlu0 %v1705, 126
        %v1714 = vpop.permute.xlu0 %1713
        %v1718 = vadd.f32 %v1638, %v1710
        %v1719 = vadd.f32 %v1639, %v1712
        %v1720 = vadd.f32 %v1640, %v1714
        %s1721 = sld [smem:[#allocation5 + $0xe3]]
        %v1722 = vstv %s1721
        %v1723 = vmul.f32 %v1722, %v1546
        %v1724 = vmul.f32 %v1722, %v1547
        %v1725 = vmul.f32 %v1722, %v1548
        %1729 = vrot.lane.b32.xlu0 %v1723, 126
        %v1730 = vpop.permute.xlu0 %1729
        %1731 = vrot.lane.b32.xlu0 %v1724, 126
        %v1732 = vpop.permute.xlu0 %1731
        %1733 = vrot.lane.b32.xlu0 %v1725, 126
        %v1734 = vpop.permute.xlu0 %1733
        %v1738 = vadd.f32 %v1658, %v1730
        %v1739 = vadd.f32 %v1659, %v1732
        %v1740 = vadd.f32 %v1660, %v1734
        %v1741 = vld [vmem:[%s1545 + $0x1] sm:$0xff]
        %v1742 = vld [vmem:[%s1545 + $0x9] sm:$0xff]
        %v1743 = vld [vmem:[%s1545 + $0x11] sm:$0x3]
        %s1744 = sld [smem:[#allocation5 + $0xc]]
        %v1745 = vstv %s1744
        %v1746 = vmul.f32 %v1745, %v1741
        %v1747 = vmul.f32 %v1745, %v1742
        %v1748 = vmul.f32 %v1745, %v1743
        %v1749 = vadd.f32 %v1678, %v1746
        %v1750 = vadd.f32 %v1679, %v1747
        %v1751 = vadd.f32 %v1680, %v1748
        %s1752 = sld [smem:[#allocation5 + $0x54]]
        %v1753 = vstv %s1752
        %v1754 = vmul.f32 %v1753, %v1741
        %v1755 = vmul.f32 %v1753, %v1742
        %v1756 = vmul.f32 %v1753, %v1743
        %v1757 = vadd.f32 %v1698, %v1754
        %v1758 = vadd.f32 %v1699, %v1755
        %v1759 = vadd.f32 %v1700, %v1756
        %s1760 = sld [smem:[#allocation5 + $0x9c]]
        %v1761 = vstv %s1760
        %v1762 = vmul.f32 %v1761, %v1741
        %v1763 = vmul.f32 %v1761, %v1742
        %v1764 = vmul.f32 %v1761, %v1743
        %v1765 = vadd.f32 %v1718, %v1762
        %v1766 = vadd.f32 %v1719, %v1763
        %v1767 = vadd.f32 %v1720, %v1764
        %s1768 = sld [smem:[#allocation5 + $0xe4]]
        %v1769 = vstv %s1768
        %v1770 = vmul.f32 %v1769, %v1741
        %v1771 = vmul.f32 %v1769, %v1742
        %v1772 = vmul.f32 %v1769, %v1743
        %v1773 = vadd.f32 %v1738, %v1770
        %v1774 = vadd.f32 %v1739, %v1771
        %v1775 = vadd.f32 %v1740, %v1772
        %s1776 = sld [smem:[#allocation5 + $0xd]]
        %v1777 = vstv %s1776
        %v1778 = vmul.f32 %v1777, %v1741
        %v1779 = vmul.f32 %v1777, %v1742
        %v1780 = vmul.f32 %v1777, %v1743
        %1784 = vrot.lane.b32.xlu0 %v1778, 127
        %v1785 = vpop.permute.xlu0 %1784
        %1786 = vrot.lane.b32.xlu0 %v1779, 127
        %v1787 = vpop.permute.xlu0 %1786
        %1788 = vrot.lane.b32.xlu0 %v1780, 127
        %v1789 = vpop.permute.xlu0 %1788
        %v1793 = vadd.f32 %v1749, %v1785
        %v1794 = vadd.f32 %v1750, %v1787
        %v1795 = vadd.f32 %v1751, %v1789
        %s1796 = sld [smem:[#allocation5 + $0x55]]
        %v1797 = vstv %s1796
        %v1798 = vmul.f32 %v1797, %v1741
        %v1799 = vmul.f32 %v1797, %v1742
        %v1800 = vmul.f32 %v1797, %v1743
        %1804 = vrot.lane.b32.xlu0 %v1798, 127
        %v1805 = vpop.permute.xlu0 %1804
        %1806 = vrot.lane.b32.xlu0 %v1799, 127
        %v1807 = vpop.permute.xlu0 %1806
        %1808 = vrot.lane.b32.xlu0 %v1800, 127
        %v1809 = vpop.permute.xlu0 %1808
        %v1813 = vadd.f32 %v1757, %v1805
        %v1814 = vadd.f32 %v1758, %v1807
        %v1815 = vadd.f32 %v1759, %v1809
        %s1816 = sld [smem:[#allocation5 + $0x9d]]
        %v1817 = vstv %s1816
        %v1818 = vmul.f32 %v1817, %v1741
        %v1819 = vmul.f32 %v1817, %v1742
        %v1820 = vmul.f32 %v1817, %v1743
        %1824 = vrot.lane.b32.xlu0 %v1818, 127
        %v1825 = vpop.permute.xlu0 %1824
        %1826 = vrot.lane.b32.xlu0 %v1819, 127
        %v1827 = vpop.permute.xlu0 %1826
        %1828 = vrot.lane.b32.xlu0 %v1820, 127
        %v1829 = vpop.permute.xlu0 %1828
        %v1833 = vadd.f32 %v1765, %v1825
        %v1834 = vadd.f32 %v1766, %v1827
        %v1835 = vadd.f32 %v1767, %v1829
        %s1836 = sld [smem:[#allocation5 + $0xe5]]
        %v1837 = vstv %s1836
        %v1838 = vmul.f32 %v1837, %v1741
        %v1839 = vmul.f32 %v1837, %v1742
        %v1840 = vmul.f32 %v1837, %v1743
        %1844 = vrot.lane.b32.xlu0 %v1838, 127
        %v1845 = vpop.permute.xlu0 %1844
        %1846 = vrot.lane.b32.xlu0 %v1839, 127
        %v1847 = vpop.permute.xlu0 %1846
        %1848 = vrot.lane.b32.xlu0 %v1840, 127
        %v1849 = vpop.permute.xlu0 %1848
        %v1853 = vadd.f32 %v1773, %v1845
        %v1854 = vadd.f32 %v1774, %v1847
        %v1855 = vadd.f32 %v1775, %v1849
        %s1856 = sld [smem:[#allocation5 + $0xe]]
        %v1857 = vstv %s1856
        %v1858 = vmul.f32 %v1857, %v1741
        %v1859 = vmul.f32 %v1857, %v1742
        %v1860 = vmul.f32 %v1857, %v1743
        %1864 = vrot.lane.b32.xlu0 %v1858, 126
        %v1865 = vpop.permute.xlu0 %1864
        %1866 = vrot.lane.b32.xlu0 %v1859, 126
        %v1867 = vpop.permute.xlu0 %1866
        %1868 = vrot.lane.b32.xlu0 %v1860, 126
        %v1869 = vpop.permute.xlu0 %1868
        %v1873 = vadd.f32 %v1793, %v1865
        %v1874 = vadd.f32 %v1794, %v1867
        %v1875 = vadd.f32 %v1795, %v1869
        %s1876 = sld [smem:[#allocation5 + $0x56]]
        %v1877 = vstv %s1876
        %v1878 = vmul.f32 %v1877, %v1741
        %v1879 = vmul.f32 %v1877, %v1742
        %v1880 = vmul.f32 %v1877, %v1743
        %1884 = vrot.lane.b32.xlu0 %v1878, 126
        %v1885 = vpop.permute.xlu0 %1884
        %1886 = vrot.lane.b32.xlu0 %v1879, 126
        %v1887 = vpop.permute.xlu0 %1886
        %1888 = vrot.lane.b32.xlu0 %v1880, 126
        %v1889 = vpop.permute.xlu0 %1888
        %v1893 = vadd.f32 %v1813, %v1885
        %v1894 = vadd.f32 %v1814, %v1887
        %v1895 = vadd.f32 %v1815, %v1889
        %s1896 = sld [smem:[#allocation5 + $0x9e]]
        %v1897 = vstv %s1896
        %v1898 = vmul.f32 %v1897, %v1741
        %v1899 = vmul.f32 %v1897, %v1742
        %v1900 = vmul.f32 %v1897, %v1743
        %1904 = vrot.lane.b32.xlu0 %v1898, 126
        %v1905 = vpop.permute.xlu0 %1904
        %1906 = vrot.lane.b32.xlu0 %v1899, 126
        %v1907 = vpop.permute.xlu0 %1906
        %1908 = vrot.lane.b32.xlu0 %v1900, 126
        %v1909 = vpop.permute.xlu0 %1908
        %v1913 = vadd.f32 %v1833, %v1905
        %v1914 = vadd.f32 %v1834, %v1907
        %v1915 = vadd.f32 %v1835, %v1909
        %s1916 = sld [smem:[#allocation5 + $0xe6]]
        %v1917 = vstv %s1916
        %v1918 = vmul.f32 %v1917, %v1741
        %v1919 = vmul.f32 %v1917, %v1742
        %v1920 = vmul.f32 %v1917, %v1743
        %1924 = vrot.lane.b32.xlu0 %v1918, 126
        %v1925 = vpop.permute.xlu0 %1924
        %1926 = vrot.lane.b32.xlu0 %v1919, 126
        %v1927 = vpop.permute.xlu0 %1926
        %1928 = vrot.lane.b32.xlu0 %v1920, 126
        %v1929 = vpop.permute.xlu0 %1928
        %v1933 = vadd.f32 %v1853, %v1925
        %v1934 = vadd.f32 %v1854, %v1927
        %v1935 = vadd.f32 %v1855, %v1929
        %v1936 = vld [vmem:[%s1545 + $0x2] sm:$0xff]
        %v1937 = vld [vmem:[%s1545 + $0xa] sm:$0xff]
        %v1938 = vld [vmem:[%s1545 + $0x12] sm:$0x3]
        %s1939 = sld [smem:[#allocation5 + $0xf]]
        %v1940 = vstv %s1939
        %v1941 = vmul.f32 %v1940, %v1936
        %v1942 = vmul.f32 %v1940, %v1937
        %v1943 = vmul.f32 %v1940, %v1938
        %v1944 = vadd.f32 %v1873, %v1941
        %v1945 = vadd.f32 %v1874, %v1942
        %v1946 = vadd.f32 %v1875, %v1943
        %s1947 = sld [smem:[#allocation5 + $0x57]]
        %v1948 = vstv %s1947
        %v1949 = vmul.f32 %v1948, %v1936
        %v1950 = vmul.f32 %v1948, %v1937
        %v1951 = vmul.f32 %v1948, %v1938
        %v1952 = vadd.f32 %v1893, %v1949
        %v1953 = vadd.f32 %v1894, %v1950
        %v1954 = vadd.f32 %v1895, %v1951
        %s1955 = sld [smem:[#allocation5 + $0x9f]]
        %v1956 = vstv %s1955
        %v1957 = vmul.f32 %v1956, %v1936
        %v1958 = vmul.f32 %v1956, %v1937
        %v1959 = vmul.f32 %v1956, %v1938
        %v1960 = vadd.f32 %v1913, %v1957
        %v1961 = vadd.f32 %v1914, %v1958
        %v1962 = vadd.f32 %v1915, %v1959
        %s1963 = sld [smem:[#allocation5 + $0xe7]]
        %v1964 = vstv %s1963
        %v1965 = vmul.f32 %v1964, %v1936
        %v1966 = vmul.f32 %v1964, %v1937
        %v1967 = vmul.f32 %v1964, %v1938
        %v1968 = vadd.f32 %v1933, %v1965
        %v1969 = vadd.f32 %v1934, %v1966
        %v1970 = vadd.f32 %v1935, %v1967
        %s1971 = sld [smem:[#allocation5 + $0x10]]
        %v1972 = vstv %s1971
        %v1973 = vmul.f32 %v1972, %v1936
        %v1974 = vmul.f32 %v1972, %v1937
        %v1975 = vmul.f32 %v1972, %v1938
        %1979 = vrot.lane.b32.xlu0 %v1973, 127
        %v1980 = vpop.permute.xlu0 %1979
        %1981 = vrot.lane.b32.xlu0 %v1974, 127
        %v1982 = vpop.permute.xlu0 %1981
        %1983 = vrot.lane.b32.xlu0 %v1975, 127
        %v1984 = vpop.permute.xlu0 %1983
        %v1988 = vadd.f32 %v1944, %v1980
        %v1989 = vadd.f32 %v1945, %v1982
        %v1990 = vadd.f32 %v1946, %v1984
        %s1991 = sld [smem:[#allocation5 + $0x58]]
        %v1992 = vstv %s1991
        %v1993 = vmul.f32 %v1992, %v1936
        %v1994 = vmul.f32 %v1992, %v1937
        %v1995 = vmul.f32 %v1992, %v1938
        %1999 = vrot.lane.b32.xlu0 %v1993, 127
        %v2000 = vpop.permute.xlu0 %1999
        %2001 = vrot.lane.b32.xlu0 %v1994, 127
        %v2002 = vpop.permute.xlu0 %2001
        %2003 = vrot.lane.b32.xlu0 %v1995, 127
        %v2004 = vpop.permute.xlu0 %2003
        %v2008 = vadd.f32 %v1952, %v2000
        %v2009 = vadd.f32 %v1953, %v2002
        %v2010 = vadd.f32 %v1954, %v2004
        %s2011 = sld [smem:[#allocation5 + $0xa0]]
        %v2012 = vstv %s2011
        %v2013 = vmul.f32 %v2012, %v1936
        %v2014 = vmul.f32 %v2012, %v1937
        %v2015 = vmul.f32 %v2012, %v1938
        %2019 = vrot.lane.b32.xlu0 %v2013, 127
        %v2020 = vpop.permute.xlu0 %2019
        %2021 = vrot.lane.b32.xlu0 %v2014, 127
        %v2022 = vpop.permute.xlu0 %2021
        %2023 = vrot.lane.b32.xlu0 %v2015, 127
        %v2024 = vpop.permute.xlu0 %2023
        %v2028 = vadd.f32 %v1960, %v2020
        %v2029 = vadd.f32 %v1961, %v2022
        %v2030 = vadd.f32 %v1962, %v2024
        %s2031 = sld [smem:[#allocation5 + $0xe8]]
        %v2032 = vstv %s2031
        %v2033 = vmul.f32 %v2032, %v1936
        %v2034 = vmul.f32 %v2032, %v1937
        %v2035 = vmul.f32 %v2032, %v1938
        %2039 = vrot.lane.b32.xlu0 %v2033, 127
        %v2040 = vpop.permute.xlu0 %2039
        %2041 = vrot.lane.b32.xlu0 %v2034, 127
        %v2042 = vpop.permute.xlu0 %2041
        %2043 = vrot.lane.b32.xlu0 %v2035, 127
        %v2044 = vpop.permute.xlu0 %2043
        %v2048 = vadd.f32 %v1968, %v2040
        %v2049 = vadd.f32 %v1969, %v2042
        %v2050 = vadd.f32 %v1970, %v2044
        %s2051 = sld [smem:[#allocation5 + $0x11]]
        %v2052 = vstv %s2051
        %v2053 = vmul.f32 %v2052, %v1936
        %v2054 = vmul.f32 %v2052, %v1937
        %v2055 = vmul.f32 %v2052, %v1938
        %2059 = vrot.lane.b32.xlu0 %v2053, 126
        %v2060 = vpop.permute.xlu0 %2059
        %2061 = vrot.lane.b32.xlu0 %v2054, 126
        %v2062 = vpop.permute.xlu0 %2061
        %2063 = vrot.lane.b32.xlu0 %v2055, 126
        %v2064 = vpop.permute.xlu0 %2063
        %v2068 = vadd.f32 %v1988, %v2060
        %v2069 = vadd.f32 %v1989, %v2062
        %v2070 = vadd.f32 %v1990, %v2064
        %s2071 = sld [smem:[#allocation5 + $0x59]]
        %v2072 = vstv %s2071
        %v2073 = vmul.f32 %v2072, %v1936
        %v2074 = vmul.f32 %v2072, %v1937
        %v2075 = vmul.f32 %v2072, %v1938
        %2079 = vrot.lane.b32.xlu0 %v2073, 126
        %v2080 = vpop.permute.xlu0 %2079
        %2081 = vrot.lane.b32.xlu0 %v2074, 126
        %v2082 = vpop.permute.xlu0 %2081
        %2083 = vrot.lane.b32.xlu0 %v2075, 126
        %v2084 = vpop.permute.xlu0 %2083
        %v2088 = vadd.f32 %v2008, %v2080
        %v2089 = vadd.f32 %v2009, %v2082
        %v2090 = vadd.f32 %v2010, %v2084
        %s2091 = sld [smem:[#allocation5 + $0xa1]]
        %v2092 = vstv %s2091
        %v2093 = vmul.f32 %v2092, %v1936
        %v2094 = vmul.f32 %v2092, %v1937
        %v2095 = vmul.f32 %v2092, %v1938
        %2099 = vrot.lane.b32.xlu0 %v2093, 126
        %v2100 = vpop.permute.xlu0 %2099
        %2101 = vrot.lane.b32.xlu0 %v2094, 126
        %v2102 = vpop.permute.xlu0 %2101
        %2103 = vrot.lane.b32.xlu0 %v2095, 126
        %v2104 = vpop.permute.xlu0 %2103
        %v2108 = vadd.f32 %v2028, %v2100
        %v2109 = vadd.f32 %v2029, %v2102
        %v2110 = vadd.f32 %v2030, %v2104
        %s2111 = sld [smem:[#allocation5 + $0xe9]]
        %v2112 = vstv %s2111
        %v2113 = vmul.f32 %v2112, %v1936
        %v2114 = vmul.f32 %v2112, %v1937
        %v2115 = vmul.f32 %v2112, %v1938
        %2119 = vrot.lane.b32.xlu0 %v2113, 126
        %v2120 = vpop.permute.xlu0 %2119
        %2121 = vrot.lane.b32.xlu0 %v2114, 126
        %v2122 = vpop.permute.xlu0 %2121
        %2123 = vrot.lane.b32.xlu0 %v2115, 126
        %v2124 = vpop.permute.xlu0 %2123
        %v2128 = vadd.f32 %v2048, %v2120
        %v2129 = vadd.f32 %v2049, %v2122
        %v2130 = vadd.f32 %v2050, %v2124
        %s2131 = scalar_lea.vmem %s222, 48
        %v2132 = vld [vmem:[%s2131] sm:$0xff]
        %v2133 = vld [vmem:[%s2131 + $0x8] sm:$0xff]
        %v2134 = vld [vmem:[%s2131 + $0x10] sm:$0x3]
        %s2135 = sld [smem:[#allocation5 + $0x12]]
        %v2136 = vstv %s2135
        %v2137 = vmul.f32 %v2136, %v2132
        %v2138 = vmul.f32 %v2136, %v2133
        %v2139 = vmul.f32 %v2136, %v2134
        %v2140 = vadd.f32 %v2068, %v2137
        %v2141 = vadd.f32 %v2069, %v2138
        %v2142 = vadd.f32 %v2070, %v2139
        %s2143 = sld [smem:[#allocation5 + $0x5a]]
        %v2144 = vstv %s2143
        %v2145 = vmul.f32 %v2144, %v2132
        %v2146 = vmul.f32 %v2144, %v2133
        %v2147 = vmul.f32 %v2144, %v2134
        %v2148 = vadd.f32 %v2088, %v2145
        %v2149 = vadd.f32 %v2089, %v2146
        %v2150 = vadd.f32 %v2090, %v2147
        %s2151 = sld [smem:[#allocation5 + $0xa2]]
        %v2152 = vstv %s2151
        %v2153 = vmul.f32 %v2152, %v2132
        %v2154 = vmul.f32 %v2152, %v2133
        %v2155 = vmul.f32 %v2152, %v2134
        %v2156 = vadd.f32 %v2108, %v2153
        %v2157 = vadd.f32 %v2109, %v2154
        %v2158 = vadd.f32 %v2110, %v2155
        %s2159 = sld [smem:[#allocation5 + $0xea]]
        %v2160 = vstv %s2159
        %v2161 = vmul.f32 %v2160, %v2132
        %v2162 = vmul.f32 %v2160, %v2133
        %v2163 = vmul.f32 %v2160, %v2134
        %v2164 = vadd.f32 %v2128, %v2161
        %v2165 = vadd.f32 %v2129, %v2162
        %v2166 = vadd.f32 %v2130, %v2163
        %s2167 = sld [smem:[#allocation5 + $0x13]]
        %v2168 = vstv %s2167
        %v2169 = vmul.f32 %v2168, %v2132
        %v2170 = vmul.f32 %v2168, %v2133
        %v2171 = vmul.f32 %v2168, %v2134
        %2175 = vrot.lane.b32.xlu0 %v2169, 127
        %v2176 = vpop.permute.xlu0 %2175
        %2177 = vrot.lane.b32.xlu0 %v2170, 127
        %v2178 = vpop.permute.xlu0 %2177
        %2179 = vrot.lane.b32.xlu0 %v2171, 127
        %v2180 = vpop.permute.xlu0 %2179
        %v2184 = vadd.f32 %v2140, %v2176
        %v2185 = vadd.f32 %v2141, %v2178
        %v2186 = vadd.f32 %v2142, %v2180
        %s2187 = sld [smem:[#allocation5 + $0x5b]]
        %v2188 = vstv %s2187
        %v2189 = vmul.f32 %v2188, %v2132
        %v2190 = vmul.f32 %v2188, %v2133
        %v2191 = vmul.f32 %v2188, %v2134
        %2195 = vrot.lane.b32.xlu0 %v2189, 127
        %v2196 = vpop.permute.xlu0 %2195
        %2197 = vrot.lane.b32.xlu0 %v2190, 127
        %v2198 = vpop.permute.xlu0 %2197
        %2199 = vrot.lane.b32.xlu0 %v2191, 127
        %v2200 = vpop.permute.xlu0 %2199
        %v2204 = vadd.f32 %v2148, %v2196
        %v2205 = vadd.f32 %v2149, %v2198
        %v2206 = vadd.f32 %v2150, %v2200
        %s2207 = sld [smem:[#allocation5 + $0xa3]]
        %v2208 = vstv %s2207
        %v2209 = vmul.f32 %v2208, %v2132
        %v2210 = vmul.f32 %v2208, %v2133
        %v2211 = vmul.f32 %v2208, %v2134
        %2215 = vrot.lane.b32.xlu0 %v2209, 127
        %v2216 = vpop.permute.xlu0 %2215
        %2217 = vrot.lane.b32.xlu0 %v2210, 127
        %v2218 = vpop.permute.xlu0 %2217
        %2219 = vrot.lane.b32.xlu0 %v2211, 127
        %v2220 = vpop.permute.xlu0 %2219
        %v2224 = vadd.f32 %v2156, %v2216
        %v2225 = vadd.f32 %v2157, %v2218
        %v2226 = vadd.f32 %v2158, %v2220
        %s2227 = sld [smem:[#allocation5 + $0xeb]]
        %v2228 = vstv %s2227
        %v2229 = vmul.f32 %v2228, %v2132
        %v2230 = vmul.f32 %v2228, %v2133
        %v2231 = vmul.f32 %v2228, %v2134
        %2235 = vrot.lane.b32.xlu0 %v2229, 127
        %v2236 = vpop.permute.xlu0 %2235
        %2237 = vrot.lane.b32.xlu0 %v2230, 127
        %v2238 = vpop.permute.xlu0 %2237
        %2239 = vrot.lane.b32.xlu0 %v2231, 127
        %v2240 = vpop.permute.xlu0 %2239
        %v2244 = vadd.f32 %v2164, %v2236
        %v2245 = vadd.f32 %v2165, %v2238
        %v2246 = vadd.f32 %v2166, %v2240
        %s2247 = sld [smem:[#allocation5 + $0x14]]
        %v2248 = vstv %s2247
        %v2249 = vmul.f32 %v2248, %v2132
        %v2250 = vmul.f32 %v2248, %v2133
        %v2251 = vmul.f32 %v2248, %v2134
        %2255 = vrot.lane.b32.xlu0 %v2249, 126
        %v2256 = vpop.permute.xlu0 %2255
        %2257 = vrot.lane.b32.xlu0 %v2250, 126
        %v2258 = vpop.permute.xlu0 %2257
        %2259 = vrot.lane.b32.xlu0 %v2251, 126
        %v2260 = vpop.permute.xlu0 %2259
        %v2264 = vadd.f32 %v2184, %v2256
        %v2265 = vadd.f32 %v2185, %v2258
        %v2266 = vadd.f32 %v2186, %v2260
        %s2267 = sld [smem:[#allocation5 + $0x5c]]
        %v2268 = vstv %s2267
        %v2269 = vmul.f32 %v2268, %v2132
        %v2270 = vmul.f32 %v2268, %v2133
        %v2271 = vmul.f32 %v2268, %v2134
        %2275 = vrot.lane.b32.xlu0 %v2269, 126
        %v2276 = vpop.permute.xlu0 %2275
        %2277 = vrot.lane.b32.xlu0 %v2270, 126
        %v2278 = vpop.permute.xlu0 %2277
        %2279 = vrot.lane.b32.xlu0 %v2271, 126
        %v2280 = vpop.permute.xlu0 %2279
        %v2284 = vadd.f32 %v2204, %v2276
        %v2285 = vadd.f32 %v2205, %v2278
        %v2286 = vadd.f32 %v2206, %v2280
        %s2287 = sld [smem:[#allocation5 + $0xa4]]
        %v2288 = vstv %s2287
        %v2289 = vmul.f32 %v2288, %v2132
        %v2290 = vmul.f32 %v2288, %v2133
        %v2291 = vmul.f32 %v2288, %v2134
        %2295 = vrot.lane.b32.xlu0 %v2289, 126
        %v2296 = vpop.permute.xlu0 %2295
        %2297 = vrot.lane.b32.xlu0 %v2290, 126
        %v2298 = vpop.permute.xlu0 %2297
        %2299 = vrot.lane.b32.xlu0 %v2291, 126
        %v2300 = vpop.permute.xlu0 %2299
        %v2304 = vadd.f32 %v2224, %v2296
        %v2305 = vadd.f32 %v2225, %v2298
        %v2306 = vadd.f32 %v2226, %v2300
        %s2307 = sld [smem:[#allocation5 + $0xec]]
        %v2308 = vstv %s2307
        %v2309 = vmul.f32 %v2308, %v2132
        %v2310 = vmul.f32 %v2308, %v2133
        %v2311 = vmul.f32 %v2308, %v2134
        %2315 = vrot.lane.b32.xlu0 %v2309, 126
        %v2316 = vpop.permute.xlu0 %2315
        %2317 = vrot.lane.b32.xlu0 %v2310, 126
        %v2318 = vpop.permute.xlu0 %2317
        %2319 = vrot.lane.b32.xlu0 %v2311, 126
        %v2320 = vpop.permute.xlu0 %2319
        %v2324 = vadd.f32 %v2244, %v2316
        %v2325 = vadd.f32 %v2245, %v2318
        %v2326 = vadd.f32 %v2246, %v2320
        %v2327 = vld [vmem:[%s2131 + $0x1] sm:$0xff]
        %v2328 = vld [vmem:[%s2131 + $0x9] sm:$0xff]
        %v2329 = vld [vmem:[%s2131 + $0x11] sm:$0x3]
        %s2330 = sld [smem:[#allocation5 + $0x15]]
        %v2331 = vstv %s2330
        %v2332 = vmul.f32 %v2331, %v2327
        %v2333 = vmul.f32 %v2331, %v2328
        %v2334 = vmul.f32 %v2331, %v2329
        %v2335 = vadd.f32 %v2264, %v2332
        %v2336 = vadd.f32 %v2265, %v2333
        %v2337 = vadd.f32 %v2266, %v2334
        %s2338 = sld [smem:[#allocation5 + $0x5d]]
        %v2339 = vstv %s2338
        %v2340 = vmul.f32 %v2339, %v2327
        %v2341 = vmul.f32 %v2339, %v2328
        %v2342 = vmul.f32 %v2339, %v2329
        %v2343 = vadd.f32 %v2284, %v2340
        %v2344 = vadd.f32 %v2285, %v2341
        %v2345 = vadd.f32 %v2286, %v2342
        %s2346 = sld [smem:[#allocation5 + $0xa5]]
        %v2347 = vstv %s2346
        %v2348 = vmul.f32 %v2347, %v2327
        %v2349 = vmul.f32 %v2347, %v2328
        %v2350 = vmul.f32 %v2347, %v2329
        %v2351 = vadd.f32 %v2304, %v2348
        %v2352 = vadd.f32 %v2305, %v2349
        %v2353 = vadd.f32 %v2306, %v2350
        %s2354 = sld [smem:[#allocation5 + $0xed]]
        %v2355 = vstv %s2354
        %v2356 = vmul.f32 %v2355, %v2327
        %v2357 = vmul.f32 %v2355, %v2328
        %v2358 = vmul.f32 %v2355, %v2329
        %v2359 = vadd.f32 %v2324, %v2356
        %v2360 = vadd.f32 %v2325, %v2357
        %v2361 = vadd.f32 %v2326, %v2358
        %s2362 = sld [smem:[#allocation5 + $0x16]]
        %v2363 = vstv %s2362
        %v2364 = vmul.f32 %v2363, %v2327
        %v2365 = vmul.f32 %v2363, %v2328
        %v2366 = vmul.f32 %v2363, %v2329
        %2370 = vrot.lane.b32.xlu0 %v2364, 127
        %v2371 = vpop.permute.xlu0 %2370
        %2372 = vrot.lane.b32.xlu0 %v2365, 127
        %v2373 = vpop.permute.xlu0 %2372
        %2374 = vrot.lane.b32.xlu0 %v2366, 127
        %v2375 = vpop.permute.xlu0 %2374
        %v2379 = vadd.f32 %v2335, %v2371
        %v2380 = vadd.f32 %v2336, %v2373
        %v2381 = vadd.f32 %v2337, %v2375
        %s2382 = sld [smem:[#allocation5 + $0x5e]]
        %v2383 = vstv %s2382
        %v2384 = vmul.f32 %v2383, %v2327
        %v2385 = vmul.f32 %v2383, %v2328
        %v2386 = vmul.f32 %v2383, %v2329
        %2390 = vrot.lane.b32.xlu0 %v2384, 127
        %v2391 = vpop.permute.xlu0 %2390
        %2392 = vrot.lane.b32.xlu0 %v2385, 127
        %v2393 = vpop.permute.xlu0 %2392
        %2394 = vrot.lane.b32.xlu0 %v2386, 127
        %v2395 = vpop.permute.xlu0 %2394
        %v2399 = vadd.f32 %v2343, %v2391
        %v2400 = vadd.f32 %v2344, %v2393
        %v2401 = vadd.f32 %v2345, %v2395
        %s2402 = sld [smem:[#allocation5 + $0xa6]]
        %v2403 = vstv %s2402
        %v2404 = vmul.f32 %v2403, %v2327
        %v2405 = vmul.f32 %v2403, %v2328
        %v2406 = vmul.f32 %v2403, %v2329
        %2410 = vrot.lane.b32.xlu0 %v2404, 127
        %v2411 = vpop.permute.xlu0 %2410
        %2412 = vrot.lane.b32.xlu0 %v2405, 127
        %v2413 = vpop.permute.xlu0 %2412
        %2414 = vrot.lane.b32.xlu0 %v2406, 127
        %v2415 = vpop.permute.xlu0 %2414
        %v2419 = vadd.f32 %v2351, %v2411
        %v2420 = vadd.f32 %v2352, %v2413
        %v2421 = vadd.f32 %v2353, %v2415
        %s2422 = sld [smem:[#allocation5 + $0xee]]
        %v2423 = vstv %s2422
        %v2424 = vmul.f32 %v2423, %v2327
        %v2425 = vmul.f32 %v2423, %v2328
        %v2426 = vmul.f32 %v2423, %v2329
        %2430 = vrot.lane.b32.xlu0 %v2424, 127
        %v2431 = vpop.permute.xlu0 %2430
        %2432 = vrot.lane.b32.xlu0 %v2425, 127
        %v2433 = vpop.permute.xlu0 %2432
        %2434 = vrot.lane.b32.xlu0 %v2426, 127
        %v2435 = vpop.permute.xlu0 %2434
        %v2439 = vadd.f32 %v2359, %v2431
        %v2440 = vadd.f32 %v2360, %v2433
        %v2441 = vadd.f32 %v2361, %v2435
        %s2442 = sld [smem:[#allocation5 + $0x17]]
        %v2443 = vstv %s2442
        %v2444 = vmul.f32 %v2443, %v2327
        %v2445 = vmul.f32 %v2443, %v2328
        %v2446 = vmul.f32 %v2443, %v2329
        %2450 = vrot.lane.b32.xlu0 %v2444, 126
        %v2451 = vpop.permute.xlu0 %2450
        %2452 = vrot.lane.b32.xlu0 %v2445, 126
        %v2453 = vpop.permute.xlu0 %2452
        %2454 = vrot.lane.b32.xlu0 %v2446, 126
        %v2455 = vpop.permute.xlu0 %2454
        %v2459 = vadd.f32 %v2379, %v2451
        %v2460 = vadd.f32 %v2380, %v2453
        %v2461 = vadd.f32 %v2381, %v2455
        %s2462 = sld [smem:[#allocation5 + $0x5f]]
        %v2463 = vstv %s2462
        %v2464 = vmul.f32 %v2463, %v2327
        %v2465 = vmul.f32 %v2463, %v2328
        %v2466 = vmul.f32 %v2463, %v2329
        %2470 = vrot.lane.b32.xlu0 %v2464, 126
        %v2471 = vpop.permute.xlu0 %2470
        %2472 = vrot.lane.b32.xlu0 %v2465, 126
        %v2473 = vpop.permute.xlu0 %2472
        %2474 = vrot.lane.b32.xlu0 %v2466, 126
        %v2475 = vpop.permute.xlu0 %2474
        %v2479 = vadd.f32 %v2399, %v2471
        %v2480 = vadd.f32 %v2400, %v2473
        %v2481 = vadd.f32 %v2401, %v2475
        %s2482 = sld [smem:[#allocation5 + $0xa7]]
        %v2483 = vstv %s2482
        %v2484 = vmul.f32 %v2483, %v2327
        %v2485 = vmul.f32 %v2483, %v2328
        %v2486 = vmul.f32 %v2483, %v2329
        %2490 = vrot.lane.b32.xlu0 %v2484, 126
        %v2491 = vpop.permute.xlu0 %2490
        %2492 = vrot.lane.b32.xlu0 %v2485, 126
        %v2493 = vpop.permute.xlu0 %2492
        %2494 = vrot.lane.b32.xlu0 %v2486, 126
        %v2495 = vpop.permute.xlu0 %2494
        %v2499 = vadd.f32 %v2419, %v2491
        %v2500 = vadd.f32 %v2420, %v2493
        %v2501 = vadd.f32 %v2421, %v2495
        %s2502 = sld [smem:[#allocation5 + $0xef]]
        %v2503 = vstv %s2502
        %v2504 = vmul.f32 %v2503, %v2327
        %v2505 = vmul.f32 %v2503, %v2328
        %v2506 = vmul.f32 %v2503, %v2329
        %2510 = vrot.lane.b32.xlu0 %v2504, 126
        %v2511 = vpop.permute.xlu0 %2510
        %2512 = vrot.lane.b32.xlu0 %v2505, 126
        %v2513 = vpop.permute.xlu0 %2512
        %2514 = vrot.lane.b32.xlu0 %v2506, 126
        %v2515 = vpop.permute.xlu0 %2514
        %v2519 = vadd.f32 %v2439, %v2511
        %v2520 = vadd.f32 %v2440, %v2513
        %v2521 = vadd.f32 %v2441, %v2515
        %v2522 = vld [vmem:[%s2131 + $0x2] sm:$0xff]
        %v2523 = vld [vmem:[%s2131 + $0xa] sm:$0xff]
        %v2524 = vld [vmem:[%s2131 + $0x12] sm:$0x3]
        %s2525 = sld [smem:[#allocation5 + $0x18]]
        %v2526 = vstv %s2525
        %v2527 = vmul.f32 %v2526, %v2522
        %v2528 = vmul.f32 %v2526, %v2523
        %v2529 = vmul.f32 %v2526, %v2524
        %v2530 = vadd.f32 %v2459, %v2527
        %v2531 = vadd.f32 %v2460, %v2528
        %v2532 = vadd.f32 %v2461, %v2529
        %s2533 = sld [smem:[#allocation5 + $0x60]]
        %v2534 = vstv %s2533
        %v2535 = vmul.f32 %v2534, %v2522
        %v2536 = vmul.f32 %v2534, %v2523
        %v2537 = vmul.f32 %v2534, %v2524
        %v2538 = vadd.f32 %v2479, %v2535
        %v2539 = vadd.f32 %v2480, %v2536
        %v2540 = vadd.f32 %v2481, %v2537
        %s2541 = sld [smem:[#allocation5 + $0xa8]]
        %v2542 = vstv %s2541
        %v2543 = vmul.f32 %v2542, %v2522
        %v2544 = vmul.f32 %v2542, %v2523
        %v2545 = vmul.f32 %v2542, %v2524
        %v2546 = vadd.f32 %v2499, %v2543
        %v2547 = vadd.f32 %v2500, %v2544
        %v2548 = vadd.f32 %v2501, %v2545
        %s2549 = sld [smem:[#allocation5 + $0xf0]]
        %v2550 = vstv %s2549
        %v2551 = vmul.f32 %v2550, %v2522
        %v2552 = vmul.f32 %v2550, %v2523
        %v2553 = vmul.f32 %v2550, %v2524
        %v2554 = vadd.f32 %v2519, %v2551
        %v2555 = vadd.f32 %v2520, %v2552
        %v2556 = vadd.f32 %v2521, %v2553
        %s2557 = sld [smem:[#allocation5 + $0x19]]
        %v2558 = vstv %s2557
        %v2559 = vmul.f32 %v2558, %v2522
        %v2560 = vmul.f32 %v2558, %v2523
        %v2561 = vmul.f32 %v2558, %v2524
        %2565 = vrot.lane.b32.xlu0 %v2559, 127
        %v2566 = vpop.permute.xlu0 %2565
        %2567 = vrot.lane.b32.xlu0 %v2560, 127
        %v2568 = vpop.permute.xlu0 %2567
        %2569 = vrot.lane.b32.xlu0 %v2561, 127
        %v2570 = vpop.permute.xlu0 %2569
        %v2574 = vadd.f32 %v2530, %v2566
        %v2575 = vadd.f32 %v2531, %v2568
        %v2576 = vadd.f32 %v2532, %v2570
        %s2577 = sld [smem:[#allocation5 + $0x61]]
        %v2578 = vstv %s2577
        %v2579 = vmul.f32 %v2578, %v2522
        %v2580 = vmul.f32 %v2578, %v2523
        %v2581 = vmul.f32 %v2578, %v2524
        %2585 = vrot.lane.b32.xlu0 %v2579, 127
        %v2586 = vpop.permute.xlu0 %2585
        %2587 = vrot.lane.b32.xlu0 %v2580, 127
        %v2588 = vpop.permute.xlu0 %2587
        %2589 = vrot.lane.b32.xlu0 %v2581, 127
        %v2590 = vpop.permute.xlu0 %2589
        %v2594 = vadd.f32 %v2538, %v2586
        %v2595 = vadd.f32 %v2539, %v2588
        %v2596 = vadd.f32 %v2540, %v2590
        %s2597 = sld [smem:[#allocation5 + $0xa9]]
        %v2598 = vstv %s2597
        %v2599 = vmul.f32 %v2598, %v2522
        %v2600 = vmul.f32 %v2598, %v2523
        %v2601 = vmul.f32 %v2598, %v2524
        %2605 = vrot.lane.b32.xlu0 %v2599, 127
        %v2606 = vpop.permute.xlu0 %2605
        %2607 = vrot.lane.b32.xlu0 %v2600, 127
        %v2608 = vpop.permute.xlu0 %2607
        %2609 = vrot.lane.b32.xlu0 %v2601, 127
        %v2610 = vpop.permute.xlu0 %2609
        %v2614 = vadd.f32 %v2546, %v2606
        %v2615 = vadd.f32 %v2547, %v2608
        %v2616 = vadd.f32 %v2548, %v2610
        %s2617 = sld [smem:[#allocation5 + $0xf1]]
        %v2618 = vstv %s2617
        %v2619 = vmul.f32 %v2618, %v2522
        %v2620 = vmul.f32 %v2618, %v2523
        %v2621 = vmul.f32 %v2618, %v2524
        %2625 = vrot.lane.b32.xlu0 %v2619, 127
        %v2626 = vpop.permute.xlu0 %2625
        %2627 = vrot.lane.b32.xlu0 %v2620, 127
        %v2628 = vpop.permute.xlu0 %2627
        %2629 = vrot.lane.b32.xlu0 %v2621, 127
        %v2630 = vpop.permute.xlu0 %2629
        %v2634 = vadd.f32 %v2554, %v2626
        %v2635 = vadd.f32 %v2555, %v2628
        %v2636 = vadd.f32 %v2556, %v2630
        %s2637 = sld [smem:[#allocation5 + $0x1a]]
        %v2638 = vstv %s2637
        %v2639 = vmul.f32 %v2638, %v2522
        %v2640 = vmul.f32 %v2638, %v2523
        %v2641 = vmul.f32 %v2638, %v2524
        %2645 = vrot.lane.b32.xlu0 %v2639, 126
        %v2646 = vpop.permute.xlu0 %2645
        %2647 = vrot.lane.b32.xlu0 %v2640, 126
        %v2648 = vpop.permute.xlu0 %2647
        %2649 = vrot.lane.b32.xlu0 %v2641, 126
        %v2650 = vpop.permute.xlu0 %2649
        %v2654 = vadd.f32 %v2574, %v2646
        %v2655 = vadd.f32 %v2575, %v2648
        %v2656 = vadd.f32 %v2576, %v2650
        %s2657 = sld [smem:[#allocation5 + $0x62]]
        %v2658 = vstv %s2657
        %v2659 = vmul.f32 %v2658, %v2522
        %v2660 = vmul.f32 %v2658, %v2523
        %v2661 = vmul.f32 %v2658, %v2524
        %2665 = vrot.lane.b32.xlu0 %v2659, 126
        %v2666 = vpop.permute.xlu0 %2665
        %2667 = vrot.lane.b32.xlu0 %v2660, 126
        %v2668 = vpop.permute.xlu0 %2667
        %2669 = vrot.lane.b32.xlu0 %v2661, 126
        %v2670 = vpop.permute.xlu0 %2669
        %v2674 = vadd.f32 %v2594, %v2666
        %v2675 = vadd.f32 %v2595, %v2668
        %v2676 = vadd.f32 %v2596, %v2670
        %s2677 = sld [smem:[#allocation5 + $0xaa]]
        %v2678 = vstv %s2677
        %v2679 = vmul.f32 %v2678, %v2522
        %v2680 = vmul.f32 %v2678, %v2523
        %v2681 = vmul.f32 %v2678, %v2524
        %2685 = vrot.lane.b32.xlu0 %v2679, 126
        %v2686 = vpop.permute.xlu0 %2685
        %2687 = vrot.lane.b32.xlu0 %v2680, 126
        %v2688 = vpop.permute.xlu0 %2687
        %2689 = vrot.lane.b32.xlu0 %v2681, 126
        %v2690 = vpop.permute.xlu0 %2689
        %v2694 = vadd.f32 %v2614, %v2686
        %v2695 = vadd.f32 %v2615, %v2688
        %v2696 = vadd.f32 %v2616, %v2690
        %s2697 = sld [smem:[#allocation5 + $0xf2]]
        %v2698 = vstv %s2697
        %v2699 = vmul.f32 %v2698, %v2522
        %v2700 = vmul.f32 %v2698, %v2523
        %v2701 = vmul.f32 %v2698, %v2524
        %2705 = vrot.lane.b32.xlu0 %v2699, 126
        %v2706 = vpop.permute.xlu0 %2705
        %2707 = vrot.lane.b32.xlu0 %v2700, 126
        %v2708 = vpop.permute.xlu0 %2707
        %2709 = vrot.lane.b32.xlu0 %v2701, 126
        %v2710 = vpop.permute.xlu0 %2709
        %v2714 = vadd.f32 %v2634, %v2706
        %v2715 = vadd.f32 %v2635, %v2708
        %v2716 = vadd.f32 %v2636, %v2710
        %s2717 = scalar_lea.vmem %s222, 72
        %v2718 = vld [vmem:[%s2717] sm:$0xff]
        %v2719 = vld [vmem:[%s2717 + $0x8] sm:$0xff]
        %v2720 = vld [vmem:[%s2717 + $0x10] sm:$0x3]
        %s2721 = sld [smem:[#allocation5 + $0x1b]]
        %v2722 = vstv %s2721
        %v2723 = vmul.f32 %v2722, %v2718
        %v2724 = vmul.f32 %v2722, %v2719
        %v2725 = vmul.f32 %v2722, %v2720
        %v2726 = vadd.f32 %v2654, %v2723
        %v2727 = vadd.f32 %v2655, %v2724
        %v2728 = vadd.f32 %v2656, %v2725
        %s2729 = sld [smem:[#allocation5 + $0x63]]
        %v2730 = vstv %s2729
        %v2731 = vmul.f32 %v2730, %v2718
        %v2732 = vmul.f32 %v2730, %v2719
        %v2733 = vmul.f32 %v2730, %v2720
        %v2734 = vadd.f32 %v2674, %v2731
        %v2735 = vadd.f32 %v2675, %v2732
        %v2736 = vadd.f32 %v2676, %v2733
        %s2737 = sld [smem:[#allocation5 + $0xab]]
        %v2738 = vstv %s2737
        %v2739 = vmul.f32 %v2738, %v2718
        %v2740 = vmul.f32 %v2738, %v2719
        %v2741 = vmul.f32 %v2738, %v2720
        %v2742 = vadd.f32 %v2694, %v2739
        %v2743 = vadd.f32 %v2695, %v2740
        %v2744 = vadd.f32 %v2696, %v2741
        %s2745 = sld [smem:[#allocation5 + $0xf3]]
        %v2746 = vstv %s2745
        %v2747 = vmul.f32 %v2746, %v2718
        %v2748 = vmul.f32 %v2746, %v2719
        %v2749 = vmul.f32 %v2746, %v2720
        %v2750 = vadd.f32 %v2714, %v2747
        %v2751 = vadd.f32 %v2715, %v2748
        %v2752 = vadd.f32 %v2716, %v2749
        %s2753 = sld [smem:[#allocation5 + $0x1c]]
        %v2754 = vstv %s2753
        %v2755 = vmul.f32 %v2754, %v2718
        %v2756 = vmul.f32 %v2754, %v2719
        %v2757 = vmul.f32 %v2754, %v2720
        %2761 = vrot.lane.b32.xlu0 %v2755, 127
        %v2762 = vpop.permute.xlu0 %2761
        %2763 = vrot.lane.b32.xlu0 %v2756, 127
        %v2764 = vpop.permute.xlu0 %2763
        %2765 = vrot.lane.b32.xlu0 %v2757, 127
        %v2766 = vpop.permute.xlu0 %2765
        %v2770 = vadd.f32 %v2726, %v2762
        %v2771 = vadd.f32 %v2727, %v2764
        %v2772 = vadd.f32 %v2728, %v2766
        %s2773 = sld [smem:[#allocation5 + $0x64]]
        %v2774 = vstv %s2773
        %v2775 = vmul.f32 %v2774, %v2718
        %v2776 = vmul.f32 %v2774, %v2719
        %v2777 = vmul.f32 %v2774, %v2720
        %2781 = vrot.lane.b32.xlu0 %v2775, 127
        %v2782 = vpop.permute.xlu0 %2781
        %2783 = vrot.lane.b32.xlu0 %v2776, 127
        %v2784 = vpop.permute.xlu0 %2783
        %2785 = vrot.lane.b32.xlu0 %v2777, 127
        %v2786 = vpop.permute.xlu0 %2785
        %v2790 = vadd.f32 %v2734, %v2782
        %v2791 = vadd.f32 %v2735, %v2784
        %v2792 = vadd.f32 %v2736, %v2786
        %s2793 = sld [smem:[#allocation5 + $0xac]]
        %v2794 = vstv %s2793
        %v2795 = vmul.f32 %v2794, %v2718
        %v2796 = vmul.f32 %v2794, %v2719
        %v2797 = vmul.f32 %v2794, %v2720
        %2801 = vrot.lane.b32.xlu0 %v2795, 127
        %v2802 = vpop.permute.xlu0 %2801
        %2803 = vrot.lane.b32.xlu0 %v2796, 127
        %v2804 = vpop.permute.xlu0 %2803
        %2805 = vrot.lane.b32.xlu0 %v2797, 127
        %v2806 = vpop.permute.xlu0 %2805
        %v2810 = vadd.f32 %v2742, %v2802
        %v2811 = vadd.f32 %v2743, %v2804
        %v2812 = vadd.f32 %v2744, %v2806
        %s2813 = sld [smem:[#allocation5 + $0xf4]]
        %v2814 = vstv %s2813
        %v2815 = vmul.f32 %v2814, %v2718
        %v2816 = vmul.f32 %v2814, %v2719
        %v2817 = vmul.f32 %v2814, %v2720
        %2821 = vrot.lane.b32.xlu0 %v2815, 127
        %v2822 = vpop.permute.xlu0 %2821
        %2823 = vrot.lane.b32.xlu0 %v2816, 127
        %v2824 = vpop.permute.xlu0 %2823
        %2825 = vrot.lane.b32.xlu0 %v2817, 127
        %v2826 = vpop.permute.xlu0 %2825
        %v2830 = vadd.f32 %v2750, %v2822
        %v2831 = vadd.f32 %v2751, %v2824
        %v2832 = vadd.f32 %v2752, %v2826
        %s2833 = sld [smem:[#allocation5 + $0x1d]]
        %v2834 = vstv %s2833
        %v2835 = vmul.f32 %v2834, %v2718
        %v2836 = vmul.f32 %v2834, %v2719
        %v2837 = vmul.f32 %v2834, %v2720
        %2841 = vrot.lane.b32.xlu0 %v2835, 126
        %v2842 = vpop.permute.xlu0 %2841
        %2843 = vrot.lane.b32.xlu0 %v2836, 126
        %v2844 = vpop.permute.xlu0 %2843
        %2845 = vrot.lane.b32.xlu0 %v2837, 126
        %v2846 = vpop.permute.xlu0 %2845
        %v2850 = vadd.f32 %v2770, %v2842
        %v2851 = vadd.f32 %v2771, %v2844
        %v2852 = vadd.f32 %v2772, %v2846
        %s2853 = sld [smem:[#allocation5 + $0x65]]
        %v2854 = vstv %s2853
        %v2855 = vmul.f32 %v2854, %v2718
        %v2856 = vmul.f32 %v2854, %v2719
        %v2857 = vmul.f32 %v2854, %v2720
        %2861 = vrot.lane.b32.xlu0 %v2855, 126
        %v2862 = vpop.permute.xlu0 %2861
        %2863 = vrot.lane.b32.xlu0 %v2856, 126
        %v2864 = vpop.permute.xlu0 %2863
        %2865 = vrot.lane.b32.xlu0 %v2857, 126
        %v2866 = vpop.permute.xlu0 %2865
        %v2870 = vadd.f32 %v2790, %v2862
        %v2871 = vadd.f32 %v2791, %v2864
        %v2872 = vadd.f32 %v2792, %v2866
        %s2873 = sld [smem:[#allocation5 + $0xad]]
        %v2874 = vstv %s2873
        %v2875 = vmul.f32 %v2874, %v2718
        %v2876 = vmul.f32 %v2874, %v2719
        %v2877 = vmul.f32 %v2874, %v2720
        %2881 = vrot.lane.b32.xlu0 %v2875, 126
        %v2882 = vpop.permute.xlu0 %2881
        %2883 = vrot.lane.b32.xlu0 %v2876, 126
        %v2884 = vpop.permute.xlu0 %2883
        %2885 = vrot.lane.b32.xlu0 %v2877, 126
        %v2886 = vpop.permute.xlu0 %2885
        %v2890 = vadd.f32 %v2810, %v2882
        %v2891 = vadd.f32 %v2811, %v2884
        %v2892 = vadd.f32 %v2812, %v2886
        %s2893 = sld [smem:[#allocation5 + $0xf5]]
        %v2894 = vstv %s2893
        %v2895 = vmul.f32 %v2894, %v2718
        %v2896 = vmul.f32 %v2894, %v2719
        %v2897 = vmul.f32 %v2894, %v2720
        %2901 = vrot.lane.b32.xlu0 %v2895, 126
        %v2902 = vpop.permute.xlu0 %2901
        %2903 = vrot.lane.b32.xlu0 %v2896, 126
        %v2904 = vpop.permute.xlu0 %2903
        %2905 = vrot.lane.b32.xlu0 %v2897, 126
        %v2906 = vpop.permute.xlu0 %2905
        %v2910 = vadd.f32 %v2830, %v2902
        %v2911 = vadd.f32 %v2831, %v2904
        %v2912 = vadd.f32 %v2832, %v2906
        %v2913 = vld [vmem:[%s2717 + $0x1] sm:$0xff]
        %v2914 = vld [vmem:[%s2717 + $0x9] sm:$0xff]
        %v2915 = vld [vmem:[%s2717 + $0x11] sm:$0x3]
        %s2916 = sld [smem:[#allocation5 + $0x1e]]
        %v2917 = vstv %s2916
        %v2918 = vmul.f32 %v2917, %v2913
        %v2919 = vmul.f32 %v2917, %v2914
        %v2920 = vmul.f32 %v2917, %v2915
        %v2921 = vadd.f32 %v2850, %v2918
        %v2922 = vadd.f32 %v2851, %v2919
        %v2923 = vadd.f32 %v2852, %v2920
        %s2924 = sld [smem:[#allocation5 + $0x66]]
        %v2925 = vstv %s2924
        %v2926 = vmul.f32 %v2925, %v2913
        %v2927 = vmul.f32 %v2925, %v2914
        %v2928 = vmul.f32 %v2925, %v2915
        %v2929 = vadd.f32 %v2870, %v2926
        %v2930 = vadd.f32 %v2871, %v2927
        %v2931 = vadd.f32 %v2872, %v2928
        %s2932 = sld [smem:[#allocation5 + $0xae]]
        %v2933 = vstv %s2932
        %v2934 = vmul.f32 %v2933, %v2913
        %v2935 = vmul.f32 %v2933, %v2914
        %v2936 = vmul.f32 %v2933, %v2915
        %v2937 = vadd.f32 %v2890, %v2934
        %v2938 = vadd.f32 %v2891, %v2935
        %v2939 = vadd.f32 %v2892, %v2936
        %s2940 = sld [smem:[#allocation5 + $0xf6]]
        %v2941 = vstv %s2940
        %v2942 = vmul.f32 %v2941, %v2913
        %v2943 = vmul.f32 %v2941, %v2914
        %v2944 = vmul.f32 %v2941, %v2915
        %v2945 = vadd.f32 %v2910, %v2942
        %v2946 = vadd.f32 %v2911, %v2943
        %v2947 = vadd.f32 %v2912, %v2944
        %s2948 = sld [smem:[#allocation5 + $0x1f]]
        %v2949 = vstv %s2948
        %v2950 = vmul.f32 %v2949, %v2913
        %v2951 = vmul.f32 %v2949, %v2914
        %v2952 = vmul.f32 %v2949, %v2915
        %2956 = vrot.lane.b32.xlu0 %v2950, 127
        %v2957 = vpop.permute.xlu0 %2956
        %2958 = vrot.lane.b32.xlu0 %v2951, 127
        %v2959 = vpop.permute.xlu0 %2958
        %2960 = vrot.lane.b32.xlu0 %v2952, 127
        %v2961 = vpop.permute.xlu0 %2960
        %v2965 = vadd.f32 %v2921, %v2957
        %v2966 = vadd.f32 %v2922, %v2959
        %v2967 = vadd.f32 %v2923, %v2961
        %s2968 = sld [smem:[#allocation5 + $0x67]]
        %v2969 = vstv %s2968
        %v2970 = vmul.f32 %v2969, %v2913
        %v2971 = vmul.f32 %v2969, %v2914
        %v2972 = vmul.f32 %v2969, %v2915
        %2976 = vrot.lane.b32.xlu0 %v2970, 127
        %v2977 = vpop.permute.xlu0 %2976
        %2978 = vrot.lane.b32.xlu0 %v2971, 127
        %v2979 = vpop.permute.xlu0 %2978
        %2980 = vrot.lane.b32.xlu0 %v2972, 127
        %v2981 = vpop.permute.xlu0 %2980
        %v2985 = vadd.f32 %v2929, %v2977
        %v2986 = vadd.f32 %v2930, %v2979
        %v2987 = vadd.f32 %v2931, %v2981
        %s2988 = sld [smem:[#allocation5 + $0xaf]]
        %v2989 = vstv %s2988
        %v2990 = vmul.f32 %v2989, %v2913
        %v2991 = vmul.f32 %v2989, %v2914
        %v2992 = vmul.f32 %v2989, %v2915
        %2996 = vrot.lane.b32.xlu0 %v2990, 127
        %v2997 = vpop.permute.xlu0 %2996
        %2998 = vrot.lane.b32.xlu0 %v2991, 127
        %v2999 = vpop.permute.xlu0 %2998
        %3000 = vrot.lane.b32.xlu0 %v2992, 127
        %v3001 = vpop.permute.xlu0 %3000
        %v3005 = vadd.f32 %v2937, %v2997
        %v3006 = vadd.f32 %v2938, %v2999
        %v3007 = vadd.f32 %v2939, %v3001
        %s3008 = sld [smem:[#allocation5 + $0xf7]]
        %v3009 = vstv %s3008
        %v3010 = vmul.f32 %v3009, %v2913
        %v3011 = vmul.f32 %v3009, %v2914
        %v3012 = vmul.f32 %v3009, %v2915
        %3016 = vrot.lane.b32.xlu0 %v3010, 127
        %v3017 = vpop.permute.xlu0 %3016
        %3018 = vrot.lane.b32.xlu0 %v3011, 127
        %v3019 = vpop.permute.xlu0 %3018
        %3020 = vrot.lane.b32.xlu0 %v3012, 127
        %v3021 = vpop.permute.xlu0 %3020
        %v3025 = vadd.f32 %v2945, %v3017
        %v3026 = vadd.f32 %v2946, %v3019
        %v3027 = vadd.f32 %v2947, %v3021
        %s3028 = sld [smem:[#allocation5 + $0x20]]
        %v3029 = vstv %s3028
        %v3030 = vmul.f32 %v3029, %v2913
        %v3031 = vmul.f32 %v3029, %v2914
        %v3032 = vmul.f32 %v3029, %v2915
        %3036 = vrot.lane.b32.xlu0 %v3030, 126
        %v3037 = vpop.permute.xlu0 %3036
        %3038 = vrot.lane.b32.xlu0 %v3031, 126
        %v3039 = vpop.permute.xlu0 %3038
        %3040 = vrot.lane.b32.xlu0 %v3032, 126
        %v3041 = vpop.permute.xlu0 %3040
        %v3045 = vadd.f32 %v2965, %v3037
        %v3046 = vadd.f32 %v2966, %v3039
        %v3047 = vadd.f32 %v2967, %v3041
        %s3048 = sld [smem:[#allocation5 + $0x68]]
        %v3049 = vstv %s3048
        %v3050 = vmul.f32 %v3049, %v2913
        %v3051 = vmul.f32 %v3049, %v2914
        %v3052 = vmul.f32 %v3049, %v2915
        %3056 = vrot.lane.b32.xlu0 %v3050, 126
        %v3057 = vpop.permute.xlu0 %3056
        %3058 = vrot.lane.b32.xlu0 %v3051, 126
        %v3059 = vpop.permute.xlu0 %3058
        %3060 = vrot.lane.b32.xlu0 %v3052, 126
        %v3061 = vpop.permute.xlu0 %3060
        %v3065 = vadd.f32 %v2985, %v3057
        %v3066 = vadd.f32 %v2986, %v3059
        %v3067 = vadd.f32 %v2987, %v3061
        %s3068 = sld [smem:[#allocation5 + $0xb0]]
        %v3069 = vstv %s3068
        %v3070 = vmul.f32 %v3069, %v2913
        %v3071 = vmul.f32 %v3069, %v2914
        %v3072 = vmul.f32 %v3069, %v2915
        %3076 = vrot.lane.b32.xlu0 %v3070, 126
        %v3077 = vpop.permute.xlu0 %3076
        %3078 = vrot.lane.b32.xlu0 %v3071, 126
        %v3079 = vpop.permute.xlu0 %3078
        %3080 = vrot.lane.b32.xlu0 %v3072, 126
        %v3081 = vpop.permute.xlu0 %3080
        %v3085 = vadd.f32 %v3005, %v3077
        %v3086 = vadd.f32 %v3006, %v3079
        %v3087 = vadd.f32 %v3007, %v3081
        %s3088 = sld [smem:[#allocation5 + $0xf8]]
        %v3089 = vstv %s3088
        %v3090 = vmul.f32 %v3089, %v2913
        %v3091 = vmul.f32 %v3089, %v2914
        %v3092 = vmul.f32 %v3089, %v2915
        %3096 = vrot.lane.b32.xlu0 %v3090, 126
        %v3097 = vpop.permute.xlu0 %3096
        %3098 = vrot.lane.b32.xlu0 %v3091, 126
        %v3099 = vpop.permute.xlu0 %3098
        %3100 = vrot.lane.b32.xlu0 %v3092, 126
        %v3101 = vpop.permute.xlu0 %3100
        %v3105 = vadd.f32 %v3025, %v3097
        %v3106 = vadd.f32 %v3026, %v3099
        %v3107 = vadd.f32 %v3027, %v3101
        %v3108 = vld [vmem:[%s2717 + $0x2] sm:$0xff]
        %v3109 = vld [vmem:[%s2717 + $0xa] sm:$0xff]
        %v3110 = vld [vmem:[%s2717 + $0x12] sm:$0x3]
        %s3111 = sld [smem:[#allocation5 + $0x21]]
        %v3112 = vstv %s3111
        %v3113 = vmul.f32 %v3112, %v3108
        %v3114 = vmul.f32 %v3112, %v3109
        %v3115 = vmul.f32 %v3112, %v3110
        %v3116 = vadd.f32 %v3045, %v3113
        %v3117 = vadd.f32 %v3046, %v3114
        %v3118 = vadd.f32 %v3047, %v3115
        %s3119 = sld [smem:[#allocation5 + $0x69]]
        %v3120 = vstv %s3119
        %v3121 = vmul.f32 %v3120, %v3108
        %v3122 = vmul.f32 %v3120, %v3109
        %v3123 = vmul.f32 %v3120, %v3110
        %v3124 = vadd.f32 %v3065, %v3121
        %v3125 = vadd.f32 %v3066, %v3122
        %v3126 = vadd.f32 %v3067, %v3123
        %s3127 = sld [smem:[#allocation5 + $0xb1]]
        %v3128 = vstv %s3127
        %v3129 = vmul.f32 %v3128, %v3108
        %v3130 = vmul.f32 %v3128, %v3109
        %v3131 = vmul.f32 %v3128, %v3110
        %v3132 = vadd.f32 %v3085, %v3129
        %v3133 = vadd.f32 %v3086, %v3130
        %v3134 = vadd.f32 %v3087, %v3131
        %s3135 = sld [smem:[#allocation5 + $0xf9]]
        %v3136 = vstv %s3135
        %v3137 = vmul.f32 %v3136, %v3108
        %v3138 = vmul.f32 %v3136, %v3109
        %v3139 = vmul.f32 %v3136, %v3110
        %v3140 = vadd.f32 %v3105, %v3137
        %v3141 = vadd.f32 %v3106, %v3138
        %v3142 = vadd.f32 %v3107, %v3139
        %s3143 = sld [smem:[#allocation5 + $0x22]]
        %v3144 = vstv %s3143
        %v3145 = vmul.f32 %v3144, %v3108
        %v3146 = vmul.f32 %v3144, %v3109
        %v3147 = vmul.f32 %v3144, %v3110
        %3151 = vrot.lane.b32.xlu0 %v3145, 127
        %v3152 = vpop.permute.xlu0 %3151
        %3153 = vrot.lane.b32.xlu0 %v3146, 127
        %v3154 = vpop.permute.xlu0 %3153
        %3155 = vrot.lane.b32.xlu0 %v3147, 127
        %v3156 = vpop.permute.xlu0 %3155
        %v3160 = vadd.f32 %v3116, %v3152
        %v3161 = vadd.f32 %v3117, %v3154
        %v3162 = vadd.f32 %v3118, %v3156
        %s3163 = sld [smem:[#allocation5 + $0x6a]]
        %v3164 = vstv %s3163
        %v3165 = vmul.f32 %v3164, %v3108
        %v3166 = vmul.f32 %v3164, %v3109
        %v3167 = vmul.f32 %v3164, %v3110
        %3171 = vrot.lane.b32.xlu0 %v3165, 127
        %v3172 = vpop.permute.xlu0 %3171
        %3173 = vrot.lane.b32.xlu0 %v3166, 127
        %v3174 = vpop.permute.xlu0 %3173
        %3175 = vrot.lane.b32.xlu0 %v3167, 127
        %v3176 = vpop.permute.xlu0 %3175
        %v3180 = vadd.f32 %v3124, %v3172
        %v3181 = vadd.f32 %v3125, %v3174
        %v3182 = vadd.f32 %v3126, %v3176
        %s3183 = sld [smem:[#allocation5 + $0xb2]]
        %v3184 = vstv %s3183
        %v3185 = vmul.f32 %v3184, %v3108
        %v3186 = vmul.f32 %v3184, %v3109
        %v3187 = vmul.f32 %v3184, %v3110
        %3191 = vrot.lane.b32.xlu0 %v3185, 127
        %v3192 = vpop.permute.xlu0 %3191
        %3193 = vrot.lane.b32.xlu0 %v3186, 127
        %v3194 = vpop.permute.xlu0 %3193
        %3195 = vrot.lane.b32.xlu0 %v3187, 127
        %v3196 = vpop.permute.xlu0 %3195
        %v3200 = vadd.f32 %v3132, %v3192
        %v3201 = vadd.f32 %v3133, %v3194
        %v3202 = vadd.f32 %v3134, %v3196
        %s3203 = sld [smem:[#allocation5 + $0xfa]]
        %v3204 = vstv %s3203
        %v3205 = vmul.f32 %v3204, %v3108
        %v3206 = vmul.f32 %v3204, %v3109
        %v3207 = vmul.f32 %v3204, %v3110
        %3211 = vrot.lane.b32.xlu0 %v3205, 127
        %v3212 = vpop.permute.xlu0 %3211
        %3213 = vrot.lane.b32.xlu0 %v3206, 127
        %v3214 = vpop.permute.xlu0 %3213
        %3215 = vrot.lane.b32.xlu0 %v3207, 127
        %v3216 = vpop.permute.xlu0 %3215
        %v3220 = vadd.f32 %v3140, %v3212
        %v3221 = vadd.f32 %v3141, %v3214
        %v3222 = vadd.f32 %v3142, %v3216
        %s3223 = sld [smem:[#allocation5 + $0x23]]
        %v3224 = vstv %s3223
        %v3225 = vmul.f32 %v3224, %v3108
        %v3226 = vmul.f32 %v3224, %v3109
        %v3227 = vmul.f32 %v3224, %v3110
        %3231 = vrot.lane.b32.xlu0 %v3225, 126
        %v3232 = vpop.permute.xlu0 %3231
        %3233 = vrot.lane.b32.xlu0 %v3226, 126
        %v3234 = vpop.permute.xlu0 %3233
        %3235 = vrot.lane.b32.xlu0 %v3227, 126
        %v3236 = vpop.permute.xlu0 %3235
        %v3240 = vadd.f32 %v3160, %v3232
        %v3241 = vadd.f32 %v3161, %v3234
        %v3242 = vadd.f32 %v3162, %v3236
        %s3243 = sld [smem:[#allocation5 + $0x6b]]
        %v3244 = vstv %s3243
        %v3245 = vmul.f32 %v3244, %v3108
        %v3246 = vmul.f32 %v3244, %v3109
        %v3247 = vmul.f32 %v3244, %v3110
        %3251 = vrot.lane.b32.xlu0 %v3245, 126
        %v3252 = vpop.permute.xlu0 %3251
        %3253 = vrot.lane.b32.xlu0 %v3246, 126
        %v3254 = vpop.permute.xlu0 %3253
        %3255 = vrot.lane.b32.xlu0 %v3247, 126
        %v3256 = vpop.permute.xlu0 %3255
        %v3260 = vadd.f32 %v3180, %v3252
        %v3261 = vadd.f32 %v3181, %v3254
        %v3262 = vadd.f32 %v3182, %v3256
        %s3263 = sld [smem:[#allocation5 + $0xb3]]
        %v3264 = vstv %s3263
        %v3265 = vmul.f32 %v3264, %v3108
        %v3266 = vmul.f32 %v3264, %v3109
        %v3267 = vmul.f32 %v3264, %v3110
        %3271 = vrot.lane.b32.xlu0 %v3265, 126
        %v3272 = vpop.permute.xlu0 %3271
        %3273 = vrot.lane.b32.xlu0 %v3266, 126
        %v3274 = vpop.permute.xlu0 %3273
        %3275 = vrot.lane.b32.xlu0 %v3267, 126
        %v3276 = vpop.permute.xlu0 %3275
        %v3280 = vadd.f32 %v3200, %v3272
        %v3281 = vadd.f32 %v3201, %v3274
        %v3282 = vadd.f32 %v3202, %v3276
        %s3283 = sld [smem:[#allocation5 + $0xfb]]
        %v3284 = vstv %s3283
        %v3285 = vmul.f32 %v3284, %v3108
        %v3286 = vmul.f32 %v3284, %v3109
        %v3287 = vmul.f32 %v3284, %v3110
        %3291 = vrot.lane.b32.xlu0 %v3285, 126
        %v3292 = vpop.permute.xlu0 %3291
        %3293 = vrot.lane.b32.xlu0 %v3286, 126
        %v3294 = vpop.permute.xlu0 %3293
        %3295 = vrot.lane.b32.xlu0 %v3287, 126
        %v3296 = vpop.permute.xlu0 %3295
        %v3300 = vadd.f32 %v3220, %v3292
        %v3301 = vadd.f32 %v3221, %v3294
        %v3302 = vadd.f32 %v3222, %v3296
        %v3303 = vld [vmem:[#allocation2] sm:$0xff]
        %v3304 = vld [vmem:[#allocation2 + $0x8] sm:$0xff]
        %v3305 = vld [vmem:[#allocation2 + $0x10] sm:$0x3]
        %s3306 = sld [smem:[#allocation5 + $0x24]]
        %v3307 = vstv %s3306
        %v3308 = vmul.f32 %v3307, %v3303
        %v3309 = vmul.f32 %v3307, %v3304
        %v3310 = vmul.f32 %v3307, %v3305
        %v3311 = vadd.f32 %v3240, %v3308
        %v3312 = vadd.f32 %v3241, %v3309
        %v3313 = vadd.f32 %v3242, %v3310
        %s3314 = sld [smem:[#allocation5 + $0x6c]]
        %v3315 = vstv %s3314
        %v3316 = vmul.f32 %v3315, %v3303
        %v3317 = vmul.f32 %v3315, %v3304
        %v3318 = vmul.f32 %v3315, %v3305
        %v3319 = vadd.f32 %v3260, %v3316
        %v3320 = vadd.f32 %v3261, %v3317
        %v3321 = vadd.f32 %v3262, %v3318
        %s3322 = sld [smem:[#allocation5 + $0xb4]]
        %v3323 = vstv %s3322
        %v3324 = vmul.f32 %v3323, %v3303
        %v3325 = vmul.f32 %v3323, %v3304
        %v3326 = vmul.f32 %v3323, %v3305
        %v3327 = vadd.f32 %v3280, %v3324
        %v3328 = vadd.f32 %v3281, %v3325
        %v3329 = vadd.f32 %v3282, %v3326
        %s3330 = sld [smem:[#allocation5 + $0xfc]]
        %v3331 = vstv %s3330
        %v3332 = vmul.f32 %v3331, %v3303
        %v3333 = vmul.f32 %v3331, %v3304
        %v3334 = vmul.f32 %v3331, %v3305
        %v3335 = vadd.f32 %v3300, %v3332
        %v3336 = vadd.f32 %v3301, %v3333
        %v3337 = vadd.f32 %v3302, %v3334
        %s3338 = sld [smem:[#allocation5 + $0x25]]
        %v3339 = vstv %s3338
        %v3340 = vmul.f32 %v3339, %v3303
        %v3341 = vmul.f32 %v3339, %v3304
        %v3342 = vmul.f32 %v3339, %v3305
        %3346 = vrot.lane.b32.xlu0 %v3340, 127
        %v3347 = vpop.permute.xlu0 %3346
        %3348 = vrot.lane.b32.xlu0 %v3341, 127
        %v3349 = vpop.permute.xlu0 %3348
        %3350 = vrot.lane.b32.xlu0 %v3342, 127
        %v3351 = vpop.permute.xlu0 %3350
        %v3355 = vadd.f32 %v3311, %v3347
        %v3356 = vadd.f32 %v3312, %v3349
        %v3357 = vadd.f32 %v3313, %v3351
        %s3358 = sld [smem:[#allocation5 + $0x6d]]
        %v3359 = vstv %s3358
        %v3360 = vmul.f32 %v3359, %v3303
        %v3361 = vmul.f32 %v3359, %v3304
        %v3362 = vmul.f32 %v3359, %v3305
        %3366 = vrot.lane.b32.xlu0 %v3360, 127
        %v3367 = vpop.permute.xlu0 %3366
        %3368 = vrot.lane.b32.xlu0 %v3361, 127
        %v3369 = vpop.permute.xlu0 %3368
        %3370 = vrot.lane.b32.xlu0 %v3362, 127
        %v3371 = vpop.permute.xlu0 %3370
        %v3375 = vadd.f32 %v3319, %v3367
        %v3376 = vadd.f32 %v3320, %v3369
        %v3377 = vadd.f32 %v3321, %v3371
        %s3378 = sld [smem:[#allocation5 + $0xb5]]
        %v3379 = vstv %s3378
        %v3380 = vmul.f32 %v3379, %v3303
        %v3381 = vmul.f32 %v3379, %v3304
        %v3382 = vmul.f32 %v3379, %v3305
        %3386 = vrot.lane.b32.xlu0 %v3380, 127
        %v3387 = vpop.permute.xlu0 %3386
        %3388 = vrot.lane.b32.xlu0 %v3381, 127
        %v3389 = vpop.permute.xlu0 %3388
        %3390 = vrot.lane.b32.xlu0 %v3382, 127
        %v3391 = vpop.permute.xlu0 %3390
        %v3395 = vadd.f32 %v3327, %v3387
        %v3396 = vadd.f32 %v3328, %v3389
        %v3397 = vadd.f32 %v3329, %v3391
        %s3398 = sld [smem:[#allocation5 + $0xfd]]
        %v3399 = vstv %s3398
        %v3400 = vmul.f32 %v3399, %v3303
        %v3401 = vmul.f32 %v3399, %v3304
        %v3402 = vmul.f32 %v3399, %v3305
        %3406 = vrot.lane.b32.xlu0 %v3400, 127
        %v3407 = vpop.permute.xlu0 %3406
        %3408 = vrot.lane.b32.xlu0 %v3401, 127
        %v3409 = vpop.permute.xlu0 %3408
        %3410 = vrot.lane.b32.xlu0 %v3402, 127
        %v3411 = vpop.permute.xlu0 %3410
        %v3415 = vadd.f32 %v3335, %v3407
        %v3416 = vadd.f32 %v3336, %v3409
        %v3417 = vadd.f32 %v3337, %v3411
        %s3418 = sld [smem:[#allocation5 + $0x26]]
        %v3419 = vstv %s3418
        %v3420 = vmul.f32 %v3419, %v3303
        %v3421 = vmul.f32 %v3419, %v3304
        %v3422 = vmul.f32 %v3419, %v3305
        %3426 = vrot.lane.b32.xlu0 %v3420, 126
        %v3427 = vpop.permute.xlu0 %3426
        %3428 = vrot.lane.b32.xlu0 %v3421, 126
        %v3429 = vpop.permute.xlu0 %3428
        %3430 = vrot.lane.b32.xlu0 %v3422, 126
        %v3431 = vpop.permute.xlu0 %3430
        %v3435 = vadd.f32 %v3355, %v3427
        %v3436 = vadd.f32 %v3356, %v3429
        %v3437 = vadd.f32 %v3357, %v3431
        %s3438 = sld [smem:[#allocation5 + $0x6e]]
        %v3439 = vstv %s3438
        %v3440 = vmul.f32 %v3439, %v3303
        %v3441 = vmul.f32 %v3439, %v3304
        %v3442 = vmul.f32 %v3439, %v3305
        %3446 = vrot.lane.b32.xlu0 %v3440, 126
        %v3447 = vpop.permute.xlu0 %3446
        %3448 = vrot.lane.b32.xlu0 %v3441, 126
        %v3449 = vpop.permute.xlu0 %3448
        %3450 = vrot.lane.b32.xlu0 %v3442, 126
        %v3451 = vpop.permute.xlu0 %3450
        %v3455 = vadd.f32 %v3375, %v3447
        %v3456 = vadd.f32 %v3376, %v3449
        %v3457 = vadd.f32 %v3377, %v3451
        %s3458 = sld [smem:[#allocation5 + $0xb6]]
        %v3459 = vstv %s3458
        %v3460 = vmul.f32 %v3459, %v3303
        %v3461 = vmul.f32 %v3459, %v3304
        %v3462 = vmul.f32 %v3459, %v3305
        %3466 = vrot.lane.b32.xlu0 %v3460, 126
        %v3467 = vpop.permute.xlu0 %3466
        %3468 = vrot.lane.b32.xlu0 %v3461, 126
        %v3469 = vpop.permute.xlu0 %3468
        %3470 = vrot.lane.b32.xlu0 %v3462, 126
        %v3471 = vpop.permute.xlu0 %3470
        %v3475 = vadd.f32 %v3395, %v3467
        %v3476 = vadd.f32 %v3396, %v3469
        %v3477 = vadd.f32 %v3397, %v3471
        %s3478 = sld [smem:[#allocation5 + $0xfe]]
        %v3479 = vstv %s3478
        %v3480 = vmul.f32 %v3479, %v3303
        %v3481 = vmul.f32 %v3479, %v3304
        %v3482 = vmul.f32 %v3479, %v3305
        %3486 = vrot.lane.b32.xlu0 %v3480, 126
        %v3487 = vpop.permute.xlu0 %3486
        %3488 = vrot.lane.b32.xlu0 %v3481, 126
        %v3489 = vpop.permute.xlu0 %3488
        %3490 = vrot.lane.b32.xlu0 %v3482, 126
        %v3491 = vpop.permute.xlu0 %3490
        %v3495 = vadd.f32 %v3415, %v3487
        %v3496 = vadd.f32 %v3416, %v3489
        %v3497 = vadd.f32 %v3417, %v3491
        %v3498 = vld [vmem:[#allocation2 + $0x1] sm:$0xff]
        %v3499 = vld [vmem:[#allocation2 + $0x9] sm:$0xff]
        %v3500 = vld [vmem:[#allocation2 + $0x11] sm:$0x3]
        %s3501 = sld [smem:[#allocation5 + $0x27]]
        %v3502 = vstv %s3501
        %v3503 = vmul.f32 %v3502, %v3498
        %v3504 = vmul.f32 %v3502, %v3499
        %v3505 = vmul.f32 %v3502, %v3500
        %v3506 = vadd.f32 %v3435, %v3503
        %v3507 = vadd.f32 %v3436, %v3504
        %v3508 = vadd.f32 %v3437, %v3505
        %s3509 = sld [smem:[#allocation5 + $0x6f]]
        %v3510 = vstv %s3509
        %v3511 = vmul.f32 %v3510, %v3498
        %v3512 = vmul.f32 %v3510, %v3499
        %v3513 = vmul.f32 %v3510, %v3500
        %v3514 = vadd.f32 %v3455, %v3511
        %v3515 = vadd.f32 %v3456, %v3512
        %v3516 = vadd.f32 %v3457, %v3513
        %s3517 = sld [smem:[#allocation5 + $0xb7]]
        %v3518 = vstv %s3517
        %v3519 = vmul.f32 %v3518, %v3498
        %v3520 = vmul.f32 %v3518, %v3499
        %v3521 = vmul.f32 %v3518, %v3500
        %v3522 = vadd.f32 %v3475, %v3519
        %v3523 = vadd.f32 %v3476, %v3520
        %v3524 = vadd.f32 %v3477, %v3521
        %s3525 = sld [smem:[#allocation5 + $0xff]]
        %v3526 = vstv %s3525
        %v3527 = vmul.f32 %v3526, %v3498
        %v3528 = vmul.f32 %v3526, %v3499
        %v3529 = vmul.f32 %v3526, %v3500
        %v3530 = vadd.f32 %v3495, %v3527
        %v3531 = vadd.f32 %v3496, %v3528
        %v3532 = vadd.f32 %v3497, %v3529
        %s3533 = sld [smem:[#allocation5 + $0x28]]
        %v3534 = vstv %s3533
        %v3535 = vmul.f32 %v3534, %v3498
        %v3536 = vmul.f32 %v3534, %v3499
        %v3537 = vmul.f32 %v3534, %v3500
        %3541 = vrot.lane.b32.xlu0 %v3535, 127
        %v3542 = vpop.permute.xlu0 %3541
        %3543 = vrot.lane.b32.xlu0 %v3536, 127
        %v3544 = vpop.permute.xlu0 %3543
        %3545 = vrot.lane.b32.xlu0 %v3537, 127
        %v3546 = vpop.permute.xlu0 %3545
        %v3550 = vadd.f32 %v3506, %v3542
        %v3551 = vadd.f32 %v3507, %v3544
        %v3552 = vadd.f32 %v3508, %v3546
        %s3553 = sld [smem:[#allocation5 + $0x70]]
        %v3554 = vstv %s3553
        %v3555 = vmul.f32 %v3554, %v3498
        %v3556 = vmul.f32 %v3554, %v3499
        %v3557 = vmul.f32 %v3554, %v3500
        %3561 = vrot.lane.b32.xlu0 %v3555, 127
        %v3562 = vpop.permute.xlu0 %3561
        %3563 = vrot.lane.b32.xlu0 %v3556, 127
        %v3564 = vpop.permute.xlu0 %3563
        %3565 = vrot.lane.b32.xlu0 %v3557, 127
        %v3566 = vpop.permute.xlu0 %3565
        %v3570 = vadd.f32 %v3514, %v3562
        %v3571 = vadd.f32 %v3515, %v3564
        %v3572 = vadd.f32 %v3516, %v3566
        %s3573 = sld [smem:[#allocation5 + $0xb8]]
        %v3574 = vstv %s3573
        %v3575 = vmul.f32 %v3574, %v3498
        %v3576 = vmul.f32 %v3574, %v3499
        %v3577 = vmul.f32 %v3574, %v3500
        %3581 = vrot.lane.b32.xlu0 %v3575, 127
        %v3582 = vpop.permute.xlu0 %3581
        %3583 = vrot.lane.b32.xlu0 %v3576, 127
        %v3584 = vpop.permute.xlu0 %3583
        %3585 = vrot.lane.b32.xlu0 %v3577, 127
        %v3586 = vpop.permute.xlu0 %3585
        %v3590 = vadd.f32 %v3522, %v3582
        %v3591 = vadd.f32 %v3523, %v3584
        %v3592 = vadd.f32 %v3524, %v3586
        %s3593 = sld [smem:[#allocation5 + $0x100]]
        %v3594 = vstv %s3593
        %v3595 = vmul.f32 %v3594, %v3498
        %v3596 = vmul.f32 %v3594, %v3499
        %v3597 = vmul.f32 %v3594, %v3500
        %3601 = vrot.lane.b32.xlu0 %v3595, 127
        %v3602 = vpop.permute.xlu0 %3601
        %3603 = vrot.lane.b32.xlu0 %v3596, 127
        %v3604 = vpop.permute.xlu0 %3603
        %3605 = vrot.lane.b32.xlu0 %v3597, 127
        %v3606 = vpop.permute.xlu0 %3605
        %v3610 = vadd.f32 %v3530, %v3602
        %v3611 = vadd.f32 %v3531, %v3604
        %v3612 = vadd.f32 %v3532, %v3606
        %s3613 = sld [smem:[#allocation5 + $0x29]]
        %v3614 = vstv %s3613
        %v3615 = vmul.f32 %v3614, %v3498
        %v3616 = vmul.f32 %v3614, %v3499
        %v3617 = vmul.f32 %v3614, %v3500
        %3621 = vrot.lane.b32.xlu0 %v3615, 126
        %v3622 = vpop.permute.xlu0 %3621
        %3623 = vrot.lane.b32.xlu0 %v3616, 126
        %v3624 = vpop.permute.xlu0 %3623
        %3625 = vrot.lane.b32.xlu0 %v3617, 126
        %v3626 = vpop.permute.xlu0 %3625
        %v3630 = vadd.f32 %v3550, %v3622
        %v3631 = vadd.f32 %v3551, %v3624
        %v3632 = vadd.f32 %v3552, %v3626
        %s3633 = sld [smem:[#allocation5 + $0x71]]
        %v3634 = vstv %s3633
        %v3635 = vmul.f32 %v3634, %v3498
        %v3636 = vmul.f32 %v3634, %v3499
        %v3637 = vmul.f32 %v3634, %v3500
        %3641 = vrot.lane.b32.xlu0 %v3635, 126
        %v3642 = vpop.permute.xlu0 %3641
        %3643 = vrot.lane.b32.xlu0 %v3636, 126
        %v3644 = vpop.permute.xlu0 %3643
        %3645 = vrot.lane.b32.xlu0 %v3637, 126
        %v3646 = vpop.permute.xlu0 %3645
        %v3650 = vadd.f32 %v3570, %v3642
        %v3651 = vadd.f32 %v3571, %v3644
        %v3652 = vadd.f32 %v3572, %v3646
        %s3653 = sld [smem:[#allocation5 + $0xb9]]
        %v3654 = vstv %s3653
        %v3655 = vmul.f32 %v3654, %v3498
        %v3656 = vmul.f32 %v3654, %v3499
        %v3657 = vmul.f32 %v3654, %v3500
        %3661 = vrot.lane.b32.xlu0 %v3655, 126
        %v3662 = vpop.permute.xlu0 %3661
        %3663 = vrot.lane.b32.xlu0 %v3656, 126
        %v3664 = vpop.permute.xlu0 %3663
        %3665 = vrot.lane.b32.xlu0 %v3657, 126
        %v3666 = vpop.permute.xlu0 %3665
        %v3670 = vadd.f32 %v3590, %v3662
        %v3671 = vadd.f32 %v3591, %v3664
        %v3672 = vadd.f32 %v3592, %v3666
        %s3673 = sld [smem:[#allocation5 + $0x101]]
        %v3674 = vstv %s3673
        %v3675 = vmul.f32 %v3674, %v3498
        %v3676 = vmul.f32 %v3674, %v3499
        %v3677 = vmul.f32 %v3674, %v3500
        %3681 = vrot.lane.b32.xlu0 %v3675, 126
        %v3682 = vpop.permute.xlu0 %3681
        %3683 = vrot.lane.b32.xlu0 %v3676, 126
        %v3684 = vpop.permute.xlu0 %3683
        %3685 = vrot.lane.b32.xlu0 %v3677, 126
        %v3686 = vpop.permute.xlu0 %3685
        %v3690 = vadd.f32 %v3610, %v3682
        %v3691 = vadd.f32 %v3611, %v3684
        %v3692 = vadd.f32 %v3612, %v3686
        %v3693 = vld [vmem:[#allocation2 + $0x2] sm:$0xff]
        %v3694 = vld [vmem:[#allocation2 + $0xa] sm:$0xff]
        %v3695 = vld [vmem:[#allocation2 + $0x12] sm:$0x3]
        %s3696 = sld [smem:[#allocation5 + $0x2a]]
        %v3697 = vstv %s3696
        %v3698 = vmul.f32 %v3697, %v3693
        %v3699 = vmul.f32 %v3697, %v3694
        %v3700 = vmul.f32 %v3697, %v3695
        %v3701 = vadd.f32 %v3630, %v3698
        %v3702 = vadd.f32 %v3631, %v3699
        %v3703 = vadd.f32 %v3632, %v3700
        %s3704 = sld [smem:[#allocation5 + $0x72]]
        %v3705 = vstv %s3704
        %v3706 = vmul.f32 %v3705, %v3693
        %v3707 = vmul.f32 %v3705, %v3694
        %v3708 = vmul.f32 %v3705, %v3695
        %v3709 = vadd.f32 %v3650, %v3706
        %v3710 = vadd.f32 %v3651, %v3707
        %v3711 = vadd.f32 %v3652, %v3708
        %s3712 = sld [smem:[#allocation5 + $0xba]]
        %v3713 = vstv %s3712
        %v3714 = vmul.f32 %v3713, %v3693
        %v3715 = vmul.f32 %v3713, %v3694
        %v3716 = vmul.f32 %v3713, %v3695
        %v3717 = vadd.f32 %v3670, %v3714
        %v3718 = vadd.f32 %v3671, %v3715
        %v3719 = vadd.f32 %v3672, %v3716
        %s3720 = sld [smem:[#allocation5 + $0x102]]
        %v3721 = vstv %s3720
        %v3722 = vmul.f32 %v3721, %v3693
        %v3723 = vmul.f32 %v3721, %v3694
        %v3724 = vmul.f32 %v3721, %v3695
        %v3725 = vadd.f32 %v3690, %v3722
        %v3726 = vadd.f32 %v3691, %v3723
        %v3727 = vadd.f32 %v3692, %v3724
        %s3728 = sld [smem:[#allocation5 + $0x2b]]
        %v3729 = vstv %s3728
        %v3730 = vmul.f32 %v3729, %v3693
        %v3731 = vmul.f32 %v3729, %v3694
        %v3732 = vmul.f32 %v3729, %v3695
        %3736 = vrot.lane.b32.xlu0 %v3730, 127
        %v3737 = vpop.permute.xlu0 %3736
        %3738 = vrot.lane.b32.xlu0 %v3731, 127
        %v3739 = vpop.permute.xlu0 %3738
        %3740 = vrot.lane.b32.xlu0 %v3732, 127
        %v3741 = vpop.permute.xlu0 %3740
        %v3745 = vadd.f32 %v3701, %v3737
        %v3746 = vadd.f32 %v3702, %v3739
        %v3747 = vadd.f32 %v3703, %v3741
        %s3748 = sld [smem:[#allocation5 + $0x73]]
        %v3749 = vstv %s3748
        %v3750 = vmul.f32 %v3749, %v3693
        %v3751 = vmul.f32 %v3749, %v3694
        %v3752 = vmul.f32 %v3749, %v3695
        %3756 = vrot.lane.b32.xlu0 %v3750, 127
        %v3757 = vpop.permute.xlu0 %3756
        %3758 = vrot.lane.b32.xlu0 %v3751, 127
        %v3759 = vpop.permute.xlu0 %3758
        %3760 = vrot.lane.b32.xlu0 %v3752, 127
        %v3761 = vpop.permute.xlu0 %3760
        %v3765 = vadd.f32 %v3709, %v3757
        %v3766 = vadd.f32 %v3710, %v3759
        %v3767 = vadd.f32 %v3711, %v3761
        %s3768 = sld [smem:[#allocation5 + $0xbb]]
        %v3769 = vstv %s3768
        %v3770 = vmul.f32 %v3769, %v3693
        %v3771 = vmul.f32 %v3769, %v3694
        %v3772 = vmul.f32 %v3769, %v3695
        %3776 = vrot.lane.b32.xlu0 %v3770, 127
        %v3777 = vpop.permute.xlu0 %3776
        %3778 = vrot.lane.b32.xlu0 %v3771, 127
        %v3779 = vpop.permute.xlu0 %3778
        %3780 = vrot.lane.b32.xlu0 %v3772, 127
        %v3781 = vpop.permute.xlu0 %3780
        %v3785 = vadd.f32 %v3717, %v3777
        %v3786 = vadd.f32 %v3718, %v3779
        %v3787 = vadd.f32 %v3719, %v3781
        %s3788 = sld [smem:[#allocation5 + $0x103]]
        %v3789 = vstv %s3788
        %v3790 = vmul.f32 %v3789, %v3693
        %v3791 = vmul.f32 %v3789, %v3694
        %v3792 = vmul.f32 %v3789, %v3695
        %3796 = vrot.lane.b32.xlu0 %v3790, 127
        %v3797 = vpop.permute.xlu0 %3796
        %3798 = vrot.lane.b32.xlu0 %v3791, 127
        %v3799 = vpop.permute.xlu0 %3798
        %3800 = vrot.lane.b32.xlu0 %v3792, 127
        %v3801 = vpop.permute.xlu0 %3800
        %v3805 = vadd.f32 %v3725, %v3797
        %v3806 = vadd.f32 %v3726, %v3799
        %v3807 = vadd.f32 %v3727, %v3801
        %s3808 = sld [smem:[#allocation5 + $0x2c]]
        %v3809 = vstv %s3808
        %v3810 = vmul.f32 %v3809, %v3693
        %v3811 = vmul.f32 %v3809, %v3694
        %v3812 = vmul.f32 %v3809, %v3695
        %3816 = vrot.lane.b32.xlu0 %v3810, 126
        %v3817 = vpop.permute.xlu0 %3816
        %3818 = vrot.lane.b32.xlu0 %v3811, 126
        %v3819 = vpop.permute.xlu0 %3818
        %3820 = vrot.lane.b32.xlu0 %v3812, 126
        %v3821 = vpop.permute.xlu0 %3820
        %v3825 = vadd.f32 %v3745, %v3817
        %v3826 = vadd.f32 %v3746, %v3819
        %v3827 = vadd.f32 %v3747, %v3821
        %s3828 = sld [smem:[#allocation5 + $0x74]]
        %v3829 = vstv %s3828
        %v3830 = vmul.f32 %v3829, %v3693
        %v3831 = vmul.f32 %v3829, %v3694
        %v3832 = vmul.f32 %v3829, %v3695
        %3836 = vrot.lane.b32.xlu0 %v3830, 126
        %v3837 = vpop.permute.xlu0 %3836
        %3838 = vrot.lane.b32.xlu0 %v3831, 126
        %v3839 = vpop.permute.xlu0 %3838
        %3840 = vrot.lane.b32.xlu0 %v3832, 126
        %v3841 = vpop.permute.xlu0 %3840
        %v3845 = vadd.f32 %v3765, %v3837
        %v3846 = vadd.f32 %v3766, %v3839
        %v3847 = vadd.f32 %v3767, %v3841
        %s3848 = sld [smem:[#allocation5 + $0xbc]]
        %v3849 = vstv %s3848
        %v3850 = vmul.f32 %v3849, %v3693
        %v3851 = vmul.f32 %v3849, %v3694
        %v3852 = vmul.f32 %v3849, %v3695
        %3856 = vrot.lane.b32.xlu0 %v3850, 126
        %v3857 = vpop.permute.xlu0 %3856
        %3858 = vrot.lane.b32.xlu0 %v3851, 126
        %v3859 = vpop.permute.xlu0 %3858
        %3860 = vrot.lane.b32.xlu0 %v3852, 126
        %v3861 = vpop.permute.xlu0 %3860
        %v3865 = vadd.f32 %v3785, %v3857
        %v3866 = vadd.f32 %v3786, %v3859
        %v3867 = vadd.f32 %v3787, %v3861
        %s3868 = sld [smem:[#allocation5 + $0x104]]
        %v3869 = vstv %s3868
        %v3870 = vmul.f32 %v3869, %v3693
        %v3871 = vmul.f32 %v3869, %v3694
        %v3872 = vmul.f32 %v3869, %v3695
        %3876 = vrot.lane.b32.xlu0 %v3870, 126
        %v3877 = vpop.permute.xlu0 %3876
        %3878 = vrot.lane.b32.xlu0 %v3871, 126
        %v3879 = vpop.permute.xlu0 %3878
        %3880 = vrot.lane.b32.xlu0 %v3872, 126
        %v3881 = vpop.permute.xlu0 %3880
        %v3885 = vadd.f32 %v3805, %v3877
        %v3886 = vadd.f32 %v3806, %v3879
        %v3887 = vadd.f32 %v3807, %v3881
        %v3888 = vld [vmem:[%s583] sm:$0xff]
        %v3889 = vld [vmem:[%s583 + $0x8] sm:$0xff]
        %v3890 = vld [vmem:[%s583 + $0x10] sm:$0x3]
        %s3891 = sld [smem:[#allocation5 + $0x2d]]
        %v3892 = vstv %s3891
        %v3893 = vmul.f32 %v3892, %v3888
        %v3894 = vmul.f32 %v3892, %v3889
        %v3895 = vmul.f32 %v3892, %v3890
        %v3896 = vadd.f32 %v3825, %v3893
        %v3897 = vadd.f32 %v3826, %v3894
        %v3898 = vadd.f32 %v3827, %v3895
        %s3899 = sld [smem:[#allocation5 + $0x75]]
        %v3900 = vstv %s3899
        %v3901 = vmul.f32 %v3900, %v3888
        %v3902 = vmul.f32 %v3900, %v3889
        %v3903 = vmul.f32 %v3900, %v3890
        %v3904 = vadd.f32 %v3845, %v3901
        %v3905 = vadd.f32 %v3846, %v3902
        %v3906 = vadd.f32 %v3847, %v3903
        %s3907 = sld [smem:[#allocation5 + $0xbd]]
        %v3908 = vstv %s3907
        %v3909 = vmul.f32 %v3908, %v3888
        %v3910 = vmul.f32 %v3908, %v3889
        %v3911 = vmul.f32 %v3908, %v3890
        %v3912 = vadd.f32 %v3865, %v3909
        %v3913 = vadd.f32 %v3866, %v3910
        %v3914 = vadd.f32 %v3867, %v3911
        %s3915 = sld [smem:[#allocation5 + $0x105]]
        %v3916 = vstv %s3915
        %v3917 = vmul.f32 %v3916, %v3888
        %v3918 = vmul.f32 %v3916, %v3889
        %v3919 = vmul.f32 %v3916, %v3890
        %v3920 = vadd.f32 %v3885, %v3917
        %v3921 = vadd.f32 %v3886, %v3918
        %v3922 = vadd.f32 %v3887, %v3919
        %s3923 = sld [smem:[#allocation5 + $0x2e]]
        %v3924 = vstv %s3923
        %v3925 = vmul.f32 %v3924, %v3888
        %v3926 = vmul.f32 %v3924, %v3889
        %v3927 = vmul.f32 %v3924, %v3890
        %3931 = vrot.lane.b32.xlu0 %v3925, 127
        %v3932 = vpop.permute.xlu0 %3931
        %3933 = vrot.lane.b32.xlu0 %v3926, 127
        %v3934 = vpop.permute.xlu0 %3933
        %3935 = vrot.lane.b32.xlu0 %v3927, 127
        %v3936 = vpop.permute.xlu0 %3935
        %v3940 = vadd.f32 %v3896, %v3932
        %v3941 = vadd.f32 %v3897, %v3934
        %v3942 = vadd.f32 %v3898, %v3936
        %s3943 = sld [smem:[#allocation5 + $0x76]]
        %v3944 = vstv %s3943
        %v3945 = vmul.f32 %v3944, %v3888
        %v3946 = vmul.f32 %v3944, %v3889
        %v3947 = vmul.f32 %v3944, %v3890
        %3951 = vrot.lane.b32.xlu0 %v3945, 127
        %v3952 = vpop.permute.xlu0 %3951
        %3953 = vrot.lane.b32.xlu0 %v3946, 127
        %v3954 = vpop.permute.xlu0 %3953
        %3955 = vrot.lane.b32.xlu0 %v3947, 127
        %v3956 = vpop.permute.xlu0 %3955
        %v3960 = vadd.f32 %v3904, %v3952
        %v3961 = vadd.f32 %v3905, %v3954
        %v3962 = vadd.f32 %v3906, %v3956
        %s3963 = sld [smem:[#allocation5 + $0xbe]]
        %v3964 = vstv %s3963
        %v3965 = vmul.f32 %v3964, %v3888
        %v3966 = vmul.f32 %v3964, %v3889
        %v3967 = vmul.f32 %v3964, %v3890
        %3971 = vrot.lane.b32.xlu0 %v3965, 127
        %v3972 = vpop.permute.xlu0 %3971
        %3973 = vrot.lane.b32.xlu0 %v3966, 127
        %v3974 = vpop.permute.xlu0 %3973
        %3975 = vrot.lane.b32.xlu0 %v3967, 127
        %v3976 = vpop.permute.xlu0 %3975
        %v3980 = vadd.f32 %v3912, %v3972
        %v3981 = vadd.f32 %v3913, %v3974
        %v3982 = vadd.f32 %v3914, %v3976
        %s3983 = sld [smem:[#allocation5 + $0x106]]
        %v3984 = vstv %s3983
        %v3985 = vmul.f32 %v3984, %v3888
        %v3986 = vmul.f32 %v3984, %v3889
        %v3987 = vmul.f32 %v3984, %v3890
        %3991 = vrot.lane.b32.xlu0 %v3985, 127
        %v3992 = vpop.permute.xlu0 %3991
        %3993 = vrot.lane.b32.xlu0 %v3986, 127
        %v3994 = vpop.permute.xlu0 %3993
        %3995 = vrot.lane.b32.xlu0 %v3987, 127
        %v3996 = vpop.permute.xlu0 %3995
        %v4000 = vadd.f32 %v3920, %v3992
        %v4001 = vadd.f32 %v3921, %v3994
        %v4002 = vadd.f32 %v3922, %v3996
        %s4003 = sld [smem:[#allocation5 + $0x2f]]
        %v4004 = vstv %s4003
        %v4005 = vmul.f32 %v4004, %v3888
        %v4006 = vmul.f32 %v4004, %v3889
        %v4007 = vmul.f32 %v4004, %v3890
        %4011 = vrot.lane.b32.xlu0 %v4005, 126
        %v4012 = vpop.permute.xlu0 %4011
        %4013 = vrot.lane.b32.xlu0 %v4006, 126
        %v4014 = vpop.permute.xlu0 %4013
        %4015 = vrot.lane.b32.xlu0 %v4007, 126
        %v4016 = vpop.permute.xlu0 %4015
        %v4020 = vadd.f32 %v3940, %v4012
        %v4021 = vadd.f32 %v3941, %v4014
        %v4022 = vadd.f32 %v3942, %v4016
        %s4023 = sld [smem:[#allocation5 + $0x77]]
        %v4024 = vstv %s4023
        %v4025 = vmul.f32 %v4024, %v3888
        %v4026 = vmul.f32 %v4024, %v3889
        %v4027 = vmul.f32 %v4024, %v3890
        %4031 = vrot.lane.b32.xlu0 %v4025, 126
        %v4032 = vpop.permute.xlu0 %4031
        %4033 = vrot.lane.b32.xlu0 %v4026, 126
        %v4034 = vpop.permute.xlu0 %4033
        %4035 = vrot.lane.b32.xlu0 %v4027, 126
        %v4036 = vpop.permute.xlu0 %4035
        %v4040 = vadd.f32 %v3960, %v4032
        %v4041 = vadd.f32 %v3961, %v4034
        %v4042 = vadd.f32 %v3962, %v4036
        %s4043 = sld [smem:[#allocation5 + $0xbf]]
        %v4044 = vstv %s4043
        %v4045 = vmul.f32 %v4044, %v3888
        %v4046 = vmul.f32 %v4044, %v3889
        %v4047 = vmul.f32 %v4044, %v3890
        %4051 = vrot.lane.b32.xlu0 %v4045, 126
        %v4052 = vpop.permute.xlu0 %4051
        %4053 = vrot.lane.b32.xlu0 %v4046, 126
        %v4054 = vpop.permute.xlu0 %4053
        %4055 = vrot.lane.b32.xlu0 %v4047, 126
        %v4056 = vpop.permute.xlu0 %4055
        %v4060 = vadd.f32 %v3980, %v4052
        %v4061 = vadd.f32 %v3981, %v4054
        %v4062 = vadd.f32 %v3982, %v4056
        %s4063 = sld [smem:[#allocation5 + $0x107]]
        %v4064 = vstv %s4063
        %v4065 = vmul.f32 %v4064, %v3888
        %v4066 = vmul.f32 %v4064, %v3889
        %v4067 = vmul.f32 %v4064, %v3890
        %4071 = vrot.lane.b32.xlu0 %v4065, 126
        %v4072 = vpop.permute.xlu0 %4071
        %4073 = vrot.lane.b32.xlu0 %v4066, 126
        %v4074 = vpop.permute.xlu0 %4073
        %4075 = vrot.lane.b32.xlu0 %v4067, 126
        %v4076 = vpop.permute.xlu0 %4075
        %v4080 = vadd.f32 %v4000, %v4072
        %v4081 = vadd.f32 %v4001, %v4074
        %v4082 = vadd.f32 %v4002, %v4076
        %v4083 = vld [vmem:[%s583 + $0x1] sm:$0xff]
        %v4084 = vld [vmem:[%s583 + $0x9] sm:$0xff]
        %v4085 = vld [vmem:[%s583 + $0x11] sm:$0x3]
        %s4086 = sld [smem:[#allocation5 + $0x30]]
        %v4087 = vstv %s4086
        %v4088 = vmul.f32 %v4087, %v4083
        %v4089 = vmul.f32 %v4087, %v4084
        %v4090 = vmul.f32 %v4087, %v4085
        %v4091 = vadd.f32 %v4020, %v4088
        %v4092 = vadd.f32 %v4021, %v4089
        %v4093 = vadd.f32 %v4022, %v4090
        %s4094 = sld [smem:[#allocation5 + $0x78]]
        %v4095 = vstv %s4094
        %v4096 = vmul.f32 %v4095, %v4083
        %v4097 = vmul.f32 %v4095, %v4084
        %v4098 = vmul.f32 %v4095, %v4085
        %v4099 = vadd.f32 %v4040, %v4096
        %v4100 = vadd.f32 %v4041, %v4097
        %v4101 = vadd.f32 %v4042, %v4098
        %s4102 = sld [smem:[#allocation5 + $0xc0]]
        %v4103 = vstv %s4102
        %v4104 = vmul.f32 %v4103, %v4083
        %v4105 = vmul.f32 %v4103, %v4084
        %v4106 = vmul.f32 %v4103, %v4085
        %v4107 = vadd.f32 %v4060, %v4104
        %v4108 = vadd.f32 %v4061, %v4105
        %v4109 = vadd.f32 %v4062, %v4106
        %s4110 = sld [smem:[#allocation5 + $0x108]]
        %v4111 = vstv %s4110
        %v4112 = vmul.f32 %v4111, %v4083
        %v4113 = vmul.f32 %v4111, %v4084
        %v4114 = vmul.f32 %v4111, %v4085
        %v4115 = vadd.f32 %v4080, %v4112
        %v4116 = vadd.f32 %v4081, %v4113
        %v4117 = vadd.f32 %v4082, %v4114
        %s4118 = sld [smem:[#allocation5 + $0x31]]
        %v4119 = vstv %s4118
        %v4120 = vmul.f32 %v4119, %v4083
        %v4121 = vmul.f32 %v4119, %v4084
        %v4122 = vmul.f32 %v4119, %v4085
        %4126 = vrot.lane.b32.xlu0 %v4120, 127
        %v4127 = vpop.permute.xlu0 %4126
        %4128 = vrot.lane.b32.xlu0 %v4121, 127
        %v4129 = vpop.permute.xlu0 %4128
        %4130 = vrot.lane.b32.xlu0 %v4122, 127
        %v4131 = vpop.permute.xlu0 %4130
        %v4135 = vadd.f32 %v4091, %v4127
        %v4136 = vadd.f32 %v4092, %v4129
        %v4137 = vadd.f32 %v4093, %v4131
        %s4138 = sld [smem:[#allocation5 + $0x79]]
        %v4139 = vstv %s4138
        %v4140 = vmul.f32 %v4139, %v4083
        %v4141 = vmul.f32 %v4139, %v4084
        %v4142 = vmul.f32 %v4139, %v4085
        %4146 = vrot.lane.b32.xlu0 %v4140, 127
        %v4147 = vpop.permute.xlu0 %4146
        %4148 = vrot.lane.b32.xlu0 %v4141, 127
        %v4149 = vpop.permute.xlu0 %4148
        %4150 = vrot.lane.b32.xlu0 %v4142, 127
        %v4151 = vpop.permute.xlu0 %4150
        %v4155 = vadd.f32 %v4099, %v4147
        %v4156 = vadd.f32 %v4100, %v4149
        %v4157 = vadd.f32 %v4101, %v4151
        %s4158 = sld [smem:[#allocation5 + $0xc1]]
        %v4159 = vstv %s4158
        %v4160 = vmul.f32 %v4159, %v4083
        %v4161 = vmul.f32 %v4159, %v4084
        %v4162 = vmul.f32 %v4159, %v4085
        %4166 = vrot.lane.b32.xlu0 %v4160, 127
        %v4167 = vpop.permute.xlu0 %4166
        %4168 = vrot.lane.b32.xlu0 %v4161, 127
        %v4169 = vpop.permute.xlu0 %4168
        %4170 = vrot.lane.b32.xlu0 %v4162, 127
        %v4171 = vpop.permute.xlu0 %4170
        %v4175 = vadd.f32 %v4107, %v4167
        %v4176 = vadd.f32 %v4108, %v4169
        %v4177 = vadd.f32 %v4109, %v4171
        %s4178 = sld [smem:[#allocation5 + $0x109]]
        %v4179 = vstv %s4178
        %v4180 = vmul.f32 %v4179, %v4083
        %v4181 = vmul.f32 %v4179, %v4084
        %v4182 = vmul.f32 %v4179, %v4085
        %4186 = vrot.lane.b32.xlu0 %v4180, 127
        %v4187 = vpop.permute.xlu0 %4186
        %4188 = vrot.lane.b32.xlu0 %v4181, 127
        %v4189 = vpop.permute.xlu0 %4188
        %4190 = vrot.lane.b32.xlu0 %v4182, 127
        %v4191 = vpop.permute.xlu0 %4190
        %v4195 = vadd.f32 %v4115, %v4187
        %v4196 = vadd.f32 %v4116, %v4189
        %v4197 = vadd.f32 %v4117, %v4191
        %s4198 = sld [smem:[#allocation5 + $0x32]]
        %v4199 = vstv %s4198
        %v4200 = vmul.f32 %v4199, %v4083
        %v4201 = vmul.f32 %v4199, %v4084
        %v4202 = vmul.f32 %v4199, %v4085
        %4206 = vrot.lane.b32.xlu0 %v4200, 126
        %v4207 = vpop.permute.xlu0 %4206
        %4208 = vrot.lane.b32.xlu0 %v4201, 126
        %v4209 = vpop.permute.xlu0 %4208
        %4210 = vrot.lane.b32.xlu0 %v4202, 126
        %v4211 = vpop.permute.xlu0 %4210
        %v4215 = vadd.f32 %v4135, %v4207
        %v4216 = vadd.f32 %v4136, %v4209
        %v4217 = vadd.f32 %v4137, %v4211
        %s4218 = sld [smem:[#allocation5 + $0x7a]]
        %v4219 = vstv %s4218
        %v4220 = vmul.f32 %v4219, %v4083
        %v4221 = vmul.f32 %v4219, %v4084
        %v4222 = vmul.f32 %v4219, %v4085
        %4226 = vrot.lane.b32.xlu0 %v4220, 126
        %v4227 = vpop.permute.xlu0 %4226
        %4228 = vrot.lane.b32.xlu0 %v4221, 126
        %v4229 = vpop.permute.xlu0 %4228
        %4230 = vrot.lane.b32.xlu0 %v4222, 126
        %v4231 = vpop.permute.xlu0 %4230
        %v4235 = vadd.f32 %v4155, %v4227
        %v4236 = vadd.f32 %v4156, %v4229
        %v4237 = vadd.f32 %v4157, %v4231
        %s4238 = sld [smem:[#allocation5 + $0xc2]]
        %v4239 = vstv %s4238
        %v4240 = vmul.f32 %v4239, %v4083
        %v4241 = vmul.f32 %v4239, %v4084
        %v4242 = vmul.f32 %v4239, %v4085
        %4246 = vrot.lane.b32.xlu0 %v4240, 126
        %v4247 = vpop.permute.xlu0 %4246
        %4248 = vrot.lane.b32.xlu0 %v4241, 126
        %v4249 = vpop.permute.xlu0 %4248
        %4250 = vrot.lane.b32.xlu0 %v4242, 126
        %v4251 = vpop.permute.xlu0 %4250
        %v4255 = vadd.f32 %v4175, %v4247
        %v4256 = vadd.f32 %v4176, %v4249
        %v4257 = vadd.f32 %v4177, %v4251
        %s4258 = sld [smem:[#allocation5 + $0x10a]]
        %v4259 = vstv %s4258
        %v4260 = vmul.f32 %v4259, %v4083
        %v4261 = vmul.f32 %v4259, %v4084
        %v4262 = vmul.f32 %v4259, %v4085
        %4266 = vrot.lane.b32.xlu0 %v4260, 126
        %v4267 = vpop.permute.xlu0 %4266
        %4268 = vrot.lane.b32.xlu0 %v4261, 126
        %v4269 = vpop.permute.xlu0 %4268
        %4270 = vrot.lane.b32.xlu0 %v4262, 126
        %v4271 = vpop.permute.xlu0 %4270
        %v4275 = vadd.f32 %v4195, %v4267
        %v4276 = vadd.f32 %v4196, %v4269
        %v4277 = vadd.f32 %v4197, %v4271
        %v4278 = vld [vmem:[%s583 + $0x2] sm:$0xff]
        %v4279 = vld [vmem:[%s583 + $0xa] sm:$0xff]
        %v4280 = vld [vmem:[%s583 + $0x12] sm:$0x3]
        %s4281 = sld [smem:[#allocation5 + $0x33]]
        %v4282 = vstv %s4281
        %v4283 = vmul.f32 %v4282, %v4278
        %v4284 = vmul.f32 %v4282, %v4279
        %v4285 = vmul.f32 %v4282, %v4280
        %v4286 = vadd.f32 %v4215, %v4283
        %v4287 = vadd.f32 %v4216, %v4284
        %v4288 = vadd.f32 %v4217, %v4285
        %s4289 = sld [smem:[#allocation5 + $0x7b]]
        %v4290 = vstv %s4289
        %v4291 = vmul.f32 %v4290, %v4278
        %v4292 = vmul.f32 %v4290, %v4279
        %v4293 = vmul.f32 %v4290, %v4280
        %v4294 = vadd.f32 %v4235, %v4291
        %v4295 = vadd.f32 %v4236, %v4292
        %v4296 = vadd.f32 %v4237, %v4293
        %s4297 = sld [smem:[#allocation5 + $0xc3]]
        %v4298 = vstv %s4297
        %v4299 = vmul.f32 %v4298, %v4278
        %v4300 = vmul.f32 %v4298, %v4279
        %v4301 = vmul.f32 %v4298, %v4280
        %v4302 = vadd.f32 %v4255, %v4299
        %v4303 = vadd.f32 %v4256, %v4300
        %v4304 = vadd.f32 %v4257, %v4301
        %s4305 = sld [smem:[#allocation5 + $0x10b]]
        %v4306 = vstv %s4305
        %v4307 = vmul.f32 %v4306, %v4278
        %v4308 = vmul.f32 %v4306, %v4279
        %v4309 = vmul.f32 %v4306, %v4280
        %v4310 = vadd.f32 %v4275, %v4307
        %v4311 = vadd.f32 %v4276, %v4308
        %v4312 = vadd.f32 %v4277, %v4309
        %s4313 = sld [smem:[#allocation5 + $0x34]]
        %v4314 = vstv %s4313
        %v4315 = vmul.f32 %v4314, %v4278
        %v4316 = vmul.f32 %v4314, %v4279
        %v4317 = vmul.f32 %v4314, %v4280
        %4321 = vrot.lane.b32.xlu0 %v4315, 127
        %v4322 = vpop.permute.xlu0 %4321
        %4323 = vrot.lane.b32.xlu0 %v4316, 127
        %v4324 = vpop.permute.xlu0 %4323
        %4325 = vrot.lane.b32.xlu0 %v4317, 127
        %v4326 = vpop.permute.xlu0 %4325
        %v4330 = vadd.f32 %v4286, %v4322
        %v4331 = vadd.f32 %v4287, %v4324
        %v4332 = vadd.f32 %v4288, %v4326
        %s4333 = sld [smem:[#allocation5 + $0x7c]]
        %v4334 = vstv %s4333
        %v4335 = vmul.f32 %v4334, %v4278
        %v4336 = vmul.f32 %v4334, %v4279
        %v4337 = vmul.f32 %v4334, %v4280
        %4341 = vrot.lane.b32.xlu0 %v4335, 127
        %v4342 = vpop.permute.xlu0 %4341
        %4343 = vrot.lane.b32.xlu0 %v4336, 127
        %v4344 = vpop.permute.xlu0 %4343
        %4345 = vrot.lane.b32.xlu0 %v4337, 127
        %v4346 = vpop.permute.xlu0 %4345
        %v4350 = vadd.f32 %v4294, %v4342
        %v4351 = vadd.f32 %v4295, %v4344
        %v4352 = vadd.f32 %v4296, %v4346
        %s4353 = sld [smem:[#allocation5 + $0xc4]]
        %v4354 = vstv %s4353
        %v4355 = vmul.f32 %v4354, %v4278
        %v4356 = vmul.f32 %v4354, %v4279
        %v4357 = vmul.f32 %v4354, %v4280
        %4361 = vrot.lane.b32.xlu0 %v4355, 127
        %v4362 = vpop.permute.xlu0 %4361
        %4363 = vrot.lane.b32.xlu0 %v4356, 127
        %v4364 = vpop.permute.xlu0 %4363
        %4365 = vrot.lane.b32.xlu0 %v4357, 127
        %v4366 = vpop.permute.xlu0 %4365
        %v4370 = vadd.f32 %v4302, %v4362
        %v4371 = vadd.f32 %v4303, %v4364
        %v4372 = vadd.f32 %v4304, %v4366
        %s4373 = sld [smem:[#allocation5 + $0x10c]]
        %v4374 = vstv %s4373
        %v4375 = vmul.f32 %v4374, %v4278
        %v4376 = vmul.f32 %v4374, %v4279
        %v4377 = vmul.f32 %v4374, %v4280
        %4381 = vrot.lane.b32.xlu0 %v4375, 127
        %v4382 = vpop.permute.xlu0 %4381
        %4383 = vrot.lane.b32.xlu0 %v4376, 127
        %v4384 = vpop.permute.xlu0 %4383
        %4385 = vrot.lane.b32.xlu0 %v4377, 127
        %v4386 = vpop.permute.xlu0 %4385
        %v4390 = vadd.f32 %v4310, %v4382
        %v4391 = vadd.f32 %v4311, %v4384
        %v4392 = vadd.f32 %v4312, %v4386
        %s4393 = sld [smem:[#allocation5 + $0x35]]
        %v4394 = vstv %s4393
        %v4395 = vmul.f32 %v4394, %v4278
        %v4396 = vmul.f32 %v4394, %v4279
        %v4397 = vmul.f32 %v4394, %v4280
        %4401 = vrot.lane.b32.xlu0 %v4395, 126
        %v4402 = vpop.permute.xlu0 %4401
        %4403 = vrot.lane.b32.xlu0 %v4396, 126
        %v4404 = vpop.permute.xlu0 %4403
        %4405 = vrot.lane.b32.xlu0 %v4397, 126
        %v4406 = vpop.permute.xlu0 %4405
        %v4410 = vadd.f32 %v4330, %v4402
        %v4411 = vadd.f32 %v4331, %v4404
        %v4412 = vadd.f32 %v4332, %v4406
        %s4413 = sld [smem:[#allocation5 + $0x7d]]
        %v4414 = vstv %s4413
        %v4415 = vmul.f32 %v4414, %v4278
        %v4416 = vmul.f32 %v4414, %v4279
        %v4417 = vmul.f32 %v4414, %v4280
        %4421 = vrot.lane.b32.xlu0 %v4415, 126
        %v4422 = vpop.permute.xlu0 %4421
        %4423 = vrot.lane.b32.xlu0 %v4416, 126
        %v4424 = vpop.permute.xlu0 %4423
        %4425 = vrot.lane.b32.xlu0 %v4417, 126
        %v4426 = vpop.permute.xlu0 %4425
        %v4430 = vadd.f32 %v4350, %v4422
        %v4431 = vadd.f32 %v4351, %v4424
        %v4432 = vadd.f32 %v4352, %v4426
        %s4433 = sld [smem:[#allocation5 + $0xc5]]
        %v4434 = vstv %s4433
        %v4435 = vmul.f32 %v4434, %v4278
        %v4436 = vmul.f32 %v4434, %v4279
        %v4437 = vmul.f32 %v4434, %v4280
        %4441 = vrot.lane.b32.xlu0 %v4435, 126
        %v4442 = vpop.permute.xlu0 %4441
        %4443 = vrot.lane.b32.xlu0 %v4436, 126
        %v4444 = vpop.permute.xlu0 %4443
        %4445 = vrot.lane.b32.xlu0 %v4437, 126
        %v4446 = vpop.permute.xlu0 %4445
        %v4450 = vadd.f32 %v4370, %v4442
        %v4451 = vadd.f32 %v4371, %v4444
        %v4452 = vadd.f32 %v4372, %v4446
        %s4453 = sld [smem:[#allocation5 + $0x10d]]
        %v4454 = vstv %s4453
        %v4455 = vmul.f32 %v4454, %v4278
        %v4456 = vmul.f32 %v4454, %v4279
        %v4457 = vmul.f32 %v4454, %v4280
        %4461 = vrot.lane.b32.xlu0 %v4455, 126
        %v4462 = vpop.permute.xlu0 %4461
        %4463 = vrot.lane.b32.xlu0 %v4456, 126
        %v4464 = vpop.permute.xlu0 %4463
        %4465 = vrot.lane.b32.xlu0 %v4457, 126
        %v4466 = vpop.permute.xlu0 %4465
        %v4470 = vadd.f32 %v4390, %v4462
        %v4471 = vadd.f32 %v4391, %v4464
        %v4472 = vadd.f32 %v4392, %v4466
        %v4473 = vld [vmem:[%s758] sm:$0xff]
        %v4474 = vld [vmem:[%s758 + $0x8] sm:$0xff]
        %v4475 = vld [vmem:[%s758 + $0x10] sm:$0x3]
        %s4476 = sld [smem:[#allocation5 + $0x36]]
        %v4477 = vstv %s4476
        %v4478 = vmul.f32 %v4477, %v4473
        %v4479 = vmul.f32 %v4477, %v4474
        %v4480 = vmul.f32 %v4477, %v4475
        %v4481 = vadd.f32 %v4410, %v4478
        %v4482 = vadd.f32 %v4411, %v4479
        %v4483 = vadd.f32 %v4412, %v4480
        %s4484 = sld [smem:[#allocation5 + $0x7e]]
        %v4485 = vstv %s4484
        %v4486 = vmul.f32 %v4485, %v4473
        %v4487 = vmul.f32 %v4485, %v4474
        %v4488 = vmul.f32 %v4485, %v4475
        %v4489 = vadd.f32 %v4430, %v4486
        %v4490 = vadd.f32 %v4431, %v4487
        %v4491 = vadd.f32 %v4432, %v4488
        %s4492 = sld [smem:[#allocation5 + $0xc6]]
        %v4493 = vstv %s4492
        %v4494 = vmul.f32 %v4493, %v4473
        %v4495 = vmul.f32 %v4493, %v4474
        %v4496 = vmul.f32 %v4493, %v4475
        %v4497 = vadd.f32 %v4450, %v4494
        %v4498 = vadd.f32 %v4451, %v4495
        %v4499 = vadd.f32 %v4452, %v4496
        %s4500 = sld [smem:[#allocation5 + $0x10e]]
        %v4501 = vstv %s4500
        %v4502 = vmul.f32 %v4501, %v4473
        %v4503 = vmul.f32 %v4501, %v4474
        %v4504 = vmul.f32 %v4501, %v4475
        %v4505 = vadd.f32 %v4470, %v4502
        %v4506 = vadd.f32 %v4471, %v4503
        %v4507 = vadd.f32 %v4472, %v4504
        %s4508 = sld [smem:[#allocation5 + $0x37]]
        %v4509 = vstv %s4508
        %v4510 = vmul.f32 %v4509, %v4473
        %v4511 = vmul.f32 %v4509, %v4474
        %v4512 = vmul.f32 %v4509, %v4475
        %4516 = vrot.lane.b32.xlu0 %v4510, 127
        %v4517 = vpop.permute.xlu0 %4516
        %4518 = vrot.lane.b32.xlu0 %v4511, 127
        %v4519 = vpop.permute.xlu0 %4518
        %4520 = vrot.lane.b32.xlu0 %v4512, 127
        %v4521 = vpop.permute.xlu0 %4520
        %v4525 = vadd.f32 %v4481, %v4517
        %v4526 = vadd.f32 %v4482, %v4519
        %v4527 = vadd.f32 %v4483, %v4521
        %s4528 = sld [smem:[#allocation5 + $0x7f]]
        %v4529 = vstv %s4528
        %v4530 = vmul.f32 %v4529, %v4473
        %v4531 = vmul.f32 %v4529, %v4474
        %v4532 = vmul.f32 %v4529, %v4475
        %4536 = vrot.lane.b32.xlu0 %v4530, 127
        %v4537 = vpop.permute.xlu0 %4536
        %4538 = vrot.lane.b32.xlu0 %v4531, 127
        %v4539 = vpop.permute.xlu0 %4538
        %4540 = vrot.lane.b32.xlu0 %v4532, 127
        %v4541 = vpop.permute.xlu0 %4540
        %v4545 = vadd.f32 %v4489, %v4537
        %v4546 = vadd.f32 %v4490, %v4539
        %v4547 = vadd.f32 %v4491, %v4541
        %s4548 = sld [smem:[#allocation5 + $0xc7]]
        %v4549 = vstv %s4548
        %v4550 = vmul.f32 %v4549, %v4473
        %v4551 = vmul.f32 %v4549, %v4474
        %v4552 = vmul.f32 %v4549, %v4475
        %4556 = vrot.lane.b32.xlu0 %v4550, 127
        %v4557 = vpop.permute.xlu0 %4556
        %4558 = vrot.lane.b32.xlu0 %v4551, 127
        %v4559 = vpop.permute.xlu0 %4558
        %4560 = vrot.lane.b32.xlu0 %v4552, 127
        %v4561 = vpop.permute.xlu0 %4560
        %v4565 = vadd.f32 %v4497, %v4557
        %v4566 = vadd.f32 %v4498, %v4559
        %v4567 = vadd.f32 %v4499, %v4561
        %s4568 = sld [smem:[#allocation5 + $0x10f]]
        %v4569 = vstv %s4568
        %v4570 = vmul.f32 %v4569, %v4473
        %v4571 = vmul.f32 %v4569, %v4474
        %v4572 = vmul.f32 %v4569, %v4475
        %4576 = vrot.lane.b32.xlu0 %v4570, 127
        %v4577 = vpop.permute.xlu0 %4576
        %4578 = vrot.lane.b32.xlu0 %v4571, 127
        %v4579 = vpop.permute.xlu0 %4578
        %4580 = vrot.lane.b32.xlu0 %v4572, 127
        %v4581 = vpop.permute.xlu0 %4580
        %v4585 = vadd.f32 %v4505, %v4577
        %v4586 = vadd.f32 %v4506, %v4579
        %v4587 = vadd.f32 %v4507, %v4581
        %s4588 = sld [smem:[#allocation5 + $0x38]]
        %v4589 = vstv %s4588
        %v4590 = vmul.f32 %v4589, %v4473
        %v4591 = vmul.f32 %v4589, %v4474
        %v4592 = vmul.f32 %v4589, %v4475
        %4596 = vrot.lane.b32.xlu0 %v4590, 126
        %v4597 = vpop.permute.xlu0 %4596
        %4598 = vrot.lane.b32.xlu0 %v4591, 126
        %v4599 = vpop.permute.xlu0 %4598
        %4600 = vrot.lane.b32.xlu0 %v4592, 126
        %v4601 = vpop.permute.xlu0 %4600
        %v4605 = vadd.f32 %v4525, %v4597
        %v4606 = vadd.f32 %v4526, %v4599
        %v4607 = vadd.f32 %v4527, %v4601
        %s4608 = sld [smem:[#allocation5 + $0x80]]
        %v4609 = vstv %s4608
        %v4610 = vmul.f32 %v4609, %v4473
        %v4611 = vmul.f32 %v4609, %v4474
        %v4612 = vmul.f32 %v4609, %v4475
        %4616 = vrot.lane.b32.xlu0 %v4610, 126
        %v4617 = vpop.permute.xlu0 %4616
        %4618 = vrot.lane.b32.xlu0 %v4611, 126
        %v4619 = vpop.permute.xlu0 %4618
        %4620 = vrot.lane.b32.xlu0 %v4612, 126
        %v4621 = vpop.permute.xlu0 %4620
        %v4625 = vadd.f32 %v4545, %v4617
        %v4626 = vadd.f32 %v4546, %v4619
        %v4627 = vadd.f32 %v4547, %v4621
        %s4628 = sld [smem:[#allocation5 + $0xc8]]
        %v4629 = vstv %s4628
        %v4630 = vmul.f32 %v4629, %v4473
        %v4631 = vmul.f32 %v4629, %v4474
        %v4632 = vmul.f32 %v4629, %v4475
        %4636 = vrot.lane.b32.xlu0 %v4630, 126
        %v4637 = vpop.permute.xlu0 %4636
        %4638 = vrot.lane.b32.xlu0 %v4631, 126
        %v4639 = vpop.permute.xlu0 %4638
        %4640 = vrot.lane.b32.xlu0 %v4632, 126
        %v4641 = vpop.permute.xlu0 %4640
        %v4645 = vadd.f32 %v4565, %v4637
        %v4646 = vadd.f32 %v4566, %v4639
        %v4647 = vadd.f32 %v4567, %v4641
        %s4648 = sld [smem:[#allocation5 + $0x110]]
        %v4649 = vstv %s4648
        %v4650 = vmul.f32 %v4649, %v4473
        %v4651 = vmul.f32 %v4649, %v4474
        %v4652 = vmul.f32 %v4649, %v4475
        %4656 = vrot.lane.b32.xlu0 %v4650, 126
        %v4657 = vpop.permute.xlu0 %4656
        %4658 = vrot.lane.b32.xlu0 %v4651, 126
        %v4659 = vpop.permute.xlu0 %4658
        %4660 = vrot.lane.b32.xlu0 %v4652, 126
        %v4661 = vpop.permute.xlu0 %4660
        %v4665 = vadd.f32 %v4585, %v4657
        %v4666 = vadd.f32 %v4586, %v4659
        %v4667 = vadd.f32 %v4587, %v4661
        %v4668 = vld [vmem:[%s758 + $0x1] sm:$0xff]
        %v4669 = vld [vmem:[%s758 + $0x9] sm:$0xff]
        %v4670 = vld [vmem:[%s758 + $0x11] sm:$0x3]
        %s4671 = sld [smem:[#allocation5 + $0x39]]
        %v4672 = vstv %s4671
        %v4673 = vmul.f32 %v4672, %v4668
        %v4674 = vmul.f32 %v4672, %v4669
        %v4675 = vmul.f32 %v4672, %v4670
        %v4676 = vadd.f32 %v4605, %v4673
        %v4677 = vadd.f32 %v4606, %v4674
        %v4678 = vadd.f32 %v4607, %v4675
        %s4679 = sld [smem:[#allocation5 + $0x81]]
        %v4680 = vstv %s4679
        %v4681 = vmul.f32 %v4680, %v4668
        %v4682 = vmul.f32 %v4680, %v4669
        %v4683 = vmul.f32 %v4680, %v4670
        %v4684 = vadd.f32 %v4625, %v4681
        %v4685 = vadd.f32 %v4626, %v4682
        %v4686 = vadd.f32 %v4627, %v4683
        %s4687 = sld [smem:[#allocation5 + $0xc9]]
        %v4688 = vstv %s4687
        %v4689 = vmul.f32 %v4688, %v4668
        %v4690 = vmul.f32 %v4688, %v4669
        %v4691 = vmul.f32 %v4688, %v4670
        %v4692 = vadd.f32 %v4645, %v4689
        %v4693 = vadd.f32 %v4646, %v4690
        %v4694 = vadd.f32 %v4647, %v4691
        %s4695 = sld [smem:[#allocation5 + $0x111]]
        %v4696 = vstv %s4695
        %v4697 = vmul.f32 %v4696, %v4668
        %v4698 = vmul.f32 %v4696, %v4669
        %v4699 = vmul.f32 %v4696, %v4670
        %v4700 = vadd.f32 %v4665, %v4697
        %v4701 = vadd.f32 %v4666, %v4698
        %v4702 = vadd.f32 %v4667, %v4699
        %s4703 = sld [smem:[#allocation5 + $0x3a]]
        %v4704 = vstv %s4703
        %v4705 = vmul.f32 %v4704, %v4668
        %v4706 = vmul.f32 %v4704, %v4669
        %v4707 = vmul.f32 %v4704, %v4670
        %4711 = vrot.lane.b32.xlu0 %v4705, 127
        %v4712 = vpop.permute.xlu0 %4711
        %4713 = vrot.lane.b32.xlu0 %v4706, 127
        %v4714 = vpop.permute.xlu0 %4713
        %4715 = vrot.lane.b32.xlu0 %v4707, 127
        %v4716 = vpop.permute.xlu0 %4715
        %v4720 = vadd.f32 %v4676, %v4712
        %v4721 = vadd.f32 %v4677, %v4714
        %v4722 = vadd.f32 %v4678, %v4716
        %s4723 = sld [smem:[#allocation5 + $0x82]]
        %v4724 = vstv %s4723
        %v4725 = vmul.f32 %v4724, %v4668
        %v4726 = vmul.f32 %v4724, %v4669
        %v4727 = vmul.f32 %v4724, %v4670
        %4731 = vrot.lane.b32.xlu0 %v4725, 127
        %v4732 = vpop.permute.xlu0 %4731
        %4733 = vrot.lane.b32.xlu0 %v4726, 127
        %v4734 = vpop.permute.xlu0 %4733
        %4735 = vrot.lane.b32.xlu0 %v4727, 127
        %v4736 = vpop.permute.xlu0 %4735
        %v4740 = vadd.f32 %v4684, %v4732
        %v4741 = vadd.f32 %v4685, %v4734
        %v4742 = vadd.f32 %v4686, %v4736
        %s4743 = sld [smem:[#allocation5 + $0xca]]
        %v4744 = vstv %s4743
        %v4745 = vmul.f32 %v4744, %v4668
        %v4746 = vmul.f32 %v4744, %v4669
        %v4747 = vmul.f32 %v4744, %v4670
        %4751 = vrot.lane.b32.xlu0 %v4745, 127
        %v4752 = vpop.permute.xlu0 %4751
        %4753 = vrot.lane.b32.xlu0 %v4746, 127
        %v4754 = vpop.permute.xlu0 %4753
        %4755 = vrot.lane.b32.xlu0 %v4747, 127
        %v4756 = vpop.permute.xlu0 %4755
        %v4760 = vadd.f32 %v4692, %v4752
        %v4761 = vadd.f32 %v4693, %v4754
        %v4762 = vadd.f32 %v4694, %v4756
        %s4763 = sld [smem:[#allocation5 + $0x112]]
        %v4764 = vstv %s4763
        %v4765 = vmul.f32 %v4764, %v4668
        %v4766 = vmul.f32 %v4764, %v4669
        %v4767 = vmul.f32 %v4764, %v4670
        %4771 = vrot.lane.b32.xlu0 %v4765, 127
        %v4772 = vpop.permute.xlu0 %4771
        %4773 = vrot.lane.b32.xlu0 %v4766, 127
        %v4774 = vpop.permute.xlu0 %4773
        %4775 = vrot.lane.b32.xlu0 %v4767, 127
        %v4776 = vpop.permute.xlu0 %4775
        %v4780 = vadd.f32 %v4700, %v4772
        %v4781 = vadd.f32 %v4701, %v4774
        %v4782 = vadd.f32 %v4702, %v4776
        %s4783 = sld [smem:[#allocation5 + $0x3b]]
        %v4784 = vstv %s4783
        %v4785 = vmul.f32 %v4784, %v4668
        %v4786 = vmul.f32 %v4784, %v4669
        %v4787 = vmul.f32 %v4784, %v4670
        %4791 = vrot.lane.b32.xlu0 %v4785, 126
        %v4792 = vpop.permute.xlu0 %4791
        %4793 = vrot.lane.b32.xlu0 %v4786, 126
        %v4794 = vpop.permute.xlu0 %4793
        %4795 = vrot.lane.b32.xlu0 %v4787, 126
        %v4796 = vpop.permute.xlu0 %4795
        %v4800 = vadd.f32 %v4720, %v4792
        %v4801 = vadd.f32 %v4721, %v4794
        %v4802 = vadd.f32 %v4722, %v4796
        %s4803 = sld [smem:[#allocation5 + $0x83]]
        %v4804 = vstv %s4803
        %v4805 = vmul.f32 %v4804, %v4668
        %v4806 = vmul.f32 %v4804, %v4669
        %v4807 = vmul.f32 %v4804, %v4670
        %4811 = vrot.lane.b32.xlu0 %v4805, 126
        %v4812 = vpop.permute.xlu0 %4811
        %4813 = vrot.lane.b32.xlu0 %v4806, 126
        %v4814 = vpop.permute.xlu0 %4813
        %4815 = vrot.lane.b32.xlu0 %v4807, 126
        %v4816 = vpop.permute.xlu0 %4815
        %v4820 = vadd.f32 %v4740, %v4812
        %v4821 = vadd.f32 %v4741, %v4814
        %v4822 = vadd.f32 %v4742, %v4816
        %s4823 = sld [smem:[#allocation5 + $0xcb]]
        %v4824 = vstv %s4823
        %v4825 = vmul.f32 %v4824, %v4668
        %v4826 = vmul.f32 %v4824, %v4669
        %v4827 = vmul.f32 %v4824, %v4670
        %4831 = vrot.lane.b32.xlu0 %v4825, 126
        %v4832 = vpop.permute.xlu0 %4831
        %4833 = vrot.lane.b32.xlu0 %v4826, 126
        %v4834 = vpop.permute.xlu0 %4833
        %4835 = vrot.lane.b32.xlu0 %v4827, 126
        %v4836 = vpop.permute.xlu0 %4835
        %v4840 = vadd.f32 %v4760, %v4832
        %v4841 = vadd.f32 %v4761, %v4834
        %v4842 = vadd.f32 %v4762, %v4836
        %s4843 = sld [smem:[#allocation5 + $0x113]]
        %v4844 = vstv %s4843
        %v4845 = vmul.f32 %v4844, %v4668
        %v4846 = vmul.f32 %v4844, %v4669
        %v4847 = vmul.f32 %v4844, %v4670
        %4851 = vrot.lane.b32.xlu0 %v4845, 126
        %v4852 = vpop.permute.xlu0 %4851
        %4853 = vrot.lane.b32.xlu0 %v4846, 126
        %v4854 = vpop.permute.xlu0 %4853
        %4855 = vrot.lane.b32.xlu0 %v4847, 126
        %v4856 = vpop.permute.xlu0 %4855
        %v4860 = vadd.f32 %v4780, %v4852
        %v4861 = vadd.f32 %v4781, %v4854
        %v4862 = vadd.f32 %v4782, %v4856
        %v4863 = vld [vmem:[%s758 + $0x2] sm:$0xff]
        %v4864 = vld [vmem:[%s758 + $0xa] sm:$0xff]
        %v4865 = vld [vmem:[%s758 + $0x12] sm:$0x3]
        %s4866 = sld [smem:[#allocation5 + $0x3c]]
        %v4867 = vstv %s4866
        %v4868 = vmul.f32 %v4867, %v4863
        %v4869 = vmul.f32 %v4867, %v4864
        %v4870 = vmul.f32 %v4867, %v4865
        %v4871 = vadd.f32 %v4800, %v4868
        %v4872 = vadd.f32 %v4801, %v4869
        %v4873 = vadd.f32 %v4802, %v4870
        %s4874 = sld [smem:[#allocation5 + $0x84]]
        %v4875 = vstv %s4874
        %v4876 = vmul.f32 %v4875, %v4863
        %v4877 = vmul.f32 %v4875, %v4864
        %v4878 = vmul.f32 %v4875, %v4865
        %v4879 = vadd.f32 %v4820, %v4876
        %v4880 = vadd.f32 %v4821, %v4877
        %v4881 = vadd.f32 %v4822, %v4878
        %s4882 = sld [smem:[#allocation5 + $0xcc]]
        %v4883 = vstv %s4882
        %v4884 = vmul.f32 %v4883, %v4863
        %v4885 = vmul.f32 %v4883, %v4864
        %v4886 = vmul.f32 %v4883, %v4865
        %v4887 = vadd.f32 %v4840, %v4884
        %v4888 = vadd.f32 %v4841, %v4885
        %v4889 = vadd.f32 %v4842, %v4886
        %s4890 = sld [smem:[#allocation5 + $0x114]]
        %v4891 = vstv %s4890
        %v4892 = vmul.f32 %v4891, %v4863
        %v4893 = vmul.f32 %v4891, %v4864
        %v4894 = vmul.f32 %v4891, %v4865
        %v4895 = vadd.f32 %v4860, %v4892
        %v4896 = vadd.f32 %v4861, %v4893
        %v4897 = vadd.f32 %v4862, %v4894
        %s4898 = sld [smem:[#allocation5 + $0x3d]]
        %v4899 = vstv %s4898
        %v4900 = vmul.f32 %v4899, %v4863
        %v4901 = vmul.f32 %v4899, %v4864
        %v4902 = vmul.f32 %v4899, %v4865
        %4906 = vrot.lane.b32.xlu0 %v4900, 127
        %v4907 = vpop.permute.xlu0 %4906
        %4908 = vrot.lane.b32.xlu0 %v4901, 127
        %v4909 = vpop.permute.xlu0 %4908
        %4910 = vrot.lane.b32.xlu0 %v4902, 127
        %v4911 = vpop.permute.xlu0 %4910
        %v4915 = vadd.f32 %v4871, %v4907
        %v4916 = vadd.f32 %v4872, %v4909
        %v4917 = vadd.f32 %v4873, %v4911
        %s4918 = sld [smem:[#allocation5 + $0x85]]
        %v4919 = vstv %s4918
        %v4920 = vmul.f32 %v4919, %v4863
        %v4921 = vmul.f32 %v4919, %v4864
        %v4922 = vmul.f32 %v4919, %v4865
        %4926 = vrot.lane.b32.xlu0 %v4920, 127
        %v4927 = vpop.permute.xlu0 %4926
        %4928 = vrot.lane.b32.xlu0 %v4921, 127
        %v4929 = vpop.permute.xlu0 %4928
        %4930 = vrot.lane.b32.xlu0 %v4922, 127
        %v4931 = vpop.permute.xlu0 %4930
        %v4935 = vadd.f32 %v4879, %v4927
        %v4936 = vadd.f32 %v4880, %v4929
        %v4937 = vadd.f32 %v4881, %v4931
        %s4938 = sld [smem:[#allocation5 + $0xcd]]
        %v4939 = vstv %s4938
        %v4940 = vmul.f32 %v4939, %v4863
        %v4941 = vmul.f32 %v4939, %v4864
        %v4942 = vmul.f32 %v4939, %v4865
        %4946 = vrot.lane.b32.xlu0 %v4940, 127
        %v4947 = vpop.permute.xlu0 %4946
        %4948 = vrot.lane.b32.xlu0 %v4941, 127
        %v4949 = vpop.permute.xlu0 %4948
        %4950 = vrot.lane.b32.xlu0 %v4942, 127
        %v4951 = vpop.permute.xlu0 %4950
        %v4955 = vadd.f32 %v4887, %v4947
        %v4956 = vadd.f32 %v4888, %v4949
        %v4957 = vadd.f32 %v4889, %v4951
        %s4958 = sld [smem:[#allocation5 + $0x115]]
        %v4959 = vstv %s4958
        %v4960 = vmul.f32 %v4959, %v4863
        %v4961 = vmul.f32 %v4959, %v4864
        %v4962 = vmul.f32 %v4959, %v4865
        %4966 = vrot.lane.b32.xlu0 %v4960, 127
        %v4967 = vpop.permute.xlu0 %4966
        %4968 = vrot.lane.b32.xlu0 %v4961, 127
        %v4969 = vpop.permute.xlu0 %4968
        %4970 = vrot.lane.b32.xlu0 %v4962, 127
        %v4971 = vpop.permute.xlu0 %4970
        %v4975 = vadd.f32 %v4895, %v4967
        %v4976 = vadd.f32 %v4896, %v4969
        %v4977 = vadd.f32 %v4897, %v4971
        %s4978 = sld [smem:[#allocation5 + $0x3e]]
        %v4979 = vstv %s4978
        %v4980 = vmul.f32 %v4979, %v4863
        %v4981 = vmul.f32 %v4979, %v4864
        %v4982 = vmul.f32 %v4979, %v4865
        %4986 = vrot.lane.b32.xlu0 %v4980, 126
        %v4987 = vpop.permute.xlu0 %4986
        %4988 = vrot.lane.b32.xlu0 %v4981, 126
        %v4989 = vpop.permute.xlu0 %4988
        %4990 = vrot.lane.b32.xlu0 %v4982, 126
        %v4991 = vpop.permute.xlu0 %4990
        %v4995 = vadd.f32 %v4915, %v4987
        %v4996 = vadd.f32 %v4916, %v4989
        %v4997 = vadd.f32 %v4917, %v4991
        %s4998 = sld [smem:[#allocation5 + $0x86]]
        %v4999 = vstv %s4998
        %v5000 = vmul.f32 %v4999, %v4863
        %v5001 = vmul.f32 %v4999, %v4864
        %v5002 = vmul.f32 %v4999, %v4865
        %5006 = vrot.lane.b32.xlu0 %v5000, 126
        %v5007 = vpop.permute.xlu0 %5006
        %5008 = vrot.lane.b32.xlu0 %v5001, 126
        %v5009 = vpop.permute.xlu0 %5008
        %5010 = vrot.lane.b32.xlu0 %v5002, 126
        %v5011 = vpop.permute.xlu0 %5010
        %v5015 = vadd.f32 %v4935, %v5007
        %v5016 = vadd.f32 %v4936, %v5009
        %v5017 = vadd.f32 %v4937, %v5011
        %s5018 = sld [smem:[#allocation5 + $0xce]]
        %v5019 = vstv %s5018
        %v5020 = vmul.f32 %v5019, %v4863
        %v5021 = vmul.f32 %v5019, %v4864
        %v5022 = vmul.f32 %v5019, %v4865
        %5026 = vrot.lane.b32.xlu0 %v5020, 126
        %v5027 = vpop.permute.xlu0 %5026
        %5028 = vrot.lane.b32.xlu0 %v5021, 126
        %v5029 = vpop.permute.xlu0 %5028
        %5030 = vrot.lane.b32.xlu0 %v5022, 126
        %v5031 = vpop.permute.xlu0 %5030
        %v5035 = vadd.f32 %v4955, %v5027
        %v5036 = vadd.f32 %v4956, %v5029
        %v5037 = vadd.f32 %v4957, %v5031
        %s5038 = sld [smem:[#allocation5 + $0x116]]
        %v5039 = vstv %s5038
        %v5040 = vmul.f32 %v5039, %v4863
        %v5041 = vmul.f32 %v5039, %v4864
        %v5042 = vmul.f32 %v5039, %v4865
        %5046 = vrot.lane.b32.xlu0 %v5040, 126
        %v5047 = vpop.permute.xlu0 %5046
        %5048 = vrot.lane.b32.xlu0 %v5041, 126
        %v5049 = vpop.permute.xlu0 %5048
        %5050 = vrot.lane.b32.xlu0 %v5042, 126
        %v5051 = vpop.permute.xlu0 %5050
        %v5055 = vadd.f32 %v4975, %v5047
        %v5056 = vadd.f32 %v4976, %v5049
        %v5057 = vadd.f32 %v4977, %v5051
        %v5058 = vld [vmem:[%s933] sm:$0xff]
        %v5059 = vld [vmem:[%s933 + $0x8] sm:$0xff]
        %v5060 = vld [vmem:[%s933 + $0x10] sm:$0x3]
        %s5061 = sld [smem:[#allocation5 + $0x3f]]
        %v5062 = vstv %s5061
        %v5063 = vmul.f32 %v5062, %v5058
        %v5064 = vmul.f32 %v5062, %v5059
        %v5065 = vmul.f32 %v5062, %v5060
        %v5066 = vadd.f32 %v4995, %v5063
        %v5067 = vadd.f32 %v4996, %v5064
        %v5068 = vadd.f32 %v4997, %v5065
        %s5069 = sld [smem:[#allocation5 + $0x87]]
        %v5070 = vstv %s5069
        %v5071 = vmul.f32 %v5070, %v5058
        %v5072 = vmul.f32 %v5070, %v5059
        %v5073 = vmul.f32 %v5070, %v5060
        %v5074 = vadd.f32 %v5015, %v5071
        %v5075 = vadd.f32 %v5016, %v5072
        %v5076 = vadd.f32 %v5017, %v5073
        %s5077 = sld [smem:[#allocation5 + $0xcf]]
        %v5078 = vstv %s5077
        %v5079 = vmul.f32 %v5078, %v5058
        %v5080 = vmul.f32 %v5078, %v5059
        %v5081 = vmul.f32 %v5078, %v5060
        %v5082 = vadd.f32 %v5035, %v5079
        %v5083 = vadd.f32 %v5036, %v5080
        %v5084 = vadd.f32 %v5037, %v5081
        %s5085 = sld [smem:[#allocation5 + $0x117]]
        %v5086 = vstv %s5085
        %v5087 = vmul.f32 %v5086, %v5058
        %v5088 = vmul.f32 %v5086, %v5059
        %v5089 = vmul.f32 %v5086, %v5060
        %v5090 = vadd.f32 %v5055, %v5087
        %v5091 = vadd.f32 %v5056, %v5088
        %v5092 = vadd.f32 %v5057, %v5089
        %s5093 = sld [smem:[#allocation5 + $0x40]]
        %v5094 = vstv %s5093
        %v5095 = vmul.f32 %v5094, %v5058
        %v5096 = vmul.f32 %v5094, %v5059
        %v5097 = vmul.f32 %v5094, %v5060
        %5101 = vrot.lane.b32.xlu0 %v5095, 127
        %v5102 = vpop.permute.xlu0 %5101
        %5103 = vrot.lane.b32.xlu0 %v5096, 127
        %v5104 = vpop.permute.xlu0 %5103
        %5105 = vrot.lane.b32.xlu0 %v5097, 127
        %v5106 = vpop.permute.xlu0 %5105
        %v5110 = vadd.f32 %v5066, %v5102
        %v5111 = vadd.f32 %v5067, %v5104
        %v5112 = vadd.f32 %v5068, %v5106
        %s5113 = sld [smem:[#allocation5 + $0x88]]
        %v5114 = vstv %s5113
        %v5115 = vmul.f32 %v5114, %v5058
        %v5116 = vmul.f32 %v5114, %v5059
        %v5117 = vmul.f32 %v5114, %v5060
        %5121 = vrot.lane.b32.xlu0 %v5115, 127
        %v5122 = vpop.permute.xlu0 %5121
        %5123 = vrot.lane.b32.xlu0 %v5116, 127
        %v5124 = vpop.permute.xlu0 %5123
        %5125 = vrot.lane.b32.xlu0 %v5117, 127
        %v5126 = vpop.permute.xlu0 %5125
        %v5130 = vadd.f32 %v5074, %v5122
        %v5131 = vadd.f32 %v5075, %v5124
        %v5132 = vadd.f32 %v5076, %v5126
        %s5133 = sld [smem:[#allocation5 + $0xd0]]
        %v5134 = vstv %s5133
        %v5135 = vmul.f32 %v5134, %v5058
        %v5136 = vmul.f32 %v5134, %v5059
        %v5137 = vmul.f32 %v5134, %v5060
        %5141 = vrot.lane.b32.xlu0 %v5135, 127
        %v5142 = vpop.permute.xlu0 %5141
        %5143 = vrot.lane.b32.xlu0 %v5136, 127
        %v5144 = vpop.permute.xlu0 %5143
        %5145 = vrot.lane.b32.xlu0 %v5137, 127
        %v5146 = vpop.permute.xlu0 %5145
        %v5150 = vadd.f32 %v5082, %v5142
        %v5151 = vadd.f32 %v5083, %v5144
        %v5152 = vadd.f32 %v5084, %v5146
        %s5153 = sld [smem:[#allocation5 + $0x118]]
        %v5154 = vstv %s5153
        %v5155 = vmul.f32 %v5154, %v5058
        %v5156 = vmul.f32 %v5154, %v5059
        %v5157 = vmul.f32 %v5154, %v5060
        %5161 = vrot.lane.b32.xlu0 %v5155, 127
        %v5162 = vpop.permute.xlu0 %5161
        %5163 = vrot.lane.b32.xlu0 %v5156, 127
        %v5164 = vpop.permute.xlu0 %5163
        %5165 = vrot.lane.b32.xlu0 %v5157, 127
        %v5166 = vpop.permute.xlu0 %5165
        %v5170 = vadd.f32 %v5090, %v5162
        %v5171 = vadd.f32 %v5091, %v5164
        %v5172 = vadd.f32 %v5092, %v5166
        %s5173 = sld [smem:[#allocation5 + $0x41]]
        %v5174 = vstv %s5173
        %v5175 = vmul.f32 %v5174, %v5058
        %v5176 = vmul.f32 %v5174, %v5059
        %v5177 = vmul.f32 %v5174, %v5060
        %5181 = vrot.lane.b32.xlu0 %v5175, 126
        %v5182 = vpop.permute.xlu0 %5181
        %5183 = vrot.lane.b32.xlu0 %v5176, 126
        %v5184 = vpop.permute.xlu0 %5183
        %5185 = vrot.lane.b32.xlu0 %v5177, 126
        %v5186 = vpop.permute.xlu0 %5185
        %v5190 = vadd.f32 %v5110, %v5182
        %v5191 = vadd.f32 %v5111, %v5184
        %v5192 = vadd.f32 %v5112, %v5186
        %s5193 = sld [smem:[#allocation5 + $0x89]]
        %v5194 = vstv %s5193
        %v5195 = vmul.f32 %v5194, %v5058
        %v5196 = vmul.f32 %v5194, %v5059
        %v5197 = vmul.f32 %v5194, %v5060
        %5201 = vrot.lane.b32.xlu0 %v5195, 126
        %v5202 = vpop.permute.xlu0 %5201
        %5203 = vrot.lane.b32.xlu0 %v5196, 126
        %v5204 = vpop.permute.xlu0 %5203
        %5205 = vrot.lane.b32.xlu0 %v5197, 126
        %v5206 = vpop.permute.xlu0 %5205
        %v5210 = vadd.f32 %v5130, %v5202
        %v5211 = vadd.f32 %v5131, %v5204
        %v5212 = vadd.f32 %v5132, %v5206
        %s5213 = sld [smem:[#allocation5 + $0xd1]]
        %v5214 = vstv %s5213
        %v5215 = vmul.f32 %v5214, %v5058
        %v5216 = vmul.f32 %v5214, %v5059
        %v5217 = vmul.f32 %v5214, %v5060
        %5221 = vrot.lane.b32.xlu0 %v5215, 126
        %v5222 = vpop.permute.xlu0 %5221
        %5223 = vrot.lane.b32.xlu0 %v5216, 126
        %v5224 = vpop.permute.xlu0 %5223
        %5225 = vrot.lane.b32.xlu0 %v5217, 126
        %v5226 = vpop.permute.xlu0 %5225
        %v5230 = vadd.f32 %v5150, %v5222
        %v5231 = vadd.f32 %v5151, %v5224
        %v5232 = vadd.f32 %v5152, %v5226
        %s5233 = sld [smem:[#allocation5 + $0x119]]
        %v5234 = vstv %s5233
        %v5235 = vmul.f32 %v5234, %v5058
        %v5236 = vmul.f32 %v5234, %v5059
        %v5237 = vmul.f32 %v5234, %v5060
        %5241 = vrot.lane.b32.xlu0 %v5235, 126
        %v5242 = vpop.permute.xlu0 %5241
        %5243 = vrot.lane.b32.xlu0 %v5236, 126
        %v5244 = vpop.permute.xlu0 %5243
        %5245 = vrot.lane.b32.xlu0 %v5237, 126
        %v5246 = vpop.permute.xlu0 %5245
        %v5250 = vadd.f32 %v5170, %v5242
        %v5251 = vadd.f32 %v5171, %v5244
        %v5252 = vadd.f32 %v5172, %v5246
        %v5253 = vld [vmem:[%s933 + $0x1] sm:$0xff]
        %v5254 = vld [vmem:[%s933 + $0x9] sm:$0xff]
        %v5255 = vld [vmem:[%s933 + $0x11] sm:$0x3]
        %s5256 = sld [smem:[#allocation5 + $0x42]]
        %v5257 = vstv %s5256
        %v5258 = vmul.f32 %v5257, %v5253
        %v5259 = vmul.f32 %v5257, %v5254
        %v5260 = vmul.f32 %v5257, %v5255
        %v5261 = vadd.f32 %v5190, %v5258
        %v5262 = vadd.f32 %v5191, %v5259
        %v5263 = vadd.f32 %v5192, %v5260
        %s5264 = sld [smem:[#allocation5 + $0x8a]]
        %v5265 = vstv %s5264
        %v5266 = vmul.f32 %v5265, %v5253
        %v5267 = vmul.f32 %v5265, %v5254
        %v5268 = vmul.f32 %v5265, %v5255
        %v5269 = vadd.f32 %v5210, %v5266
        %v5270 = vadd.f32 %v5211, %v5267
        %v5271 = vadd.f32 %v5212, %v5268
        %s5272 = sld [smem:[#allocation5 + $0xd2]]
        %v5273 = vstv %s5272
        %v5274 = vmul.f32 %v5273, %v5253
        %v5275 = vmul.f32 %v5273, %v5254
        %v5276 = vmul.f32 %v5273, %v5255
        %v5277 = vadd.f32 %v5230, %v5274
        %v5278 = vadd.f32 %v5231, %v5275
        %v5279 = vadd.f32 %v5232, %v5276
        %s5280 = sld [smem:[#allocation5 + $0x11a]]
        %v5281 = vstv %s5280
        %v5282 = vmul.f32 %v5281, %v5253
        %v5283 = vmul.f32 %v5281, %v5254
        %v5284 = vmul.f32 %v5281, %v5255
        %v5285 = vadd.f32 %v5250, %v5282
        %v5286 = vadd.f32 %v5251, %v5283
        %v5287 = vadd.f32 %v5252, %v5284
        %s5288 = sld [smem:[#allocation5 + $0x43]]
        %v5289 = vstv %s5288
        %v5290 = vmul.f32 %v5289, %v5253
        %v5291 = vmul.f32 %v5289, %v5254
        %v5292 = vmul.f32 %v5289, %v5255
        %5296 = vrot.lane.b32.xlu0 %v5290, 127
        %v5297 = vpop.permute.xlu0 %5296
        %5298 = vrot.lane.b32.xlu0 %v5291, 127
        %v5299 = vpop.permute.xlu0 %5298
        %5300 = vrot.lane.b32.xlu0 %v5292, 127
        %v5301 = vpop.permute.xlu0 %5300
        %v5305 = vadd.f32 %v5261, %v5297
        %v5306 = vadd.f32 %v5262, %v5299
        %v5307 = vadd.f32 %v5263, %v5301
        %s5308 = sld [smem:[#allocation5 + $0x8b]]
        %v5309 = vstv %s5308
        %v5310 = vmul.f32 %v5309, %v5253
        %v5311 = vmul.f32 %v5309, %v5254
        %v5312 = vmul.f32 %v5309, %v5255
        %5316 = vrot.lane.b32.xlu0 %v5310, 127
        %v5317 = vpop.permute.xlu0 %5316
        %5318 = vrot.lane.b32.xlu0 %v5311, 127
        %v5319 = vpop.permute.xlu0 %5318
        %5320 = vrot.lane.b32.xlu0 %v5312, 127
        %v5321 = vpop.permute.xlu0 %5320
        %v5325 = vadd.f32 %v5269, %v5317
        %v5326 = vadd.f32 %v5270, %v5319
        %v5327 = vadd.f32 %v5271, %v5321
        %s5328 = sld [smem:[#allocation5 + $0xd3]]
        %v5329 = vstv %s5328
        %v5330 = vmul.f32 %v5329, %v5253
        %v5331 = vmul.f32 %v5329, %v5254
        %v5332 = vmul.f32 %v5329, %v5255
        %5336 = vrot.lane.b32.xlu0 %v5330, 127
        %v5337 = vpop.permute.xlu0 %5336
        %5338 = vrot.lane.b32.xlu0 %v5331, 127
        %v5339 = vpop.permute.xlu0 %5338
        %5340 = vrot.lane.b32.xlu0 %v5332, 127
        %v5341 = vpop.permute.xlu0 %5340
        %v5345 = vadd.f32 %v5277, %v5337
        %v5346 = vadd.f32 %v5278, %v5339
        %v5347 = vadd.f32 %v5279, %v5341
        %s5348 = sld [smem:[#allocation5 + $0x11b]]
        %v5349 = vstv %s5348
        %v5350 = vmul.f32 %v5349, %v5253
        %v5351 = vmul.f32 %v5349, %v5254
        %v5352 = vmul.f32 %v5349, %v5255
        %5356 = vrot.lane.b32.xlu0 %v5350, 127
        %v5357 = vpop.permute.xlu0 %5356
        %5358 = vrot.lane.b32.xlu0 %v5351, 127
        %v5359 = vpop.permute.xlu0 %5358
        %5360 = vrot.lane.b32.xlu0 %v5352, 127
        %v5361 = vpop.permute.xlu0 %5360
        %v5365 = vadd.f32 %v5285, %v5357
        %v5366 = vadd.f32 %v5286, %v5359
        %v5367 = vadd.f32 %v5287, %v5361
        %s5368 = sld [smem:[#allocation5 + $0x44]]
        %v5369 = vstv %s5368
        %v5370 = vmul.f32 %v5369, %v5253
        %v5371 = vmul.f32 %v5369, %v5254
        %v5372 = vmul.f32 %v5369, %v5255
        %5376 = vrot.lane.b32.xlu0 %v5370, 126
        %v5377 = vpop.permute.xlu0 %5376
        %5378 = vrot.lane.b32.xlu0 %v5371, 126
        %v5379 = vpop.permute.xlu0 %5378
        %5380 = vrot.lane.b32.xlu0 %v5372, 126
        %v5381 = vpop.permute.xlu0 %5380
        %v5385 = vadd.f32 %v5305, %v5377
        %v5386 = vadd.f32 %v5306, %v5379
        %v5387 = vadd.f32 %v5307, %v5381
        %s5388 = sld [smem:[#allocation5 + $0x8c]]
        %v5389 = vstv %s5388
        %v5390 = vmul.f32 %v5389, %v5253
        %v5391 = vmul.f32 %v5389, %v5254
        %v5392 = vmul.f32 %v5389, %v5255
        %5396 = vrot.lane.b32.xlu0 %v5390, 126
        %v5397 = vpop.permute.xlu0 %5396
        %5398 = vrot.lane.b32.xlu0 %v5391, 126
        %v5399 = vpop.permute.xlu0 %5398
        %5400 = vrot.lane.b32.xlu0 %v5392, 126
        %v5401 = vpop.permute.xlu0 %5400
        %v5405 = vadd.f32 %v5325, %v5397
        %v5406 = vadd.f32 %v5326, %v5399
        %v5407 = vadd.f32 %v5327, %v5401
        %s5408 = sld [smem:[#allocation5 + $0xd4]]
        %v5409 = vstv %s5408
        %v5410 = vmul.f32 %v5409, %v5253
        %v5411 = vmul.f32 %v5409, %v5254
        %v5412 = vmul.f32 %v5409, %v5255
        %5416 = vrot.lane.b32.xlu0 %v5410, 126
        %v5417 = vpop.permute.xlu0 %5416
        %5418 = vrot.lane.b32.xlu0 %v5411, 126
        %v5419 = vpop.permute.xlu0 %5418
        %5420 = vrot.lane.b32.xlu0 %v5412, 126
        %v5421 = vpop.permute.xlu0 %5420
        %v5425 = vadd.f32 %v5345, %v5417
        %v5426 = vadd.f32 %v5346, %v5419
        %v5427 = vadd.f32 %v5347, %v5421
        %s5428 = sld [smem:[#allocation5 + $0x11c]]
        %v5429 = vstv %s5428
        %v5430 = vmul.f32 %v5429, %v5253
        %v5431 = vmul.f32 %v5429, %v5254
        %v5432 = vmul.f32 %v5429, %v5255
        %5436 = vrot.lane.b32.xlu0 %v5430, 126
        %v5437 = vpop.permute.xlu0 %5436
        %5438 = vrot.lane.b32.xlu0 %v5431, 126
        %v5439 = vpop.permute.xlu0 %5438
        %5440 = vrot.lane.b32.xlu0 %v5432, 126
        %v5441 = vpop.permute.xlu0 %5440
        %v5445 = vadd.f32 %v5365, %v5437
        %v5446 = vadd.f32 %v5366, %v5439
        %v5447 = vadd.f32 %v5367, %v5441
        %v5448 = vld [vmem:[%s933 + $0x2] sm:$0xff]
        %v5449 = vld [vmem:[%s933 + $0xa] sm:$0xff]
        %v5450 = vld [vmem:[%s933 + $0x12] sm:$0x3]
        %s5451 = sld [smem:[#allocation5 + $0x45]]
        %v5452 = vstv %s5451
        %v5453 = vmul.f32 %v5452, %v5448
        %v5454 = vmul.f32 %v5452, %v5449
        %v5455 = vmul.f32 %v5452, %v5450
        %v5456 = vadd.f32 %v5385, %v5453
        %v5457 = vadd.f32 %v5386, %v5454
        %v5458 = vadd.f32 %v5387, %v5455
        %s5459 = sld [smem:[#allocation5 + $0x8d]]
        %v5460 = vstv %s5459
        %v5461 = vmul.f32 %v5460, %v5448
        %v5462 = vmul.f32 %v5460, %v5449
        %v5463 = vmul.f32 %v5460, %v5450
        %v5464 = vadd.f32 %v5405, %v5461
        %v5465 = vadd.f32 %v5406, %v5462
        %v5466 = vadd.f32 %v5407, %v5463
        %s5467 = sld [smem:[#allocation5 + $0xd5]]
        %v5468 = vstv %s5467
        %v5469 = vmul.f32 %v5468, %v5448
        %v5470 = vmul.f32 %v5468, %v5449
        %v5471 = vmul.f32 %v5468, %v5450
        %v5472 = vadd.f32 %v5425, %v5469
        %v5473 = vadd.f32 %v5426, %v5470
        %v5474 = vadd.f32 %v5427, %v5471
        %s5475 = sld [smem:[#allocation5 + $0x11d]]
        %v5476 = vstv %s5475
        %v5477 = vmul.f32 %v5476, %v5448
        %v5478 = vmul.f32 %v5476, %v5449
        %v5479 = vmul.f32 %v5476, %v5450
        %v5480 = vadd.f32 %v5445, %v5477
        %v5481 = vadd.f32 %v5446, %v5478
        %v5482 = vadd.f32 %v5447, %v5479
        %s5483 = sld [smem:[#allocation5 + $0x46]]
        %v5484 = vstv %s5483
        %v5485 = vmul.f32 %v5484, %v5448
        %v5486 = vmul.f32 %v5484, %v5449
        %v5487 = vmul.f32 %v5484, %v5450
        %5491 = vrot.lane.b32.xlu0 %v5485, 127
        %v5492 = vpop.permute.xlu0 %5491
        %5493 = vrot.lane.b32.xlu0 %v5486, 127
        %v5494 = vpop.permute.xlu0 %5493
        %5495 = vrot.lane.b32.xlu0 %v5487, 127
        %v5496 = vpop.permute.xlu0 %5495
        %v5500 = vadd.f32 %v5456, %v5492
        %v5501 = vadd.f32 %v5457, %v5494
        %v5502 = vadd.f32 %v5458, %v5496
        %s5503 = sld [smem:[#allocation5 + $0x8e]]
        %v5504 = vstv %s5503
        %v5505 = vmul.f32 %v5504, %v5448
        %v5506 = vmul.f32 %v5504, %v5449
        %v5507 = vmul.f32 %v5504, %v5450
        %5511 = vrot.lane.b32.xlu0 %v5505, 127
        %v5512 = vpop.permute.xlu0 %5511
        %5513 = vrot.lane.b32.xlu0 %v5506, 127
        %v5514 = vpop.permute.xlu0 %5513
        %5515 = vrot.lane.b32.xlu0 %v5507, 127
        %v5516 = vpop.permute.xlu0 %5515
        %v5520 = vadd.f32 %v5464, %v5512
        %v5521 = vadd.f32 %v5465, %v5514
        %v5522 = vadd.f32 %v5466, %v5516
        %s5523 = sld [smem:[#allocation5 + $0xd6]]
        %v5524 = vstv %s5523
        %v5525 = vmul.f32 %v5524, %v5448
        %v5526 = vmul.f32 %v5524, %v5449
        %v5527 = vmul.f32 %v5524, %v5450
        %5531 = vrot.lane.b32.xlu0 %v5525, 127
        %v5532 = vpop.permute.xlu0 %5531
        %5533 = vrot.lane.b32.xlu0 %v5526, 127
        %v5534 = vpop.permute.xlu0 %5533
        %5535 = vrot.lane.b32.xlu0 %v5527, 127
        %v5536 = vpop.permute.xlu0 %5535
        %v5540 = vadd.f32 %v5472, %v5532
        %v5541 = vadd.f32 %v5473, %v5534
        %v5542 = vadd.f32 %v5474, %v5536
        %s5543 = sld [smem:[#allocation5 + $0x11e]]
        %v5544 = vstv %s5543
        %v5545 = vmul.f32 %v5544, %v5448
        %v5546 = vmul.f32 %v5544, %v5449
        %v5547 = vmul.f32 %v5544, %v5450
        %5551 = vrot.lane.b32.xlu0 %v5545, 127
        %v5552 = vpop.permute.xlu0 %5551
        %5553 = vrot.lane.b32.xlu0 %v5546, 127
        %v5554 = vpop.permute.xlu0 %5553
        %5555 = vrot.lane.b32.xlu0 %v5547, 127
        %v5556 = vpop.permute.xlu0 %5555
        %v5560 = vadd.f32 %v5480, %v5552
        %v5561 = vadd.f32 %v5481, %v5554
        %v5562 = vadd.f32 %v5482, %v5556
        %s5563 = sld [smem:[#allocation5 + $0x47]]
        %v5564 = vstv %s5563
        %v5565 = vmul.f32 %v5564, %v5448
        %v5566 = vmul.f32 %v5564, %v5449
        %v5567 = vmul.f32 %v5564, %v5450
        %5571 = vrot.lane.b32.xlu0 %v5565, 126
        %v5572 = vpop.permute.xlu0 %5571
        %5573 = vrot.lane.b32.xlu0 %v5566, 126
        %v5574 = vpop.permute.xlu0 %5573
        %5575 = vrot.lane.b32.xlu0 %v5567, 126
        %v5576 = vpop.permute.xlu0 %5575
        %v5580 = vadd.f32 %v5500, %v5572
        %v5581 = vadd.f32 %v5501, %v5574
        %v5582 = vadd.f32 %v5502, %v5576
        %s5583 = sld [smem:[#allocation5 + $0x8f]]
        %v5584 = vstv %s5583
        %v5585 = vmul.f32 %v5584, %v5448
        %v5586 = vmul.f32 %v5584, %v5449
        %v5587 = vmul.f32 %v5584, %v5450
        %5591 = vrot.lane.b32.xlu0 %v5585, 126
        %v5592 = vpop.permute.xlu0 %5591
        %5593 = vrot.lane.b32.xlu0 %v5586, 126
        %v5594 = vpop.permute.xlu0 %5593
        %5595 = vrot.lane.b32.xlu0 %v5587, 126
        %v5596 = vpop.permute.xlu0 %5595
        %v5600 = vadd.f32 %v5520, %v5592
        %v5601 = vadd.f32 %v5521, %v5594
        %v5602 = vadd.f32 %v5522, %v5596
        %s5603 = sld [smem:[#allocation5 + $0xd7]]
        %v5604 = vstv %s5603
        %v5605 = vmul.f32 %v5604, %v5448
        %v5606 = vmul.f32 %v5604, %v5449
        %v5607 = vmul.f32 %v5604, %v5450
        %5611 = vrot.lane.b32.xlu0 %v5605, 126
        %v5612 = vpop.permute.xlu0 %5611
        %5613 = vrot.lane.b32.xlu0 %v5606, 126
        %v5614 = vpop.permute.xlu0 %5613
        %5615 = vrot.lane.b32.xlu0 %v5607, 126
        %v5616 = vpop.permute.xlu0 %5615
        %v5620 = vadd.f32 %v5540, %v5612
        %v5621 = vadd.f32 %v5541, %v5614
        %v5622 = vadd.f32 %v5542, %v5616
        %s5623 = sld [smem:[#allocation5 + $0x11f]]
        %v5624 = vstv %s5623
        %v5625 = vmul.f32 %v5624, %v5448
        %v5626 = vmul.f32 %v5624, %v5449
        %v5627 = vmul.f32 %v5624, %v5450
        %5631 = vrot.lane.b32.xlu0 %v5625, 126
        %v5632 = vpop.permute.xlu0 %5631
        %5633 = vrot.lane.b32.xlu0 %v5626, 126
        %v5634 = vpop.permute.xlu0 %5633
        %5635 = vrot.lane.b32.xlu0 %v5627, 126
        %v5636 = vpop.permute.xlu0 %5635
        %v5640 = vadd.f32 %v5560, %v5632
        %v5641 = vadd.f32 %v5561, %v5634
        %v5642 = vadd.f32 %v5562, %v5636
        %s5643 = sld [smem:[#allocation5 + $0x1b0]]
        %v5644 = vstv %s5643
        %v5645 = vmul.f32 %v5580, %v5644
        %v5646 = vmul.f32 %v5581, %v5644
        %v5647 = vmul.f32 %v5582, %v5644
        %s5648 = sld [smem:[#allocation5 + $0x1b4]]
        %v5649 = vstv %s5648
        %v5650 = vadd.f32 %v5645, %v5649
        %v5651 = vadd.f32 %v5646, %v5649
        %v5652 = vadd.f32 %v5647, %v5649
        %v5653 = vmax.f32 %v5650, 0.0
        %v5654 = vmax.f32 %v5651, 0.0
        %v5655 = vmax.f32 %v5652, 0.0
        %v5656 = vsel %vm957, %v5653, 0.0
        %v5657 = vsel %vm958, %v5654, 0.0
        %v5658 = vsel %vm959, %v5655, 0.0
        %vm5659 = vcmask 146432
        %5660 = vst.msk [vmem:[#allocation3] sm:$0xff] %vm5659, %v5656
        %5661 = vst.msk [vmem:[#allocation3 + $0x8] sm:$0xff] %vm5659, %v5657
        %vm5662 = vcmask 140288
        %5663 = vst.msk [vmem:[#allocation3 + $0x10] sm:$0x3] %vm5662, %v5658
        %s5664 = sld [smem:[#allocation5 + $0x1b1]]
        %v5665 = vstv %s5664
        %v5666 = vmul.f32 %v5600, %v5665
        %v5667 = vmul.f32 %v5601, %v5665
        %v5668 = vmul.f32 %v5602, %v5665
        %s5669 = sld [smem:[#allocation5 + $0x1b5]]
        %v5670 = vstv %s5669
        %v5671 = vadd.f32 %v5666, %v5670
        %v5672 = vadd.f32 %v5667, %v5670
        %v5673 = vadd.f32 %v5668, %v5670
        %v5674 = vmax.f32 %v5671, 0.0
        %v5675 = vmax.f32 %v5672, 0.0
        %v5676 = vmax.f32 %v5673, 0.0
        %v5677 = vsel %vm957, %v5674, 0.0
        %v5678 = vsel %vm958, %v5675, 0.0
        %v5679 = vsel %vm959, %v5676, 0.0
        %s5680 = scalar_lea.vmem [#allocation3], 24
        %5681 = vst.msk [vmem:[%s5680] sm:$0xff] %vm5659, %v5677
        %5682 = vst.msk [vmem:[%s5680 + $0x8] sm:$0xff] %vm5659, %v5678
        %5683 = vst.msk [vmem:[%s5680 + $0x10] sm:$0x3] %vm5662, %v5679
        %s5684 = sld [smem:[#allocation5 + $0x1b2]]
        %v5685 = vstv %s5684
        %v5686 = vmul.f32 %v5620, %v5685
        %v5687 = vmul.f32 %v5621, %v5685
        %v5688 = vmul.f32 %v5622, %v5685
        %s5689 = sld [smem:[#allocation5 + $0x1b6]]
        %v5690 = vstv %s5689
        %v5691 = vadd.f32 %v5686, %v5690
        %v5692 = vadd.f32 %v5687, %v5690
        %v5693 = vadd.f32 %v5688, %v5690
        %v5694 = vmax.f32 %v5691, 0.0
        %v5695 = vmax.f32 %v5692, 0.0
        %v5696 = vmax.f32 %v5693, 0.0
        %v5697 = vsel %vm957, %v5694, 0.0
        %v5698 = vsel %vm958, %v5695, 0.0
        %v5699 = vsel %vm959, %v5696, 0.0
        %s5700 = scalar_lea.vmem [#allocation3], 48
        %5701 = vst.msk [vmem:[%s5700] sm:$0xff] %vm5659, %v5697
        %5702 = vst.msk [vmem:[%s5700 + $0x8] sm:$0xff] %vm5659, %v5698
        %5703 = vst.msk [vmem:[%s5700 + $0x10] sm:$0x3] %vm5662, %v5699
        %s5704 = sld [smem:[#allocation5 + $0x1b3]]
        %v5705 = vstv %s5704
        %v5706 = vmul.f32 %v5640, %v5705
        %v5707 = vmul.f32 %v5641, %v5705
        %v5708 = vmul.f32 %v5642, %v5705
        %s5709 = sld [smem:[#allocation5 + $0x1b7]]
        %v5710 = vstv %s5709
        %v5711 = vadd.f32 %v5706, %v5710
        %v5712 = vadd.f32 %v5707, %v5710
        %v5713 = vadd.f32 %v5708, %v5710
        %v5714 = vmax.f32 %v5711, 0.0
        %v5715 = vmax.f32 %v5712, 0.0
        %v5716 = vmax.f32 %v5713, 0.0
        %v5717 = vsel %vm957, %v5714, 0.0
        %v5718 = vsel %vm958, %v5715, 0.0
        %v5719 = vsel %vm959, %v5716, 0.0
        %s5720 = scalar_lea.vmem [#allocation3], 72
        %5721 = vst.msk [vmem:[%s5720] sm:$0xff] %vm5659, %v5717
        %5722 = vst.msk [vmem:[%s5720 + $0x8] sm:$0xff] %vm5659, %v5718
        %5723 = vst.msk [vmem:[%s5720 + $0x10] sm:$0x3] %vm5662, %v5719
        %v5724 = vld [vmem:[#allocation3] sm:$0xff]
        %v5725 = vld [vmem:[#allocation3 + $0x8] sm:$0xff]
        %s5726 = sld [smem:[#allocation5 + $0x120]]
        %v5727 = vstv %s5726
        %v5728 = vmul.f32 %v5727, %v5724
        %v5729 = vmul.f32 %v5727, %v5725
        %v5730 = vadd.f32 %v5728, 0.0
        %v5731 = vadd.f32 %v5729, 0.0
        %s5732 = sld [smem:[#allocation5 + $0x144]]
        %v5733 = vstv %s5732
        %v5734 = vmul.f32 %v5733, %v5724
        %v5735 = vmul.f32 %v5733, %v5725
        %v5736 = vadd.f32 %v5734, 0.0
        %v5737 = vadd.f32 %v5735, 0.0
        %s5738 = sld [smem:[#allocation5 + $0x168]]
        %v5739 = vstv %s5738
        %v5740 = vmul.f32 %v5739, %v5724
        %v5741 = vmul.f32 %v5739, %v5725
        %v5742 = vadd.f32 %v5740, 0.0
        %v5743 = vadd.f32 %v5741, 0.0
        %s5744 = sld [smem:[#allocation5 + $0x18c]]
        %v5745 = vstv %s5744
        %v5746 = vmul.f32 %v5745, %v5724
        %v5747 = vmul.f32 %v5745, %v5725
        %v5748 = vadd.f32 %v5746, 0.0
        %v5749 = vadd.f32 %v5747, 0.0
        %s5750 = sld [smem:[#allocation5 + $0x121]]
        %v5751 = vstv %s5750
        %v5752 = vmul.f32 %v5751, %v5724
        %v5753 = vmul.f32 %v5751, %v5725
        %5756 = vrot.lane.b32.xlu0 %v5752, 127
        %v5757 = vpop.permute.xlu0 %5756
        %5758 = vrot.lane.b32.xlu0 %v5753, 127
        %v5759 = vpop.permute.xlu0 %5758
        %v5762 = vadd.f32 %v5730, %v5757
        %v5763 = vadd.f32 %v5731, %v5759
        %s5764 = sld [smem:[#allocation5 + $0x145]]
        %v5765 = vstv %s5764
        %v5766 = vmul.f32 %v5765, %v5724
        %v5767 = vmul.f32 %v5765, %v5725
        %5770 = vrot.lane.b32.xlu0 %v5766, 127
        %v5771 = vpop.permute.xlu0 %5770
        %5772 = vrot.lane.b32.xlu0 %v5767, 127
        %v5773 = vpop.permute.xlu0 %5772
        %v5776 = vadd.f32 %v5736, %v5771
        %v5777 = vadd.f32 %v5737, %v5773
        %s5778 = sld [smem:[#allocation5 + $0x169]]
        %v5779 = vstv %s5778
        %v5780 = vmul.f32 %v5779, %v5724
        %v5781 = vmul.f32 %v5779, %v5725
        %5784 = vrot.lane.b32.xlu0 %v5780, 127
        %v5785 = vpop.permute.xlu0 %5784
        %5786 = vrot.lane.b32.xlu0 %v5781, 127
        %v5787 = vpop.permute.xlu0 %5786
        %v5790 = vadd.f32 %v5742, %v5785
        %v5791 = vadd.f32 %v5743, %v5787
        %s5792 = sld [smem:[#allocation5 + $0x18d]]
        %v5793 = vstv %s5792
        %v5794 = vmul.f32 %v5793, %v5724
        %v5795 = vmul.f32 %v5793, %v5725
        %5798 = vrot.lane.b32.xlu0 %v5794, 127
        %v5799 = vpop.permute.xlu0 %5798
        %5800 = vrot.lane.b32.xlu0 %v5795, 127
        %v5801 = vpop.permute.xlu0 %5800
        %v5804 = vadd.f32 %v5748, %v5799
        %v5805 = vadd.f32 %v5749, %v5801
        %s5806 = sld [smem:[#allocation5 + $0x122]]
        %v5807 = vstv %s5806
        %v5808 = vmul.f32 %v5807, %v5724
        %v5809 = vmul.f32 %v5807, %v5725
        %5812 = vrot.lane.b32.xlu0 %v5808, 126
        %v5813 = vpop.permute.xlu0 %5812
        %5814 = vrot.lane.b32.xlu0 %v5809, 126
        %v5815 = vpop.permute.xlu0 %5814
        %v5818 = vadd.f32 %v5762, %v5813
        %v5819 = vadd.f32 %v5763, %v5815
        %s5820 = sld [smem:[#allocation5 + $0x146]]
        %v5821 = vstv %s5820
        %v5822 = vmul.f32 %v5821, %v5724
        %v5823 = vmul.f32 %v5821, %v5725
        %5826 = vrot.lane.b32.xlu0 %v5822, 126
        %v5827 = vpop.permute.xlu0 %5826
        %5828 = vrot.lane.b32.xlu0 %v5823, 126
        %v5829 = vpop.permute.xlu0 %5828
        %v5832 = vadd.f32 %v5776, %v5827
        %v5833 = vadd.f32 %v5777, %v5829
        %s5834 = sld [smem:[#allocation5 + $0x16a]]
        %v5835 = vstv %s5834
        %v5836 = vmul.f32 %v5835, %v5724
        %v5837 = vmul.f32 %v5835, %v5725
        %5840 = vrot.lane.b32.xlu0 %v5836, 126
        %v5841 = vpop.permute.xlu0 %5840
        %5842 = vrot.lane.b32.xlu0 %v5837, 126
        %v5843 = vpop.permute.xlu0 %5842
        %v5846 = vadd.f32 %v5790, %v5841
        %v5847 = vadd.f32 %v5791, %v5843
        %s5848 = sld [smem:[#allocation5 + $0x18e]]
        %v5849 = vstv %s5848
        %v5850 = vmul.f32 %v5849, %v5724
        %v5851 = vmul.f32 %v5849, %v5725
        %5854 = vrot.lane.b32.xlu0 %v5850, 126
        %v5855 = vpop.permute.xlu0 %5854
        %5856 = vrot.lane.b32.xlu0 %v5851, 126
        %v5857 = vpop.permute.xlu0 %5856
        %v5860 = vadd.f32 %v5804, %v5855
        %v5861 = vadd.f32 %v5805, %v5857
        %v5862 = vld [vmem:[#allocation3 + $0x1] sm:$0xff]
        %v5863 = vld [vmem:[#allocation3 + $0x9] sm:$0xff]
        %s5864 = sld [smem:[#allocation5 + $0x123]]
        %v5865 = vstv %s5864
        %v5866 = vmul.f32 %v5865, %v5862
        %v5867 = vmul.f32 %v5865, %v5863
        %v5868 = vadd.f32 %v5818, %v5866
        %v5869 = vadd.f32 %v5819, %v5867
        %s5870 = sld [smem:[#allocation5 + $0x147]]
        %v5871 = vstv %s5870
        %v5872 = vmul.f32 %v5871, %v5862
        %v5873 = vmul.f32 %v5871, %v5863
        %v5874 = vadd.f32 %v5832, %v5872
        %v5875 = vadd.f32 %v5833, %v5873
        %s5876 = sld [smem:[#allocation5 + $0x16b]]
        %v5877 = vstv %s5876
        %v5878 = vmul.f32 %v5877, %v5862
        %v5879 = vmul.f32 %v5877, %v5863
        %v5880 = vadd.f32 %v5846, %v5878
        %v5881 = vadd.f32 %v5847, %v5879
        %s5882 = sld [smem:[#allocation5 + $0x18f]]
        %v5883 = vstv %s5882
        %v5884 = vmul.f32 %v5883, %v5862
        %v5885 = vmul.f32 %v5883, %v5863
        %v5886 = vadd.f32 %v5860, %v5884
        %v5887 = vadd.f32 %v5861, %v5885
        %s5888 = sld [smem:[#allocation5 + $0x124]]
        %v5889 = vstv %s5888
        %v5890 = vmul.f32 %v5889, %v5862
        %v5891 = vmul.f32 %v5889, %v5863
        %5894 = vrot.lane.b32.xlu0 %v5890, 127
        %v5895 = vpop.permute.xlu0 %5894
        %5896 = vrot.lane.b32.xlu0 %v5891, 127
        %v5897 = vpop.permute.xlu0 %5896
        %v5900 = vadd.f32 %v5868, %v5895
        %v5901 = vadd.f32 %v5869, %v5897
        %s5902 = sld [smem:[#allocation5 + $0x148]]
        %v5903 = vstv %s5902
        %v5904 = vmul.f32 %v5903, %v5862
        %v5905 = vmul.f32 %v5903, %v5863
        %5908 = vrot.lane.b32.xlu0 %v5904, 127
        %v5909 = vpop.permute.xlu0 %5908
        %5910 = vrot.lane.b32.xlu0 %v5905, 127
        %v5911 = vpop.permute.xlu0 %5910
        %v5914 = vadd.f32 %v5874, %v5909
        %v5915 = vadd.f32 %v5875, %v5911
        %s5916 = sld [smem:[#allocation5 + $0x16c]]
        %v5917 = vstv %s5916
        %v5918 = vmul.f32 %v5917, %v5862
        %v5919 = vmul.f32 %v5917, %v5863
        %5922 = vrot.lane.b32.xlu0 %v5918, 127
        %v5923 = vpop.permute.xlu0 %5922
        %5924 = vrot.lane.b32.xlu0 %v5919, 127
        %v5925 = vpop.permute.xlu0 %5924
        %v5928 = vadd.f32 %v5880, %v5923
        %v5929 = vadd.f32 %v5881, %v5925
        %s5930 = sld [smem:[#allocation5 + $0x190]]
        %v5931 = vstv %s5930
        %v5932 = vmul.f32 %v5931, %v5862
        %v5933 = vmul.f32 %v5931, %v5863
        %5936 = vrot.lane.b32.xlu0 %v5932, 127
        %v5937 = vpop.permute.xlu0 %5936
        %5938 = vrot.lane.b32.xlu0 %v5933, 127
        %v5939 = vpop.permute.xlu0 %5938
        %v5942 = vadd.f32 %v5886, %v5937
        %v5943 = vadd.f32 %v5887, %v5939
        %s5944 = sld [smem:[#allocation5 + $0x125]]
        %v5945 = vstv %s5944
        %v5946 = vmul.f32 %v5945, %v5862
        %v5947 = vmul.f32 %v5945, %v5863
        %5950 = vrot.lane.b32.xlu0 %v5946, 126
        %v5951 = vpop.permute.xlu0 %5950
        %5952 = vrot.lane.b32.xlu0 %v5947, 126
        %v5953 = vpop.permute.xlu0 %5952
        %v5956 = vadd.f32 %v5900, %v5951
        %v5957 = vadd.f32 %v5901, %v5953
        %s5958 = sld [smem:[#allocation5 + $0x149]]
        %v5959 = vstv %s5958
        %v5960 = vmul.f32 %v5959, %v5862
        %v5961 = vmul.f32 %v5959, %v5863
        %5964 = vrot.lane.b32.xlu0 %v5960, 126
        %v5965 = vpop.permute.xlu0 %5964
        %5966 = vrot.lane.b32.xlu0 %v5961, 126
        %v5967 = vpop.permute.xlu0 %5966
        %v5970 = vadd.f32 %v5914, %v5965
        %v5971 = vadd.f32 %v5915, %v5967
        %s5972 = sld [smem:[#allocation5 + $0x16d]]
        %v5973 = vstv %s5972
        %v5974 = vmul.f32 %v5973, %v5862
        %v5975 = vmul.f32 %v5973, %v5863
        %5978 = vrot.lane.b32.xlu0 %v5974, 126
        %v5979 = vpop.permute.xlu0 %5978
        %5980 = vrot.lane.b32.xlu0 %v5975, 126
        %v5981 = vpop.permute.xlu0 %5980
        %v5984 = vadd.f32 %v5928, %v5979
        %v5985 = vadd.f32 %v5929, %v5981
        %s5986 = sld [smem:[#allocation5 + $0x191]]
        %v5987 = vstv %s5986
        %v5988 = vmul.f32 %v5987, %v5862
        %v5989 = vmul.f32 %v5987, %v5863
        %5992 = vrot.lane.b32.xlu0 %v5988, 126
        %v5993 = vpop.permute.xlu0 %5992
        %5994 = vrot.lane.b32.xlu0 %v5989, 126
        %v5995 = vpop.permute.xlu0 %5994
        %v5998 = vadd.f32 %v5942, %v5993
        %v5999 = vadd.f32 %v5943, %v5995
        %v6000 = vld [vmem:[#allocation3 + $0x2] sm:$0xff]
        %v6001 = vld [vmem:[#allocation3 + $0xa] sm:$0xff]
        %s6002 = sld [smem:[#allocation5 + $0x126]]
        %v6003 = vstv %s6002
        %v6004 = vmul.f32 %v6003, %v6000
        %v6005 = vmul.f32 %v6003, %v6001
        %v6006 = vadd.f32 %v5956, %v6004
        %v6007 = vadd.f32 %v5957, %v6005
        %s6008 = sld [smem:[#allocation5 + $0x14a]]
        %v6009 = vstv %s6008
        %v6010 = vmul.f32 %v6009, %v6000
        %v6011 = vmul.f32 %v6009, %v6001
        %v6012 = vadd.f32 %v5970, %v6010
        %v6013 = vadd.f32 %v5971, %v6011
        %s6014 = sld [smem:[#allocation5 + $0x16e]]
        %v6015 = vstv %s6014
        %v6016 = vmul.f32 %v6015, %v6000
        %v6017 = vmul.f32 %v6015, %v6001
        %v6018 = vadd.f32 %v5984, %v6016
        %v6019 = vadd.f32 %v5985, %v6017
        %s6020 = sld [smem:[#allocation5 + $0x192]]
        %v6021 = vstv %s6020
        %v6022 = vmul.f32 %v6021, %v6000
        %v6023 = vmul.f32 %v6021, %v6001
        %v6024 = vadd.f32 %v5998, %v6022
        %v6025 = vadd.f32 %v5999, %v6023
        %s6026 = sld [smem:[#allocation5 + $0x127]]
        %v6027 = vstv %s6026
        %v6028 = vmul.f32 %v6027, %v6000
        %v6029 = vmul.f32 %v6027, %v6001
        %6032 = vrot.lane.b32.xlu0 %v6028, 127
        %v6033 = vpop.permute.xlu0 %6032
        %6034 = vrot.lane.b32.xlu0 %v6029, 127
        %v6035 = vpop.permute.xlu0 %6034
        %v6038 = vadd.f32 %v6006, %v6033
        %v6039 = vadd.f32 %v6007, %v6035
        %s6040 = sld [smem:[#allocation5 + $0x14b]]
        %v6041 = vstv %s6040
        %v6042 = vmul.f32 %v6041, %v6000
        %v6043 = vmul.f32 %v6041, %v6001
        %6046 = vrot.lane.b32.xlu0 %v6042, 127
        %v6047 = vpop.permute.xlu0 %6046
        %6048 = vrot.lane.b32.xlu0 %v6043, 127
        %v6049 = vpop.permute.xlu0 %6048
        %v6052 = vadd.f32 %v6012, %v6047
        %v6053 = vadd.f32 %v6013, %v6049
        %s6054 = sld [smem:[#allocation5 + $0x16f]]
        %v6055 = vstv %s6054
        %v6056 = vmul.f32 %v6055, %v6000
        %v6057 = vmul.f32 %v6055, %v6001
        %6060 = vrot.lane.b32.xlu0 %v6056, 127
        %v6061 = vpop.permute.xlu0 %6060
        %6062 = vrot.lane.b32.xlu0 %v6057, 127
        %v6063 = vpop.permute.xlu0 %6062
        %v6066 = vadd.f32 %v6018, %v6061
        %v6067 = vadd.f32 %v6019, %v6063
        %s6068 = sld [smem:[#allocation5 + $0x193]]
        %v6069 = vstv %s6068
        %v6070 = vmul.f32 %v6069, %v6000
        %v6071 = vmul.f32 %v6069, %v6001
        %6074 = vrot.lane.b32.xlu0 %v6070, 127
        %v6075 = vpop.permute.xlu0 %6074
        %6076 = vrot.lane.b32.xlu0 %v6071, 127
        %v6077 = vpop.permute.xlu0 %6076
        %v6080 = vadd.f32 %v6024, %v6075
        %v6081 = vadd.f32 %v6025, %v6077
        %s6082 = sld [smem:[#allocation5 + $0x128]]
        %v6083 = vstv %s6082
        %v6084 = vmul.f32 %v6083, %v6000
        %v6085 = vmul.f32 %v6083, %v6001
        %6088 = vrot.lane.b32.xlu0 %v6084, 126
        %v6089 = vpop.permute.xlu0 %6088
        %6090 = vrot.lane.b32.xlu0 %v6085, 126
        %v6091 = vpop.permute.xlu0 %6090
        %v6094 = vadd.f32 %v6038, %v6089
        %v6095 = vadd.f32 %v6039, %v6091
        %s6096 = sld [smem:[#allocation5 + $0x14c]]
        %v6097 = vstv %s6096
        %v6098 = vmul.f32 %v6097, %v6000
        %v6099 = vmul.f32 %v6097, %v6001
        %6102 = vrot.lane.b32.xlu0 %v6098, 126
        %v6103 = vpop.permute.xlu0 %6102
        %6104 = vrot.lane.b32.xlu0 %v6099, 126
        %v6105 = vpop.permute.xlu0 %6104
        %v6108 = vadd.f32 %v6052, %v6103
        %v6109 = vadd.f32 %v6053, %v6105
        %s6110 = sld [smem:[#allocation5 + $0x170]]
        %v6111 = vstv %s6110
        %v6112 = vmul.f32 %v6111, %v6000
        %v6113 = vmul.f32 %v6111, %v6001
        %6116 = vrot.lane.b32.xlu0 %v6112, 126
        %v6117 = vpop.permute.xlu0 %6116
        %6118 = vrot.lane.b32.xlu0 %v6113, 126
        %v6119 = vpop.permute.xlu0 %6118
        %v6122 = vadd.f32 %v6066, %v6117
        %v6123 = vadd.f32 %v6067, %v6119
        %s6124 = sld [smem:[#allocation5 + $0x194]]
        %v6125 = vstv %s6124
        %v6126 = vmul.f32 %v6125, %v6000
        %v6127 = vmul.f32 %v6125, %v6001
        %6130 = vrot.lane.b32.xlu0 %v6126, 126
        %v6131 = vpop.permute.xlu0 %6130
        %6132 = vrot.lane.b32.xlu0 %v6127, 126
        %v6133 = vpop.permute.xlu0 %6132
        %v6136 = vadd.f32 %v6080, %v6131
        %v6137 = vadd.f32 %v6081, %v6133
        %v6138 = vld [vmem:[%s5680] sm:$0xff]
        %v6139 = vld [vmem:[%s5680 + $0x8] sm:$0xff]
        %s6140 = sld [smem:[#allocation5 + $0x129]]
        %v6141 = vstv %s6140
        %v6142 = vmul.f32 %v6141, %v6138
        %v6143 = vmul.f32 %v6141, %v6139
        %v6144 = vadd.f32 %v6094, %v6142
        %v6145 = vadd.f32 %v6095, %v6143
        %s6146 = sld [smem:[#allocation5 + $0x14d]]
        %v6147 = vstv %s6146
        %v6148 = vmul.f32 %v6147, %v6138
        %v6149 = vmul.f32 %v6147, %v6139
        %v6150 = vadd.f32 %v6108, %v6148
        %v6151 = vadd.f32 %v6109, %v6149
        %s6152 = sld [smem:[#allocation5 + $0x171]]
        %v6153 = vstv %s6152
        %v6154 = vmul.f32 %v6153, %v6138
        %v6155 = vmul.f32 %v6153, %v6139
        %v6156 = vadd.f32 %v6122, %v6154
        %v6157 = vadd.f32 %v6123, %v6155
        %s6158 = sld [smem:[#allocation5 + $0x195]]
        %v6159 = vstv %s6158
        %v6160 = vmul.f32 %v6159, %v6138
        %v6161 = vmul.f32 %v6159, %v6139
        %v6162 = vadd.f32 %v6136, %v6160
        %v6163 = vadd.f32 %v6137, %v6161
        %s6164 = sld [smem:[#allocation5 + $0x12a]]
        %v6165 = vstv %s6164
        %v6166 = vmul.f32 %v6165, %v6138
        %v6167 = vmul.f32 %v6165, %v6139
        %6170 = vrot.lane.b32.xlu0 %v6166, 127
        %v6171 = vpop.permute.xlu0 %6170
        %6172 = vrot.lane.b32.xlu0 %v6167, 127
        %v6173 = vpop.permute.xlu0 %6172
        %v6176 = vadd.f32 %v6144, %v6171
        %v6177 = vadd.f32 %v6145, %v6173
        %s6178 = sld [smem:[#allocation5 + $0x14e]]
        %v6179 = vstv %s6178
        %v6180 = vmul.f32 %v6179, %v6138
        %v6181 = vmul.f32 %v6179, %v6139
        %6184 = vrot.lane.b32.xlu0 %v6180, 127
        %v6185 = vpop.permute.xlu0 %6184
        %6186 = vrot.lane.b32.xlu0 %v6181, 127
        %v6187 = vpop.permute.xlu0 %6186
        %v6190 = vadd.f32 %v6150, %v6185
        %v6191 = vadd.f32 %v6151, %v6187
        %s6192 = sld [smem:[#allocation5 + $0x172]]
        %v6193 = vstv %s6192
        %v6194 = vmul.f32 %v6193, %v6138
        %v6195 = vmul.f32 %v6193, %v6139
        %6198 = vrot.lane.b32.xlu0 %v6194, 127
        %v6199 = vpop.permute.xlu0 %6198
        %6200 = vrot.lane.b32.xlu0 %v6195, 127
        %v6201 = vpop.permute.xlu0 %6200
        %v6204 = vadd.f32 %v6156, %v6199
        %v6205 = vadd.f32 %v6157, %v6201
        %s6206 = sld [smem:[#allocation5 + $0x196]]
        %v6207 = vstv %s6206
        %v6208 = vmul.f32 %v6207, %v6138
        %v6209 = vmul.f32 %v6207, %v6139
        %6212 = vrot.lane.b32.xlu0 %v6208, 127
        %v6213 = vpop.permute.xlu0 %6212
        %6214 = vrot.lane.b32.xlu0 %v6209, 127
        %v6215 = vpop.permute.xlu0 %6214
        %v6218 = vadd.f32 %v6162, %v6213
        %v6219 = vadd.f32 %v6163, %v6215
        %s6220 = sld [smem:[#allocation5 + $0x12b]]
        %v6221 = vstv %s6220
        %v6222 = vmul.f32 %v6221, %v6138
        %v6223 = vmul.f32 %v6221, %v6139
        %6226 = vrot.lane.b32.xlu0 %v6222, 126
        %v6227 = vpop.permute.xlu0 %6226
        %6228 = vrot.lane.b32.xlu0 %v6223, 126
        %v6229 = vpop.permute.xlu0 %6228
        %v6232 = vadd.f32 %v6176, %v6227
        %v6233 = vadd.f32 %v6177, %v6229
        %s6234 = sld [smem:[#allocation5 + $0x14f]]
        %v6235 = vstv %s6234
        %v6236 = vmul.f32 %v6235, %v6138
        %v6237 = vmul.f32 %v6235, %v6139
        %6240 = vrot.lane.b32.xlu0 %v6236, 126
        %v6241 = vpop.permute.xlu0 %6240
        %6242 = vrot.lane.b32.xlu0 %v6237, 126
        %v6243 = vpop.permute.xlu0 %6242
        %v6246 = vadd.f32 %v6190, %v6241
        %v6247 = vadd.f32 %v6191, %v6243
        %s6248 = sld [smem:[#allocation5 + $0x173]]
        %v6249 = vstv %s6248
        %v6250 = vmul.f32 %v6249, %v6138
        %v6251 = vmul.f32 %v6249, %v6139
        %6254 = vrot.lane.b32.xlu0 %v6250, 126
        %v6255 = vpop.permute.xlu0 %6254
        %6256 = vrot.lane.b32.xlu0 %v6251, 126
        %v6257 = vpop.permute.xlu0 %6256
        %v6260 = vadd.f32 %v6204, %v6255
        %v6261 = vadd.f32 %v6205, %v6257
        %s6262 = sld [smem:[#allocation5 + $0x197]]
        %v6263 = vstv %s6262
        %v6264 = vmul.f32 %v6263, %v6138
        %v6265 = vmul.f32 %v6263, %v6139
        %6268 = vrot.lane.b32.xlu0 %v6264, 126
        %v6269 = vpop.permute.xlu0 %6268
        %6270 = vrot.lane.b32.xlu0 %v6265, 126
        %v6271 = vpop.permute.xlu0 %6270
        %v6274 = vadd.f32 %v6218, %v6269
        %v6275 = vadd.f32 %v6219, %v6271
        %v6276 = vld [vmem:[%s5680 + $0x1] sm:$0xff]
        %v6277 = vld [vmem:[%s5680 + $0x9] sm:$0xff]
        %s6278 = sld [smem:[#allocation5 + $0x12c]]
        %v6279 = vstv %s6278
        %v6280 = vmul.f32 %v6279, %v6276
        %v6281 = vmul.f32 %v6279, %v6277
        %v6282 = vadd.f32 %v6232, %v6280
        %v6283 = vadd.f32 %v6233, %v6281
        %s6284 = sld [smem:[#allocation5 + $0x150]]
        %v6285 = vstv %s6284
        %v6286 = vmul.f32 %v6285, %v6276
        %v6287 = vmul.f32 %v6285, %v6277
        %v6288 = vadd.f32 %v6246, %v6286
        %v6289 = vadd.f32 %v6247, %v6287
        %s6290 = sld [smem:[#allocation5 + $0x174]]
        %v6291 = vstv %s6290
        %v6292 = vmul.f32 %v6291, %v6276
        %v6293 = vmul.f32 %v6291, %v6277
        %v6294 = vadd.f32 %v6260, %v6292
        %v6295 = vadd.f32 %v6261, %v6293
        %s6296 = sld [smem:[#allocation5 + $0x198]]
        %v6297 = vstv %s6296
        %v6298 = vmul.f32 %v6297, %v6276
        %v6299 = vmul.f32 %v6297, %v6277
        %v6300 = vadd.f32 %v6274, %v6298
        %v6301 = vadd.f32 %v6275, %v6299
        %s6302 = sld [smem:[#allocation5 + $0x12d]]
        %v6303 = vstv %s6302
        %v6304 = vmul.f32 %v6303, %v6276
        %v6305 = vmul.f32 %v6303, %v6277
        %6308 = vrot.lane.b32.xlu0 %v6304, 127
        %v6309 = vpop.permute.xlu0 %6308
        %6310 = vrot.lane.b32.xlu0 %v6305, 127
        %v6311 = vpop.permute.xlu0 %6310
        %v6314 = vadd.f32 %v6282, %v6309
        %v6315 = vadd.f32 %v6283, %v6311
        %s6316 = sld [smem:[#allocation5 + $0x151]]
        %v6317 = vstv %s6316
        %v6318 = vmul.f32 %v6317, %v6276
        %v6319 = vmul.f32 %v6317, %v6277
        %6322 = vrot.lane.b32.xlu0 %v6318, 127
        %v6323 = vpop.permute.xlu0 %6322
        %6324 = vrot.lane.b32.xlu0 %v6319, 127
        %v6325 = vpop.permute.xlu0 %6324
        %v6328 = vadd.f32 %v6288, %v6323
        %v6329 = vadd.f32 %v6289, %v6325
        %s6330 = sld [smem:[#allocation5 + $0x175]]
        %v6331 = vstv %s6330
        %v6332 = vmul.f32 %v6331, %v6276
        %v6333 = vmul.f32 %v6331, %v6277
        %6336 = vrot.lane.b32.xlu0 %v6332, 127
        %v6337 = vpop.permute.xlu0 %6336
        %6338 = vrot.lane.b32.xlu0 %v6333, 127
        %v6339 = vpop.permute.xlu0 %6338
        %v6342 = vadd.f32 %v6294, %v6337
        %v6343 = vadd.f32 %v6295, %v6339
        %s6344 = sld [smem:[#allocation5 + $0x199]]
        %v6345 = vstv %s6344
        %v6346 = vmul.f32 %v6345, %v6276
        %v6347 = vmul.f32 %v6345, %v6277
        %6350 = vrot.lane.b32.xlu0 %v6346, 127
        %v6351 = vpop.permute.xlu0 %6350
        %6352 = vrot.lane.b32.xlu0 %v6347, 127
        %v6353 = vpop.permute.xlu0 %6352
        %v6356 = vadd.f32 %v6300, %v6351
        %v6357 = vadd.f32 %v6301, %v6353
        %s6358 = sld [smem:[#allocation5 + $0x12e]]
        %v6359 = vstv %s6358
        %v6360 = vmul.f32 %v6359, %v6276
        %v6361 = vmul.f32 %v6359, %v6277
        %6364 = vrot.lane.b32.xlu0 %v6360, 126
        %v6365 = vpop.permute.xlu0 %6364
        %6366 = vrot.lane.b32.xlu0 %v6361, 126
        %v6367 = vpop.permute.xlu0 %6366
        %v6370 = vadd.f32 %v6314, %v6365
        %v6371 = vadd.f32 %v6315, %v6367
        %s6372 = sld [smem:[#allocation5 + $0x152]]
        %v6373 = vstv %s6372
        %v6374 = vmul.f32 %v6373, %v6276
        %v6375 = vmul.f32 %v6373, %v6277
        %6378 = vrot.lane.b32.xlu0 %v6374, 126
        %v6379 = vpop.permute.xlu0 %6378
        %6380 = vrot.lane.b32.xlu0 %v6375, 126
        %v6381 = vpop.permute.xlu0 %6380
        %v6384 = vadd.f32 %v6328, %v6379
        %v6385 = vadd.f32 %v6329, %v6381
        %s6386 = sld [smem:[#allocation5 + $0x176]]
        %v6387 = vstv %s6386
        %v6388 = vmul.f32 %v6387, %v6276
        %v6389 = vmul.f32 %v6387, %v6277
        %6392 = vrot.lane.b32.xlu0 %v6388, 126
        %v6393 = vpop.permute.xlu0 %6392
        %6394 = vrot.lane.b32.xlu0 %v6389, 126
        %v6395 = vpop.permute.xlu0 %6394
        %v6398 = vadd.f32 %v6342, %v6393
        %v6399 = vadd.f32 %v6343, %v6395
        %s6400 = sld [smem:[#allocation5 + $0x19a]]
        %v6401 = vstv %s6400
        %v6402 = vmul.f32 %v6401, %v6276
        %v6403 = vmul.f32 %v6401, %v6277
        %6406 = vrot.lane.b32.xlu0 %v6402, 126
        %v6407 = vpop.permute.xlu0 %6406
        %6408 = vrot.lane.b32.xlu0 %v6403, 126
        %v6409 = vpop.permute.xlu0 %6408
        %v6412 = vadd.f32 %v6356, %v6407
        %v6413 = vadd.f32 %v6357, %v6409
        %v6414 = vld [vmem:[%s5680 + $0x2] sm:$0xff]
        %v6415 = vld [vmem:[%s5680 + $0xa] sm:$0xff]
        %s6416 = sld [smem:[#allocation5 + $0x12f]]
        %v6417 = vstv %s6416
        %v6418 = vmul.f32 %v6417, %v6414
        %v6419 = vmul.f32 %v6417, %v6415
        %v6420 = vadd.f32 %v6370, %v6418
        %v6421 = vadd.f32 %v6371, %v6419
        %s6422 = sld [smem:[#allocation5 + $0x153]]
        %v6423 = vstv %s6422
        %v6424 = vmul.f32 %v6423, %v6414
        %v6425 = vmul.f32 %v6423, %v6415
        %v6426 = vadd.f32 %v6384, %v6424
        %v6427 = vadd.f32 %v6385, %v6425
        %s6428 = sld [smem:[#allocation5 + $0x177]]
        %v6429 = vstv %s6428
        %v6430 = vmul.f32 %v6429, %v6414
        %v6431 = vmul.f32 %v6429, %v6415
        %v6432 = vadd.f32 %v6398, %v6430
        %v6433 = vadd.f32 %v6399, %v6431
        %s6434 = sld [smem:[#allocation5 + $0x19b]]
        %v6435 = vstv %s6434
        %v6436 = vmul.f32 %v6435, %v6414
        %v6437 = vmul.f32 %v6435, %v6415
        %v6438 = vadd.f32 %v6412, %v6436
        %v6439 = vadd.f32 %v6413, %v6437
        %s6440 = sld [smem:[#allocation5 + $0x130]]
        %v6441 = vstv %s6440
        %v6442 = vmul.f32 %v6441, %v6414
        %v6443 = vmul.f32 %v6441, %v6415
        %6446 = vrot.lane.b32.xlu0 %v6442, 127
        %v6447 = vpop.permute.xlu0 %6446
        %6448 = vrot.lane.b32.xlu0 %v6443, 127
        %v6449 = vpop.permute.xlu0 %6448
        %v6452 = vadd.f32 %v6420, %v6447
        %v6453 = vadd.f32 %v6421, %v6449
        %s6454 = sld [smem:[#allocation5 + $0x154]]
        %v6455 = vstv %s6454
        %v6456 = vmul.f32 %v6455, %v6414
        %v6457 = vmul.f32 %v6455, %v6415
        %6460 = vrot.lane.b32.xlu0 %v6456, 127
        %v6461 = vpop.permute.xlu0 %6460
        %6462 = vrot.lane.b32.xlu0 %v6457, 127
        %v6463 = vpop.permute.xlu0 %6462
        %v6466 = vadd.f32 %v6426, %v6461
        %v6467 = vadd.f32 %v6427, %v6463
        %s6468 = sld [smem:[#allocation5 + $0x178]]
        %v6469 = vstv %s6468
        %v6470 = vmul.f32 %v6469, %v6414
        %v6471 = vmul.f32 %v6469, %v6415
        %6474 = vrot.lane.b32.xlu0 %v6470, 127
        %v6475 = vpop.permute.xlu0 %6474
        %6476 = vrot.lane.b32.xlu0 %v6471, 127
        %v6477 = vpop.permute.xlu0 %6476
        %v6480 = vadd.f32 %v6432, %v6475
        %v6481 = vadd.f32 %v6433, %v6477
        %s6482 = sld [smem:[#allocation5 + $0x19c]]
        %v6483 = vstv %s6482
        %v6484 = vmul.f32 %v6483, %v6414
        %v6485 = vmul.f32 %v6483, %v6415
        %6488 = vrot.lane.b32.xlu0 %v6484, 127
        %v6489 = vpop.permute.xlu0 %6488
        %6490 = vrot.lane.b32.xlu0 %v6485, 127
        %v6491 = vpop.permute.xlu0 %6490
        %v6494 = vadd.f32 %v6438, %v6489
        %v6495 = vadd.f32 %v6439, %v6491
        %s6496 = sld [smem:[#allocation5 + $0x131]]
        %v6497 = vstv %s6496
        %v6498 = vmul.f32 %v6497, %v6414
        %v6499 = vmul.f32 %v6497, %v6415
        %6502 = vrot.lane.b32.xlu0 %v6498, 126
        %v6503 = vpop.permute.xlu0 %6502
        %6504 = vrot.lane.b32.xlu0 %v6499, 126
        %v6505 = vpop.permute.xlu0 %6504
        %v6508 = vadd.f32 %v6452, %v6503
        %v6509 = vadd.f32 %v6453, %v6505
        %s6510 = sld [smem:[#allocation5 + $0x155]]
        %v6511 = vstv %s6510
        %v6512 = vmul.f32 %v6511, %v6414
        %v6513 = vmul.f32 %v6511, %v6415
        %6516 = vrot.lane.b32.xlu0 %v6512, 126
        %v6517 = vpop.permute.xlu0 %6516
        %6518 = vrot.lane.b32.xlu0 %v6513, 126
        %v6519 = vpop.permute.xlu0 %6518
        %v6522 = vadd.f32 %v6466, %v6517
        %v6523 = vadd.f32 %v6467, %v6519
        %s6524 = sld [smem:[#allocation5 + $0x179]]
        %v6525 = vstv %s6524
        %v6526 = vmul.f32 %v6525, %v6414
        %v6527 = vmul.f32 %v6525, %v6415
        %6530 = vrot.lane.b32.xlu0 %v6526, 126
        %v6531 = vpop.permute.xlu0 %6530
        %6532 = vrot.lane.b32.xlu0 %v6527, 126
        %v6533 = vpop.permute.xlu0 %6532
        %v6536 = vadd.f32 %v6480, %v6531
        %v6537 = vadd.f32 %v6481, %v6533
        %s6538 = sld [smem:[#allocation5 + $0x19d]]
        %v6539 = vstv %s6538
        %v6540 = vmul.f32 %v6539, %v6414
        %v6541 = vmul.f32 %v6539, %v6415
        %6544 = vrot.lane.b32.xlu0 %v6540, 126
        %v6545 = vpop.permute.xlu0 %6544
        %6546 = vrot.lane.b32.xlu0 %v6541, 126
        %v6547 = vpop.permute.xlu0 %6546
        %v6550 = vadd.f32 %v6494, %v6545
        %v6551 = vadd.f32 %v6495, %v6547
        %v6552 = vld [vmem:[%s5700] sm:$0xff]
        %v6553 = vld [vmem:[%s5700 + $0x8] sm:$0xff]
        %s6554 = sld [smem:[#allocation5 + $0x132]]
        %v6555 = vstv %s6554
        %v6556 = vmul.f32 %v6555, %v6552
        %v6557 = vmul.f32 %v6555, %v6553
        %v6558 = vadd.f32 %v6508, %v6556
        %v6559 = vadd.f32 %v6509, %v6557
        %s6560 = sld [smem:[#allocation5 + $0x156]]
        %v6561 = vstv %s6560
        %v6562 = vmul.f32 %v6561, %v6552
        %v6563 = vmul.f32 %v6561, %v6553
        %v6564 = vadd.f32 %v6522, %v6562
        %v6565 = vadd.f32 %v6523, %v6563
        %s6566 = sld [smem:[#allocation5 + $0x17a]]
        %v6567 = vstv %s6566
        %v6568 = vmul.f32 %v6567, %v6552
        %v6569 = vmul.f32 %v6567, %v6553
        %v6570 = vadd.f32 %v6536, %v6568
        %v6571 = vadd.f32 %v6537, %v6569
        %s6572 = sld [smem:[#allocation5 + $0x19e]]
        %v6573 = vstv %s6572
        %v6574 = vmul.f32 %v6573, %v6552
        %v6575 = vmul.f32 %v6573, %v6553
        %v6576 = vadd.f32 %v6550, %v6574
        %v6577 = vadd.f32 %v6551, %v6575
        %s6578 = sld [smem:[#allocation5 + $0x133]]
        %v6579 = vstv %s6578
        %v6580 = vmul.f32 %v6579, %v6552
        %v6581 = vmul.f32 %v6579, %v6553
        %6584 = vrot.lane.b32.xlu0 %v6580, 127
        %v6585 = vpop.permute.xlu0 %6584
        %6586 = vrot.lane.b32.xlu0 %v6581, 127
        %v6587 = vpop.permute.xlu0 %6586
        %v6590 = vadd.f32 %v6558, %v6585
        %v6591 = vadd.f32 %v6559, %v6587
        %s6592 = sld [smem:[#allocation5 + $0x157]]
        %v6593 = vstv %s6592
        %v6594 = vmul.f32 %v6593, %v6552
        %v6595 = vmul.f32 %v6593, %v6553
        %6598 = vrot.lane.b32.xlu0 %v6594, 127
        %v6599 = vpop.permute.xlu0 %6598
        %6600 = vrot.lane.b32.xlu0 %v6595, 127
        %v6601 = vpop.permute.xlu0 %6600
        %v6604 = vadd.f32 %v6564, %v6599
        %v6605 = vadd.f32 %v6565, %v6601
        %s6606 = sld [smem:[#allocation5 + $0x17b]]
        %v6607 = vstv %s6606
        %v6608 = vmul.f32 %v6607, %v6552
        %v6609 = vmul.f32 %v6607, %v6553
        %6612 = vrot.lane.b32.xlu0 %v6608, 127
        %v6613 = vpop.permute.xlu0 %6612
        %6614 = vrot.lane.b32.xlu0 %v6609, 127
        %v6615 = vpop.permute.xlu0 %6614
        %v6618 = vadd.f32 %v6570, %v6613
        %v6619 = vadd.f32 %v6571, %v6615
        %s6620 = sld [smem:[#allocation5 + $0x19f]]
        %v6621 = vstv %s6620
        %v6622 = vmul.f32 %v6621, %v6552
        %v6623 = vmul.f32 %v6621, %v6553
        %6626 = vrot.lane.b32.xlu0 %v6622, 127
        %v6627 = vpop.permute.xlu0 %6626
        %6628 = vrot.lane.b32.xlu0 %v6623, 127
        %v6629 = vpop.permute.xlu0 %6628
        %v6632 = vadd.f32 %v6576, %v6627
        %v6633 = vadd.f32 %v6577, %v6629
        %s6634 = sld [smem:[#allocation5 + $0x134]]
        %v6635 = vstv %s6634
        %v6636 = vmul.f32 %v6635, %v6552
        %v6637 = vmul.f32 %v6635, %v6553
        %6640 = vrot.lane.b32.xlu0 %v6636, 126
        %v6641 = vpop.permute.xlu0 %6640
        %6642 = vrot.lane.b32.xlu0 %v6637, 126
        %v6643 = vpop.permute.xlu0 %6642
        %v6646 = vadd.f32 %v6590, %v6641
        %v6647 = vadd.f32 %v6591, %v6643
        %s6648 = sld [smem:[#allocation5 + $0x158]]
        %v6649 = vstv %s6648
        %v6650 = vmul.f32 %v6649, %v6552
        %v6651 = vmul.f32 %v6649, %v6553
        %6654 = vrot.lane.b32.xlu0 %v6650, 126
        %v6655 = vpop.permute.xlu0 %6654
        %6656 = vrot.lane.b32.xlu0 %v6651, 126
        %v6657 = vpop.permute.xlu0 %6656
        %v6660 = vadd.f32 %v6604, %v6655
        %v6661 = vadd.f32 %v6605, %v6657
        %s6662 = sld [smem:[#allocation5 + $0x17c]]
        %v6663 = vstv %s6662
        %v6664 = vmul.f32 %v6663, %v6552
        %v6665 = vmul.f32 %v6663, %v6553
        %6668 = vrot.lane.b32.xlu0 %v6664, 126
        %v6669 = vpop.permute.xlu0 %6668
        %6670 = vrot.lane.b32.xlu0 %v6665, 126
        %v6671 = vpop.permute.xlu0 %6670
        %v6674 = vadd.f32 %v6618, %v6669
        %v6675 = vadd.f32 %v6619, %v6671
        %s6676 = sld [smem:[#allocation5 + $0x1a0]]
        %v6677 = vstv %s6676
        %v6678 = vmul.f32 %v6677, %v6552
        %v6679 = vmul.f32 %v6677, %v6553
        %6682 = vrot.lane.b32.xlu0 %v6678, 126
        %v6683 = vpop.permute.xlu0 %6682
        %6684 = vrot.lane.b32.xlu0 %v6679, 126
        %v6685 = vpop.permute.xlu0 %6684
        %v6688 = vadd.f32 %v6632, %v6683
        %v6689 = vadd.f32 %v6633, %v6685
        %v6690 = vld [vmem:[%s5700 + $0x1] sm:$0xff]
        %v6691 = vld [vmem:[%s5700 + $0x9] sm:$0xff]
        %s6692 = sld [smem:[#allocation5 + $0x135]]
        %v6693 = vstv %s6692
        %v6694 = vmul.f32 %v6693, %v6690
        %v6695 = vmul.f32 %v6693, %v6691
        %v6696 = vadd.f32 %v6646, %v6694
        %v6697 = vadd.f32 %v6647, %v6695
        %s6698 = sld [smem:[#allocation5 + $0x159]]
        %v6699 = vstv %s6698
        %v6700 = vmul.f32 %v6699, %v6690
        %v6701 = vmul.f32 %v6699, %v6691
        %v6702 = vadd.f32 %v6660, %v6700
        %v6703 = vadd.f32 %v6661, %v6701
        %s6704 = sld [smem:[#allocation5 + $0x17d]]
        %v6705 = vstv %s6704
        %v6706 = vmul.f32 %v6705, %v6690
        %v6707 = vmul.f32 %v6705, %v6691
        %v6708 = vadd.f32 %v6674, %v6706
        %v6709 = vadd.f32 %v6675, %v6707
        %s6710 = sld [smem:[#allocation5 + $0x1a1]]
        %v6711 = vstv %s6710
        %v6712 = vmul.f32 %v6711, %v6690
        %v6713 = vmul.f32 %v6711, %v6691
        %v6714 = vadd.f32 %v6688, %v6712
        %v6715 = vadd.f32 %v6689, %v6713
        %s6716 = sld [smem:[#allocation5 + $0x136]]
        %v6717 = vstv %s6716
        %v6718 = vmul.f32 %v6717, %v6690
        %v6719 = vmul.f32 %v6717, %v6691
        %6722 = vrot.lane.b32.xlu0 %v6718, 127
        %v6723 = vpop.permute.xlu0 %6722
        %6724 = vrot.lane.b32.xlu0 %v6719, 127
        %v6725 = vpop.permute.xlu0 %6724
        %v6728 = vadd.f32 %v6696, %v6723
        %v6729 = vadd.f32 %v6697, %v6725
        %s6730 = sld [smem:[#allocation5 + $0x15a]]
        %v6731 = vstv %s6730
        %v6732 = vmul.f32 %v6731, %v6690
        %v6733 = vmul.f32 %v6731, %v6691
        %6736 = vrot.lane.b32.xlu0 %v6732, 127
        %v6737 = vpop.permute.xlu0 %6736
        %6738 = vrot.lane.b32.xlu0 %v6733, 127
        %v6739 = vpop.permute.xlu0 %6738
        %v6742 = vadd.f32 %v6702, %v6737
        %v6743 = vadd.f32 %v6703, %v6739
        %s6744 = sld [smem:[#allocation5 + $0x17e]]
        %v6745 = vstv %s6744
        %v6746 = vmul.f32 %v6745, %v6690
        %v6747 = vmul.f32 %v6745, %v6691
        %6750 = vrot.lane.b32.xlu0 %v6746, 127
        %v6751 = vpop.permute.xlu0 %6750
        %6752 = vrot.lane.b32.xlu0 %v6747, 127
        %v6753 = vpop.permute.xlu0 %6752
        %v6756 = vadd.f32 %v6708, %v6751
        %v6757 = vadd.f32 %v6709, %v6753
        %s6758 = sld [smem:[#allocation5 + $0x1a2]]
        %v6759 = vstv %s6758
        %v6760 = vmul.f32 %v6759, %v6690
        %v6761 = vmul.f32 %v6759, %v6691
        %6764 = vrot.lane.b32.xlu0 %v6760, 127
        %v6765 = vpop.permute.xlu0 %6764
        %6766 = vrot.lane.b32.xlu0 %v6761, 127
        %v6767 = vpop.permute.xlu0 %6766
        %v6770 = vadd.f32 %v6714, %v6765
        %v6771 = vadd.f32 %v6715, %v6767
        %s6772 = sld [smem:[#allocation5 + $0x137]]
        %v6773 = vstv %s6772
        %v6774 = vmul.f32 %v6773, %v6690
        %v6775 = vmul.f32 %v6773, %v6691
        %6778 = vrot.lane.b32.xlu0 %v6774, 126
        %v6779 = vpop.permute.xlu0 %6778
        %6780 = vrot.lane.b32.xlu0 %v6775, 126
        %v6781 = vpop.permute.xlu0 %6780
        %v6784 = vadd.f32 %v6728, %v6779
        %v6785 = vadd.f32 %v6729, %v6781
        %s6786 = sld [smem:[#allocation5 + $0x15b]]
        %v6787 = vstv %s6786
        %v6788 = vmul.f32 %v6787, %v6690
        %v6789 = vmul.f32 %v6787, %v6691
        %6792 = vrot.lane.b32.xlu0 %v6788, 126
        %v6793 = vpop.permute.xlu0 %6792
        %6794 = vrot.lane.b32.xlu0 %v6789, 126
        %v6795 = vpop.permute.xlu0 %6794
        %v6798 = vadd.f32 %v6742, %v6793
        %v6799 = vadd.f32 %v6743, %v6795
        %s6800 = sld [smem:[#allocation5 + $0x17f]]
        %v6801 = vstv %s6800
        %v6802 = vmul.f32 %v6801, %v6690
        %v6803 = vmul.f32 %v6801, %v6691
        %6806 = vrot.lane.b32.xlu0 %v6802, 126
        %v6807 = vpop.permute.xlu0 %6806
        %6808 = vrot.lane.b32.xlu0 %v6803, 126
        %v6809 = vpop.permute.xlu0 %6808
        %v6812 = vadd.f32 %v6756, %v6807
        %v6813 = vadd.f32 %v6757, %v6809
        %s6814 = sld [smem:[#allocation5 + $0x1a3]]
        %v6815 = vstv %s6814
        %v6816 = vmul.f32 %v6815, %v6690
        %v6817 = vmul.f32 %v6815, %v6691
        %6820 = vrot.lane.b32.xlu0 %v6816, 126
        %v6821 = vpop.permute.xlu0 %6820
        %6822 = vrot.lane.b32.xlu0 %v6817, 126
        %v6823 = vpop.permute.xlu0 %6822
        %v6826 = vadd.f32 %v6770, %v6821
        %v6827 = vadd.f32 %v6771, %v6823
        %v6828 = vld [vmem:[%s5700 + $0x2] sm:$0xff]
        %v6829 = vld [vmem:[%s5700 + $0xa] sm:$0xff]
        %s6830 = sld [smem:[#allocation5 + $0x138]]
        %v6831 = vstv %s6830
        %v6832 = vmul.f32 %v6831, %v6828
        %v6833 = vmul.f32 %v6831, %v6829
        %v6834 = vadd.f32 %v6784, %v6832
        %v6835 = vadd.f32 %v6785, %v6833
        %s6836 = sld [smem:[#allocation5 + $0x15c]]
        %v6837 = vstv %s6836
        %v6838 = vmul.f32 %v6837, %v6828
        %v6839 = vmul.f32 %v6837, %v6829
        %v6840 = vadd.f32 %v6798, %v6838
        %v6841 = vadd.f32 %v6799, %v6839
        %s6842 = sld [smem:[#allocation5 + $0x180]]
        %v6843 = vstv %s6842
        %v6844 = vmul.f32 %v6843, %v6828
        %v6845 = vmul.f32 %v6843, %v6829
        %v6846 = vadd.f32 %v6812, %v6844
        %v6847 = vadd.f32 %v6813, %v6845
        %s6848 = sld [smem:[#allocation5 + $0x1a4]]
        %v6849 = vstv %s6848
        %v6850 = vmul.f32 %v6849, %v6828
        %v6851 = vmul.f32 %v6849, %v6829
        %v6852 = vadd.f32 %v6826, %v6850
        %v6853 = vadd.f32 %v6827, %v6851
        %s6854 = sld [smem:[#allocation5 + $0x139]]
        %v6855 = vstv %s6854
        %v6856 = vmul.f32 %v6855, %v6828
        %v6857 = vmul.f32 %v6855, %v6829
        %6860 = vrot.lane.b32.xlu0 %v6856, 127
        %v6861 = vpop.permute.xlu0 %6860
        %6862 = vrot.lane.b32.xlu0 %v6857, 127
        %v6863 = vpop.permute.xlu0 %6862
        %v6866 = vadd.f32 %v6834, %v6861
        %v6867 = vadd.f32 %v6835, %v6863
        %s6868 = sld [smem:[#allocation5 + $0x15d]]
        %v6869 = vstv %s6868
        %v6870 = vmul.f32 %v6869, %v6828
        %v6871 = vmul.f32 %v6869, %v6829
        %6874 = vrot.lane.b32.xlu0 %v6870, 127
        %v6875 = vpop.permute.xlu0 %6874
        %6876 = vrot.lane.b32.xlu0 %v6871, 127
        %v6877 = vpop.permute.xlu0 %6876
        %v6880 = vadd.f32 %v6840, %v6875
        %v6881 = vadd.f32 %v6841, %v6877
        %s6882 = sld [smem:[#allocation5 + $0x181]]
        %v6883 = vstv %s6882
        %v6884 = vmul.f32 %v6883, %v6828
        %v6885 = vmul.f32 %v6883, %v6829
        %6888 = vrot.lane.b32.xlu0 %v6884, 127
        %v6889 = vpop.permute.xlu0 %6888
        %6890 = vrot.lane.b32.xlu0 %v6885, 127
        %v6891 = vpop.permute.xlu0 %6890
        %v6894 = vadd.f32 %v6846, %v6889
        %v6895 = vadd.f32 %v6847, %v6891
        %s6896 = sld [smem:[#allocation5 + $0x1a5]]
        %v6897 = vstv %s6896
        %v6898 = vmul.f32 %v6897, %v6828
        %v6899 = vmul.f32 %v6897, %v6829
        %6902 = vrot.lane.b32.xlu0 %v6898, 127
        %v6903 = vpop.permute.xlu0 %6902
        %6904 = vrot.lane.b32.xlu0 %v6899, 127
        %v6905 = vpop.permute.xlu0 %6904
        %v6908 = vadd.f32 %v6852, %v6903
        %v6909 = vadd.f32 %v6853, %v6905
        %s6910 = sld [smem:[#allocation5 + $0x13a]]
        %v6911 = vstv %s6910
        %v6912 = vmul.f32 %v6911, %v6828
        %v6913 = vmul.f32 %v6911, %v6829
        %6916 = vrot.lane.b32.xlu0 %v6912, 126
        %v6917 = vpop.permute.xlu0 %6916
        %6918 = vrot.lane.b32.xlu0 %v6913, 126
        %v6919 = vpop.permute.xlu0 %6918
        %v6922 = vadd.f32 %v6866, %v6917
        %v6923 = vadd.f32 %v6867, %v6919
        %s6924 = sld [smem:[#allocation5 + $0x15e]]
        %v6925 = vstv %s6924
        %v6926 = vmul.f32 %v6925, %v6828
        %v6927 = vmul.f32 %v6925, %v6829
        %6930 = vrot.lane.b32.xlu0 %v6926, 126
        %v6931 = vpop.permute.xlu0 %6930
        %6932 = vrot.lane.b32.xlu0 %v6927, 126
        %v6933 = vpop.permute.xlu0 %6932
        %v6936 = vadd.f32 %v6880, %v6931
        %v6937 = vadd.f32 %v6881, %v6933
        %s6938 = sld [smem:[#allocation5 + $0x182]]
        %v6939 = vstv %s6938
        %v6940 = vmul.f32 %v6939, %v6828
        %v6941 = vmul.f32 %v6939, %v6829
        %6944 = vrot.lane.b32.xlu0 %v6940, 126
        %v6945 = vpop.permute.xlu0 %6944
        %6946 = vrot.lane.b32.xlu0 %v6941, 126
        %v6947 = vpop.permute.xlu0 %6946
        %v6950 = vadd.f32 %v6894, %v6945
        %v6951 = vadd.f32 %v6895, %v6947
        %s6952 = sld [smem:[#allocation5 + $0x1a6]]
        %v6953 = vstv %s6952
        %v6954 = vmul.f32 %v6953, %v6828
        %v6955 = vmul.f32 %v6953, %v6829
        %6958 = vrot.lane.b32.xlu0 %v6954, 126
        %v6959 = vpop.permute.xlu0 %6958
        %6960 = vrot.lane.b32.xlu0 %v6955, 126
        %v6961 = vpop.permute.xlu0 %6960
        %v6964 = vadd.f32 %v6908, %v6959
        %v6965 = vadd.f32 %v6909, %v6961
        %v6966 = vld [vmem:[%s5720] sm:$0xff]
        %v6967 = vld [vmem:[%s5720 + $0x8] sm:$0xff]
        %s6968 = sld [smem:[#allocation5 + $0x13b]]
        %v6969 = vstv %s6968
        %v6970 = vmul.f32 %v6969, %v6966
        %v6971 = vmul.f32 %v6969, %v6967
        %v6972 = vadd.f32 %v6922, %v6970
        %v6973 = vadd.f32 %v6923, %v6971
        %s6974 = sld [smem:[#allocation5 + $0x15f]]
        %v6975 = vstv %s6974
        %v6976 = vmul.f32 %v6975, %v6966
        %v6977 = vmul.f32 %v6975, %v6967
        %v6978 = vadd.f32 %v6936, %v6976
        %v6979 = vadd.f32 %v6937, %v6977
        %s6980 = sld [smem:[#allocation5 + $0x183]]
        %v6981 = vstv %s6980
        %v6982 = vmul.f32 %v6981, %v6966
        %v6983 = vmul.f32 %v6981, %v6967
        %v6984 = vadd.f32 %v6950, %v6982
        %v6985 = vadd.f32 %v6951, %v6983
        %s6986 = sld [smem:[#allocation5 + $0x1a7]]
        %v6987 = vstv %s6986
        %v6988 = vmul.f32 %v6987, %v6966
        %v6989 = vmul.f32 %v6987, %v6967
        %v6990 = vadd.f32 %v6964, %v6988
        %v6991 = vadd.f32 %v6965, %v6989
        %s6992 = sld [smem:[#allocation5 + $0x13c]]
        %v6993 = vstv %s6992
        %v6994 = vmul.f32 %v6993, %v6966
        %v6995 = vmul.f32 %v6993, %v6967
        %6998 = vrot.lane.b32.xlu0 %v6994, 127
        %v6999 = vpop.permute.xlu0 %6998
        %7000 = vrot.lane.b32.xlu0 %v6995, 127
        %v7001 = vpop.permute.xlu0 %7000
        %v7004 = vadd.f32 %v6972, %v6999
        %v7005 = vadd.f32 %v6973, %v7001
        %s7006 = sld [smem:[#allocation5 + $0x160]]
        %v7007 = vstv %s7006
        %v7008 = vmul.f32 %v7007, %v6966
        %v7009 = vmul.f32 %v7007, %v6967
        %7012 = vrot.lane.b32.xlu0 %v7008, 127
        %v7013 = vpop.permute.xlu0 %7012
        %7014 = vrot.lane.b32.xlu0 %v7009, 127
        %v7015 = vpop.permute.xlu0 %7014
        %v7018 = vadd.f32 %v6978, %v7013
        %v7019 = vadd.f32 %v6979, %v7015
        %s7020 = sld [smem:[#allocation5 + $0x184]]
        %v7021 = vstv %s7020
        %v7022 = vmul.f32 %v7021, %v6966
        %v7023 = vmul.f32 %v7021, %v6967
        %7026 = vrot.lane.b32.xlu0 %v7022, 127
        %v7027 = vpop.permute.xlu0 %7026
        %7028 = vrot.lane.b32.xlu0 %v7023, 127
        %v7029 = vpop.permute.xlu0 %7028
        %v7032 = vadd.f32 %v6984, %v7027
        %v7033 = vadd.f32 %v6985, %v7029
        %s7034 = sld [smem:[#allocation5 + $0x1a8]]
        %v7035 = vstv %s7034
        %v7036 = vmul.f32 %v7035, %v6966
        %v7037 = vmul.f32 %v7035, %v6967
        %7040 = vrot.lane.b32.xlu0 %v7036, 127
        %v7041 = vpop.permute.xlu0 %7040
        %7042 = vrot.lane.b32.xlu0 %v7037, 127
        %v7043 = vpop.permute.xlu0 %7042
        %v7046 = vadd.f32 %v6990, %v7041
        %v7047 = vadd.f32 %v6991, %v7043
        %s7048 = sld [smem:[#allocation5 + $0x13d]]
        %v7049 = vstv %s7048
        %v7050 = vmul.f32 %v7049, %v6966
        %v7051 = vmul.f32 %v7049, %v6967
        %7054 = vrot.lane.b32.xlu0 %v7050, 126
        %v7055 = vpop.permute.xlu0 %7054
        %7056 = vrot.lane.b32.xlu0 %v7051, 126
        %v7057 = vpop.permute.xlu0 %7056
        %v7060 = vadd.f32 %v7004, %v7055
        %v7061 = vadd.f32 %v7005, %v7057
        %s7062 = sld [smem:[#allocation5 + $0x161]]
        %v7063 = vstv %s7062
        %v7064 = vmul.f32 %v7063, %v6966
        %v7065 = vmul.f32 %v7063, %v6967
        %7068 = vrot.lane.b32.xlu0 %v7064, 126
        %v7069 = vpop.permute.xlu0 %7068
        %7070 = vrot.lane.b32.xlu0 %v7065, 126
        %v7071 = vpop.permute.xlu0 %7070
        %v7074 = vadd.f32 %v7018, %v7069
        %v7075 = vadd.f32 %v7019, %v7071
        %s7076 = sld [smem:[#allocation5 + $0x185]]
        %v7077 = vstv %s7076
        %v7078 = vmul.f32 %v7077, %v6966
        %v7079 = vmul.f32 %v7077, %v6967
        %7082 = vrot.lane.b32.xlu0 %v7078, 126
        %v7083 = vpop.permute.xlu0 %7082
        %7084 = vrot.lane.b32.xlu0 %v7079, 126
        %v7085 = vpop.permute.xlu0 %7084
        %v7088 = vadd.f32 %v7032, %v7083
        %v7089 = vadd.f32 %v7033, %v7085
        %s7090 = sld [smem:[#allocation5 + $0x1a9]]
        %v7091 = vstv %s7090
        %v7092 = vmul.f32 %v7091, %v6966
        %v7093 = vmul.f32 %v7091, %v6967
        %7096 = vrot.lane.b32.xlu0 %v7092, 126
        %v7097 = vpop.permute.xlu0 %7096
        %7098 = vrot.lane.b32.xlu0 %v7093, 126
        %v7099 = vpop.permute.xlu0 %7098
        %v7102 = vadd.f32 %v7046, %v7097
        %v7103 = vadd.f32 %v7047, %v7099
        %v7104 = vld [vmem:[%s5720 + $0x1] sm:$0xff]
        %v7105 = vld [vmem:[%s5720 + $0x9] sm:$0xff]
        %s7106 = sld [smem:[#allocation5 + $0x13e]]
        %v7107 = vstv %s7106
        %v7108 = vmul.f32 %v7107, %v7104
        %v7109 = vmul.f32 %v7107, %v7105
        %v7110 = vadd.f32 %v7060, %v7108
        %v7111 = vadd.f32 %v7061, %v7109
        %s7112 = sld [smem:[#allocation5 + $0x162]]
        %v7113 = vstv %s7112
        %v7114 = vmul.f32 %v7113, %v7104
        %v7115 = vmul.f32 %v7113, %v7105
        %v7116 = vadd.f32 %v7074, %v7114
        %v7117 = vadd.f32 %v7075, %v7115
        %s7118 = sld [smem:[#allocation5 + $0x186]]
        %v7119 = vstv %s7118
        %v7120 = vmul.f32 %v7119, %v7104
        %v7121 = vmul.f32 %v7119, %v7105
        %v7122 = vadd.f32 %v7088, %v7120
        %v7123 = vadd.f32 %v7089, %v7121
        %s7124 = sld [smem:[#allocation5 + $0x1aa]]
        %v7125 = vstv %s7124
        %v7126 = vmul.f32 %v7125, %v7104
        %v7127 = vmul.f32 %v7125, %v7105
        %v7128 = vadd.f32 %v7102, %v7126
        %v7129 = vadd.f32 %v7103, %v7127
        %s7130 = sld [smem:[#allocation5 + $0x13f]]
        %v7131 = vstv %s7130
        %v7132 = vmul.f32 %v7131, %v7104
        %v7133 = vmul.f32 %v7131, %v7105
        %7136 = vrot.lane.b32.xlu0 %v7132, 127
        %v7137 = vpop.permute.xlu0 %7136
        %7138 = vrot.lane.b32.xlu0 %v7133, 127
        %v7139 = vpop.permute.xlu0 %7138
        %v7142 = vadd.f32 %v7110, %v7137
        %v7143 = vadd.f32 %v7111, %v7139
        %s7144 = sld [smem:[#allocation5 + $0x163]]
        %v7145 = vstv %s7144
        %v7146 = vmul.f32 %v7145, %v7104
        %v7147 = vmul.f32 %v7145, %v7105
        %7150 = vrot.lane.b32.xlu0 %v7146, 127
        %v7151 = vpop.permute.xlu0 %7150
        %7152 = vrot.lane.b32.xlu0 %v7147, 127
        %v7153 = vpop.permute.xlu0 %7152
        %v7156 = vadd.f32 %v7116, %v7151
        %v7157 = vadd.f32 %v7117, %v7153
        %s7158 = sld [smem:[#allocation5 + $0x187]]
        %v7159 = vstv %s7158
        %v7160 = vmul.f32 %v7159, %v7104
        %v7161 = vmul.f32 %v7159, %v7105
        %7164 = vrot.lane.b32.xlu0 %v7160, 127
        %v7165 = vpop.permute.xlu0 %7164
        %7166 = vrot.lane.b32.xlu0 %v7161, 127
        %v7167 = vpop.permute.xlu0 %7166
        %v7170 = vadd.f32 %v7122, %v7165
        %v7171 = vadd.f32 %v7123, %v7167
        %s7172 = sld [smem:[#allocation5 + $0x1ab]]
        %v7173 = vstv %s7172
        %v7174 = vmul.f32 %v7173, %v7104
        %v7175 = vmul.f32 %v7173, %v7105
        %7178 = vrot.lane.b32.xlu0 %v7174, 127
        %v7179 = vpop.permute.xlu0 %7178
        %7180 = vrot.lane.b32.xlu0 %v7175, 127
        %v7181 = vpop.permute.xlu0 %7180
        %v7184 = vadd.f32 %v7128, %v7179
        %v7185 = vadd.f32 %v7129, %v7181
        %s7186 = sld [smem:[#allocation5 + $0x140]]
        %v7187 = vstv %s7186
        %v7188 = vmul.f32 %v7187, %v7104
        %v7189 = vmul.f32 %v7187, %v7105
        %7192 = vrot.lane.b32.xlu0 %v7188, 126
        %v7193 = vpop.permute.xlu0 %7192
        %7194 = vrot.lane.b32.xlu0 %v7189, 126
        %v7195 = vpop.permute.xlu0 %7194
        %v7198 = vadd.f32 %v7142, %v7193
        %v7199 = vadd.f32 %v7143, %v7195
        %s7200 = sld [smem:[#allocation5 + $0x164]]
        %v7201 = vstv %s7200
        %v7202 = vmul.f32 %v7201, %v7104
        %v7203 = vmul.f32 %v7201, %v7105
        %7206 = vrot.lane.b32.xlu0 %v7202, 126
        %v7207 = vpop.permute.xlu0 %7206
        %7208 = vrot.lane.b32.xlu0 %v7203, 126
        %v7209 = vpop.permute.xlu0 %7208
        %v7212 = vadd.f32 %v7156, %v7207
        %v7213 = vadd.f32 %v7157, %v7209
        %s7214 = sld [smem:[#allocation5 + $0x188]]
        %v7215 = vstv %s7214
        %v7216 = vmul.f32 %v7215, %v7104
        %v7217 = vmul.f32 %v7215, %v7105
        %7220 = vrot.lane.b32.xlu0 %v7216, 126
        %v7221 = vpop.permute.xlu0 %7220
        %7222 = vrot.lane.b32.xlu0 %v7217, 126
        %v7223 = vpop.permute.xlu0 %7222
        %v7226 = vadd.f32 %v7170, %v7221
        %v7227 = vadd.f32 %v7171, %v7223
        %s7228 = sld [smem:[#allocation5 + $0x1ac]]
        %v7229 = vstv %s7228
        %v7230 = vmul.f32 %v7229, %v7104
        %v7231 = vmul.f32 %v7229, %v7105
        %7234 = vrot.lane.b32.xlu0 %v7230, 126
        %v7235 = vpop.permute.xlu0 %7234
        %7236 = vrot.lane.b32.xlu0 %v7231, 126
        %v7237 = vpop.permute.xlu0 %7236
        %v7240 = vadd.f32 %v7184, %v7235
        %v7241 = vadd.f32 %v7185, %v7237
        %v7242 = vld [vmem:[%s5720 + $0x2] sm:$0xff]
        %v7243 = vld [vmem:[%s5720 + $0xa] sm:$0xff]
        %s7244 = sld [smem:[#allocation5 + $0x141]]
        %v7245 = vstv %s7244
        %v7246 = vmul.f32 %v7245, %v7242
        %v7247 = vmul.f32 %v7245, %v7243
        %v7248 = vadd.f32 %v7198, %v7246
        %v7249 = vadd.f32 %v7199, %v7247
        %s7250 = sld [smem:[#allocation5 + $0x165]]
        %v7251 = vstv %s7250
        %v7252 = vmul.f32 %v7251, %v7242
        %v7253 = vmul.f32 %v7251, %v7243
        %v7254 = vadd.f32 %v7212, %v7252
        %v7255 = vadd.f32 %v7213, %v7253
        %s7256 = sld [smem:[#allocation5 + $0x189]]
        %v7257 = vstv %s7256
        %v7258 = vmul.f32 %v7257, %v7242
        %v7259 = vmul.f32 %v7257, %v7243
        %v7260 = vadd.f32 %v7226, %v7258
        %v7261 = vadd.f32 %v7227, %v7259
        %s7262 = sld [smem:[#allocation5 + $0x1ad]]
        %v7263 = vstv %s7262
        %v7264 = vmul.f32 %v7263, %v7242
        %v7265 = vmul.f32 %v7263, %v7243
        %v7266 = vadd.f32 %v7240, %v7264
        %v7267 = vadd.f32 %v7241, %v7265
        %s7268 = sld [smem:[#allocation5 + $0x142]]
        %v7269 = vstv %s7268
        %v7270 = vmul.f32 %v7269, %v7242
        %v7271 = vmul.f32 %v7269, %v7243
        %7274 = vrot.lane.b32.xlu0 %v7270, 127
        %v7275 = vpop.permute.xlu0 %7274
        %7276 = vrot.lane.b32.xlu0 %v7271, 127
        %v7277 = vpop.permute.xlu0 %7276
        %v7280 = vadd.f32 %v7248, %v7275
        %v7281 = vadd.f32 %v7249, %v7277
        %s7282 = sld [smem:[#allocation5 + $0x166]]
        %v7283 = vstv %s7282
        %v7284 = vmul.f32 %v7283, %v7242
        %v7285 = vmul.f32 %v7283, %v7243
        %7288 = vrot.lane.b32.xlu0 %v7284, 127
        %v7289 = vpop.permute.xlu0 %7288
        %7290 = vrot.lane.b32.xlu0 %v7285, 127
        %v7291 = vpop.permute.xlu0 %7290
        %v7294 = vadd.f32 %v7254, %v7289
        %v7295 = vadd.f32 %v7255, %v7291
        %s7296 = sld [smem:[#allocation5 + $0x18a]]
        %v7297 = vstv %s7296
        %v7298 = vmul.f32 %v7297, %v7242
        %v7299 = vmul.f32 %v7297, %v7243
        %7302 = vrot.lane.b32.xlu0 %v7298, 127
        %v7303 = vpop.permute.xlu0 %7302
        %7304 = vrot.lane.b32.xlu0 %v7299, 127
        %v7305 = vpop.permute.xlu0 %7304
        %v7308 = vadd.f32 %v7260, %v7303
        %v7309 = vadd.f32 %v7261, %v7305
        %s7310 = sld [smem:[#allocation5 + $0x1ae]]
        %v7311 = vstv %s7310
        %v7312 = vmul.f32 %v7311, %v7242
        %v7313 = vmul.f32 %v7311, %v7243
        %7316 = vrot.lane.b32.xlu0 %v7312, 127
        %v7317 = vpop.permute.xlu0 %7316
        %7318 = vrot.lane.b32.xlu0 %v7313, 127
        %v7319 = vpop.permute.xlu0 %7318
        %v7322 = vadd.f32 %v7266, %v7317
        %v7323 = vadd.f32 %v7267, %v7319
        %s7324 = sld [smem:[#allocation5 + $0x143]]
        %v7325 = vstv %s7324
        %v7326 = vmul.f32 %v7325, %v7242
        %v7327 = vmul.f32 %v7325, %v7243
        %7330 = vrot.lane.b32.xlu0 %v7326, 126
        %v7331 = vpop.permute.xlu0 %7330
        %7332 = vrot.lane.b32.xlu0 %v7327, 126
        %v7333 = vpop.permute.xlu0 %7332
        %v7336 = vadd.f32 %v7280, %v7331
        %v7337 = vadd.f32 %v7281, %v7333
        %s7338 = sld [smem:[#allocation5 + $0x167]]
        %v7339 = vstv %s7338
        %v7340 = vmul.f32 %v7339, %v7242
        %v7341 = vmul.f32 %v7339, %v7243
        %7344 = vrot.lane.b32.xlu0 %v7340, 126
        %v7345 = vpop.permute.xlu0 %7344
        %7346 = vrot.lane.b32.xlu0 %v7341, 126
        %v7347 = vpop.permute.xlu0 %7346
        %v7350 = vadd.f32 %v7294, %v7345
        %v7351 = vadd.f32 %v7295, %v7347
        %s7352 = sld [smem:[#allocation5 + $0x18b]]
        %v7353 = vstv %s7352
        %v7354 = vmul.f32 %v7353, %v7242
        %v7355 = vmul.f32 %v7353, %v7243
        %7358 = vrot.lane.b32.xlu0 %v7354, 126
        %v7359 = vpop.permute.xlu0 %7358
        %7360 = vrot.lane.b32.xlu0 %v7355, 126
        %v7361 = vpop.permute.xlu0 %7360
        %v7364 = vadd.f32 %v7308, %v7359
        %v7365 = vadd.f32 %v7309, %v7361
        %s7366 = sld [smem:[#allocation5 + $0x1af]]
        %v7367 = vstv %s7366
        %v7368 = vmul.f32 %v7367, %v7242
        %v7369 = vmul.f32 %v7367, %v7243
        %7372 = vrot.lane.b32.xlu0 %v7368, 126
        %v7373 = vpop.permute.xlu0 %7372
        %7374 = vrot.lane.b32.xlu0 %v7369, 126
        %v7375 = vpop.permute.xlu0 %7374
        %v7378 = vadd.f32 %v7322, %v7373
        %v7379 = vadd.f32 %v7323, %v7375
        %s7380 = sld [smem:[#allocation5 + $0x1b8]]
        %v7381 = vstv %s7380
        %v7382 = vmul.f32 %v7336, %v7381
        %v7383 = vmul.f32 %v7337, %v7381
        %s7384 = sld [smem:[#allocation5 + $0x1bc]]
        %v7385 = vstv %s7384
        %v7386 = vadd.f32 %v7382, %v7385
        %v7387 = vadd.f32 %v7383, %v7385
        %v7388 = vmax.f32 %v7386, 0.0
        %v7389 = vmax.f32 %v7387, 0.0
        %vm7390 = vcmask 130048
        %7391 = vst.msk [vmem:[%s212] sm:$0xff] %vm7390, %v7388
        %7392 = vst.msk [vmem:[%s212 + $0x8] sm:$0xff] %vm7390, %v7389
        %s7393 = sld [smem:[#allocation5 + $0x1b9]]
        %v7394 = vstv %s7393
        %v7395 = vmul.f32 %v7350, %v7394
        %v7396 = vmul.f32 %v7351, %v7394
        %s7397 = sld [smem:[#allocation5 + $0x1bd]]
        %v7398 = vstv %s7397
        %v7399 = vadd.f32 %v7395, %v7398
        %v7400 = vadd.f32 %v7396, %v7398
        %v7401 = vmax.f32 %v7399, 0.0
        %v7402 = vmax.f32 %v7400, 0.0
        %s7403 = scalar_lea.vmem %s212, 16 [#allocation6]
        %7404 = vst.msk [vmem:[%s7403] sm:$0xff] %vm7390, %v7401
        %7405 = vst.msk [vmem:[%s7403 + $0x8] sm:$0xff] %vm7390, %v7402
        %s7406 = sld [smem:[#allocation5 + $0x1ba]]
        %v7407 = vstv %s7406
        %v7408 = vmul.f32 %v7364, %v7407
        %v7409 = vmul.f32 %v7365, %v7407
        %s7410 = sld [smem:[#allocation5 + $0x1be]]
        %v7411 = vstv %s7410
        %v7412 = vadd.f32 %v7408, %v7411
        %v7413 = vadd.f32 %v7409, %v7411
        %v7414 = vmax.f32 %v7412, 0.0
        %v7415 = vmax.f32 %v7413, 0.0
        %s7416 = scalar_lea.vmem %s212, 32 [#allocation6]
        %7417 = vst.msk [vmem:[%s7416] sm:$0xff] %vm7390, %v7414
        %7418 = vst.msk [vmem:[%s7416 + $0x8] sm:$0xff] %vm7390, %v7415
        %s7419 = sld [smem:[#allocation5 + $0x1bb]]
        %v7420 = vstv %s7419
        %v7421 = vmul.f32 %v7378, %v7420
        %v7422 = vmul.f32 %v7379, %v7420
        %s7423 = sld [smem:[#allocation5 + $0x1bf]]
        %v7424 = vstv %s7423
        %v7425 = vadd.f32 %v7421, %v7424
        %v7426 = vadd.f32 %v7422, %v7424
        %v7427 = vmax.f32 %v7425, 0.0
        %v7428 = vmax.f32 %v7426, 0.0
        %s7429 = scalar_lea.vmem %s212, 48 [#allocation6]
        %7430 = vst.msk [vmem:[%s7429] sm:$0xff] %vm7390, %v7427
        %7431 = vst.msk [vmem:[%s7429 + $0x8] sm:$0xff] %vm7390, %v7428
        %s7432 = sand.u32 %s127, 1
        %s7433 = scalar_lea.sflag [#allocation7], %s7432
        %s7434 = sand.u32 %s127, 1
        %s7435 = smul.addr %s7434, 64
        %s7436 = scalar_lea.vmem [#allocation6], %s7435
        // Predicated region
        $region37: #{tpu_custom_call.1} parent=35 // pred_check
          %p7437 = pneg %p137
        $region38: #{tpu_custom_call.1} parent=35 // pred_check_branch
          %7439 = sbr.rel (%p7437) target = $region40
        $region39: #{tpu_custom_call.1} parent=35 // pred_region
          %s7441 = ssub.s32 1024, 1024
          %7442 = vsyncadd %s7433, %s7441
          %s7443 = smul.addr %s25, 8
          %s7444 = smul.addr %s7443, 128
          %s7445 = scalar_lea.hbm %s5, %s7444
          %s7446 = sshll.u32 %s7436, 4
          %s7447 = int_to_ptr.vmem [resolvable:$true] %s7446
          %7452 = dma.vmem_to_hbm [thread:$0]  %s7447, 1024, %s7445, %s7433, 128, 128, 8
        $region40: #{tpu_custom_call.1} parent=35 // pred_fallthru
          _
      $region36: #{tpu_custom_call.1} parent=5 // pred_fallthru
        _
      %p7453 = scmp.le.s32.totalorder 2, %s20
      // Predicated region
      $region41: #{tpu_custom_call.1} parent=5 // pred_check
        %p7454 = pneg %p7453
      $region42: #{tpu_custom_call.1} parent=5 // pred_check_branch
        %7456 = sbr.rel (%p7454) target = $region44
      $region43: #{tpu_custom_call.1} parent=5 // pred_region
        %s7457 = ssub.s32 %s20, 2
        // Predicated region
        $region45: #{tpu_custom_call.1} parent=43 // pred_check
          %p7458 = pneg %p143
        $region46: #{tpu_custom_call.1} parent=43 // pred_check_branch
          %7460 = sbr.rel (%p7458) target = $region48
        $region47: #{tpu_custom_call.1} parent=43 // pred_region
          %s7461 = sand.u32 %s128, 1
          %s7462 = scalar_lea.sflag [#allocation7], %s7461
          %s7463 = sand.u32 %s128, 1
          %s7464 = smul.addr %s7463, 64
          %s7465 = scalar_lea.vmem [#allocation6], %s7464
          %7466 = dma.done %s7462, 1024
        $region48: #{tpu_custom_call.1} parent=43 // pred_fallthru
          _
      $region44: #{tpu_custom_call.1} parent=5 // pred_fallthru
        _
    $region6: #{tpu_custom_call.1} parent=1 // loop_footer
      %s24 = sadd.s32 1, %s20
    $region7: #{tpu_custom_call.1} parent=1 // loop_footer_branch
      %19 = sbr.rel target = $region3
    $region8: #{tpu_custom_call.1} parent=1 // loop_exit
      _
    %7467 = vsyncpa [#allocation7], 1
    %s7468 = scalar_lea.sflag [#allocation7], 1
    %7469 = vsyncpa %s7468, 1

</llo_original>
